<compile_context>
chip_gen: v7x
topology: tpu7x:2x2x1
jax: 0.10.0
libtpu: 0.0.40
codegen_flags: <defaults>
</compile_context>

<pallas_src>
import jax
import jax.numpy as jnp
from jax import lax
from jax.experimental import pallas as pl
from jax.experimental.pallas import tpu as pltpu


# bf16 matmul operands are MXU-native on v5e/v6e/v7x; gate math/accumulation
# stay f32.  Set to jnp.float32 to reproduce the PyTorch f32 reference tightly.
MATMUL_DTYPE = jnp.bfloat16
# Inter-layer activation storage (kernel output stream).  bf16 halves each
# layer's HBM write and the next layer's read; the public API returns f32.
OUT_DTYPE = jnp.bfloat16 if MATMUL_DTYPE == jnp.bfloat16 else jnp.float32

_LANE = 128                                                # hidden lane pad
_SUBLANE = 16 if jnp.dtype(OUT_DTYPE).itemsize < 4 else 8  # dilated-batch pad


def _round_up(x, m):
    return -(-x // m) * m


# ---------------------------------------------------------------------------
# Hardware detection (best effort; every probe has a safe fallback).
# ---------------------------------------------------------------------------
def _device_kind():
    try:
        return jax.devices()[0].device_kind.lower()
    except Exception:
        return ""


def _vmem_capacity_bytes(kind):
    try:
        v = int(getattr(pltpu.get_tpu_info(), "vmem_capacity_bytes", 0))
        if v > 0:
            return v
    except Exception:
        pass
    if "v7" in kind:
        return 64 << 20
    if "v5" in kind or "v6" in kind:
        return 128 << 20
    return 64 << 20                       # conservative default


def make_hw_config():
    kind = _device_kind()
    num_tc = 2 if "v7" in kind else 1     # v7x: 2 TensorCores; v5e/v6e: 1
    tt_target = 8 if "v7" in kind else 16  # time steps per grid step target
    vmem_cap = _vmem_capacity_bytes(kind)
    # Leave headroom for Mosaic internal scratch on top of our own streams.
    vmem_budget = min(int(vmem_cap * 0.5), 80 << 20)
    return {"num_tc": num_tc, "tt_target": tt_target,
            "vmem_cap": vmem_cap, "vmem_budget": vmem_budget}


def _layer_vmem_bytes(block_t, block_b, dp, hp, x_bytes, out_bytes, w_bytes,
                      weight_bufs):
    x_stream = 2 * block_t * block_b * dp * x_bytes          # double-buffered
    out_stream = 2 * block_t * block_b * hp * out_bytes      # double-buffered
    gi_scratch = block_t * block_b * 3 * hp * 4
    h_scratch = block_b * hp * 4
    weights = weight_bufs * ((dp * 3 * hp + hp * 3 * hp) * w_bytes
                             + (3 * hp + hp) * 4)
    return x_stream + out_stream + gi_scratch + h_scratch + weights


# ---------------------------------------------------------------------------
# Pallas kernel.  PyTorch nn.GRU semantics (gate order r, z, n):
#   r = sigmoid(gi_r + h W_hr^T)           gi_r = x W_ir^T + b_ir + b_hr
#   z = sigmoid(gi_z + h W_hz^T)           gi_z = x W_iz^T + b_iz + b_hz
#   n = tanh   (gi_n + r*(h W_hn^T + b_hn))gi_n = x W_in^T + b_in
#   h' = (1 - z) * n + z * h
# ---------------------------------------------------------------------------
def _dilated_gru_kernel(x_ref, w_i_ref, w_h_ref, b_i_ref, b_hn_ref, out_ref,
                        h_scratch, gi_scratch):
    """One (batch-block, time-block) tile.

    x_ref     : (TT, BB, Dp)       dilated inputs (layer activation dtype)
    w_i_ref   : (Dp, 3*Hp)         fused input weights  [W_ir^T|W_iz^T|W_in^T]
    w_h_ref   : (Hp, 3*Hp)         fused recurrent weights
    b_i_ref   : (1, 3*Hp)          fused input biases   [b_ir+b_hr|b_iz+b_hz|b_in]
    b_hn_ref  : (1, Hp)            candidate-gate hidden bias
    out_ref   : (TT, BB, Hp)       hidden state at every step (OUT_DTYPE)
    h_scratch : (BB, Hp) f32       hidden state carried across time blocks
    gi_scratch: (TT*BB, 3*Hp) f32  per-tile input projection
    """
    t_blk = pl.program_id(1)

    @pl.when(t_blk == 0)
    def _():
        h_scratch[...] = jnp.zeros_like(h_scratch)

    tt, bb, dp = x_ref.shape
    hp = h_scratch.shape[-1]
    mm_dtype = w_h_ref.dtype

    # Input projection for the whole tile: ONE batched MXU matmul, off the
    # serial h-dependency chain (amortized over block_t*block_b rows).
    x_flat = x_ref[...].reshape(tt * bb, dp).astype(mm_dtype)
    gi_scratch[...] = (
        jnp.dot(x_flat, w_i_ref[...], preferred_element_type=jnp.float32)
        + b_i_ref[...])

    w_h = w_h_ref[...]            # VMEM-resident fused recurrent weights
    b_hn = b_hn_ref[...]          # (1, Hp); broadcasts inside the add

    def step(i, h):
        base = pl.multiple_of(i * bb, bb)
        gi = gi_scratch[pl.ds(base, bb), :]                       # (BB, 3*Hp)
        gh = jnp.dot(h.astype(mm_dtype), w_h,
                     preferred_element_type=jnp.float32)          # (BB, 3*Hp)
        r = jax.nn.sigmoid(gi[:, 0:hp] + gh[:, 0:hp])
        z = jax.nn.sigmoid(gi[:, hp:2 * hp] + gh[:, hp:2 * hp])
        n = jnp.tanh(gi[:, 2 * hp:] + r * (gh[:, 2 * hp:] + b_hn))
        h_new = (1.0 - z) * n + z * h
        out_ref[i] = h_new.astype(out_ref.dtype)
        return h_new

    # Short blocks: fully unroll (LLO scheduler visibility).  Longer blocks:
    # rolled loop to cap vreg pressure (steps are serially dependent anyway).
    h_scratch[...] = lax.fori_loop(0, tt, step, h_scratch[...],
                                   unroll=(tt <= 8))


def dilated_gru_pallas(x, p, *, block_t, block_b, vmem_limit_bytes,
                       single_buffer_weights):
    """x: (S_pad, B_pad, Dp) dilated/padded inputs -> (S_pad, B_pad, Hp)."""
    s_pad, b_pad, dp = x.shape
    hp = p["hp"]
    grid = (b_pad // block_b, s_pad // block_t)

    resident_kwargs = {}
    if single_buffer_weights:
        # Constant-index operands: one VMEM buffer instead of the default two
        # (frees VMEM for a larger time block at big Hp).
        resident_kwargs["pipeline_mode"] = pl.Buffered(1)

    def resident(shape):
        nd = len(shape)
        return pl.BlockSpec(shape, lambda b, t: (0,) * nd, **resident_kwargs)

    return pl.pallas_call(
        _dilated_gru_kernel,
        out_shape=jax.ShapeDtypeStruct((s_pad, b_pad, hp), OUT_DTYPE),
        grid_spec=pltpu.PrefetchScalarGridSpec(
            num_scalar_prefetch=0,
            grid=grid,
            in_specs=[
                pl.BlockSpec((block_t, block_b, dp), lambda b, t: (t, b, 0)),
                resident((dp, 3 * hp)),        # w_i
                resident((hp, 3 * hp)),        # w_h
                resident((1, 3 * hp)),         # b_i
                resident((1, hp)),             # b_hn
            ],
            out_specs=pl.BlockSpec((block_t, block_b, hp),
                                   lambda b, t: (t, b, 0)),
            scratch_shapes=[
                pltpu.VMEM((block_b, hp), jnp.float32),            # h carry
                pltpu.VMEM((block_t * block_b, 3 * hp), jnp.float32),  # gi
            ]),
        compiler_params=pltpu.CompilerParams(
            # Batch blocks are independent (second TensorCore on v7x); the
            # time axis carries the hidden state: keep it last & "arbitrary".
            dimension_semantics=("parallel", "arbitrary"),
            vmem_limit_bytes=int(vmem_limit_bytes)),
    )(x, p["w_i"], p["w_h"], p["b_i"], p["b_hn"])


# ---------------------------------------------------------------------------
# DRNN glue (padding / dilation reshapes) -- mirrors the PyTorch module.
# ---------------------------------------------------------------------------
def drnn_layer(x, p, rate, hw, single_buffer_weights):
    """One dilated-GRU layer; x: (T, B, D) time-major -> (T, B, h)."""
    T, B, D = x.shape
    h, hp, dp = p["h"], p["hp"], p["dp"]

    # _pad_inputs + _prepare_inputs: pad T to a multiple of `rate`, then
    # cat([x[j::rate] for j in range(rate)], dim=1) is exactly a reshape.
    s = -(-T // rate)
    xpad = jnp.pad(x, ((0, s * rate - T), (0, 0), (0, 0)))
    bd = rate * B
    dilated = xpad.reshape(s, bd, D)

    # Pad dilated batch to a sublane multiple.  Split it across two parallel
    # grid blocks only on a 2-TensorCore chip (v7x); single-TC v5e/v6e keep
    # one block (fewer grid steps, fuller MXU rows).
    b_pad = _round_up(bd, _SUBLANE)
    if hw["num_tc"] >= 2 and b_pad % (2 * _SUBLANE) == 0:
        block_b = b_pad // 2
    else:
        block_b = b_pad

    # Per-generation VMEM budgeting: largest time block (up to the target)
    # whose double-buffered streams + scratch + weights fit the budget.
    x_bytes = jnp.dtype(x.dtype).itemsize
    out_bytes = jnp.dtype(OUT_DTYPE).itemsize
    w_bytes = jnp.dtype(MATMUL_DTYPE).itemsize
    weight_bufs = 1 if single_buffer_weights else 2
    block_t = max(1, min(hw["tt_target"], s))
    while block_t > 1 and _layer_vmem_bytes(
            block_t, block_b, dp, hp, x_bytes, out_bytes, w_bytes,
            weight_bufs) > hw["vmem_budget"]:
        block_t = max(1, block_t // 2)
    need = _layer_vmem_bytes(block_t, block_b, dp, hp, x_bytes, out_bytes,
                             w_bytes, weight_bufs)
    vmem_limit = int(min(max(need + (need >> 2) + (2 << 20), 32 << 20),
                         int(hw["vmem_cap"] * 0.9)))

    s_pad = _round_up(s, block_t)
    xin = jnp.pad(dilated,
                  ((0, s_pad - s), (0, b_pad - bd), (0, dp - D)))

    out = dilated_gru_pallas(xin, p, block_t=block_t, block_b=block_b,
                             vmem_limit_bytes=vmem_limit,
                             single_buffer_weights=single_buffer_weights)

    # _split_outputs (interleave) == reshape; _unpad_outputs == slice; also
    # drop the lane/sublane/time/feature padding introduced above.
    out = out[:s, :bd, :h]
    return out.reshape(s * rate, B, h)[:T]


def drnn_forward(x, params_list, dilations=(1, 4, 16), *,
                 single_buffer_weights=True, hw=None):
    """x: (batch, seq, n_input) -> (inputs, outputs) like the PyTorch module."""
    # TODO(synk): optional `hidden=` initial-state argument of DRNN.forward is
    # not implemented (the default hidden=None / zero-init path is).
    if hw is None:
        hw = make_hw_config()
    x = jnp.transpose(x, (1, 0, 2))            # batch-first -> time-major
    outputs = []
    for p, rate in zip(params_list, dilations):
        x = drnn_layer(x, p, rate, hw, single_buffer_weights)
        outputs.append(x[-1].astype(jnp.float32))   # last step, (batch, H_i)
    return jnp.transpose(x, (1, 0, 2)).astype(jnp.float32), outputs


# ---------------------------------------------------------------------------
# Parameter init -- same shapes/dist as torch.nn.GRU default, repacked:
#   w_i : (Dp, 3*Hp) = [W_ir^T | W_iz^T | W_in^T]   (lane- & row-padded)
#   w_h : (Hp, 3*Hp) = [W_hr^T | W_hz^T | W_hn^T]
#   b_i : (1, 3*Hp)  = [b_ir+b_hr | b_iz+b_hz | b_in]
#   b_hn: (1, Hp)
# Padded hidden lanes see zero weights/biases -> they stay exactly 0 (h0=0)
# and never influence real units; they are sliced off after the kernel.
# ---------------------------------------------------------------------------
def init_gru_params(key, d_in, h, matmul_dtype=MATMUL_DTYPE):
    bound = 1.0 / float(h) ** 0.5
    ks = jax.random.split(key, 4)
    w_ih = jax.random.uniform(ks[0], (3 * h, d_in), jnp.float32, -bound, bound)
    w_hh = jax.random.uniform(ks[1], (3 * h, h), jnp.float32, -bound, bound)
    b_ih = jax.random.uniform(ks[2], (3 * h,), jnp.float32, -bound, bound)
    b_hh = jax.random.uniform(ks[3], (3 * h,), jnp.float32, -bound, bound)

    hp = _round_up(h, _LANE)
    dp = _round_up(d_in, _SUBLANE)     # pad contraction dim of the projection

    def pack_w(w3, d, d_pad):          # (3h, d) torch layout -> (d_pad, 3*hp)
        out = jnp.zeros((d_pad, 3 * hp), jnp.float32)
        for g in range(3):
            out = out.at[:d, g * hp:g * hp + h].set(w3[g * h:(g + 1) * h].T)
        return out

    w_i = pack_w(w_ih, d_in, dp)
    w_h = pack_w(w_hh, h, hp)

    b_i = jnp.zeros((1, 3 * hp), jnp.float32)
    b_i = b_i.at[0, 0 * hp:0 * hp + h].set(b_ih[0 * h:1 * h] + b_hh[0 * h:1 * h])
    b_i = b_i.at[0, 1 * hp:1 * hp + h].set(b_ih[1 * h:2 * h] + b_hh[1 * h:2 * h])
    b_i = b_i.at[0, 2 * hp:2 * hp + h].set(b_ih[2 * h:3 * h])
    b_hn = jnp.zeros((1, hp), jnp.float32).at[0, :h].set(b_hh[2 * h:3 * h])

    return {
        "w_i": w_i.astype(matmul_dtype),
        "w_h": w_h.astype(matmul_dtype),
        "b_i": b_i,                        # stays f32 (added to f32 acc)
        "b_hn": b_hn,                      # stays f32
        "h": h, "hp": hp, "dp": dp,
        "_raw": (w_ih, w_hh, b_ih, b_hh),  # for the pure-JAX reference only
    }


# ---------------------------------------------------------------------------
# Pure-JAX reference (literal nn.GRU math on raw torch-layout f32 weights).
# ---------------------------------------------------------------------------
def _gru_cell_ref(x_seq, raw):
    w_ih, w_hh, b_ih, b_hh = raw
    h_dim = w_hh.shape[1]

    def step(hh, xx):
        gi = xx @ w_ih.T + b_ih
        gh = hh @ w_hh.T + b_hh
        i_r, i_z, i_n = jnp.split(gi, 3, axis=-1)
        h_r, h_z, h_n = jnp.split(gh, 3, axis=-1)
        r = jax.nn.sigmoid(i_r + h_r)
        z = jax.nn.sigmoid(i_z + h_z)
        n = jnp.tanh(i_n + r * h_n)
        h_new = (1.0 - z) * n + z * hh
        return h_new, h_new

    h0 = jnp.zeros((x_seq.shape[1], h_dim), jnp.float32)
    _, outs = lax.scan(step, h0, x_seq)
    return outs


def drnn_forward_ref(x, params_list, dilations=(1, 4, 16)):
    x = jnp.transpose(x, (1, 0, 2))
    outputs = []
    for p, rate in zip(params_list, dilations):
        T, B, D = x.shape
        s = -(-T // rate)
        xp = jnp.pad(x, ((0, s * rate - T), (0, 0), (0, 0)))
        out = _gru_cell_ref(xp.reshape(s, rate * B, D), p["_raw"])
        x = out.reshape(s * rate, B, out.shape[-1])[:T]
        outputs.append(x[-1])
    return jnp.transpose(x, (1, 0, 2)), outputs


if __name__ == "__main__":
    key = jax.random.PRNGKey(0)

    batch, seq, n_input = 2, 8, 4
    n_hidden = [32, 32, 32]           # one hidden size per DRNN layer
    dilations = (1, 4, 16)

    k_x, k_p = jax.random.split(key)
    x = jax.random.normal(k_x, (batch, seq, n_input), jnp.float32)

    params_list = []
    d_prev = n_input
    for i, h in enumerate(n_hidden):
        params_list.append(init_gru_params(jax.random.fold_in(k_p, i), d_prev, h))
        d_prev = h

    cfg = make_hw_config()

    def build(single_buffer_weights):
        return jax.jit(lambda xx: drnn_forward(
            xx, params_list, dilations,
            single_buffer_weights=single_buffer_weights, hw=cfg))

    try:
        fwd = build(True)
        inputs_out, layer_last_outputs = fwd(x)
        jax.block_until_ready(inputs_out)
    except Exception:
        # pl.Buffered(1) single-buffering of resident weights is purely a VMEM
        # optimization; fall back to default double-buffering if the installed
        # JAX/Mosaic rejects it.
        fwd = build(False)
        inputs_out, layer_last_outputs = fwd(x)
        jax.block_until_ready(inputs_out)
    for o in layer_last_outputs:
        jax.block_until_ready(o)

    assert inputs_out.shape == (batch, seq, n_hidden[-1])
    assert inputs_out.dtype == jnp.float32
    assert all(o.shape == (batch, hh)
               for o, hh in zip(layer_last_outputs, n_hidden))

    # Correctness check against a pure-JAX f32 reference of the whole forward
    # pass.  Tolerance covers bf16 weights + bf16 inter-layer activations
    # (set MATMUL_DTYPE = jnp.float32 above for ~1e-5 agreement).
    ref_out, ref_last = drnn_forward_ref(x, params_list, dilations)
    assert jnp.allclose(inputs_out, ref_out, atol=3e-2, rtol=3e-2)
    for o, r in zip(layer_last_outputs, ref_last):
        assert jnp.allclose(o, r, atol=3e-2, rtol=3e-2)

    print("KERNEL_OK")
</pallas_src>

<mosaic_0001>
module attributes {stable_mosaic.version = 11 : i64} {
  func.func @_dilated_gru_kernel(%arg0: i32, %arg1: i32, %arg2: memref<2x16x32xbf16, #tpu.memory_space<vmem>>, %arg3: memref<32x384xbf16, #tpu.memory_space<vmem>>, %arg4: memref<128x384xbf16, #tpu.memory_space<vmem>>, %arg5: memref<1x384xf32, #tpu.memory_space<vmem>>, %arg6: memref<1x128xf32, #tpu.memory_space<vmem>>, %arg7: memref<2x16x128xbf16, #tpu.memory_space<vmem>>, %arg8: memref<16x128xf32, #tpu.memory_space<vmem>>, %arg9: memref<32x384xf32, #tpu.memory_space<vmem>>) attributes {dimension_semantics = [#tpu.dimension_semantics<parallel>, #tpu.dimension_semantics<arbitrary>], iteration_bounds = array<i64: 1, 1>, scalar_prefetch = 0 : i64, scratch_operands = 2 : i64, tpu.core_type = #tpu.core_type<tc>, window_params = [{transform_indices = @transform_0, window_bounds = array<i64: 2, 16, 32>}, {pipeline_mode = #tpu.pipeline_mode<synchronous>, transform_indices = @transform_1, window_bounds = array<i64: 32, 384>}, {pipeline_mode = #tpu.pipeline_mode<synchronous>, transform_indices = @transform_2, window_bounds = array<i64: 128, 384>}, {pipeline_mode = #tpu.pipeline_mode<synchronous>, transform_indices = @transform_3, window_bounds = array<i64: 1, 384>}, {pipeline_mode = #tpu.pipeline_mode<synchronous>, transform_indices = @transform_4, window_bounds = array<i64: 1, 128>}, {transform_indices = @transform_5, window_bounds = array<i64: 2, 16, 128>}]} {
    %c0_i32 = arith.constant 0 : i32
    %0 = arith.cmpi eq, %arg1, %c0_i32 : i32
    %1 = arith.extui %0 : i1 to i32
    %c0_i32_0 = arith.constant 0 : i32
    %2 = arith.cmpi ne, %1, %c0_i32_0 : i32
    scf.if %2 {
      %cst_33 = arith.constant 0.000000e+00 : f32
      %93 = vector.broadcast %cst_33 : f32 to vector<16x128xf32>
      %c0_34 = arith.constant 0 : index
      %c0_35 = arith.constant 0 : index
      %94 = vector.load %arg8[%c0_34, %c0_35] : memref<16x128xf32, #tpu.memory_space<vmem>>, vector<16x128xf32>
      tpu.vector_store %arg8[%c0_34, %c0_35], %93 {strides = array<i32>} : memref<16x128xf32, #tpu.memory_space<vmem>>, vector<16x128xf32>,
    } else {
    }
    %c0 = arith.constant 0 : index
    %c0_1 = arith.constant 0 : index
    %c0_2 = arith.constant 0 : index
    %3 = vector.load %arg2[%c0, %c0_1, %c0_2] : memref<2x16x32xbf16, #tpu.memory_space<vmem>>, vector<2x16x32xbf16>
    %4 = vector.shape_cast %3 : vector<2x16x32xbf16> to vector<32x32xbf16>
    %c0_3 = arith.constant 0 : index
    %c0_4 = arith.constant 0 : index
    %5 = vector.load %arg3[%c0_3, %c0_4] : memref<32x384xbf16, #tpu.memory_space<vmem>>, vector<32x384xbf16>
    %cst = arith.constant dense<0.000000e+00> : vector<32x384xf32>
    %6 = tpu.matmul %4, %5, %cst {dimension_numbers = #tpu.dot_dimension_numbers<[1], [0], [0], [1], [0, 0, 1, 1], [], []>} : vector<32x32xbf16>, vector<32x384xbf16>, vector<32x384xf32> -> vector<32x384xf32>
    %c0_5 = arith.constant 0 : index
    %c0_6 = arith.constant 0 : index
    %7 = vector.load %arg5[%c0_5, %c0_6] : memref<1x384xf32, #tpu.memory_space<vmem>>, vector<1x384xf32>
    %8 = vector.broadcast %7 : vector<1x384xf32> to vector<32x384xf32>
    %9 = arith.addf %6, %8 : vector<32x384xf32>
    %c0_7 = arith.constant 0 : index
    %c0_8 = arith.constant 0 : index
    %10 = vector.load %arg9[%c0_7, %c0_8] : memref<32x384xf32, #tpu.memory_space<vmem>>, vector<32x384xf32>
    tpu.vector_store %arg9[%c0_7, %c0_8], %9 {strides = array<i32>} : memref<32x384xf32, #tpu.memory_space<vmem>>, vector<32x384xf32>,
    %c0_9 = arith.constant 0 : index
    %c0_10 = arith.constant 0 : index
    %11 = vector.load %arg4[%c0_9, %c0_10] : memref<128x384xbf16, #tpu.memory_space<vmem>>, vector<128x384xbf16>
    %c0_11 = arith.constant 0 : index
    %c0_12 = arith.constant 0 : index
    %12 = vector.load %arg6[%c0_11, %c0_12] : memref<1x128xf32, #tpu.memory_space<vmem>>, vector<1x128xf32>
    %c0_13 = arith.constant 0 : index
    %c0_14 = arith.constant 0 : index
    %13 = vector.load %arg8[%c0_13, %c0_14] : memref<16x128xf32, #tpu.memory_space<vmem>>, vector<16x128xf32>
    %c0_i32_15 = arith.constant 0 : i32
    %c16_i32 = arith.constant 16 : i32
    %14 = arith.muli %c0_i32_15, %c16_i32 : i32
    %15 = tpu.assume_multiple %14, 16 : i32
    %16 = arith.index_cast %15 : i32 to index
    %c0_16 = arith.constant 0 : index
    %17 = vector.load %arg9[%16, %c0_16] : memref<32x384xf32, #tpu.memory_space<vmem>>, vector<16x384xf32>
    %18 = arith.truncf %13 : vector<16x128xf32> to vector<16x128xbf16>
    %cst_17 = arith.constant dense<0.000000e+00> : vector<16x384xf32>
    %19 = tpu.matmul %18, %11, %cst_17 {dimension_numbers = #tpu.dot_dimension_numbers<[1], [0], [0], [1], [0, 0, 1, 1], [], []>} : vector<16x128xbf16>, vector<128x384xbf16>, vector<16x384xf32> -> vector<16x384xf32>
    %20 = vector.extract_strided_slice %17 {offsets = [0, 0], sizes = [16, 128], strides = [1, 1]} : vector<16x384xf32> to vector<16x128xf32>
    %21 = vector.extract_strided_slice %19 {offsets = [0, 0], sizes = [16, 128], strides = [1, 1]} : vector<16x384xf32> to vector<16x128xf32>
    %22 = arith.addf %20, %21 : vector<16x128xf32>
    %23 = arith.negf %22 : vector<16x128xf32>
    %24 = math.exp %23 : vector<16x128xf32>
    %cst_18 = arith.constant 1.000000e+00 : f32
    %25 = vector.broadcast %cst_18 : f32 to vector<16x128xf32>
    %26 = arith.addf %25, %24 : vector<16x128xf32>
    %27 = arith.divf %25, %26 : vector<16x128xf32>
    %28 = vector.extract_strided_slice %17 {offsets = [0, 128], sizes = [16, 128], strides = [1, 1]} : vector<16x384xf32> to vector<16x128xf32>
    %29 = vector.extract_strided_slice %19 {offsets = [0, 128], sizes = [16, 128], strides = [1, 1]} : vector<16x384xf32> to vector<16x128xf32>
    %30 = arith.addf %28, %29 : vector<16x128xf32>
    %31 = arith.negf %30 : vector<16x128xf32>
    %32 = math.exp %31 : vector<16x128xf32>
    %cst_19 = arith.constant 1.000000e+00 : f32
    %33 = vector.broadcast %cst_19 : f32 to vector<16x128xf32>
    %34 = arith.addf %33, %32 : vector<16x128xf32>
    %35 = arith.divf %33, %34 : vector<16x128xf32>
    %36 = vector.extract_strided_slice %17 {offsets = [0, 256], sizes = [16, 128], strides = [1, 1]} : vector<16x384xf32> to vector<16x128xf32>
    %37 = vector.extract_strided_slice %19 {offsets = [0, 256], sizes = [16, 128], strides = [1, 1]} : vector<16x384xf32> to vector<16x128xf32>
    %38 = vector.broadcast %12 : vector<1x128xf32> to vector<16x128xf32>
    %39 = arith.addf %37, %38 : vector<16x128xf32>
    %40 = arith.mulf %27, %39 : vector<16x128xf32>
    %41 = arith.addf %36, %40 : vector<16x128xf32>
    %42 = math.tanh %41 : vector<16x128xf32>
    %cst_20 = arith.constant 1.000000e+00 : f32
    %43 = vector.broadcast %cst_20 : f32 to vector<16x128xf32>
    %44 = arith.subf %43, %35 : vector<16x128xf32>
    %45 = arith.mulf %44, %42 : vector<16x128xf32>
    %46 = arith.mulf %35, %13 : vector<16x128xf32>
    %47 = arith.addf %45, %46 : vector<16x128xf32>
    %48 = arith.truncf %47 : vector<16x128xf32> to vector<16x128xbf16>
    %49 = arith.index_cast %c0_i32_15 : i32 to index
    %c0_21 = arith.constant 0 : index
    %c0_22 = arith.constant 0 : index
    %50 = vector.load %arg7[%49, %c0_21, %c0_22] : memref<2x16x128xbf16, #tpu.memory_space<vmem>>, vector<1x16x128xbf16>
    %51 = vector.shape_cast %50 : vector<1x16x128xbf16> to vector<16x128xbf16>
    %52 = vector.shape_cast %48 : vector<16x128xbf16> to vector<1x16x128xbf16>
    tpu.vector_store %arg7[%49, %c0_21, %c0_22], %52 {strides = array<i32>} : memref<2x16x128xbf16, #tpu.memory_space<vmem>>, vector<1x16x128xbf16>,
    %c1_i32 = arith.constant 1 : i32
    %c16_i32_23 = arith.constant 16 : i32
    %53 = arith.muli %c1_i32, %c16_i32_23 : i32
    %54 = tpu.assume_multiple %53, 16 : i32
    %55 = arith.index_cast %54 : i32 to index
    %c0_24 = arith.constant 0 : index
    %56 = vector.load %arg9[%55, %c0_24] : memref<32x384xf32, #tpu.memory_space<vmem>>, vector<16x384xf32>
    %57 = arith.truncf %47 : vector<16x128xf32> to vector<16x128xbf16>
    %cst_25 = arith.constant dense<0.000000e+00> : vector<16x384xf32>
    %58 = tpu.matmul %57, %11, %cst_25 {dimension_numbers = #tpu.dot_dimension_numbers<[1], [0], [0], [1], [0, 0, 1, 1], [], []>} : vector<16x128xbf16>, vector<128x384xbf16>, vector<16x384xf32> -> vector<16x384xf32>
    %59 = vector.extract_strided_slice %56 {offsets = [0, 0], sizes = [16, 128], strides = [1, 1]} : vector<16x384xf32> to vector<16x128xf32>
    %60 = vector.extract_strided_slice %58 {offsets = [0, 0], sizes = [16, 128], strides = [1, 1]} : vector<16x384xf32> to vector<16x128xf32>
    %61 = arith.addf %59, %60 : vector<16x128xf32>
    %62 = arith.negf %61 : vector<16x128xf32>
    %63 = math.exp %62 : vector<16x128xf32>
    %cst_26 = arith.constant 1.000000e+00 : f32
    %64 = vector.broadcast %cst_26 : f32 to vector<16x128xf32>
    %65 = arith.addf %64, %63 : vector<16x128xf32>
    %66 = arith.divf %64, %65 : vector<16x128xf32>
    %67 = vector.extract_strided_slice %56 {offsets = [0, 128], sizes = [16, 128], strides = [1, 1]} : vector<16x384xf32> to vector<16x128xf32>
    %68 = vector.extract_strided_slice %58 {offsets = [0, 128], sizes = [16, 128], strides = [1, 1]} : vector<16x384xf32> to vector<16x128xf32>
    %69 = arith.addf %67, %68 : vector<16x128xf32>
    %70 = arith.negf %69 : vector<16x128xf32>
    %71 = math.exp %70 : vector<16x128xf32>
    %cst_27 = arith.constant 1.000000e+00 : f32
    %72 = vector.broadcast %cst_27 : f32 to vector<16x128xf32>
    %73 = arith.addf %72, %71 : vector<16x128xf32>
    %74 = arith.divf %72, %73 : vector<16x128xf32>
    %75 = vector.extract_strided_slice %56 {offsets = [0, 256], sizes = [16, 128], strides = [1, 1]} : vector<16x384xf32> to vector<16x128xf32>
    %76 = vector.extract_strided_slice %58 {offsets = [0, 256], sizes = [16, 128], strides = [1, 1]} : vector<16x384xf32> to vector<16x128xf32>
    %77 = vector.broadcast %12 : vector<1x128xf32> to vector<16x128xf32>
    %78 = arith.addf %76, %77 : vector<16x128xf32>
    %79 = arith.mulf %66, %78 : vector<16x128xf32>
    %80 = arith.addf %75, %79 : vector<16x128xf32>
    %81 = math.tanh %80 : vector<16x128xf32>
    %cst_28 = arith.constant 1.000000e+00 : f32
    %82 = vector.broadcast %cst_28 : f32 to vector<16x128xf32>
    %83 = arith.subf %82, %74 : vector<16x128xf32>
    %84 = arith.mulf %83, %81 : vector<16x128xf32>
    %85 = arith.mulf %74, %47 : vector<16x128xf32>
    %86 = arith.addf %84, %85 : vector<16x128xf32>
    %87 = arith.truncf %86 : vector<16x128xf32> to vector<16x128xbf16>
    %88 = arith.index_cast %c1_i32 : i32 to index
    %c0_29 = arith.constant 0 : index
    %c0_30 = arith.constant 0 : index
    %89 = vector.load %arg7[%88, %c0_29, %c0_30] : memref<2x16x128xbf16, #tpu.memory_space<vmem>>, vector<1x16x128xbf16>
    %90 = vector.shape_cast %89 : vector<1x16x128xbf16> to vector<16x128xbf16>
    %91 = vector.shape_cast %87 : vector<16x128xbf16> to vector<1x16x128xbf16>
    tpu.vector_store %arg7[%88, %c0_29, %c0_30], %91 {strides = array<i32>} : memref<2x16x128xbf16, #tpu.memory_space<vmem>>, vector<1x16x128xbf16>,
    %c2_i32 = arith.constant 2 : i32
    %c0_31 = arith.constant 0 : index
    %c0_32 = arith.constant 0 : index
    %92 = vector.load %arg8[%c0_31, %c0_32] : memref<16x128xf32, #tpu.memory_space<vmem>>, vector<16x128xf32>
    tpu.vector_store %arg8[%c0_31, %c0_32], %86 {strides = array<i32>} : memref<16x128xf32, #tpu.memory_space<vmem>>, vector<16x128xf32>,
    return
  }
  func.func @transform_0(%arg0: i32, %arg1: i32) -> (i32, i32, i32) {
    %c0_i32 = arith.constant 0 : i32
    %c0_i32_0 = arith.constant 0 : i32
    return %arg1, %arg0, %c0_i32 : i32, i32, i32
  }
  func.func @transform_1(%arg0: i32, %arg1: i32) -> (i32, i32) {
    %c0_i32 = arith.constant 0 : i32
    %c0_i32_0 = arith.constant 0 : i32
    %c0_i32_1 = arith.constant 0 : i32
    return %c0_i32, %c0_i32_0 : i32, i32
  }
  func.func @transform_2(%arg0: i32, %arg1: i32) -> (i32, i32) {
    %c0_i32 = arith.constant 0 : i32
    %c0_i32_0 = arith.constant 0 : i32
    %c0_i32_1 = arith.constant 0 : i32
    return %c0_i32, %c0_i32_0 : i32, i32
  }
  func.func @transform_3(%arg0: i32, %arg1: i32) -> (i32, i32) {
    %c0_i32 = arith.constant 0 : i32
    %c0_i32_0 = arith.constant 0 : i32
    %c0_i32_1 = arith.constant 0 : i32
    return %c0_i32, %c0_i32_0 : i32, i32
  }
  func.func @transform_4(%arg0: i32, %arg1: i32) -> (i32, i32) {
    %c0_i32 = arith.constant 0 : i32
    %c0_i32_0 = arith.constant 0 : i32
    %c0_i32_1 = arith.constant 0 : i32
    return %c0_i32, %c0_i32_0 : i32, i32
  }
  func.func @transform_5(%arg0: i32, %arg1: i32) -> (i32, i32, i32) {
    %c0_i32 = arith.constant 0 : i32
    %c0_i32_0 = arith.constant 0 : i32
    return %arg1, %arg0, %c0_i32 : i32, i32, i32
  }
}

module attributes {stable_mosaic.version = 11 : i64} {
  func.func @_dilated_gru_kernel(%arg0: i32, %arg1: i32, %arg2: memref<8x16x16xf32, #tpu.memory_space<vmem>>, %arg3: memref<16x384xbf16, #tpu.memory_space<vmem>>, %arg4: memref<128x384xbf16, #tpu.memory_space<vmem>>, %arg5: memref<1x384xf32, #tpu.memory_space<vmem>>, %arg6: memref<1x128xf32, #tpu.memory_space<vmem>>, %arg7: memref<8x16x128xbf16, #tpu.memory_space<vmem>>, %arg8: memref<16x128xf32, #tpu.memory_space<vmem>>, %arg9: memref<128x384xf32, #tpu.memory_space<vmem>>) attributes {dimension_semantics = [#tpu.dimension_semantics<parallel>, #tpu.dimension_semantics<arbitrary>], iteration_bounds = array<i64: 1, 1>, scalar_prefetch = 0 : i64, scratch_operands = 2 : i64, tpu.core_type = #tpu.core_type<tc>, window_params = [{transform_indices = @transform_0, window_bounds = array<i64: 8, 16, 16>}, {pipeline_mode = #tpu.pipeline_mode<synchronous>, transform_indices = @transform_1, window_bounds = array<i64: 16, 384>}, {pipeline_mode = #tpu.pipeline_mode<synchronous>, transform_indices = @transform_2, window_bounds = array<i64: 128, 384>}, {pipeline_mode = #tpu.pipeline_mode<synchronous>, transform_indices = @transform_3, window_bounds = array<i64: 1, 384>}, {pipeline_mode = #tpu.pipeline_mode<synchronous>, transform_indices = @transform_4, window_bounds = array<i64: 1, 128>}, {transform_indices = @transform_5, window_bounds = array<i64: 8, 16, 128>}]} {
    %c0_i32 = arith.constant 0 : i32
    %0 = arith.cmpi eq, %arg1, %c0_i32 : i32
    %1 = arith.extui %0 : i1 to i32
    %c0_i32_0 = arith.constant 0 : i32
    %2 = arith.cmpi ne, %1, %c0_i32_0 : i32
    scf.if %2 {
      %cst_81 = arith.constant 0.000000e+00 : f32
      %328 = vector.broadcast %cst_81 : f32 to vector<16x128xf32>
      %c0_82 = arith.constant 0 : index
      %c0_83 = arith.constant 0 : index
      %329 = vector.load %arg8[%c0_82, %c0_83] : memref<16x128xf32, #tpu.memory_space<vmem>>, vector<16x128xf32>
      tpu.vector_store %arg8[%c0_82, %c0_83], %328 {strides = array<i32>} : memref<16x128xf32, #tpu.memory_space<vmem>>, vector<16x128xf32>,
    } else {
    }
    %c0 = arith.constant 0 : index
    %c0_1 = arith.constant 0 : index
    %c0_2 = arith.constant 0 : index
    %3 = vector.load %arg2[%c0, %c0_1, %c0_2] : memref<8x16x16xf32, #tpu.memory_space<vmem>>, vector<8x16x16xf32>
    %4 = vector.shape_cast %3 : vector<8x16x16xf32> to vector<128x16xf32>
    %5 = arith.truncf %4 : vector<128x16xf32> to vector<128x16xbf16>
    %c0_3 = arith.constant 0 : index
    %c0_4 = arith.constant 0 : index
    %6 = vector.load %arg3[%c0_3, %c0_4] : memref<16x384xbf16, #tpu.memory_space<vmem>>, vector<16x384xbf16>
    %cst = arith.constant dense<0.000000e+00> : vector<128x384xf32>
    %7 = tpu.matmul %5, %6, %cst {dimension_numbers = #tpu.dot_dimension_numbers<[1], [0], [0], [1], [0, 0, 1, 1], [], []>} : vector<128x16xbf16>, vector<16x384xbf16>, vector<128x384xf32> -> vector<128x384xf32>
    %c0_5 = arith.constant 0 : index
    %c0_6 = arith.constant 0 : index
    %8 = vector.load %arg5[%c0_5, %c0_6] : memref<1x384xf32, #tpu.memory_space<vmem>>, vector<1x384xf32>
    %9 = vector.broadcast %8 : vector<1x384xf32> to vector<128x384xf32>
    %10 = arith.addf %7, %9 : vector<128x384xf32>
    %c0_7 = arith.constant 0 : index
    %c0_8 = arith.constant 0 : index
    %11 = vector.load %arg9[%c0_7, %c0_8] : memref<128x384xf32, #tpu.memory_space<vmem>>, vector<128x384xf32>
    tpu.vector_store %arg9[%c0_7, %c0_8], %10 {strides = array<i32>} : memref<128x384xf32, #tpu.memory_space<vmem>>, vector<128x384xf32>,
    %c0_9 = arith.constant 0 : index
    %c0_10 = arith.constant 0 : index
    %12 = vector.load %arg4[%c0_9, %c0_10] : memref<128x384xbf16, #tpu.memory_space<vmem>>, vector<128x384xbf16>
    %c0_11 = arith.constant 0 : index
    %c0_12 = arith.constant 0 : index
    %13 = vector.load %arg6[%c0_11, %c0_12] : memref<1x128xf32, #tpu.memory_space<vmem>>, vector<1x128xf32>
    %c0_13 = arith.constant 0 : index
    %c0_14 = arith.constant 0 : index
    %14 = vector.load %arg8[%c0_13, %c0_14] : memref<16x128xf32, #tpu.memory_space<vmem>>, vector<16x128xf32>
    %c0_i32_15 = arith.constant 0 : i32
    %c16_i32 = arith.constant 16 : i32
    %15 = arith.muli %c0_i32_15, %c16_i32 : i32
    %16 = tpu.assume_multiple %15, 16 : i32
    %17 = arith.index_cast %16 : i32 to index
    %c0_16 = arith.constant 0 : index
    %18 = vector.load %arg9[%17, %c0_16] : memref<128x384xf32, #tpu.memory_space<vmem>>, vector<16x384xf32>
    %19 = arith.truncf %14 : vector<16x128xf32> to vector<16x128xbf16>
    %cst_17 = arith.constant dense<0.000000e+00> : vector<16x384xf32>
    %20 = tpu.matmul %19, %12, %cst_17 {dimension_numbers = #tpu.dot_dimension_numbers<[1], [0], [0], [1], [0, 0, 1, 1], [], []>} : vector<16x128xbf16>, vector<128x384xbf16>, vector<16x384xf32> -> vector<16x384xf32>
    %21 = vector.extract_strided_slice %18 {offsets = [0, 0], sizes = [16, 128], strides = [1, 1]} : vector<16x384xf32> to vector<16x128xf32>
    %22 = vector.extract_strided_slice %20 {offsets = [0, 0], sizes = [16, 128], strides = [1, 1]} : vector<16x384xf32> to vector<16x128xf32>
    %23 = arith.addf %21, %22 : vector<16x128xf32>
    %24 = arith.negf %23 : vector<16x128xf32>
    %25 = math.exp %24 : vector<16x128xf32>
    %cst_18 = arith.constant 1.000000e+00 : f32
    %26 = vector.broadcast %cst_18 : f32 to vector<16x128xf32>
    %27 = arith.addf %26, %25 : vector<16x128xf32>
    %28 = arith.divf %26, %27 : vector<16x128xf32>
    %29 = vector.extract_strided_slice %18 {offsets = [0, 128], sizes = [16, 128], strides = [1, 1]} : vector<16x384xf32> to vector<16x128xf32>
    %30 = vector.extract_strided_slice %20 {offsets = [0, 128], sizes = [16, 128], strides = [1, 1]} : vector<16x384xf32> to vector<16x128xf32>
    %31 = arith.addf %29, %30 : vector<16x128xf32>
    %32 = arith.negf %31 : vector<16x128xf32>
    %33 = math.exp %32 : vector<16x128xf32>
    %cst_19 = arith.constant 1.000000e+00 : f32
    %34 = vector.broadcast %cst_19 : f32 to vector<16x128xf32>
    %35 = arith.addf %34, %33 : vector<16x128xf32>
    %36 = arith.divf %34, %35 : vector<16x128xf32>
    %37 = vector.extract_strided_slice %18 {offsets = [0, 256], sizes = [16, 128], strides = [1, 1]} : vector<16x384xf32> to vector<16x128xf32>
    %38 = vector.extract_strided_slice %20 {offsets = [0, 256], sizes = [16, 128], strides = [1, 1]} : vector<16x384xf32> to vector<16x128xf32>
    %39 = vector.broadcast %13 : vector<1x128xf32> to vector<16x128xf32>
    %40 = arith.addf %38, %39 : vector<16x128xf32>
    %41 = arith.mulf %28, %40 : vector<16x128xf32>
    %42 = arith.addf %37, %41 : vector<16x128xf32>
    %43 = math.tanh %42 : vector<16x128xf32>
    %cst_20 = arith.constant 1.000000e+00 : f32
    %44 = vector.broadcast %cst_20 : f32 to vector<16x128xf32>
    %45 = arith.subf %44, %36 : vector<16x128xf32>
    %46 = arith.mulf %45, %43 : vector<16x128xf32>
    %47 = arith.mulf %36, %14 : vector<16x128xf32>
    %48 = arith.addf %46, %47 : vector<16x128xf32>
    %49 = arith.truncf %48 : vector<16x128xf32> to vector<16x128xbf16>
    %50 = arith.index_cast %c0_i32_15 : i32 to index
    %c0_21 = arith.constant 0 : index
    %c0_22 = arith.constant 0 : index
    %51 = vector.load %arg7[%50, %c0_21, %c0_22] : memref<8x16x128xbf16, #tpu.memory_space<vmem>>, vector<1x16x128xbf16>
    %52 = vector.shape_cast %51 : vector<1x16x128xbf16> to vector<16x128xbf16>
    %53 = vector.shape_cast %49 : vector<16x128xbf16> to vector<1x16x128xbf16>
    tpu.vector_store %arg7[%50, %c0_21, %c0_22], %53 {strides = array<i32>} : memref<8x16x128xbf16, #tpu.memory_space<vmem>>, vector<1x16x128xbf16>,
    %c1_i32 = arith.constant 1 : i32
    %c16_i32_23 = arith.constant 16 : i32
    %54 = arith.muli %c1_i32, %c16_i32_23 : i32
    %55 = tpu.assume_multiple %54, 16 : i32
    %56 = arith.index_cast %55 : i32 to index
    %c0_24 = arith.constant 0 : index
    %57 = vector.load %arg9[%56, %c0_24] : memref<128x384xf32, #tpu.memory_space<vmem>>, vector<16x384xf32>
    %58 = arith.truncf %48 : vector<16x128xf32> to vector<16x128xbf16>
    %cst_25 = arith.constant dense<0.000000e+00> : vector<16x384xf32>
    %59 = tpu.matmul %58, %12, %cst_25 {dimension_numbers = #tpu.dot_dimension_numbers<[1], [0], [0], [1], [0, 0, 1, 1], [], []>} : vector<16x128xbf16>, vector<128x384xbf16>, vector<16x384xf32> -> vector<16x384xf32>
    %60 = vector.extract_strided_slice %57 {offsets = [0, 0], sizes = [16, 128], strides = [1, 1]} : vector<16x384xf32> to vector<16x128xf32>
    %61 = vector.extract_strided_slice %59 {offsets = [0, 0], sizes = [16, 128], strides = [1, 1]} : vector<16x384xf32> to vector<16x128xf32>
    %62 = arith.addf %60, %61 : vector<16x128xf32>
    %63 = arith.negf %62 : vector<16x128xf32>
    %64 = math.exp %63 : vector<16x128xf32>
    %cst_26 = arith.constant 1.000000e+00 : f32
    %65 = vector.broadcast %cst_26 : f32 to vector<16x128xf32>
    %66 = arith.addf %65, %64 : vector<16x128xf32>
    %67 = arith.divf %65, %66 : vector<16x128xf32>
    %68 = vector.extract_strided_slice %57 {offsets = [0, 128], sizes = [16, 128], strides = [1, 1]} : vector<16x384xf32> to vector<16x128xf32>
    %69 = vector.extract_strided_slice %59 {offsets = [0, 128], sizes = [16, 128], strides = [1, 1]} : vector<16x384xf32> to vector<16x128xf32>
    %70 = arith.addf %68, %69 : vector<16x128xf32>
    %71 = arith.negf %70 : vector<16x128xf32>
    %72 = math.exp %71 : vector<16x128xf32>
    %cst_27 = arith.constant 1.000000e+00 : f32
    %73 = vector.broadcast %cst_27 : f32 to vector<16x128xf32>
    %74 = arith.addf %73, %72 : vector<16x128xf32>
    %75 = arith.divf %73, %74 : vector<16x128xf32>
    %76 = vector.extract_strided_slice %57 {offsets = [0, 256], sizes = [16, 128], strides = [1, 1]} : vector<16x384xf32> to vector<16x128xf32>
    %77 = vector.extract_strided_slice %59 {offsets = [0, 256], sizes = [16, 128], strides = [1, 1]} : vector<16x384xf32> to vector<16x128xf32>
    %78 = vector.broadcast %13 : vector<1x128xf32> to vector<16x128xf32>
    %79 = arith.addf %77, %78 : vector<16x128xf32>
    %80 = arith.mulf %67, %79 : vector<16x128xf32>
    %81 = arith.addf %76, %80 : vector<16x128xf32>
    %82 = math.tanh %81 : vector<16x128xf32>
    %cst_28 = arith.constant 1.000000e+00 : f32
    %83 = vector.broadcast %cst_28 : f32 to vector<16x128xf32>
    %84 = arith.subf %83, %75 : vector<16x128xf32>
    %85 = arith.mulf %84, %82 : vector<16x128xf32>
    %86 = arith.mulf %75, %48 : vector<16x128xf32>
    %87 = arith.addf %85, %86 : vector<16x128xf32>
    %88 = arith.truncf %87 : vector<16x128xf32> to vector<16x128xbf16>
    %89 = arith.index_cast %c1_i32 : i32 to index
    %c0_29 = arith.constant 0 : index
    %c0_30 = arith.constant 0 : index
    %90 = vector.load %arg7[%89, %c0_29, %c0_30] : memref<8x16x128xbf16, #tpu.memory_space<vmem>>, vector<1x16x128xbf16>
    %91 = vector.shape_cast %90 : vector<1x16x128xbf16> to vector<16x128xbf16>
    %92 = vector.shape_cast %88 : vector<16x128xbf16> to vector<1x16x128xbf16>
    tpu.vector_store %arg7[%89, %c0_29, %c0_30], %92 {strides = array<i32>} : memref<8x16x128xbf16, #tpu.memory_space<vmem>>, vector<1x16x128xbf16>,
    %c2_i32 = arith.constant 2 : i32
    %c16_i32_31 = arith.constant 16 : i32
    %93 = arith.muli %c2_i32, %c16_i32_31 : i32
    %94 = tpu.assume_multiple %93, 16 : i32
    %95 = arith.index_cast %94 : i32 to index
    %c0_32 = arith.constant 0 : index
    %96 = vector.load %arg9[%95, %c0_32] : memref<128x384xf32, #tpu.memory_space<vmem>>, vector<16x384xf32>
    %97 = arith.truncf %87 : vector<16x128xf32> to vector<16x128xbf16>
    %cst_33 = arith.constant dense<0.000000e+00> : vector<16x384xf32>
    %98 = tpu.matmul %97, %12, %cst_33 {dimension_numbers = #tpu.dot_dimension_numbers<[1], [0], [0], [1], [0, 0, 1, 1], [], []>} : vector<16x128xbf16>, vector<128x384xbf16>, vector<16x384xf32> -> vector<16x384xf32>
    %99 = vector.extract_strided_slice %96 {offsets = [0, 0], sizes = [16, 128], strides = [1, 1]} : vector<16x384xf32> to vector<16x128xf32>
    %100 = vector.extract_strided_slice %98 {offsets = [0, 0], sizes = [16, 128], strides = [1, 1]} : vector<16x384xf32> to vector<16x128xf32>
    %101 = arith.addf %99, %100 : vector<16x128xf32>
    %102 = arith.negf %101 : vector<16x128xf32>
    %103 = math.exp %102 : vector<16x128xf32>
    %cst_34 = arith.constant 1.000000e+00 : f32
    %104 = vector.broadcast %cst_34 : f32 to vector<16x128xf32>
    %105 = arith.addf %104, %103 : vector<16x128xf32>
    %106 = arith.divf %104, %105 : vector<16x128xf32>
    %107 = vector.extract_strided_slice %96 {offsets = [0, 128], sizes = [16, 128], strides = [1, 1]} : vector<16x384xf32> to vector<16x128xf32>
    %108 = vector.extract_strided_slice %98 {offsets = [0, 128], sizes = [16, 128], strides = [1, 1]} : vector<16x384xf32> to vector<16x128xf32>
    %109 = arith.addf %107, %108 : vector<16x128xf32>
    %110 = arith.negf %109 : vector<16x128xf32>
    %111 = math.exp %110 : vector<16x128xf32>
    %cst_35 = arith.constant 1.000000e+00 : f32
    %112 = vector.broadcast %cst_35 : f32 to vector<16x128xf32>
    %113 = arith.addf %112, %111 : vector<16x128xf32>
    %114 = arith.divf %112, %113 : vector<16x128xf32>
    %115 = vector.extract_strided_slice %96 {offsets = [0, 256], sizes = [16, 128], strides = [1, 1]} : vector<16x384xf32> to vector<16x128xf32>
    %116 = vector.extract_strided_slice %98 {offsets = [0, 256], sizes = [16, 128], strides = [1, 1]} : vector<16x384xf32> to vector<16x128xf32>
    %117 = vector.broadcast %13 : vector<1x128xf32> to vector<16x128xf32>
    %118 = arith.addf %116, %117 : vector<16x128xf32>
    %119 = arith.mulf %106, %118 : vector<16x128xf32>
    %120 = arith.addf %115, %119 : vector<16x128xf32>
    %121 = math.tanh %120 : vector<16x128xf32>
    %cst_36 = arith.constant 1.000000e+00 : f32
    %122 = vector.broadcast %cst_36 : f32 to vector<16x128xf32>
    %123 = arith.subf %122, %114 : vector<16x128xf32>
    %124 = arith.mulf %123, %121 : vector<16x128xf32>
    %125 = arith.mulf %114, %87 : vector<16x128xf32>
    %126 = arith.addf %124, %125 : vector<16x128xf32>
    %127 = arith.truncf %126 : vector<16x128xf32> to vector<16x128xbf16>
    %128 = arith.index_cast %c2_i32 : i32 to index
    %c0_37 = arith.constant 0 : index
    %c0_38 = arith.constant 0 : index
    %129 = vector.load %arg7[%128, %c0_37, %c0_38] : memref<8x16x128xbf16, #tpu.memory_space<vmem>>, vector<1x16x128xbf16>
    %130 = vector.shape_cast %129 : vector<1x16x128xbf16> to vector<16x128xbf16>
    %131 = vector.shape_cast %127 : vector<16x128xbf16> to vector<1x16x128xbf16>
    tpu.vector_store %arg7[%128, %c0_37, %c0_38], %131 {strides = array<i32>} : memref<8x16x128xbf16, #tpu.memory_space<vmem>>, vector<1x16x128xbf16>,
    %c3_i32 = arith.constant 3 : i32
    %c16_i32_39 = arith.constant 16 : i32
    %132 = arith.muli %c3_i32, %c16_i32_39 : i32
    %133 = tpu.assume_multiple %132, 16 : i32
    %134 = arith.index_cast %133 : i32 to index
    %c0_40 = arith.constant 0 : index
    %135 = vector.load %arg9[%134, %c0_40] : memref<128x384xf32, #tpu.memory_space<vmem>>, vector<16x384xf32>
    %136 = arith.truncf %126 : vector<16x128xf32> to vector<16x128xbf16>
    %cst_41 = arith.constant dense<0.000000e+00> : vector<16x384xf32>
    %137 = tpu.matmul %136, %12, %cst_41 {dimension_numbers = #tpu.dot_dimension_numbers<[1], [0], [0], [1], [0, 0, 1, 1], [], []>} : vector<16x128xbf16>, vector<128x384xbf16>, vector<16x384xf32> -> vector<16x384xf32>
    %138 = vector.extract_strided_slice %135 {offsets = [0, 0], sizes = [16, 128], strides = [1, 1]} : vector<16x384xf32> to vector<16x128xf32>
    %139 = vector.extract_strided_slice %137 {offsets = [0, 0], sizes = [16, 128], strides = [1, 1]} : vector<16x384xf32> to vector<16x128xf32>
    %140 = arith.addf %138, %139 : vector<16x128xf32>
    %141 = arith.negf %140 : vector<16x128xf32>
    %142 = math.exp %141 : vector<16x128xf32>
    %cst_42 = arith.constant 1.000000e+00 : f32
    %143 = vector.broadcast %cst_42 : f32 to vector<16x128xf32>
    %144 = arith.addf %143, %142 : vector<16x128xf32>
    %145 = arith.divf %143, %144 : vector<16x128xf32>
    %146 = vector.extract_strided_slice %135 {offsets = [0, 128], sizes = [16, 128], strides = [1, 1]} : vector<16x384xf32> to vector<16x128xf32>
    %147 = vector.extract_strided_slice %137 {offsets = [0, 128], sizes = [16, 128], strides = [1, 1]} : vector<16x384xf32> to vector<16x128xf32>
    %148 = arith.addf %146, %147 : vector<16x128xf32>
    %149 = arith.negf %148 : vector<16x128xf32>
    %150 = math.exp %149 : vector<16x128xf32>
    %cst_43 = arith.constant 1.000000e+00 : f32
    %151 = vector.broadcast %cst_43 : f32 to vector<16x128xf32>
    %152 = arith.addf %151, %150 : vector<16x128xf32>
    %153 = arith.divf %151, %152 : vector<16x128xf32>
    %154 = vector.extract_strided_slice %135 {offsets = [0, 256], sizes = [16, 128], strides = [1, 1]} : vector<16x384xf32> to vector<16x128xf32>
    %155 = vector.extract_strided_slice %137 {offsets = [0, 256], sizes = [16, 128], strides = [1, 1]} : vector<16x384xf32> to vector<16x128xf32>
    %156 = vector.broadcast %13 : vector<1x128xf32> to vector<16x128xf32>
    %157 = arith.addf %155, %156 : vector<16x128xf32>
    %158 = arith.mulf %145, %157 : vector<16x128xf32>
    %159 = arith.addf %154, %158 : vector<16x128xf32>
    %160 = math.tanh %159 : vector<16x128xf32>
    %cst_44 = arith.constant 1.000000e+00 : f32
    %161 = vector.broadcast %cst_44 : f32 to vector<16x128xf32>
    %162 = arith.subf %161, %153 : vector<16x128xf32>
    %163 = arith.mulf %162, %160 : vector<16x128xf32>
    %164 = arith.mulf %153, %126 : vector<16x128xf32>
    %165 = arith.addf %163, %164 : vector<16x128xf32>
    %166 = arith.truncf %165 : vector<16x128xf32> to vector<16x128xbf16>
    %167 = arith.index_cast %c3_i32 : i32 to index
    %c0_45 = arith.constant 0 : index
    %c0_46 = arith.constant 0 : index
    %168 = vector.load %arg7[%167, %c0_45, %c0_46] : memref<8x16x128xbf16, #tpu.memory_space<vmem>>, vector<1x16x128xbf16>
    %169 = vector.shape_cast %168 : vector<1x16x128xbf16> to vector<16x128xbf16>
    %170 = vector.shape_cast %166 : vector<16x128xbf16> to vector<1x16x128xbf16>
    tpu.vector_store %arg7[%167, %c0_45, %c0_46], %170 {strides = array<i32>} : memref<8x16x128xbf16, #tpu.memory_space<vmem>>, vector<1x16x128xbf16>,
    %c4_i32 = arith.constant 4 : i32
    %c16_i32_47 = arith.constant 16 : i32
    %171 = arith.muli %c4_i32, %c16_i32_47 : i32
    %172 = tpu.assume_multiple %171, 16 : i32
    %173 = arith.index_cast %172 : i32 to index
    %c0_48 = arith.constant 0 : index
    %174 = vector.load %arg9[%173, %c0_48] : memref<128x384xf32, #tpu.memory_space<vmem>>, vector<16x384xf32>
    %175 = arith.truncf %165 : vector<16x128xf32> to vector<16x128xbf16>
    %cst_49 = arith.constant dense<0.000000e+00> : vector<16x384xf32>
    %176 = tpu.matmul %175, %12, %cst_49 {dimension_numbers = #tpu.dot_dimension_numbers<[1], [0], [0], [1], [0, 0, 1, 1], [], []>} : vector<16x128xbf16>, vector<128x384xbf16>, vector<16x384xf32> -> vector<16x384xf32>
    %177 = vector.extract_strided_slice %174 {offsets = [0, 0], sizes = [16, 128], strides = [1, 1]} : vector<16x384xf32> to vector<16x128xf32>
    %178 = vector.extract_strided_slice %176 {offsets = [0, 0], sizes = [16, 128], strides = [1, 1]} : vector<16x384xf32> to vector<16x128xf32>
    %179 = arith.addf %177, %178 : vector<16x128xf32>
    %180 = arith.negf %179 : vector<16x128xf32>
    %181 = math.exp %180 : vector<16x128xf32>
    %cst_50 = arith.constant 1.000000e+00 : f32
    %182 = vector.broadcast %cst_50 : f32 to vector<16x128xf32>
    %183 = arith.addf %182, %181 : vector<16x128xf32>
    %184 = arith.divf %182, %183 : vector<16x128xf32>
    %185 = vector.extract_strided_slice %174 {offsets = [0, 128], sizes = [16, 128], strides = [1, 1]} : vector<16x384xf32> to vector<16x128xf32>
    %186 = vector.extract_strided_slice %176 {offsets = [0, 128], sizes = [16, 128], strides = [1, 1]} : vector<16x384xf32> to vector<16x128xf32>
    %187 = arith.addf %185, %186 : vector<16x128xf32>
    %188 = arith.negf %187 : vector<16x128xf32>
    %189 = math.exp %188 : vector<16x128xf32>
    %cst_51 = arith.constant 1.000000e+00 : f32
    %190 = vector.broadcast %cst_51 : f32 to vector<16x128xf32>
    %191 = arith.addf %190, %189 : vector<16x128xf32>
    %192 = arith.divf %190, %191 : vector<16x128xf32>
    %193 = vector.extract_strided_slice %174 {offsets = [0, 256], sizes = [16, 128], strides = [1, 1]} : vector<16x384xf32> to vector<16x128xf32>
    %194 = vector.extract_strided_slice %176 {offsets = [0, 256], sizes = [16, 128], strides = [1, 1]} : vector<16x384xf32> to vector<16x128xf32>
    %195 = vector.broadcast %13 : vector<1x128xf32> to vector<16x128xf32>
    %196 = arith.addf %194, %195 : vector<16x128xf32>
    %197 = arith.mulf %184, %196 : vector<16x128xf32>
    %198 = arith.addf %193, %197 : vector<16x128xf32>
    %199 = math.tanh %198 : vector<16x128xf32>
    %cst_52 = arith.constant 1.000000e+00 : f32
    %200 = vector.broadcast %cst_52 : f32 to vector<16x128xf32>
    %201 = arith.subf %200, %192 : vector<16x128xf32>
    %202 = arith.mulf %201, %199 : vector<16x128xf32>
    %203 = arith.mulf %192, %165 : vector<16x128xf32>
    %204 = arith.addf %202, %203 : vector<16x128xf32>
    %205 = arith.truncf %204 : vector<16x128xf32> to vector<16x128xbf16>
    %206 = arith.index_cast %c4_i32 : i32 to index
    %c0_53 = arith.constant 0 : index
    %c0_54 = arith.constant 0 : index
    %207 = vector.load %arg7[%206, %c0_53, %c0_54] : memref<8x16x128xbf16, #tpu.memory_space<vmem>>, vector<1x16x128xbf16>
    %208 = vector.shape_cast %207 : vector<1x16x128xbf16> to vector<16x128xbf16>
    %209 = vector.shape_cast %205 : vector<16x128xbf16> to vector<1x16x128xbf16>
    tpu.vector_store %arg7[%206, %c0_53, %c0_54], %209 {strides = array<i32>} : memref<8x16x128xbf16, #tpu.memory_space<vmem>>, vector<1x16x128xbf16>,
    %c5_i32 = arith.constant 5 : i32
    %c16_i32_55 = arith.constant 16 : i32
    %210 = arith.muli %c5_i32, %c16_i32_55 : i32
    %211 = tpu.assume_multiple %210, 16 : i32
    %212 = arith.index_cast %211 : i32 to index
    %c0_56 = arith.constant 0 : index
    %213 = vector.load %arg9[%212, %c0_56] : memref<128x384xf32, #tpu.memory_space<vmem>>, vector<16x384xf32>
    %214 = arith.truncf %204 : vector<16x128xf32> to vector<16x128xbf16>
    %cst_57 = arith.constant dense<0.000000e+00> : vector<16x384xf32>
    %215 = tpu.matmul %214, %12, %cst_57 {dimension_numbers = #tpu.dot_dimension_numbers<[1], [0], [0], [1], [0, 0, 1, 1], [], []>} : vector<16x128xbf16>, vector<128x384xbf16>, vector<16x384xf32> -> vector<16x384xf32>
    %216 = vector.extract_strided_slice %213 {offsets = [0, 0], sizes = [16, 128], strides = [1, 1]} : vector<16x384xf32> to vector<16x128xf32>
    %217 = vector.extract_strided_slice %215 {offsets = [0, 0], sizes = [16, 128], strides = [1, 1]} : vector<16x384xf32> to vector<16x128xf32>
    %218 = arith.addf %216, %217 : vector<16x128xf32>
    %219 = arith.negf %218 : vector<16x128xf32>
    %220 = math.exp %219 : vector<16x128xf32>
    %cst_58 = arith.constant 1.000000e+00 : f32
    %221 = vector.broadcast %cst_58 : f32 to vector<16x128xf32>
    %222 = arith.addf %221, %220 : vector<16x128xf32>
    %223 = arith.divf %221, %222 : vector<16x128xf32>
    %224 = vector.extract_strided_slice %213 {offsets = [0, 128], sizes = [16, 128], strides = [1, 1]} : vector<16x384xf32> to vector<16x128xf32>
    %225 = vector.extract_strided_slice %215 {offsets = [0, 128], sizes = [16, 128], strides = [1, 1]} : vector<16x384xf32> to vector<16x128xf32>
    %226 = arith.addf %224, %225 : vector<16x128xf32>
    %227 = arith.negf %226 : vector<16x128xf32>
    %228 = math.exp %227 : vector<16x128xf32>
    %cst_59 = arith.constant 1.000000e+00 : f32
    %229 = vector.broadcast %cst_59 : f32 to vector<16x128xf32>
    %230 = arith.addf %229, %228 : vector<16x128xf32>
    %231 = arith.divf %229, %230 : vector<16x128xf32>
    %232 = vector.extract_strided_slice %213 {offsets = [0, 256], sizes = [16, 128], strides = [1, 1]} : vector<16x384xf32> to vector<16x128xf32>
    %233 = vector.extract_strided_slice %215 {offsets = [0, 256], sizes = [16, 128], strides = [1, 1]} : vector<16x384xf32> to vector<16x128xf32>
    %234 = vector.broadcast %13 : vector<1x128xf32> to vector<16x128xf32>
    %235 = arith.addf %233, %234 : vector<16x128xf32>
    %236 = arith.mulf %223, %235 : vector<16x128xf32>
    %237 = arith.addf %232, %236 : vector<16x128xf32>
    %238 = math.tanh %237 : vector<16x128xf32>
    %cst_60 = arith.constant 1.000000e+00 : f32
    %239 = vector.broadcast %cst_60 : f32 to vector<16x128xf32>
    %240 = arith.subf %239, %231 : vector<16x128xf32>
    %241 = arith.mulf %240, %238 : vector<16x128xf32>
    %242 = arith.mulf %231, %204 : vector<16x128xf32>
    %243 = arith.addf %241, %242 : vector<16x128xf32>
    %244 = arith.truncf %243 : vector<16x128xf32> to vector<16x128xbf16>
    %245 = arith.index_cast %c5_i32 : i32 to index
    %c0_61 = arith.constant 0 : index
    %c0_62 = arith.constant 0 : index
    %246 = vector.load %arg7[%245, %c0_61, %c0_62] : memref<8x16x128xbf16, #tpu.memory_space<vmem>>, vector<1x16x128xbf16>
    %247 = vector.shape_cast %246 : vector<1x16x128xbf16> to vector<16x128xbf16>
    %248 = vector.shape_cast %244 : vector<16x128xbf16> to vector<1x16x128xbf16>
    tpu.vector_store %arg7[%245, %c0_61, %c0_62], %248 {strides = array<i32>} : memref<8x16x128xbf16, #tpu.memory_space<vmem>>, vector<1x16x128xbf16>,
    %c6_i32 = arith.constant 6 : i32
    %c16_i32_63 = arith.constant 16 : i32
    %249 = arith.muli %c6_i32, %c16_i32_63 : i32
    %250 = tpu.assume_multiple %249, 16 : i32
    %251 = arith.index_cast %250 : i32 to index
    %c0_64 = arith.constant 0 : index
    %252 = vector.load %arg9[%251, %c0_64] : memref<128x384xf32, #tpu.memory_space<vmem>>, vector<16x384xf32>
    %253 = arith.truncf %243 : vector<16x128xf32> to vector<16x128xbf16>
    %cst_65 = arith.constant dense<0.000000e+00> : vector<16x384xf32>
    %254 = tpu.matmul %253, %12, %cst_65 {dimension_numbers = #tpu.dot_dimension_numbers<[1], [0], [0], [1], [0, 0, 1, 1], [], []>} : vector<16x128xbf16>, vector<128x384xbf16>, vector<16x384xf32> -> vector<16x384xf32>
    %255 = vector.extract_strided_slice %252 {offsets = [0, 0], sizes = [16, 128], strides = [1, 1]} : vector<16x384xf32> to vector<16x128xf32>
    %256 = vector.extract_strided_slice %254 {offsets = [0, 0], sizes = [16, 128], strides = [1, 1]} : vector<16x384xf32> to vector<16x128xf32>
    %257 = arith.addf %255, %256 : vector<16x128xf32>
    %258 = arith.negf %257 : vector<16x128xf32>
    %259 = math.exp %258 : vector<16x128xf32>
    %cst_66 = arith.constant 1.000000e+00 : f32
    %260 = vector.broadcast %cst_66 : f32 to vector<16x128xf32>
    %261 = arith.addf %260, %259 : vector<16x128xf32>
    %262 = arith.divf %260, %261 : vector<16x128xf32>
    %263 = vector.extract_strided_slice %252 {offsets = [0, 128], sizes = [16, 128], strides = [1, 1]} : vector<16x384xf32> to vector<16x128xf32>
    %264 = vector.extract_strided_slice %254 {offsets = [0, 128], sizes = [16, 128], strides = [1, 1]} : vector<16x384xf32> to vector<16x128xf32>
    %265 = arith.addf %263, %264 : vector<16x128xf32>
    %266 = arith.negf %265 : vector<16x128xf32>
    %267 = math.exp %266 : vector<16x128xf32>
    %cst_67 = arith.constant 1.000000e+00 : f32
    %268 = vector.broadcast %cst_67 : f32 to vector<16x128xf32>
    %269 = arith.addf %268, %267 : vector<16x128xf32>
    %270 = arith.divf %268, %269 : vector<16x128xf32>
    %271 = vector.extract_strided_slice %252 {offsets = [0, 256], sizes = [16, 128], strides = [1, 1]} : vector<16x384xf32> to vector<16x128xf32>
    %272 = vector.extract_strided_slice %254 {offsets = [0, 256], sizes = [16, 128], strides = [1, 1]} : vector<16x384xf32> to vector<16x128xf32>
    %273 = vector.broadcast %13 : vector<1x128xf32> to vector<16x128xf32>
    %274 = arith.addf %272, %273 : vector<16x128xf32>
    %275 = arith.mulf %262, %274 : vector<16x128xf32>
    %276 = arith.addf %271, %275 : vector<16x128xf32>
    %277 = math.tanh %276 : vector<16x128xf32>
    %cst_68 = arith.constant 1.000000e+00 : f32
    %278 = vector.broadcast %cst_68 : f32 to vector<16x128xf32>
    %279 = arith.subf %278, %270 : vector<16x128xf32>
    %280 = arith.mulf %279, %277 : vector<16x128xf32>
    %281 = arith.mulf %270, %243 : vector<16x128xf32>
    %282 = arith.addf %280, %281 : vector<16x128xf32>
    %283 = arith.truncf %282 : vector<16x128xf32> to vector<16x128xbf16>
    %284 = arith.index_cast %c6_i32 : i32 to index
    %c0_69 = arith.constant 0 : index
    %c0_70 = arith.constant 0 : index
    %285 = vector.load %arg7[%284, %c0_69, %c0_70] : memref<8x16x128xbf16, #tpu.memory_space<vmem>>, vector<1x16x128xbf16>
    %286 = vector.shape_cast %285 : vector<1x16x128xbf16> to vector<16x128xbf16>
    %287 = vector.shape_cast %283 : vector<16x128xbf16> to vector<1x16x128xbf16>
    tpu.vector_store %arg7[%284, %c0_69, %c0_70], %287 {strides = array<i32>} : memref<8x16x128xbf16, #tpu.memory_space<vmem>>, vector<1x16x128xbf16>,
    %c7_i32 = arith.constant 7 : i32
    %c16_i32_71 = arith.constant 16 : i32
    %288 = arith.muli %c7_i32, %c16_i32_71 : i32
    %289 = tpu.assume_multiple %288, 16 : i32
    %290 = arith.index_cast %289 : i32 to index
    %c0_72 = arith.constant 0 : index
    %291 = vector.load %arg9[%290, %c0_72] : memref<128x384xf32, #tpu.memory_space<vmem>>, vector<16x384xf32>
    %292 = arith.truncf %282 : vector<16x128xf32> to vector<16x128xbf16>
    %cst_73 = arith.constant dense<0.000000e+00> : vector<16x384xf32>
    %293 = tpu.matmul %292, %12, %cst_73 {dimension_numbers = #tpu.dot_dimension_numbers<[1], [0], [0], [1], [0, 0, 1, 1], [], []>} : vector<16x128xbf16>, vector<128x384xbf16>, vector<16x384xf32> -> vector<16x384xf32>
    %294 = vector.extract_strided_slice %291 {offsets = [0, 0], sizes = [16, 128], strides = [1, 1]} : vector<16x384xf32> to vector<16x128xf32>
    %295 = vector.extract_strided_slice %293 {offsets = [0, 0], sizes = [16, 128], strides = [1, 1]} : vector<16x384xf32> to vector<16x128xf32>
    %296 = arith.addf %294, %295 : vector<16x128xf32>
    %297 = arith.negf %296 : vector<16x128xf32>
    %298 = math.exp %297 : vector<16x128xf32>
    %cst_74 = arith.constant 1.000000e+00 : f32
    %299 = vector.broadcast %cst_74 : f32 to vector<16x128xf32>
    %300 = arith.addf %299, %298 : vector<16x128xf32>
    %301 = arith.divf %299, %300 : vector<16x128xf32>
    %302 = vector.extract_strided_slice %291 {offsets = [0, 128], sizes = [16, 128], strides = [1, 1]} : vector<16x384xf32> to vector<16x128xf32>
    %303 = vector.extract_strided_slice %293 {offsets = [0, 128], sizes = [16, 128], strides = [1, 1]} : vector<16x384xf32> to vector<16x128xf32>
    %304 = arith.addf %302, %303 : vector<16x128xf32>
    %305 = arith.negf %304 : vector<16x128xf32>
    %306 = math.exp %305 : vector<16x128xf32>
    %cst_75 = arith.constant 1.000000e+00 : f32
    %307 = vector.broadcast %cst_75 : f32 to vector<16x128xf32>
    %308 = arith.addf %307, %306 : vector<16x128xf32>
    %309 = arith.divf %307, %308 : vector<16x128xf32>
    %310 = vector.extract_strided_slice %291 {offsets = [0, 256], sizes = [16, 128], strides = [1, 1]} : vector<16x384xf32> to vector<16x128xf32>
    %311 = vector.extract_strided_slice %293 {offsets = [0, 256], sizes = [16, 128], strides = [1, 1]} : vector<16x384xf32> to vector<16x128xf32>
    %312 = vector.broadcast %13 : vector<1x128xf32> to vector<16x128xf32>
    %313 = arith.addf %311, %312 : vector<16x128xf32>
    %314 = arith.mulf %301, %313 : vector<16x128xf32>
    %315 = arith.addf %310, %314 : vector<16x128xf32>
    %316 = math.tanh %315 : vector<16x128xf32>
    %cst_76 = arith.constant 1.000000e+00 : f32
    %317 = vector.broadcast %cst_76 : f32 to vector<16x128xf32>
    %318 = arith.subf %317, %309 : vector<16x128xf32>
    %319 = arith.mulf %318, %316 : vector<16x128xf32>
    %320 = arith.mulf %309, %282 : vector<16x128xf32>
    %321 = arith.addf %319, %320 : vector<16x128xf32>
    %322 = arith.truncf %321 : vector<16x128xf32> to vector<16x128xbf16>
    %323 = arith.index_cast %c7_i32 : i32 to index
    %c0_77 = arith.constant 0 : index
    %c0_78 = arith.constant 0 : index
    %324 = vector.load %arg7[%323, %c0_77, %c0_78] : memref<8x16x128xbf16, #tpu.memory_space<vmem>>, vector<1x16x128xbf16>
    %325 = vector.shape_cast %324 : vector<1x16x128xbf16> to vector<16x128xbf16>
    %326 = vector.shape_cast %322 : vector<16x128xbf16> to vector<1x16x128xbf16>
    tpu.vector_store %arg7[%323, %c0_77, %c0_78], %326 {strides = array<i32>} : memref<8x16x128xbf16, #tpu.memory_space<vmem>>, vector<1x16x128xbf16>,
    %c8_i32 = arith.constant 8 : i32
    %c0_79 = arith.constant 0 : index
    %c0_80 = arith.constant 0 : index
    %327 = vector.load %arg8[%c0_79, %c0_80] : memref<16x128xf32, #tpu.memory_space<vmem>>, vector<16x128xf32>
    tpu.vector_store %arg8[%c0_79, %c0_80], %321 {strides = array<i32>} : memref<16x128xf32, #tpu.memory_space<vmem>>, vector<16x128xf32>,
    return
  }
  func.func @transform_0(%arg0: i32, %arg1: i32) -> (i32, i32, i32) {
    %c0_i32 = arith.constant 0 : i32
    %c0_i32_0 = arith.constant 0 : i32
    return %arg1, %arg0, %c0_i32 : i32, i32, i32
  }
  func.func @transform_1(%arg0: i32, %arg1: i32) -> (i32, i32) {
    %c0_i32 = arith.constant 0 : i32
    %c0_i32_0 = arith.constant 0 : i32
    %c0_i32_1 = arith.constant 0 : i32
    return %c0_i32, %c0_i32_0 : i32, i32
  }
  func.func @transform_2(%arg0: i32, %arg1: i32) -> (i32, i32) {
    %c0_i32 = arith.constant 0 : i32
    %c0_i32_0 = arith.constant 0 : i32
    %c0_i32_1 = arith.constant 0 : i32
    return %c0_i32, %c0_i32_0 : i32, i32
  }
  func.func @transform_3(%arg0: i32, %arg1: i32) -> (i32, i32) {
    %c0_i32 = arith.constant 0 : i32
    %c0_i32_0 = arith.constant 0 : i32
    %c0_i32_1 = arith.constant 0 : i32
    return %c0_i32, %c0_i32_0 : i32, i32
  }
  func.func @transform_4(%arg0: i32, %arg1: i32) -> (i32, i32) {
    %c0_i32 = arith.constant 0 : i32
    %c0_i32_0 = arith.constant 0 : i32
    %c0_i32_1 = arith.constant 0 : i32
    return %c0_i32, %c0_i32_0 : i32, i32
  }
  func.func @transform_5(%arg0: i32, %arg1: i32) -> (i32, i32, i32) {
    %c0_i32 = arith.constant 0 : i32
    %c0_i32_0 = arith.constant 0 : i32
    return %arg1, %arg0, %c0_i32 : i32, i32, i32
  }
}

module attributes {stable_mosaic.version = 11 : i64} {
  func.func @_dilated_gru_kernel(%arg0: i32, %arg1: i32, %arg2: memref<1x32x32xbf16, #tpu.memory_space<vmem>>, %arg3: memref<32x384xbf16, #tpu.memory_space<vmem>>, %arg4: memref<128x384xbf16, #tpu.memory_space<vmem>>, %arg5: memref<1x384xf32, #tpu.memory_space<vmem>>, %arg6: memref<1x128xf32, #tpu.memory_space<vmem>>, %arg7: memref<1x32x128xbf16, #tpu.memory_space<vmem>>, %arg8: memref<32x128xf32, #tpu.memory_space<vmem>>, %arg9: memref<32x384xf32, #tpu.memory_space<vmem>>) attributes {dimension_semantics = [#tpu.dimension_semantics<parallel>, #tpu.dimension_semantics<arbitrary>], iteration_bounds = array<i64: 1, 1>, scalar_prefetch = 0 : i64, scratch_operands = 2 : i64, tpu.core_type = #tpu.core_type<tc>, window_params = [{transform_indices = @transform_0, window_bounds = array<i64: 1, 32, 32>}, {pipeline_mode = #tpu.pipeline_mode<synchronous>, transform_indices = @transform_1, window_bounds = array<i64: 32, 384>}, {pipeline_mode = #tpu.pipeline_mode<synchronous>, transform_indices = @transform_2, window_bounds = array<i64: 128, 384>}, {pipeline_mode = #tpu.pipeline_mode<synchronous>, transform_indices = @transform_3, window_bounds = array<i64: 1, 384>}, {pipeline_mode = #tpu.pipeline_mode<synchronous>, transform_indices = @transform_4, window_bounds = array<i64: 1, 128>}, {transform_indices = @transform_5, window_bounds = array<i64: 1, 32, 128>}]} {
    %c0_i32 = arith.constant 0 : i32
    %0 = arith.cmpi eq, %arg1, %c0_i32 : i32
    %1 = arith.extui %0 : i1 to i32
    %c0_i32_0 = arith.constant 0 : i32
    %2 = arith.cmpi ne, %1, %c0_i32_0 : i32
    scf.if %2 {
      %cst_25 = arith.constant 0.000000e+00 : f32
      %54 = vector.broadcast %cst_25 : f32 to vector<32x128xf32>
      %c0_26 = arith.constant 0 : index
      %c0_27 = arith.constant 0 : index
      %55 = vector.load %arg8[%c0_26, %c0_27] : memref<32x128xf32, #tpu.memory_space<vmem>>, vector<32x128xf32>
      tpu.vector_store %arg8[%c0_26, %c0_27], %54 {strides = array<i32>} : memref<32x128xf32, #tpu.memory_space<vmem>>, vector<32x128xf32>,
    } else {
    }
    %c0 = arith.constant 0 : index
    %c0_1 = arith.constant 0 : index
    %c0_2 = arith.constant 0 : index
    %3 = vector.load %arg2[%c0, %c0_1, %c0_2] : memref<1x32x32xbf16, #tpu.memory_space<vmem>>, vector<1x32x32xbf16>
    %4 = vector.shape_cast %3 : vector<1x32x32xbf16> to vector<32x32xbf16>
    %c0_3 = arith.constant 0 : index
    %c0_4 = arith.constant 0 : index
    %5 = vector.load %arg3[%c0_3, %c0_4] : memref<32x384xbf16, #tpu.memory_space<vmem>>, vector<32x384xbf16>
    %cst = arith.constant dense<0.000000e+00> : vector<32x384xf32>
    %6 = tpu.matmul %4, %5, %cst {dimension_numbers = #tpu.dot_dimension_numbers<[1], [0], [0], [1], [0, 0, 1, 1], [], []>} : vector<32x32xbf16>, vector<32x384xbf16>, vector<32x384xf32> -> vector<32x384xf32>
    %c0_5 = arith.constant 0 : index
    %c0_6 = arith.constant 0 : index
    %7 = vector.load %arg5[%c0_5, %c0_6] : memref<1x384xf32, #tpu.memory_space<vmem>>, vector<1x384xf32>
    %8 = vector.broadcast %7 : vector<1x384xf32> to vector<32x384xf32>
    %9 = arith.addf %6, %8 : vector<32x384xf32>
    %c0_7 = arith.constant 0 : index
    %c0_8 = arith.constant 0 : index
    %10 = vector.load %arg9[%c0_7, %c0_8] : memref<32x384xf32, #tpu.memory_space<vmem>>, vector<32x384xf32>
    tpu.vector_store %arg9[%c0_7, %c0_8], %9 {strides = array<i32>} : memref<32x384xf32, #tpu.memory_space<vmem>>, vector<32x384xf32>,
    %c0_9 = arith.constant 0 : index
    %c0_10 = arith.constant 0 : index
    %11 = vector.load %arg4[%c0_9, %c0_10] : memref<128x384xbf16, #tpu.memory_space<vmem>>, vector<128x384xbf16>
    %c0_11 = arith.constant 0 : index
    %c0_12 = arith.constant 0 : index
    %12 = vector.load %arg6[%c0_11, %c0_12] : memref<1x128xf32, #tpu.memory_space<vmem>>, vector<1x128xf32>
    %c0_13 = arith.constant 0 : index
    %c0_14 = arith.constant 0 : index
    %13 = vector.load %arg8[%c0_13, %c0_14] : memref<32x128xf32, #tpu.memory_space<vmem>>, vector<32x128xf32>
    %c0_i32_15 = arith.constant 0 : i32
    %c32_i32 = arith.constant 32 : i32
    %14 = arith.muli %c0_i32_15, %c32_i32 : i32
    %15 = tpu.assume_multiple %14, 32 : i32
    %16 = arith.index_cast %15 : i32 to index
    %c0_16 = arith.constant 0 : index
    %17 = vector.load %arg9[%16, %c0_16] : memref<32x384xf32, #tpu.memory_space<vmem>>, vector<32x384xf32>
    %18 = arith.truncf %13 : vector<32x128xf32> to vector<32x128xbf16>
    %cst_17 = arith.constant dense<0.000000e+00> : vector<32x384xf32>
    %19 = tpu.matmul %18, %11, %cst_17 {dimension_numbers = #tpu.dot_dimension_numbers<[1], [0], [0], [1], [0, 0, 1, 1], [], []>} : vector<32x128xbf16>, vector<128x384xbf16>, vector<32x384xf32> -> vector<32x384xf32>
    %20 = vector.extract_strided_slice %17 {offsets = [0, 0], sizes = [32, 128], strides = [1, 1]} : vector<32x384xf32> to vector<32x128xf32>
    %21 = vector.extract_strided_slice %19 {offsets = [0, 0], sizes = [32, 128], strides = [1, 1]} : vector<32x384xf32> to vector<32x128xf32>
    %22 = arith.addf %20, %21 : vector<32x128xf32>
    %23 = arith.negf %22 : vector<32x128xf32>
    %24 = math.exp %23 : vector<32x128xf32>
    %cst_18 = arith.constant 1.000000e+00 : f32
    %25 = vector.broadcast %cst_18 : f32 to vector<32x128xf32>
    %26 = arith.addf %25, %24 : vector<32x128xf32>
    %27 = arith.divf %25, %26 : vector<32x128xf32>
    %28 = vector.extract_strided_slice %17 {offsets = [0, 128], sizes = [32, 128], strides = [1, 1]} : vector<32x384xf32> to vector<32x128xf32>
    %29 = vector.extract_strided_slice %19 {offsets = [0, 128], sizes = [32, 128], strides = [1, 1]} : vector<32x384xf32> to vector<32x128xf32>
    %30 = arith.addf %28, %29 : vector<32x128xf32>
    %31 = arith.negf %30 : vector<32x128xf32>
    %32 = math.exp %31 : vector<32x128xf32>
    %cst_19 = arith.constant 1.000000e+00 : f32
    %33 = vector.broadcast %cst_19 : f32 to vector<32x128xf32>
    %34 = arith.addf %33, %32 : vector<32x128xf32>
    %35 = arith.divf %33, %34 : vector<32x128xf32>
    %36 = vector.extract_strided_slice %17 {offsets = [0, 256], sizes = [32, 128], strides = [1, 1]} : vector<32x384xf32> to vector<32x128xf32>
    %37 = vector.extract_strided_slice %19 {offsets = [0, 256], sizes = [32, 128], strides = [1, 1]} : vector<32x384xf32> to vector<32x128xf32>
    %38 = vector.broadcast %12 : vector<1x128xf32> to vector<32x128xf32>
    %39 = arith.addf %37, %38 : vector<32x128xf32>
    %40 = arith.mulf %27, %39 : vector<32x128xf32>
    %41 = arith.addf %36, %40 : vector<32x128xf32>
    %42 = math.tanh %41 : vector<32x128xf32>
    %cst_20 = arith.constant 1.000000e+00 : f32
    %43 = vector.broadcast %cst_20 : f32 to vector<32x128xf32>
    %44 = arith.subf %43, %35 : vector<32x128xf32>
    %45 = arith.mulf %44, %42 : vector<32x128xf32>
    %46 = arith.mulf %35, %13 : vector<32x128xf32>
    %47 = arith.addf %45, %46 : vector<32x128xf32>
    %48 = arith.truncf %47 : vector<32x128xf32> to vector<32x128xbf16>
    %49 = arith.index_cast %c0_i32_15 : i32 to index
    %c0_21 = arith.constant 0 : index
    %c0_22 = arith.constant 0 : index
    %50 = vector.load %arg7[%49, %c0_21, %c0_22] : memref<1x32x128xbf16, #tpu.memory_space<vmem>>, vector<1x32x128xbf16>
    %51 = vector.shape_cast %50 : vector<1x32x128xbf16> to vector<32x128xbf16>
    %52 = vector.shape_cast %48 : vector<32x128xbf16> to vector<1x32x128xbf16>
    tpu.vector_store %arg7[%49, %c0_21, %c0_22], %52 {strides = array<i32>} : memref<1x32x128xbf16, #tpu.memory_space<vmem>>, vector<1x32x128xbf16>,
    %c1_i32 = arith.constant 1 : i32
    %c0_23 = arith.constant 0 : index
    %c0_24 = arith.constant 0 : index
    %53 = vector.load %arg8[%c0_23, %c0_24] : memref<32x128xf32, #tpu.memory_space<vmem>>, vector<32x128xf32>
    tpu.vector_store %arg8[%c0_23, %c0_24], %47 {strides = array<i32>} : memref<32x128xf32, #tpu.memory_space<vmem>>, vector<32x128xf32>,
    return
  }
  func.func @transform_0(%arg0: i32, %arg1: i32) -> (i32, i32, i32) {
    %c0_i32 = arith.constant 0 : i32
    %c0_i32_0 = arith.constant 0 : i32
    return %arg1, %arg0, %c0_i32 : i32, i32, i32
  }
  func.func @transform_1(%arg0: i32, %arg1: i32) -> (i32, i32) {
    %c0_i32 = arith.constant 0 : i32
    %c0_i32_0 = arith.constant 0 : i32
    %c0_i32_1 = arith.constant 0 : i32
    return %c0_i32, %c0_i32_0 : i32, i32
  }
  func.func @transform_2(%arg0: i32, %arg1: i32) -> (i32, i32) {
    %c0_i32 = arith.constant 0 : i32
    %c0_i32_0 = arith.constant 0 : i32
    %c0_i32_1 = arith.constant 0 : i32
    return %c0_i32, %c0_i32_0 : i32, i32
  }
  func.func @transform_3(%arg0: i32, %arg1: i32) -> (i32, i32) {
    %c0_i32 = arith.constant 0 : i32
    %c0_i32_0 = arith.constant 0 : i32
    %c0_i32_1 = arith.constant 0 : i32
    return %c0_i32, %c0_i32_0 : i32, i32
  }
  func.func @transform_4(%arg0: i32, %arg1: i32) -> (i32, i32) {
    %c0_i32 = arith.constant 0 : i32
    %c0_i32_0 = arith.constant 0 : i32
    %c0_i32_1 = arith.constant 0 : i32
    return %c0_i32, %c0_i32_0 : i32, i32
  }
  func.func @transform_5(%arg0: i32, %arg1: i32) -> (i32, i32, i32) {
    %c0_i32 = arith.constant 0 : i32
    %c0_i32_0 = arith.constant 0 : i32
    return %arg1, %arg0, %c0_i32 : i32, i32, i32
  }
}

module attributes {stable_mosaic.version = 11 : i64} {
  func.func @_dilated_gru_kernel(%arg0: i32, %arg1: i32, %arg2: memref<8x16x16xf32, #tpu.memory_space<vmem>>, %arg3: memref<16x384xbf16, #tpu.memory_space<vmem>>, %arg4: memref<128x384xbf16, #tpu.memory_space<vmem>>, %arg5: memref<1x384xf32, #tpu.memory_space<vmem>>, %arg6: memref<1x128xf32, #tpu.memory_space<vmem>>, %arg7: memref<8x16x128xbf16, #tpu.memory_space<vmem>>, %arg8: memref<16x128xf32, #tpu.memory_space<vmem>>, %arg9: memref<128x384xf32, #tpu.memory_space<vmem>>) attributes {dimension_semantics = [#tpu.dimension_semantics<parallel>, #tpu.dimension_semantics<arbitrary>], iteration_bounds = array<i64: 1, 1>, scalar_prefetch = 0 : i64, scratch_operands = 2 : i64, tpu.core_type = #tpu.core_type<tc>, window_params = [{transform_indices = @transform_0, window_bounds = array<i64: 8, 16, 16>}, {pipeline_mode = #tpu.pipeline_mode<synchronous>, transform_indices = @transform_1, window_bounds = array<i64: 16, 384>}, {pipeline_mode = #tpu.pipeline_mode<synchronous>, transform_indices = @transform_2, window_bounds = array<i64: 128, 384>}, {pipeline_mode = #tpu.pipeline_mode<synchronous>, transform_indices = @transform_3, window_bounds = array<i64: 1, 384>}, {pipeline_mode = #tpu.pipeline_mode<synchronous>, transform_indices = @transform_4, window_bounds = array<i64: 1, 128>}, {transform_indices = @transform_5, window_bounds = array<i64: 8, 16, 128>}]} {
    %c0_i32 = arith.constant 0 : i32
    %0 = arith.cmpi eq, %arg1, %c0_i32 : i32
    %1 = arith.extui %0 : i1 to i32
    %c0_i32_0 = arith.constant 0 : i32
    %2 = arith.cmpi ne, %1, %c0_i32_0 : i32
    scf.if %2 {
      %cst_81 = arith.constant 0.000000e+00 : f32
      %328 = vector.broadcast %cst_81 : f32 to vector<16x128xf32>
      %c0_82 = arith.constant 0 : index
      %c0_83 = arith.constant 0 : index
      %329 = vector.load %arg8[%c0_82, %c0_83] : memref<16x128xf32, #tpu.memory_space<vmem>>, vector<16x128xf32>
      tpu.vector_store %arg8[%c0_82, %c0_83], %328 {strides = array<i32>} : memref<16x128xf32, #tpu.memory_space<vmem>>, vector<16x128xf32>,
    } else {
    }
    %c0 = arith.constant 0 : index
    %c0_1 = arith.constant 0 : index
    %c0_2 = arith.constant 0 : index
    %3 = vector.load %arg2[%c0, %c0_1, %c0_2] : memref<8x16x16xf32, #tpu.memory_space<vmem>>, vector<8x16x16xf32>
    %4 = vector.shape_cast %3 : vector<8x16x16xf32> to vector<128x16xf32>
    %5 = arith.truncf %4 : vector<128x16xf32> to vector<128x16xbf16>
    %c0_3 = arith.constant 0 : index
    %c0_4 = arith.constant 0 : index
    %6 = vector.load %arg3[%c0_3, %c0_4] : memref<16x384xbf16, #tpu.memory_space<vmem>>, vector<16x384xbf16>
    %cst = arith.constant dense<0.000000e+00> : vector<128x384xf32>
    %7 = tpu.matmul %5, %6, %cst {dimension_numbers = #tpu.dot_dimension_numbers<[1], [0], [0], [1], [0, 0, 1, 1], [], []>} : vector<128x16xbf16>, vector<16x384xbf16>, vector<128x384xf32> -> vector<128x384xf32>
    %c0_5 = arith.constant 0 : index
    %c0_6 = arith.constant 0 : index
    %8 = vector.load %arg5[%c0_5, %c0_6] : memref<1x384xf32, #tpu.memory_space<vmem>>, vector<1x384xf32>
    %9 = vector.broadcast %8 : vector<1x384xf32> to vector<128x384xf32>
    %10 = arith.addf %7, %9 : vector<128x384xf32>
    %c0_7 = arith.constant 0 : index
    %c0_8 = arith.constant 0 : index
    %11 = vector.load %arg9[%c0_7, %c0_8] : memref<128x384xf32, #tpu.memory_space<vmem>>, vector<128x384xf32>
    tpu.vector_store %arg9[%c0_7, %c0_8], %10 {strides = array<i32>} : memref<128x384xf32, #tpu.memory_space<vmem>>, vector<128x384xf32>,
    %c0_9 = arith.constant 0 : index
    %c0_10 = arith.constant 0 : index
    %12 = vector.load %arg4[%c0_9, %c0_10] : memref<128x384xbf16, #tpu.memory_space<vmem>>, vector<128x384xbf16>
    %c0_11 = arith.constant 0 : index
    %c0_12 = arith.constant 0 : index
    %13 = vector.load %arg6[%c0_11, %c0_12] : memref<1x128xf32, #tpu.memory_space<vmem>>, vector<1x128xf32>
    %c0_13 = arith.constant 0 : index
    %c0_14 = arith.constant 0 : index
    %14 = vector.load %arg8[%c0_13, %c0_14] : memref<16x128xf32, #tpu.memory_space<vmem>>, vector<16x128xf32>
    %c0_i32_15 = arith.constant 0 : i32
    %c16_i32 = arith.constant 16 : i32
    %15 = arith.muli %c0_i32_15, %c16_i32 : i32
    %16 = tpu.assume_multiple %15, 16 : i32
    %17 = arith.index_cast %16 : i32 to index
    %c0_16 = arith.constant 0 : index
    %18 = vector.load %arg9[%17, %c0_16] : memref<128x384xf32, #tpu.memory_space<vmem>>, vector<16x384xf32>
    %19 = arith.truncf %14 : vector<16x128xf32> to vector<16x128xbf16>
    %cst_17 = arith.constant dense<0.000000e+00> : vector<16x384xf32>
    %20 = tpu.matmul %19, %12, %cst_17 {dimension_numbers = #tpu.dot_dimension_numbers<[1], [0], [0], [1], [0, 0, 1, 1], [], []>} : vector<16x128xbf16>, vector<128x384xbf16>, vector<16x384xf32> -> vector<16x384xf32>
    %21 = vector.extract_strided_slice %18 {offsets = [0, 0], sizes = [16, 128], strides = [1, 1]} : vector<16x384xf32> to vector<16x128xf32>
    %22 = vector.extract_strided_slice %20 {offsets = [0, 0], sizes = [16, 128], strides = [1, 1]} : vector<16x384xf32> to vector<16x128xf32>
    %23 = arith.addf %21, %22 : vector<16x128xf32>
    %24 = arith.negf %23 : vector<16x128xf32>
    %25 = math.exp %24 : vector<16x128xf32>
    %cst_18 = arith.constant 1.000000e+00 : f32
    %26 = vector.broadcast %cst_18 : f32 to vector<16x128xf32>
    %27 = arith.addf %26, %25 : vector<16x128xf32>
    %28 = arith.divf %26, %27 : vector<16x128xf32>
    %29 = vector.extract_strided_slice %18 {offsets = [0, 128], sizes = [16, 128], strides = [1, 1]} : vector<16x384xf32> to vector<16x128xf32>
    %30 = vector.extract_strided_slice %20 {offsets = [0, 128], sizes = [16, 128], strides = [1, 1]} : vector<16x384xf32> to vector<16x128xf32>
    %31 = arith.addf %29, %30 : vector<16x128xf32>
    %32 = arith.negf %31 : vector<16x128xf32>
    %33 = math.exp %32 : vector<16x128xf32>
    %cst_19 = arith.constant 1.000000e+00 : f32
    %34 = vector.broadcast %cst_19 : f32 to vector<16x128xf32>
    %35 = arith.addf %34, %33 : vector<16x128xf32>
    %36 = arith.divf %34, %35 : vector<16x128xf32>
    %37 = vector.extract_strided_slice %18 {offsets = [0, 256], sizes = [16, 128], strides = [1, 1]} : vector<16x384xf32> to vector<16x128xf32>
    %38 = vector.extract_strided_slice %20 {offsets = [0, 256], sizes = [16, 128], strides = [1, 1]} : vector<16x384xf32> to vector<16x128xf32>
    %39 = vector.broadcast %13 : vector<1x128xf32> to vector<16x128xf32>
    %40 = arith.addf %38, %39 : vector<16x128xf32>
    %41 = arith.mulf %28, %40 : vector<16x128xf32>
    %42 = arith.addf %37, %41 : vector<16x128xf32>
    %43 = math.tanh %42 : vector<16x128xf32>
    %cst_20 = arith.constant 1.000000e+00 : f32
    %44 = vector.broadcast %cst_20 : f32 to vector<16x128xf32>
    %45 = arith.subf %44, %36 : vector<16x128xf32>
    %46 = arith.mulf %45, %43 : vector<16x128xf32>
    %47 = arith.mulf %36, %14 : vector<16x128xf32>
    %48 = arith.addf %46, %47 : vector<16x128xf32>
    %49 = arith.truncf %48 : vector<16x128xf32> to vector<16x128xbf16>
    %50 = arith.index_cast %c0_i32_15 : i32 to index
    %c0_21 = arith.constant 0 : index
    %c0_22 = arith.constant 0 : index
    %51 = vector.load %arg7[%50, %c0_21, %c0_22] : memref<8x16x128xbf16, #tpu.memory_space<vmem>>, vector<1x16x128xbf16>
    %52 = vector.shape_cast %51 : vector<1x16x128xbf16> to vector<16x128xbf16>
    %53 = vector.shape_cast %49 : vector<16x128xbf16> to vector<1x16x128xbf16>
    tpu.vector_store %arg7[%50, %c0_21, %c0_22], %53 {strides = array<i32>} : memref<8x16x128xbf16, #tpu.memory_space<vmem>>, vector<1x16x128xbf16>,
    %c1_i32 = arith.constant 1 : i32
    %c16_i32_23 = arith.constant 16 : i32
    %54 = arith.muli %c1_i32, %c16_i32_23 : i32
    %55 = tpu.assume_multiple %54, 16 : i32
    %56 = arith.index_cast %55 : i32 to index
    %c0_24 = arith.constant 0 : index
    %57 = vector.load %arg9[%56, %c0_24] : memref<128x384xf32, #tpu.memory_space<vmem>>, vector<16x384xf32>
    %58 = arith.truncf %48 : vector<16x128xf32> to vector<16x128xbf16>
    %cst_25 = arith.constant dense<0.000000e+00> : vector<16x384xf32>
    %59 = tpu.matmul %58, %12, %cst_25 {dimension_numbers = #tpu.dot_dimension_numbers<[1], [0], [0], [1], [0, 0, 1, 1], [], []>} : vector<16x128xbf16>, vector<128x384xbf16>, vector<16x384xf32> -> vector<16x384xf32>
    %60 = vector.extract_strided_slice %57 {offsets = [0, 0], sizes = [16, 128], strides = [1, 1]} : vector<16x384xf32> to vector<16x128xf32>
    %61 = vector.extract_strided_slice %59 {offsets = [0, 0], sizes = [16, 128], strides = [1, 1]} : vector<16x384xf32> to vector<16x128xf32>
    %62 = arith.addf %60, %61 : vector<16x128xf32>
    %63 = arith.negf %62 : vector<16x128xf32>
    %64 = math.exp %63 : vector<16x128xf32>
    %cst_26 = arith.constant 1.000000e+00 : f32
    %65 = vector.broadcast %cst_26 : f32 to vector<16x128xf32>
    %66 = arith.addf %65, %64 : vector<16x128xf32>
    %67 = arith.divf %65, %66 : vector<16x128xf32>
    %68 = vector.extract_strided_slice %57 {offsets = [0, 128], sizes = [16, 128], strides = [1, 1]} : vector<16x384xf32> to vector<16x128xf32>
    %69 = vector.extract_strided_slice %59 {offsets = [0, 128], sizes = [16, 128], strides = [1, 1]} : vector<16x384xf32> to vector<16x128xf32>
    %70 = arith.addf %68, %69 : vector<16x128xf32>
    %71 = arith.negf %70 : vector<16x128xf32>
    %72 = math.exp %71 : vector<16x128xf32>
    %cst_27 = arith.constant 1.000000e+00 : f32
    %73 = vector.broadcast %cst_27 : f32 to vector<16x128xf32>
    %74 = arith.addf %73, %72 : vector<16x128xf32>
    %75 = arith.divf %73, %74 : vector<16x128xf32>
    %76 = vector.extract_strided_slice %57 {offsets = [0, 256], sizes = [16, 128], strides = [1, 1]} : vector<16x384xf32> to vector<16x128xf32>
    %77 = vector.extract_strided_slice %59 {offsets = [0, 256], sizes = [16, 128], strides = [1, 1]} : vector<16x384xf32> to vector<16x128xf32>
    %78 = vector.broadcast %13 : vector<1x128xf32> to vector<16x128xf32>
    %79 = arith.addf %77, %78 : vector<16x128xf32>
    %80 = arith.mulf %67, %79 : vector<16x128xf32>
    %81 = arith.addf %76, %80 : vector<16x128xf32>
    %82 = math.tanh %81 : vector<16x128xf32>
    %cst_28 = arith.constant 1.000000e+00 : f32
    %83 = vector.broadcast %cst_28 : f32 to vector<16x128xf32>
    %84 = arith.subf %83, %75 : vector<16x128xf32>
    %85 = arith.mulf %84, %82 : vector<16x128xf32>
    %86 = arith.mulf %75, %48 : vector<16x128xf32>
    %87 = arith.addf %85, %86 : vector<16x128xf32>
    %88 = arith.truncf %87 : vector<16x128xf32> to vector<16x128xbf16>
    %89 = arith.index_cast %c1_i32 : i32 to index
    %c0_29 = arith.constant 0 : index
    %c0_30 = arith.constant 0 : index
    %90 = vector.load %arg7[%89, %c0_29, %c0_30] : memref<8x16x128xbf16, #tpu.memory_space<vmem>>, vector<1x16x128xbf16>
    %91 = vector.shape_cast %90 : vector<1x16x128xbf16> to vector<16x128xbf16>
    %92 = vector.shape_cast %88 : vector<16x128xbf16> to vector<1x16x128xbf16>
    tpu.vector_store %arg7[%89, %c0_29, %c0_30], %92 {strides = array<i32>} : memref<8x16x128xbf16, #tpu.memory_space<vmem>>, vector<1x16x128xbf16>,
    %c2_i32 = arith.constant 2 : i32
    %c16_i32_31 = arith.constant 16 : i32
    %93 = arith.muli %c2_i32, %c16_i32_31 : i32
    %94 = tpu.assume_multiple %93, 16 : i32
    %95 = arith.index_cast %94 : i32 to index
    %c0_32 = arith.constant 0 : index
    %96 = vector.load %arg9[%95, %c0_32] : memref<128x384xf32, #tpu.memory_space<vmem>>, vector<16x384xf32>
    %97 = arith.truncf %87 : vector<16x128xf32> to vector<16x128xbf16>
    %cst_33 = arith.constant dense<0.000000e+00> : vector<16x384xf32>
    %98 = tpu.matmul %97, %12, %cst_33 {dimension_numbers = #tpu.dot_dimension_numbers<[1], [0], [0], [1], [0, 0, 1, 1], [], []>} : vector<16x128xbf16>, vector<128x384xbf16>, vector<16x384xf32> -> vector<16x384xf32>
    %99 = vector.extract_strided_slice %96 {offsets = [0, 0], sizes = [16, 128], strides = [1, 1]} : vector<16x384xf32> to vector<16x128xf32>
    %100 = vector.extract_strided_slice %98 {offsets = [0, 0], sizes = [16, 128], strides = [1, 1]} : vector<16x384xf32> to vector<16x128xf32>
    %101 = arith.addf %99, %100 : vector<16x128xf32>
    %102 = arith.negf %101 : vector<16x128xf32>
    %103 = math.exp %102 : vector<16x128xf32>
    %cst_34 = arith.constant 1.000000e+00 : f32
    %104 = vector.broadcast %cst_34 : f32 to vector<16x128xf32>
    %105 = arith.addf %104, %103 : vector<16x128xf32>
    %106 = arith.divf %104, %105 : vector<16x128xf32>
    %107 = vector.extract_strided_slice %96 {offsets = [0, 128], sizes = [16, 128], strides = [1, 1]} : vector<16x384xf32> to vector<16x128xf32>
    %108 = vector.extract_strided_slice %98 {offsets = [0, 128], sizes = [16, 128], strides = [1, 1]} : vector<16x384xf32> to vector<16x128xf32>
    %109 = arith.addf %107, %108 : vector<16x128xf32>
    %110 = arith.negf %109 : vector<16x128xf32>
    %111 = math.exp %110 : vector<16x128xf32>
    %cst_35 = arith.constant 1.000000e+00 : f32
    %112 = vector.broadcast %cst_35 : f32 to vector<16x128xf32>
    %113 = arith.addf %112, %111 : vector<16x128xf32>
    %114 = arith.divf %112, %113 : vector<16x128xf32>
    %115 = vector.extract_strided_slice %96 {offsets = [0, 256], sizes = [16, 128], strides = [1, 1]} : vector<16x384xf32> to vector<16x128xf32>
    %116 = vector.extract_strided_slice %98 {offsets = [0, 256], sizes = [16, 128], strides = [1, 1]} : vector<16x384xf32> to vector<16x128xf32>
    %117 = vector.broadcast %13 : vector<1x128xf32> to vector<16x128xf32>
    %118 = arith.addf %116, %117 : vector<16x128xf32>
    %119 = arith.mulf %106, %118 : vector<16x128xf32>
    %120 = arith.addf %115, %119 : vector<16x128xf32>
    %121 = math.tanh %120 : vector<16x128xf32>
    %cst_36 = arith.constant 1.000000e+00 : f32
    %122 = vector.broadcast %cst_36 : f32 to vector<16x128xf32>
    %123 = arith.subf %122, %114 : vector<16x128xf32>
    %124 = arith.mulf %123, %121 : vector<16x128xf32>
    %125 = arith.mulf %114, %87 : vector<16x128xf32>
    %126 = arith.addf %124, %125 : vector<16x128xf32>
    %127 = arith.truncf %126 : vector<16x128xf32> to vector<16x128xbf16>
    %128 = arith.index_cast %c2_i32 : i32 to index
    %c0_37 = arith.constant 0 : index
    %c0_38 = arith.constant 0 : index
    %129 = vector.load %arg7[%128, %c0_37, %c0_38] : memref<8x16x128xbf16, #tpu.memory_space<vmem>>, vector<1x16x128xbf16>
    %130 = vector.shape_cast %129 : vector<1x16x128xbf16> to vector<16x128xbf16>
    %131 = vector.shape_cast %127 : vector<16x128xbf16> to vector<1x16x128xbf16>
    tpu.vector_store %arg7[%128, %c0_37, %c0_38], %131 {strides = array<i32>} : memref<8x16x128xbf16, #tpu.memory_space<vmem>>, vector<1x16x128xbf16>,
    %c3_i32 = arith.constant 3 : i32
    %c16_i32_39 = arith.constant 16 : i32
    %132 = arith.muli %c3_i32, %c16_i32_39 : i32
    %133 = tpu.assume_multiple %132, 16 : i32
    %134 = arith.index_cast %133 : i32 to index
    %c0_40 = arith.constant 0 : index
    %135 = vector.load %arg9[%134, %c0_40] : memref<128x384xf32, #tpu.memory_space<vmem>>, vector<16x384xf32>
    %136 = arith.truncf %126 : vector<16x128xf32> to vector<16x128xbf16>
    %cst_41 = arith.constant dense<0.000000e+00> : vector<16x384xf32>
    %137 = tpu.matmul %136, %12, %cst_41 {dimension_numbers = #tpu.dot_dimension_numbers<[1], [0], [0], [1], [0, 0, 1, 1], [], []>} : vector<16x128xbf16>, vector<128x384xbf16>, vector<16x384xf32> -> vector<16x384xf32>
    %138 = vector.extract_strided_slice %135 {offsets = [0, 0], sizes = [16, 128], strides = [1, 1]} : vector<16x384xf32> to vector<16x128xf32>
    %139 = vector.extract_strided_slice %137 {offsets = [0, 0], sizes = [16, 128], strides = [1, 1]} : vector<16x384xf32> to vector<16x128xf32>
    %140 = arith.addf %138, %139 : vector<16x128xf32>
    %141 = arith.negf %140 : vector<16x128xf32>
    %142 = math.exp %141 : vector<16x128xf32>
    %cst_42 = arith.constant 1.000000e+00 : f32
    %143 = vector.broadcast %cst_42 : f32 to vector<16x128xf32>
    %144 = arith.addf %143, %142 : vector<16x128xf32>
    %145 = arith.divf %143, %144 : vector<16x128xf32>
    %146 = vector.extract_strided_slice %135 {offsets = [0, 128], sizes = [16, 128], strides = [1, 1]} : vector<16x384xf32> to vector<16x128xf32>
    %147 = vector.extract_strided_slice %137 {offsets = [0, 128], sizes = [16, 128], strides = [1, 1]} : vector<16x384xf32> to vector<16x128xf32>
    %148 = arith.addf %146, %147 : vector<16x128xf32>
    %149 = arith.negf %148 : vector<16x128xf32>
    %150 = math.exp %149 : vector<16x128xf32>
    %cst_43 = arith.constant 1.000000e+00 : f32
    %151 = vector.broadcast %cst_43 : f32 to vector<16x128xf32>
    %152 = arith.addf %151, %150 : vector<16x128xf32>
    %153 = arith.divf %151, %152 : vector<16x128xf32>
    %154 = vector.extract_strided_slice %135 {offsets = [0, 256], sizes = [16, 128], strides = [1, 1]} : vector<16x384xf32> to vector<16x128xf32>
    %155 = vector.extract_strided_slice %137 {offsets = [0, 256], sizes = [16, 128], strides = [1, 1]} : vector<16x384xf32> to vector<16x128xf32>
    %156 = vector.broadcast %13 : vector<1x128xf32> to vector<16x128xf32>
    %157 = arith.addf %155, %156 : vector<16x128xf32>
    %158 = arith.mulf %145, %157 : vector<16x128xf32>
    %159 = arith.addf %154, %158 : vector<16x128xf32>
    %160 = math.tanh %159 : vector<16x128xf32>
    %cst_44 = arith.constant 1.000000e+00 : f32
    %161 = vector.broadcast %cst_44 : f32 to vector<16x128xf32>
    %162 = arith.subf %161, %153 : vector<16x128xf32>
    %163 = arith.mulf %162, %160 : vector<16x128xf32>
    %164 = arith.mulf %153, %126 : vector<16x128xf32>
    %165 = arith.addf %163, %164 : vector<16x128xf32>
    %166 = arith.truncf %165 : vector<16x128xf32> to vector<16x128xbf16>
    %167 = arith.index_cast %c3_i32 : i32 to index
    %c0_45 = arith.constant 0 : index
    %c0_46 = arith.constant 0 : index
    %168 = vector.load %arg7[%167, %c0_45, %c0_46] : memref<8x16x128xbf16, #tpu.memory_space<vmem>>, vector<1x16x128xbf16>
    %169 = vector.shape_cast %168 : vector<1x16x128xbf16> to vector<16x128xbf16>
    %170 = vector.shape_cast %166 : vector<16x128xbf16> to vector<1x16x128xbf16>
    tpu.vector_store %arg7[%167, %c0_45, %c0_46], %170 {strides = array<i32>} : memref<8x16x128xbf16, #tpu.memory_space<vmem>>, vector<1x16x128xbf16>,
    %c4_i32 = arith.constant 4 : i32
    %c16_i32_47 = arith.constant 16 : i32
    %171 = arith.muli %c4_i32, %c16_i32_47 : i32
    %172 = tpu.assume_multiple %171, 16 : i32
    %173 = arith.index_cast %172 : i32 to index
    %c0_48 = arith.constant 0 : index
    %174 = vector.load %arg9[%173, %c0_48] : memref<128x384xf32, #tpu.memory_space<vmem>>, vector<16x384xf32>
    %175 = arith.truncf %165 : vector<16x128xf32> to vector<16x128xbf16>
    %cst_49 = arith.constant dense<0.000000e+00> : vector<16x384xf32>
    %176 = tpu.matmul %175, %12, %cst_49 {dimension_numbers = #tpu.dot_dimension_numbers<[1], [0], [0], [1], [0, 0, 1, 1], [], []>} : vector<16x128xbf16>, vector<128x384xbf16>, vector<16x384xf32> -> vector<16x384xf32>
    %177 = vector.extract_strided_slice %174 {offsets = [0, 0], sizes = [16, 128], strides = [1, 1]} : vector<16x384xf32> to vector<16x128xf32>
    %178 = vector.extract_strided_slice %176 {offsets = [0, 0], sizes = [16, 128], strides = [1, 1]} : vector<16x384xf32> to vector<16x128xf32>
    %179 = arith.addf %177, %178 : vector<16x128xf32>
    %180 = arith.negf %179 : vector<16x128xf32>
    %181 = math.exp %180 : vector<16x128xf32>
    %cst_50 = arith.constant 1.000000e+00 : f32
    %182 = vector.broadcast %cst_50 : f32 to vector<16x128xf32>
    %183 = arith.addf %182, %181 : vector<16x128xf32>
    %184 = arith.divf %182, %183 : vector<16x128xf32>
    %185 = vector.extract_strided_slice %174 {offsets = [0, 128], sizes = [16, 128], strides = [1, 1]} : vector<16x384xf32> to vector<16x128xf32>
    %186 = vector.extract_strided_slice %176 {offsets = [0, 128], sizes = [16, 128], strides = [1, 1]} : vector<16x384xf32> to vector<16x128xf32>
    %187 = arith.addf %185, %186 : vector<16x128xf32>
    %188 = arith.negf %187 : vector<16x128xf32>
    %189 = math.exp %188 : vector<16x128xf32>
    %cst_51 = arith.constant 1.000000e+00 : f32
    %190 = vector.broadcast %cst_51 : f32 to vector<16x128xf32>
    %191 = arith.addf %190, %189 : vector<16x128xf32>
    %192 = arith.divf %190, %191 : vector<16x128xf32>
    %193 = vector.extract_strided_slice %174 {offsets = [0, 256], sizes = [16, 128], strides = [1, 1]} : vector<16x384xf32> to vector<16x128xf32>
    %194 = vector.extract_strided_slice %176 {offsets = [0, 256], sizes = [16, 128], strides = [1, 1]} : vector<16x384xf32> to vector<16x128xf32>
    %195 = vector.broadcast %13 : vector<1x128xf32> to vector<16x128xf32>
    %196 = arith.addf %194, %195 : vector<16x128xf32>
    %197 = arith.mulf %184, %196 : vector<16x128xf32>
    %198 = arith.addf %193, %197 : vector<16x128xf32>
    %199 = math.tanh %198 : vector<16x128xf32>
    %cst_52 = arith.constant 1.000000e+00 : f32
    %200 = vector.broadcast %cst_52 : f32 to vector<16x128xf32>
    %201 = arith.subf %200, %192 : vector<16x128xf32>
    %202 = arith.mulf %201, %199 : vector<16x128xf32>
    %203 = arith.mulf %192, %165 : vector<16x128xf32>
    %204 = arith.addf %202, %203 : vector<16x128xf32>
    %205 = arith.truncf %204 : vector<16x128xf32> to vector<16x128xbf16>
    %206 = arith.index_cast %c4_i32 : i32 to index
    %c0_53 = arith.constant 0 : index
    %c0_54 = arith.constant 0 : index
    %207 = vector.load %arg7[%206, %c0_53, %c0_54] : memref<8x16x128xbf16, #tpu.memory_space<vmem>>, vector<1x16x128xbf16>
    %208 = vector.shape_cast %207 : vector<1x16x128xbf16> to vector<16x128xbf16>
    %209 = vector.shape_cast %205 : vector<16x128xbf16> to vector<1x16x128xbf16>
    tpu.vector_store %arg7[%206, %c0_53, %c0_54], %209 {strides = array<i32>} : memref<8x16x128xbf16, #tpu.memory_space<vmem>>, vector<1x16x128xbf16>,
    %c5_i32 = arith.constant 5 : i32
    %c16_i32_55 = arith.constant 16 : i32
    %210 = arith.muli %c5_i32, %c16_i32_55 : i32
    %211 = tpu.assume_multiple %210, 16 : i32
    %212 = arith.index_cast %211 : i32 to index
    %c0_56 = arith.constant 0 : index
    %213 = vector.load %arg9[%212, %c0_56] : memref<128x384xf32, #tpu.memory_space<vmem>>, vector<16x384xf32>
    %214 = arith.truncf %204 : vector<16x128xf32> to vector<16x128xbf16>
    %cst_57 = arith.constant dense<0.000000e+00> : vector<16x384xf32>
    %215 = tpu.matmul %214, %12, %cst_57 {dimension_numbers = #tpu.dot_dimension_numbers<[1], [0], [0], [1], [0, 0, 1, 1], [], []>} : vector<16x128xbf16>, vector<128x384xbf16>, vector<16x384xf32> -> vector<16x384xf32>
    %216 = vector.extract_strided_slice %213 {offsets = [0, 0], sizes = [16, 128], strides = [1, 1]} : vector<16x384xf32> to vector<16x128xf32>
    %217 = vector.extract_strided_slice %215 {offsets = [0, 0], sizes = [16, 128], strides = [1, 1]} : vector<16x384xf32> to vector<16x128xf32>
    %218 = arith.addf %216, %217 : vector<16x128xf32>
    %219 = arith.negf %218 : vector<16x128xf32>
    %220 = math.exp %219 : vector<16x128xf32>
    %cst_58 = arith.constant 1.000000e+00 : f32
    %221 = vector.broadcast %cst_58 : f32 to vector<16x128xf32>
    %222 = arith.addf %221, %220 : vector<16x128xf32>
    %223 = arith.divf %221, %222 : vector<16x128xf32>
    %224 = vector.extract_strided_slice %213 {offsets = [0, 128], sizes = [16, 128], strides = [1, 1]} : vector<16x384xf32> to vector<16x128xf32>
    %225 = vector.extract_strided_slice %215 {offsets = [0, 128], sizes = [16, 128], strides = [1, 1]} : vector<16x384xf32> to vector<16x128xf32>
    %226 = arith.addf %224, %225 : vector<16x128xf32>
    %227 = arith.negf %226 : vector<16x128xf32>
    %228 = math.exp %227 : vector<16x128xf32>
    %cst_59 = arith.constant 1.000000e+00 : f32
    %229 = vector.broadcast %cst_59 : f32 to vector<16x128xf32>
    %230 = arith.addf %229, %228 : vector<16x128xf32>
    %231 = arith.divf %229, %230 : vector<16x128xf32>
    %232 = vector.extract_strided_slice %213 {offsets = [0, 256], sizes = [16, 128], strides = [1, 1]} : vector<16x384xf32> to vector<16x128xf32>
    %233 = vector.extract_strided_slice %215 {offsets = [0, 256], sizes = [16, 128], strides = [1, 1]} : vector<16x384xf32> to vector<16x128xf32>
    %234 = vector.broadcast %13 : vector<1x128xf32> to vector<16x128xf32>
    %235 = arith.addf %233, %234 : vector<16x128xf32>
    %236 = arith.mulf %223, %235 : vector<16x128xf32>
    %237 = arith.addf %232, %236 : vector<16x128xf32>
    %238 = math.tanh %237 : vector<16x128xf32>
    %cst_60 = arith.constant 1.000000e+00 : f32
    %239 = vector.broadcast %cst_60 : f32 to vector<16x128xf32>
    %240 = arith.subf %239, %231 : vector<16x128xf32>
    %241 = arith.mulf %240, %238 : vector<16x128xf32>
    %242 = arith.mulf %231, %204 : vector<16x128xf32>
    %243 = arith.addf %241, %242 : vector<16x128xf32>
    %244 = arith.truncf %243 : vector<16x128xf32> to vector<16x128xbf16>
    %245 = arith.index_cast %c5_i32 : i32 to index
    %c0_61 = arith.constant 0 : index
    %c0_62 = arith.constant 0 : index
    %246 = vector.load %arg7[%245, %c0_61, %c0_62] : memref<8x16x128xbf16, #tpu.memory_space<vmem>>, vector<1x16x128xbf16>
    %247 = vector.shape_cast %246 : vector<1x16x128xbf16> to vector<16x128xbf16>
    %248 = vector.shape_cast %244 : vector<16x128xbf16> to vector<1x16x128xbf16>
    tpu.vector_store %arg7[%245, %c0_61, %c0_62], %248 {strides = array<i32>} : memref<8x16x128xbf16, #tpu.memory_space<vmem>>, vector<1x16x128xbf16>,
    %c6_i32 = arith.constant 6 : i32
    %c16_i32_63 = arith.constant 16 : i32
    %249 = arith.muli %c6_i32, %c16_i32_63 : i32
    %250 = tpu.assume_multiple %249, 16 : i32
    %251 = arith.index_cast %250 : i32 to index
    %c0_64 = arith.constant 0 : index
    %252 = vector.load %arg9[%251, %c0_64] : memref<128x384xf32, #tpu.memory_space<vmem>>, vector<16x384xf32>
    %253 = arith.truncf %243 : vector<16x128xf32> to vector<16x128xbf16>
    %cst_65 = arith.constant dense<0.000000e+00> : vector<16x384xf32>
    %254 = tpu.matmul %253, %12, %cst_65 {dimension_numbers = #tpu.dot_dimension_numbers<[1], [0], [0], [1], [0, 0, 1, 1], [], []>} : vector<16x128xbf16>, vector<128x384xbf16>, vector<16x384xf32> -> vector<16x384xf32>
    %255 = vector.extract_strided_slice %252 {offsets = [0, 0], sizes = [16, 128], strides = [1, 1]} : vector<16x384xf32> to vector<16x128xf32>
    %256 = vector.extract_strided_slice %254 {offsets = [0, 0], sizes = [16, 128], strides = [1, 1]} : vector<16x384xf32> to vector<16x128xf32>
    %257 = arith.addf %255, %256 : vector<16x128xf32>
    %258 = arith.negf %257 : vector<16x128xf32>
    %259 = math.exp %258 : vector<16x128xf32>
    %cst_66 = arith.constant 1.000000e+00 : f32
    %260 = vector.broadcast %cst_66 : f32 to vector<16x128xf32>
    %261 = arith.addf %260, %259 : vector<16x128xf32>
    %262 = arith.divf %260, %261 : vector<16x128xf32>
    %263 = vector.extract_strided_slice %252 {offsets = [0, 128], sizes = [16, 128], strides = [1, 1]} : vector<16x384xf32> to vector<16x128xf32>
    %264 = vector.extract_strided_slice %254 {offsets = [0, 128], sizes = [16, 128], strides = [1, 1]} : vector<16x384xf32> to vector<16x128xf32>
    %265 = arith.addf %263, %264 : vector<16x128xf32>
    %266 = arith.negf %265 : vector<16x128xf32>
    %267 = math.exp %266 : vector<16x128xf32>
    %cst_67 = arith.constant 1.000000e+00 : f32
    %268 = vector.broadcast %cst_67 : f32 to vector<16x128xf32>
    %269 = arith.addf %268, %267 : vector<16x128xf32>
    %270 = arith.divf %268, %269 : vector<16x128xf32>
    %271 = vector.extract_strided_slice %252 {offsets = [0, 256], sizes = [16, 128], strides = [1, 1]} : vector<16x384xf32> to vector<16x128xf32>
    %272 = vector.extract_strided_slice %254 {offsets = [0, 256], sizes = [16, 128], strides = [1, 1]} : vector<16x384xf32> to vector<16x128xf32>
    %273 = vector.broadcast %13 : vector<1x128xf32> to vector<16x128xf32>
    %274 = arith.addf %272, %273 : vector<16x128xf32>
    %275 = arith.mulf %262, %274 : vector<16x128xf32>
    %276 = arith.addf %271, %275 : vector<16x128xf32>
    %277 = math.tanh %276 : vector<16x128xf32>
    %cst_68 = arith.constant 1.000000e+00 : f32
    %278 = vector.broadcast %cst_68 : f32 to vector<16x128xf32>
    %279 = arith.subf %278, %270 : vector<16x128xf32>
    %280 = arith.mulf %279, %277 : vector<16x128xf32>
    %281 = arith.mulf %270, %243 : vector<16x128xf32>
    %282 = arith.addf %280, %281 : vector<16x128xf32>
    %283 = arith.truncf %282 : vector<16x128xf32> to vector<16x128xbf16>
    %284 = arith.index_cast %c6_i32 : i32 to index
    %c0_69 = arith.constant 0 : index
    %c0_70 = arith.constant 0 : index
    %285 = vector.load %arg7[%284, %c0_69, %c0_70] : memref<8x16x128xbf16, #tpu.memory_space<vmem>>, vector<1x16x128xbf16>
    %286 = vector.shape_cast %285 : vector<1x16x128xbf16> to vector<16x128xbf16>
    %287 = vector.shape_cast %283 : vector<16x128xbf16> to vector<1x16x128xbf16>
    tpu.vector_store %arg7[%284, %c0_69, %c0_70], %287 {strides = array<i32>} : memref<8x16x128xbf16, #tpu.memory_space<vmem>>, vector<1x16x128xbf16>,
    %c7_i32 = arith.constant 7 : i32
    %c16_i32_71 = arith.constant 16 : i32
    %288 = arith.muli %c7_i32, %c16_i32_71 : i32
    %289 = tpu.assume_multiple %288, 16 : i32
    %290 = arith.index_cast %289 : i32 to index
    %c0_72 = arith.constant 0 : index
    %291 = vector.load %arg9[%290, %c0_72] : memref<128x384xf32, #tpu.memory_space<vmem>>, vector<16x384xf32>
    %292 = arith.truncf %282 : vector<16x128xf32> to vector<16x128xbf16>
    %cst_73 = arith.constant dense<0.000000e+00> : vector<16x384xf32>
    %293 = tpu.matmul %292, %12, %cst_73 {dimension_numbers = #tpu.dot_dimension_numbers<[1], [0], [0], [1], [0, 0, 1, 1], [], []>} : vector<16x128xbf16>, vector<128x384xbf16>, vector<16x384xf32> -> vector<16x384xf32>
    %294 = vector.extract_strided_slice %291 {offsets = [0, 0], sizes = [16, 128], strides = [1, 1]} : vector<16x384xf32> to vector<16x128xf32>
    %295 = vector.extract_strided_slice %293 {offsets = [0, 0], sizes = [16, 128], strides = [1, 1]} : vector<16x384xf32> to vector<16x128xf32>
    %296 = arith.addf %294, %295 : vector<16x128xf32>
    %297 = arith.negf %296 : vector<16x128xf32>
    %298 = math.exp %297 : vector<16x128xf32>
    %cst_74 = arith.constant 1.000000e+00 : f32
    %299 = vector.broadcast %cst_74 : f32 to vector<16x128xf32>
    %300 = arith.addf %299, %298 : vector<16x128xf32>
    %301 = arith.divf %299, %300 : vector<16x128xf32>
    %302 = vector.extract_strided_slice %291 {offsets = [0, 128], sizes = [16, 128], strides = [1, 1]} : vector<16x384xf32> to vector<16x128xf32>
    %303 = vector.extract_strided_slice %293 {offsets = [0, 128], sizes = [16, 128], strides = [1, 1]} : vector<16x384xf32> to vector<16x128xf32>
    %304 = arith.addf %302, %303 : vector<16x128xf32>
    %305 = arith.negf %304 : vector<16x128xf32>
    %306 = math.exp %305 : vector<16x128xf32>
    %cst_75 = arith.constant 1.000000e+00 : f32
    %307 = vector.broadcast %cst_75 : f32 to vector<16x128xf32>
    %308 = arith.addf %307, %306 : vector<16x128xf32>
    %309 = arith.divf %307, %308 : vector<16x128xf32>
    %310 = vector.extract_strided_slice %291 {offsets = [0, 256], sizes = [16, 128], strides = [1, 1]} : vector<16x384xf32> to vector<16x128xf32>
    %311 = vector.extract_strided_slice %293 {offsets = [0, 256], sizes = [16, 128], strides = [1, 1]} : vector<16x384xf32> to vector<16x128xf32>
    %312 = vector.broadcast %13 : vector<1x128xf32> to vector<16x128xf32>
    %313 = arith.addf %311, %312 : vector<16x128xf32>
    %314 = arith.mulf %301, %313 : vector<16x128xf32>
    %315 = arith.addf %310, %314 : vector<16x128xf32>
    %316 = math.tanh %315 : vector<16x128xf32>
    %cst_76 = arith.constant 1.000000e+00 : f32
    %317 = vector.broadcast %cst_76 : f32 to vector<16x128xf32>
    %318 = arith.subf %317, %309 : vector<16x128xf32>
    %319 = arith.mulf %318, %316 : vector<16x128xf32>
    %320 = arith.mulf %309, %282 : vector<16x128xf32>
    %321 = arith.addf %319, %320 : vector<16x128xf32>
    %322 = arith.truncf %321 : vector<16x128xf32> to vector<16x128xbf16>
    %323 = arith.index_cast %c7_i32 : i32 to index
    %c0_77 = arith.constant 0 : index
    %c0_78 = arith.constant 0 : index
    %324 = vector.load %arg7[%323, %c0_77, %c0_78] : memref<8x16x128xbf16, #tpu.memory_space<vmem>>, vector<1x16x128xbf16>
    %325 = vector.shape_cast %324 : vector<1x16x128xbf16> to vector<16x128xbf16>
    %326 = vector.shape_cast %322 : vector<16x128xbf16> to vector<1x16x128xbf16>
    tpu.vector_store %arg7[%323, %c0_77, %c0_78], %326 {strides = array<i32>} : memref<8x16x128xbf16, #tpu.memory_space<vmem>>, vector<1x16x128xbf16>,
    %c8_i32 = arith.constant 8 : i32
    %c0_79 = arith.constant 0 : index
    %c0_80 = arith.constant 0 : index
    %327 = vector.load %arg8[%c0_79, %c0_80] : memref<16x128xf32, #tpu.memory_space<vmem>>, vector<16x128xf32>
    tpu.vector_store %arg8[%c0_79, %c0_80], %321 {strides = array<i32>} : memref<16x128xf32, #tpu.memory_space<vmem>>, vector<16x128xf32>,
    return
  }
  func.func @transform_0(%arg0: i32, %arg1: i32) -> (i32, i32, i32) {
    %c0_i32 = arith.constant 0 : i32
    %c0_i32_0 = arith.constant 0 : i32
    return %arg1, %arg0, %c0_i32 : i32, i32, i32
  }
  func.func @transform_1(%arg0: i32, %arg1: i32) -> (i32, i32) {
    %c0_i32 = arith.constant 0 : i32
    %c0_i32_0 = arith.constant 0 : i32
    %c0_i32_1 = arith.constant 0 : i32
    return %c0_i32, %c0_i32_0 : i32, i32
  }
  func.func @transform_2(%arg0: i32, %arg1: i32) -> (i32, i32) {
    %c0_i32 = arith.constant 0 : i32
    %c0_i32_0 = arith.constant 0 : i32
    %c0_i32_1 = arith.constant 0 : i32
    return %c0_i32, %c0_i32_0 : i32, i32
  }
  func.func @transform_3(%arg0: i32, %arg1: i32) -> (i32, i32) {
    %c0_i32 = arith.constant 0 : i32
    %c0_i32_0 = arith.constant 0 : i32
    %c0_i32_1 = arith.constant 0 : i32
    return %c0_i32, %c0_i32_0 : i32, i32
  }
  func.func @transform_4(%arg0: i32, %arg1: i32) -> (i32, i32) {
    %c0_i32 = arith.constant 0 : i32
    %c0_i32_0 = arith.constant 0 : i32
    %c0_i32_1 = arith.constant 0 : i32
    return %c0_i32, %c0_i32_0 : i32, i32
  }
  func.func @transform_5(%arg0: i32, %arg1: i32) -> (i32, i32, i32) {
    %c0_i32 = arith.constant 0 : i32
    %c0_i32_0 = arith.constant 0 : i32
    return %arg1, %arg0, %c0_i32 : i32, i32, i32
  }
}

module attributes {stable_mosaic.version = 11 : i64} {
  func.func @_dilated_gru_kernel(%arg0: i32, %arg1: i32, %arg2: memref<1x32x32xbf16, #tpu.memory_space<vmem>>, %arg3: memref<32x384xbf16, #tpu.memory_space<vmem>>, %arg4: memref<128x384xbf16, #tpu.memory_space<vmem>>, %arg5: memref<1x384xf32, #tpu.memory_space<vmem>>, %arg6: memref<1x128xf32, #tpu.memory_space<vmem>>, %arg7: memref<1x32x128xbf16, #tpu.memory_space<vmem>>, %arg8: memref<32x128xf32, #tpu.memory_space<vmem>>, %arg9: memref<32x384xf32, #tpu.memory_space<vmem>>) attributes {dimension_semantics = [#tpu.dimension_semantics<parallel>, #tpu.dimension_semantics<arbitrary>], iteration_bounds = array<i64: 1, 1>, scalar_prefetch = 0 : i64, scratch_operands = 2 : i64, tpu.core_type = #tpu.core_type<tc>, window_params = [{transform_indices = @transform_0, window_bounds = array<i64: 1, 32, 32>}, {pipeline_mode = #tpu.pipeline_mode<synchronous>, transform_indices = @transform_1, window_bounds = array<i64: 32, 384>}, {pipeline_mode = #tpu.pipeline_mode<synchronous>, transform_indices = @transform_2, window_bounds = array<i64: 128, 384>}, {pipeline_mode = #tpu.pipeline_mode<synchronous>, transform_indices = @transform_3, window_bounds = array<i64: 1, 384>}, {pipeline_mode = #tpu.pipeline_mode<synchronous>, transform_indices = @transform_4, window_bounds = array<i64: 1, 128>}, {transform_indices = @transform_5, window_bounds = array<i64: 1, 32, 128>}]} {
    %c0_i32 = arith.constant 0 : i32
    %0 = arith.cmpi eq, %arg1, %c0_i32 : i32
    %1 = arith.extui %0 : i1 to i32
    %c0_i32_0 = arith.constant 0 : i32
    %2 = arith.cmpi ne, %1, %c0_i32_0 : i32
    scf.if %2 {
      %cst_25 = arith.constant 0.000000e+00 : f32
      %54 = vector.broadcast %cst_25 : f32 to vector<32x128xf32>
      %c0_26 = arith.constant 0 : index
      %c0_27 = arith.constant 0 : index
      %55 = vector.load %arg8[%c0_26, %c0_27] : memref<32x128xf32, #tpu.memory_space<vmem>>, vector<32x128xf32>
      tpu.vector_store %arg8[%c0_26, %c0_27], %54 {strides = array<i32>} : memref<32x128xf32, #tpu.memory_space<vmem>>, vector<32x128xf32>,
    } else {
    }
    %c0 = arith.constant 0 : index
    %c0_1 = arith.constant 0 : index
    %c0_2 = arith.constant 0 : index
    %3 = vector.load %arg2[%c0, %c0_1, %c0_2] : memref<1x32x32xbf16, #tpu.memory_space<vmem>>, vector<1x32x32xbf16>
    %4 = vector.shape_cast %3 : vector<1x32x32xbf16> to vector<32x32xbf16>
    %c0_3 = arith.constant 0 : index
    %c0_4 = arith.constant 0 : index
    %5 = vector.load %arg3[%c0_3, %c0_4] : memref<32x384xbf16, #tpu.memory_space<vmem>>, vector<32x384xbf16>
    %cst = arith.constant dense<0.000000e+00> : vector<32x384xf32>
    %6 = tpu.matmul %4, %5, %cst {dimension_numbers = #tpu.dot_dimension_numbers<[1], [0], [0], [1], [0, 0, 1, 1], [], []>} : vector<32x32xbf16>, vector<32x384xbf16>, vector<32x384xf32> -> vector<32x384xf32>
    %c0_5 = arith.constant 0 : index
    %c0_6 = arith.constant 0 : index
    %7 = vector.load %arg5[%c0_5, %c0_6] : memref<1x384xf32, #tpu.memory_space<vmem>>, vector<1x384xf32>
    %8 = vector.broadcast %7 : vector<1x384xf32> to vector<32x384xf32>
    %9 = arith.addf %6, %8 : vector<32x384xf32>
    %c0_7 = arith.constant 0 : index
    %c0_8 = arith.constant 0 : index
    %10 = vector.load %arg9[%c0_7, %c0_8] : memref<32x384xf32, #tpu.memory_space<vmem>>, vector<32x384xf32>
    tpu.vector_store %arg9[%c0_7, %c0_8], %9 {strides = array<i32>} : memref<32x384xf32, #tpu.memory_space<vmem>>, vector<32x384xf32>,
    %c0_9 = arith.constant 0 : index
    %c0_10 = arith.constant 0 : index
    %11 = vector.load %arg4[%c0_9, %c0_10] : memref<128x384xbf16, #tpu.memory_space<vmem>>, vector<128x384xbf16>
    %c0_11 = arith.constant 0 : index
    %c0_12 = arith.constant 0 : index
    %12 = vector.load %arg6[%c0_11, %c0_12] : memref<1x128xf32, #tpu.memory_space<vmem>>, vector<1x128xf32>
    %c0_13 = arith.constant 0 : index
    %c0_14 = arith.constant 0 : index
    %13 = vector.load %arg8[%c0_13, %c0_14] : memref<32x128xf32, #tpu.memory_space<vmem>>, vector<32x128xf32>
    %c0_i32_15 = arith.constant 0 : i32
    %c32_i32 = arith.constant 32 : i32
    %14 = arith.muli %c0_i32_15, %c32_i32 : i32
    %15 = tpu.assume_multiple %14, 32 : i32
    %16 = arith.index_cast %15 : i32 to index
    %c0_16 = arith.constant 0 : index
    %17 = vector.load %arg9[%16, %c0_16] : memref<32x384xf32, #tpu.memory_space<vmem>>, vector<32x384xf32>
    %18 = arith.truncf %13 : vector<32x128xf32> to vector<32x128xbf16>
    %cst_17 = arith.constant dense<0.000000e+00> : vector<32x384xf32>
    %19 = tpu.matmul %18, %11, %cst_17 {dimension_numbers = #tpu.dot_dimension_numbers<[1], [0], [0], [1], [0, 0, 1, 1], [], []>} : vector<32x128xbf16>, vector<128x384xbf16>, vector<32x384xf32> -> vector<32x384xf32>
    %20 = vector.extract_strided_slice %17 {offsets = [0, 0], sizes = [32, 128], strides = [1, 1]} : vector<32x384xf32> to vector<32x128xf32>
    %21 = vector.extract_strided_slice %19 {offsets = [0, 0], sizes = [32, 128], strides = [1, 1]} : vector<32x384xf32> to vector<32x128xf32>
    %22 = arith.addf %20, %21 : vector<32x128xf32>
    %23 = arith.negf %22 : vector<32x128xf32>
    %24 = math.exp %23 : vector<32x128xf32>
    %cst_18 = arith.constant 1.000000e+00 : f32
    %25 = vector.broadcast %cst_18 : f32 to vector<32x128xf32>
    %26 = arith.addf %25, %24 : vector<32x128xf32>
    %27 = arith.divf %25, %26 : vector<32x128xf32>
    %28 = vector.extract_strided_slice %17 {offsets = [0, 128], sizes = [32, 128], strides = [1, 1]} : vector<32x384xf32> to vector<32x128xf32>
    %29 = vector.extract_strided_slice %19 {offsets = [0, 128], sizes = [32, 128], strides = [1, 1]} : vector<32x384xf32> to vector<32x128xf32>
    %30 = arith.addf %28, %29 : vector<32x128xf32>
    %31 = arith.negf %30 : vector<32x128xf32>
    %32 = math.exp %31 : vector<32x128xf32>
    %cst_19 = arith.constant 1.000000e+00 : f32
    %33 = vector.broadcast %cst_19 : f32 to vector<32x128xf32>
    %34 = arith.addf %33, %32 : vector<32x128xf32>
    %35 = arith.divf %33, %34 : vector<32x128xf32>
    %36 = vector.extract_strided_slice %17 {offsets = [0, 256], sizes = [32, 128], strides = [1, 1]} : vector<32x384xf32> to vector<32x128xf32>
    %37 = vector.extract_strided_slice %19 {offsets = [0, 256], sizes = [32, 128], strides = [1, 1]} : vector<32x384xf32> to vector<32x128xf32>
    %38 = vector.broadcast %12 : vector<1x128xf32> to vector<32x128xf32>
    %39 = arith.addf %37, %38 : vector<32x128xf32>
    %40 = arith.mulf %27, %39 : vector<32x128xf32>
    %41 = arith.addf %36, %40 : vector<32x128xf32>
    %42 = math.tanh %41 : vector<32x128xf32>
    %cst_20 = arith.constant 1.000000e+00 : f32
    %43 = vector.broadcast %cst_20 : f32 to vector<32x128xf32>
    %44 = arith.subf %43, %35 : vector<32x128xf32>
    %45 = arith.mulf %44, %42 : vector<32x128xf32>
    %46 = arith.mulf %35, %13 : vector<32x128xf32>
    %47 = arith.addf %45, %46 : vector<32x128xf32>
    %48 = arith.truncf %47 : vector<32x128xf32> to vector<32x128xbf16>
    %49 = arith.index_cast %c0_i32_15 : i32 to index
    %c0_21 = arith.constant 0 : index
    %c0_22 = arith.constant 0 : index
    %50 = vector.load %arg7[%49, %c0_21, %c0_22] : memref<1x32x128xbf16, #tpu.memory_space<vmem>>, vector<1x32x128xbf16>
    %51 = vector.shape_cast %50 : vector<1x32x128xbf16> to vector<32x128xbf16>
    %52 = vector.shape_cast %48 : vector<32x128xbf16> to vector<1x32x128xbf16>
    tpu.vector_store %arg7[%49, %c0_21, %c0_22], %52 {strides = array<i32>} : memref<1x32x128xbf16, #tpu.memory_space<vmem>>, vector<1x32x128xbf16>,
    %c1_i32 = arith.constant 1 : i32
    %c0_23 = arith.constant 0 : index
    %c0_24 = arith.constant 0 : index
    %53 = vector.load %arg8[%c0_23, %c0_24] : memref<32x128xf32, #tpu.memory_space<vmem>>, vector<32x128xf32>
    tpu.vector_store %arg8[%c0_23, %c0_24], %47 {strides = array<i32>} : memref<32x128xf32, #tpu.memory_space<vmem>>, vector<32x128xf32>,
    return
  }
  func.func @transform_0(%arg0: i32, %arg1: i32) -> (i32, i32, i32) {
    %c0_i32 = arith.constant 0 : i32
    %c0_i32_0 = arith.constant 0 : i32
    return %arg1, %arg0, %c0_i32 : i32, i32, i32
  }
  func.func @transform_1(%arg0: i32, %arg1: i32) -> (i32, i32) {
    %c0_i32 = arith.constant 0 : i32
    %c0_i32_0 = arith.constant 0 : i32
    %c0_i32_1 = arith.constant 0 : i32
    return %c0_i32, %c0_i32_0 : i32, i32
  }
  func.func @transform_2(%arg0: i32, %arg1: i32) -> (i32, i32) {
    %c0_i32 = arith.constant 0 : i32
    %c0_i32_0 = arith.constant 0 : i32
    %c0_i32_1 = arith.constant 0 : i32
    return %c0_i32, %c0_i32_0 : i32, i32
  }
  func.func @transform_3(%arg0: i32, %arg1: i32) -> (i32, i32) {
    %c0_i32 = arith.constant 0 : i32
    %c0_i32_0 = arith.constant 0 : i32
    %c0_i32_1 = arith.constant 0 : i32
    return %c0_i32, %c0_i32_0 : i32, i32
  }
  func.func @transform_4(%arg0: i32, %arg1: i32) -> (i32, i32) {
    %c0_i32 = arith.constant 0 : i32
    %c0_i32_0 = arith.constant 0 : i32
    %c0_i32_1 = arith.constant 0 : i32
    return %c0_i32, %c0_i32_0 : i32, i32
  }
  func.func @transform_5(%arg0: i32, %arg1: i32) -> (i32, i32, i32) {
    %c0_i32 = arith.constant 0 : i32
    %c0_i32_0 = arith.constant 0 : i32
    return %arg1, %arg0, %c0_i32 : i32, i32, i32
  }
}

module attributes {stable_mosaic.version = 11 : i64} {
  func.func @_dilated_gru_kernel(%arg0: i32, %arg1: i32, %arg2: memref<2x16x32xbf16, #tpu.memory_space<vmem>>, %arg3: memref<32x384xbf16, #tpu.memory_space<vmem>>, %arg4: memref<128x384xbf16, #tpu.memory_space<vmem>>, %arg5: memref<1x384xf32, #tpu.memory_space<vmem>>, %arg6: memref<1x128xf32, #tpu.memory_space<vmem>>, %arg7: memref<2x16x128xbf16, #tpu.memory_space<vmem>>, %arg8: memref<16x128xf32, #tpu.memory_space<vmem>>, %arg9: memref<32x384xf32, #tpu.memory_space<vmem>>) attributes {dimension_semantics = [#tpu.dimension_semantics<parallel>, #tpu.dimension_semantics<arbitrary>], iteration_bounds = array<i64: 1, 1>, scalar_prefetch = 0 : i64, scratch_operands = 2 : i64, tpu.core_type = #tpu.core_type<tc>, window_params = [{transform_indices = @transform_0, window_bounds = array<i64: 2, 16, 32>}, {pipeline_mode = #tpu.pipeline_mode<synchronous>, transform_indices = @transform_1, window_bounds = array<i64: 32, 384>}, {pipeline_mode = #tpu.pipeline_mode<synchronous>, transform_indices = @transform_2, window_bounds = array<i64: 128, 384>}, {pipeline_mode = #tpu.pipeline_mode<synchronous>, transform_indices = @transform_3, window_bounds = array<i64: 1, 384>}, {pipeline_mode = #tpu.pipeline_mode<synchronous>, transform_indices = @transform_4, window_bounds = array<i64: 1, 128>}, {transform_indices = @transform_5, window_bounds = array<i64: 2, 16, 128>}]} {
    %c0_i32 = arith.constant 0 : i32
    %0 = arith.cmpi eq, %arg1, %c0_i32 : i32
    %1 = arith.extui %0 : i1 to i32
    %c0_i32_0 = arith.constant 0 : i32
    %2 = arith.cmpi ne, %1, %c0_i32_0 : i32
    scf.if %2 {
      %cst_33 = arith.constant 0.000000e+00 : f32
      %93 = vector.broadcast %cst_33 : f32 to vector<16x128xf32>
      %c0_34 = arith.constant 0 : index
      %c0_35 = arith.constant 0 : index
      %94 = vector.load %arg8[%c0_34, %c0_35] : memref<16x128xf32, #tpu.memory_space<vmem>>, vector<16x128xf32>
      tpu.vector_store %arg8[%c0_34, %c0_35], %93 {strides = array<i32>} : memref<16x128xf32, #tpu.memory_space<vmem>>, vector<16x128xf32>,
    } else {
    }
    %c0 = arith.constant 0 : index
    %c0_1 = arith.constant 0 : index
    %c0_2 = arith.constant 0 : index
    %3 = vector.load %arg2[%c0, %c0_1, %c0_2] : memref<2x16x32xbf16, #tpu.memory_space<vmem>>, vector<2x16x32xbf16>
    %4 = vector.shape_cast %3 : vector<2x16x32xbf16> to vector<32x32xbf16>
    %c0_3 = arith.constant 0 : index
    %c0_4 = arith.constant 0 : index
    %5 = vector.load %arg3[%c0_3, %c0_4] : memref<32x384xbf16, #tpu.memory_space<vmem>>, vector<32x384xbf16>
    %cst = arith.constant dense<0.000000e+00> : vector<32x384xf32>
    %6 = tpu.matmul %4, %5, %cst {dimension_numbers = #tpu.dot_dimension_numbers<[1], [0], [0], [1], [0, 0, 1, 1], [], []>} : vector<32x32xbf16>, vector<32x384xbf16>, vector<32x384xf32> -> vector<32x384xf32>
    %c0_5 = arith.constant 0 : index
    %c0_6 = arith.constant 0 : index
    %7 = vector.load %arg5[%c0_5, %c0_6] : memref<1x384xf32, #tpu.memory_space<vmem>>, vector<1x384xf32>
    %8 = vector.broadcast %7 : vector<1x384xf32> to vector<32x384xf32>
    %9 = arith.addf %6, %8 : vector<32x384xf32>
    %c0_7 = arith.constant 0 : index
    %c0_8 = arith.constant 0 : index
    %10 = vector.load %arg9[%c0_7, %c0_8] : memref<32x384xf32, #tpu.memory_space<vmem>>, vector<32x384xf32>
    tpu.vector_store %arg9[%c0_7, %c0_8], %9 {strides = array<i32>} : memref<32x384xf32, #tpu.memory_space<vmem>>, vector<32x384xf32>,
    %c0_9 = arith.constant 0 : index
    %c0_10 = arith.constant 0 : index
    %11 = vector.load %arg4[%c0_9, %c0_10] : memref<128x384xbf16, #tpu.memory_space<vmem>>, vector<128x384xbf16>
    %c0_11 = arith.constant 0 : index
    %c0_12 = arith.constant 0 : index
    %12 = vector.load %arg6[%c0_11, %c0_12] : memref<1x128xf32, #tpu.memory_space<vmem>>, vector<1x128xf32>
    %c0_13 = arith.constant 0 : index
    %c0_14 = arith.constant 0 : index
    %13 = vector.load %arg8[%c0_13, %c0_14] : memref<16x128xf32, #tpu.memory_space<vmem>>, vector<16x128xf32>
    %c0_i32_15 = arith.constant 0 : i32
    %c16_i32 = arith.constant 16 : i32
    %14 = arith.muli %c0_i32_15, %c16_i32 : i32
    %15 = tpu.assume_multiple %14, 16 : i32
    %16 = arith.index_cast %15 : i32 to index
    %c0_16 = arith.constant 0 : index
    %17 = vector.load %arg9[%16, %c0_16] : memref<32x384xf32, #tpu.memory_space<vmem>>, vector<16x384xf32>
    %18 = arith.truncf %13 : vector<16x128xf32> to vector<16x128xbf16>
    %cst_17 = arith.constant dense<0.000000e+00> : vector<16x384xf32>
    %19 = tpu.matmul %18, %11, %cst_17 {dimension_numbers = #tpu.dot_dimension_numbers<[1], [0], [0], [1], [0, 0, 1, 1], [], []>} : vector<16x128xbf16>, vector<128x384xbf16>, vector<16x384xf32> -> vector<16x384xf32>
    %20 = vector.extract_strided_slice %17 {offsets = [0, 0], sizes = [16, 128], strides = [1, 1]} : vector<16x384xf32> to vector<16x128xf32>
    %21 = vector.extract_strided_slice %19 {offsets = [0, 0], sizes = [16, 128], strides = [1, 1]} : vector<16x384xf32> to vector<16x128xf32>
    %22 = arith.addf %20, %21 : vector<16x128xf32>
    %23 = arith.negf %22 : vector<16x128xf32>
    %24 = math.exp %23 : vector<16x128xf32>
    %cst_18 = arith.constant 1.000000e+00 : f32
    %25 = vector.broadcast %cst_18 : f32 to vector<16x128xf32>
    %26 = arith.addf %25, %24 : vector<16x128xf32>
    %27 = arith.divf %25, %26 : vector<16x128xf32>
    %28 = vector.extract_strided_slice %17 {offsets = [0, 128], sizes = [16, 128], strides = [1, 1]} : vector<16x384xf32> to vector<16x128xf32>
    %29 = vector.extract_strided_slice %19 {offsets = [0, 128], sizes = [16, 128], strides = [1, 1]} : vector<16x384xf32> to vector<16x128xf32>
    %30 = arith.addf %28, %29 : vector<16x128xf32>
    %31 = arith.negf %30 : vector<16x128xf32>
    %32 = math.exp %31 : vector<16x128xf32>
    %cst_19 = arith.constant 1.000000e+00 : f32
    %33 = vector.broadcast %cst_19 : f32 to vector<16x128xf32>
    %34 = arith.addf %33, %32 : vector<16x128xf32>
    %35 = arith.divf %33, %34 : vector<16x128xf32>
    %36 = vector.extract_strided_slice %17 {offsets = [0, 256], sizes = [16, 128], strides = [1, 1]} : vector<16x384xf32> to vector<16x128xf32>
    %37 = vector.extract_strided_slice %19 {offsets = [0, 256], sizes = [16, 128], strides = [1, 1]} : vector<16x384xf32> to vector<16x128xf32>
    %38 = vector.broadcast %12 : vector<1x128xf32> to vector<16x128xf32>
    %39 = arith.addf %37, %38 : vector<16x128xf32>
    %40 = arith.mulf %27, %39 : vector<16x128xf32>
    %41 = arith.addf %36, %40 : vector<16x128xf32>
    %42 = math.tanh %41 : vector<16x128xf32>
    %cst_20 = arith.constant 1.000000e+00 : f32
    %43 = vector.broadcast %cst_20 : f32 to vector<16x128xf32>
    %44 = arith.subf %43, %35 : vector<16x128xf32>
    %45 = arith.mulf %44, %42 : vector<16x128xf32>
    %46 = arith.mulf %35, %13 : vector<16x128xf32>
    %47 = arith.addf %45, %46 : vector<16x128xf32>
    %48 = arith.truncf %47 : vector<16x128xf32> to vector<16x128xbf16>
    %49 = arith.index_cast %c0_i32_15 : i32 to index
    %c0_21 = arith.constant 0 : index
    %c0_22 = arith.constant 0 : index
    %50 = vector.load %arg7[%49, %c0_21, %c0_22] : memref<2x16x128xbf16, #tpu.memory_space<vmem>>, vector<1x16x128xbf16>
    %51 = vector.shape_cast %50 : vector<1x16x128xbf16> to vector<16x128xbf16>
    %52 = vector.shape_cast %48 : vector<16x128xbf16> to vector<1x16x128xbf16>
    tpu.vector_store %arg7[%49, %c0_21, %c0_22], %52 {strides = array<i32>} : memref<2x16x128xbf16, #tpu.memory_space<vmem>>, vector<1x16x128xbf16>,
    %c1_i32 = arith.constant 1 : i32
    %c16_i32_23 = arith.constant 16 : i32
    %53 = arith.muli %c1_i32, %c16_i32_23 : i32
    %54 = tpu.assume_multiple %53, 16 : i32
    %55 = arith.index_cast %54 : i32 to index
    %c0_24 = arith.constant 0 : index
    %56 = vector.load %arg9[%55, %c0_24] : memref<32x384xf32, #tpu.memory_space<vmem>>, vector<16x384xf32>
    %57 = arith.truncf %47 : vector<16x128xf32> to vector<16x128xbf16>
    %cst_25 = arith.constant dense<0.000000e+00> : vector<16x384xf32>
    %58 = tpu.matmul %57, %11, %cst_25 {dimension_numbers = #tpu.dot_dimension_numbers<[1], [0], [0], [1], [0, 0, 1, 1], [], []>} : vector<16x128xbf16>, vector<128x384xbf16>, vector<16x384xf32> -> vector<16x384xf32>
    %59 = vector.extract_strided_slice %56 {offsets = [0, 0], sizes = [16, 128], strides = [1, 1]} : vector<16x384xf32> to vector<16x128xf32>
    %60 = vector.extract_strided_slice %58 {offsets = [0, 0], sizes = [16, 128], strides = [1, 1]} : vector<16x384xf32> to vector<16x128xf32>
    %61 = arith.addf %59, %60 : vector<16x128xf32>
    %62 = arith.negf %61 : vector<16x128xf32>
    %63 = math.exp %62 : vector<16x128xf32>
    %cst_26 = arith.constant 1.000000e+00 : f32
    %64 = vector.broadcast %cst_26 : f32 to vector<16x128xf32>
    %65 = arith.addf %64, %63 : vector<16x128xf32>
    %66 = arith.divf %64, %65 : vector<16x128xf32>
    %67 = vector.extract_strided_slice %56 {offsets = [0, 128], sizes = [16, 128], strides = [1, 1]} : vector<16x384xf32> to vector<16x128xf32>
    %68 = vector.extract_strided_slice %58 {offsets = [0, 128], sizes = [16, 128], strides = [1, 1]} : vector<16x384xf32> to vector<16x128xf32>
    %69 = arith.addf %67, %68 : vector<16x128xf32>
    %70 = arith.negf %69 : vector<16x128xf32>
    %71 = math.exp %70 : vector<16x128xf32>
    %cst_27 = arith.constant 1.000000e+00 : f32
    %72 = vector.broadcast %cst_27 : f32 to vector<16x128xf32>
    %73 = arith.addf %72, %71 : vector<16x128xf32>
    %74 = arith.divf %72, %73 : vector<16x128xf32>
    %75 = vector.extract_strided_slice %56 {offsets = [0, 256], sizes = [16, 128], strides = [1, 1]} : vector<16x384xf32> to vector<16x128xf32>
    %76 = vector.extract_strided_slice %58 {offsets = [0, 256], sizes = [16, 128], strides = [1, 1]} : vector<16x384xf32> to vector<16x128xf32>
    %77 = vector.broadcast %12 : vector<1x128xf32> to vector<16x128xf32>
    %78 = arith.addf %76, %77 : vector<16x128xf32>
    %79 = arith.mulf %66, %78 : vector<16x128xf32>
    %80 = arith.addf %75, %79 : vector<16x128xf32>
    %81 = math.tanh %80 : vector<16x128xf32>
    %cst_28 = arith.constant 1.000000e+00 : f32
    %82 = vector.broadcast %cst_28 : f32 to vector<16x128xf32>
    %83 = arith.subf %82, %74 : vector<16x128xf32>
    %84 = arith.mulf %83, %81 : vector<16x128xf32>
    %85 = arith.mulf %74, %47 : vector<16x128xf32>
    %86 = arith.addf %84, %85 : vector<16x128xf32>
    %87 = arith.truncf %86 : vector<16x128xf32> to vector<16x128xbf16>
    %88 = arith.index_cast %c1_i32 : i32 to index
    %c0_29 = arith.constant 0 : index
    %c0_30 = arith.constant 0 : index
    %89 = vector.load %arg7[%88, %c0_29, %c0_30] : memref<2x16x128xbf16, #tpu.memory_space<vmem>>, vector<1x16x128xbf16>
    %90 = vector.shape_cast %89 : vector<1x16x128xbf16> to vector<16x128xbf16>
    %91 = vector.shape_cast %87 : vector<16x128xbf16> to vector<1x16x128xbf16>
    tpu.vector_store %arg7[%88, %c0_29, %c0_30], %91 {strides = array<i32>} : memref<2x16x128xbf16, #tpu.memory_space<vmem>>, vector<1x16x128xbf16>,
    %c2_i32 = arith.constant 2 : i32
    %c0_31 = arith.constant 0 : index
    %c0_32 = arith.constant 0 : index
    %92 = vector.load %arg8[%c0_31, %c0_32] : memref<16x128xf32, #tpu.memory_space<vmem>>, vector<16x128xf32>
    tpu.vector_store %arg8[%c0_31, %c0_32], %86 {strides = array<i32>} : memref<16x128xf32, #tpu.memory_space<vmem>>, vector<16x128xf32>,
    return
  }
  func.func @transform_0(%arg0: i32, %arg1: i32) -> (i32, i32, i32) {
    %c0_i32 = arith.constant 0 : i32
    %c0_i32_0 = arith.constant 0 : i32
    return %arg1, %arg0, %c0_i32 : i32, i32, i32
  }
  func.func @transform_1(%arg0: i32, %arg1: i32) -> (i32, i32) {
    %c0_i32 = arith.constant 0 : i32
    %c0_i32_0 = arith.constant 0 : i32
    %c0_i32_1 = arith.constant 0 : i32
    return %c0_i32, %c0_i32_0 : i32, i32
  }
  func.func @transform_2(%arg0: i32, %arg1: i32) -> (i32, i32) {
    %c0_i32 = arith.constant 0 : i32
    %c0_i32_0 = arith.constant 0 : i32
    %c0_i32_1 = arith.constant 0 : i32
    return %c0_i32, %c0_i32_0 : i32, i32
  }
  func.func @transform_3(%arg0: i32, %arg1: i32) -> (i32, i32) {
    %c0_i32 = arith.constant 0 : i32
    %c0_i32_0 = arith.constant 0 : i32
    %c0_i32_1 = arith.constant 0 : i32
    return %c0_i32, %c0_i32_0 : i32, i32
  }
  func.func @transform_4(%arg0: i32, %arg1: i32) -> (i32, i32) {
    %c0_i32 = arith.constant 0 : i32
    %c0_i32_0 = arith.constant 0 : i32
    %c0_i32_1 = arith.constant 0 : i32
    return %c0_i32, %c0_i32_0 : i32, i32
  }
  func.func @transform_5(%arg0: i32, %arg1: i32) -> (i32, i32, i32) {
    %c0_i32 = arith.constant 0 : i32
    %c0_i32_0 = arith.constant 0 : i32
    return %arg1, %arg0, %c0_i32 : i32, i32, i32
  }
}

</mosaic_0001>

<llo_original>
// kernel: _lambda_.4
$region0: #{_lambda_.4}
  #allocation0 [shape = 'u32[]', space=smem, size = 0x4, offset = 0x4, fixed_abs, tag = 'smem constant byte address 0x4 - core index']
  #allocation1 [shape = 'u32[144,128]{1,0:T(1,128)}', space=vmem, size = 0x12000, scoped, tag = 'internal scratch']
  #allocation2 [shape = 'f32[16,128]{1,0:T(8,128)}', space=vmem, size = 0x2000, scoped, tag = 'scratch operand']
  #allocation3 [shape = 'f32[32,384]{1,0:T(8,128)}', space=vmem, size = 0xc000, scoped, tag = 'scratch operand']
  %s0 = inlined_call_operand.vmem [shape: bf16[2,16,32], index: 0, kind: input, shape index: {}]
  %s1 = inlined_call_operand.vmem [shape: bf16[32,384], index: 1, kind: input, shape index: {}]
  %s2 = inlined_call_operand.vmem [shape: bf16[128,384], index: 2, kind: input, shape index: {}]
  %s3 = inlined_call_operand.vmem [shape: f32[1,384], index: 3, kind: input, shape index: {}]
  %s4 = inlined_call_operand.vmem [shape: f32[1,128], index: 4, kind: input, shape index: {}]
  %s5 = inlined_call_operand.vmem [shape: bf16[2,16,128], index: 5, kind: output, shape index: {}]
  %s6 = sld [smem:[#allocation0]]
  $region34: #{_lambda_.4} parent=0
    _
  %s8 = ssub.s32 1, %s6
  %s9 = scalar_select 0, %s8, %s6
  // Predicated region
  $region2: #{_lambda_.4} parent=0 // pred_check
    _
  $region3: #{_lambda_.4} parent=0 // pred_check_branch
    %11 = sbr.rel (0) target = $region5
  $region4: #{_lambda_.4} parent=0 // pred_region
    _
  $region5: #{_lambda_.4} parent=0 // pred_fallthru
    _
  // Predicated region
  $region6: #{_lambda_.4} parent=0 // pred_check
    _
  $region7: #{_lambda_.4} parent=0 // pred_check_branch
    %13 = sbr.rel (0) target = $region9
  $region8: #{_lambda_.4} parent=0 // pred_region
    _
  $region9: #{_lambda_.4} parent=0 // pred_fallthru
    _
  // Predicated region
  $region10: #{_lambda_.4} parent=0 // pred_check
    _
  $region11: #{_lambda_.4} parent=0 // pred_check_branch
    %15 = sbr.rel (0) target = $region13
  $region12: #{_lambda_.4} parent=0 // pred_region
    _
  $region13: #{_lambda_.4} parent=0 // pred_fallthru
    _
  // Predicated region
  $region14: #{_lambda_.4} parent=0 // pred_check
    _
  $region15: #{_lambda_.4} parent=0 // pred_check_branch
    %17 = sbr.rel (0) target = $region17
  $region16: #{_lambda_.4} parent=0 // pred_region
    _
  $region17: #{_lambda_.4} parent=0 // pred_fallthru
    _
  // Predicated region
  $region18: #{_lambda_.4} parent=0 // pred_check
    _
  $region19: #{_lambda_.4} parent=0 // pred_check_branch
    %19 = sbr.rel (0) target = $region21
  $region20: #{_lambda_.4} parent=0 // pred_region
    _
  $region21: #{_lambda_.4} parent=0 // pred_fallthru
    _
  %p21 = scmp.eq.s32.totalorder 0, 0
  // Predicated region
  $region22: #{_lambda_.4} parent=0 // pred_check
    %p22 = pneg %p21
  $region23: #{_lambda_.4} parent=0 // pred_check_branch
    %24 = sbr.rel (%p22) target = $region25
  $region24: #{_lambda_.4} parent=0 // pred_region
    %25 = vst [vmem:[#allocation2] sm:$0xff] 0.0
    %26 = vst [vmem:[#allocation2 + $0x8] sm:$0xff] 0.0
  $region25: #{_lambda_.4} parent=0 // pred_fallthru
    _
  %v27 = vld [vmem:[%s0] sm:$0xf]
  %v28 = vld [vmem:[%s0 + $0x4] sm:$0xf]
  %v29 = vld [vmem:[%s0 + $0x8] sm:$0xf]
  %v30 = vld [vmem:[%s0 + $0xc] sm:$0xf]
  %v31 = vld [vmem:[%s1] sm:$0xff]
  %v32 = vld [vmem:[%s1 + $0x8] sm:$0xf]
  %v33 = vld [vmem:[%s1 + $0xc] sm:$0xff]
  %v34 = vld [vmem:[%s1 + $0x14] sm:$0xf]
  %v35 = vld [vmem:[%s1 + $0x18] sm:$0xff]
  %v36 = vld [vmem:[%s1 + $0x20] sm:$0xf]
  %v37 = vld [vmem:[%s1 + $0x24] sm:$0xff]
  %v38 = vld [vmem:[%s1 + $0x2c] sm:$0xf]
  %v39 = vld [vmem:[%s3] sm:$0x7]
  %v41 = vlaneseq
  %v42 = vshrl.u32 %v41, 7
  %v43 = vsub.s32 0, %v42
  %v44 = vrot.slane %v39, %v43
  %v45 = vlaneseq
  %v46 = vshrl.u32 %v45, 7
  %v47 = vsub.s32 1, %v46
  %v48 = vrot.slane %v39, %v47
  %v49 = vlaneseq
  %v50 = vshrl.u32 %v49, 7
  %v51 = vsub.s32 2, %v50
  %v52 = vrot.slane %v39, %v51
  %v60 = vunpack.c.l.b16 %v27
  %v61 = vunpack.c.l.b16 %v28
  %v62 = vunpack.c.l.b16 %v29
  %v63 = vunpack.c.l.b16 %v30
  %v64 = vpack.c.b16 %v61, %v60
  %v65 = vpack.c.b16 %v63, %v62
  %v74 = vunpack.c.l.b16 %v31
  %v75 = vunpack.c.h.b16 %v31
  %v76 = vunpack.c.l.b16 %v32
  %v77 = vunpack.c.l.b16 %v33
  %v78 = vunpack.c.h.b16 %v33
  %v79 = vunpack.c.l.b16 %v34
  %v80 = vunpack.c.l.b16 %v35
  %v81 = vunpack.c.h.b16 %v35
  %v82 = vunpack.c.l.b16 %v36
  %v83 = vunpack.c.l.b16 %v37
  %v84 = vunpack.c.h.b16 %v37
  %v85 = vunpack.c.l.b16 %v38
  %v86 = vpack.c.b16 %v77, %v74
  %v87 = vpack.c.b16 %v78, %v75
  %v88 = vpack.c.b16 %v79, %v76
  %v89 = vpack.c.b16 %v83, %v80
  %v90 = vpack.c.b16 %v84, %v81
  %v91 = vpack.c.b16 %v85, %v82
  %vm98 = vcmask 261120
  %v100 = vsel %vm98, %v64, 0
  %v103 = vsel %vm98, %v65, 0
  %105 = vmatprep.subr.bf16.mxu0 %v87
  %106 = vmatpush1.bf16.msra.mxu0 %v86
  %107 = vmatprep.subr.bf16.mxu0 %v90
  %108 = vmatpush1.bf16.msra.mxu0 %v89
  %109 = vmatprep.subr.bf16.mxu0 0
  %110 = vmatpush1.bf16.msra.mxu0 0
  %111 = vmatprep.subr.bf16.mxu0 0
  %112 = vmatpush1.bf16.msra.mxu0 0
  %113 = vmatprep.subr.bf16.mxu0 0
  %114 = vmatpush1.bf16.msra.mxu0 0
  %115 = vmatprep.subr.bf16.mxu0 0
  %116 = vmatpush1.bf16.msra.mxu0 0
  %117 = vmatprep.subr.bf16.mxu0 0
  %118 = vmatpush1.bf16.msra.mxu0 0
  %119 = vmatprep.subr.bf16.mxu0 0
  %120 = vmatpush1.bf16.msra.mxu0 0
  %121 = vmatprep.subr.bf16.mxu0 0
  %122 = vmatpush1.bf16.msra.mxu0 0
  %123 = vmatprep.subr.bf16.mxu0 0
  %124 = vmatpush1.bf16.msra.mxu0 0
  %125 = vmatprep.subr.bf16.mxu0 0
  %126 = vmatpush1.bf16.msra.mxu0 0
  %127 = vmatprep.subr.bf16.mxu0 0
  %128 = vmatpush1.bf16.msra.mxu0 0
  %129 = vmatprep.subr.bf16.mxu0 0
  %130 = vmatpush1.bf16.msra.mxu0 0
  %131 = vmatprep.subr.bf16.mxu0 0
  %132 = vmatpush1.bf16.msra.mxu0 0
  %133 = vmatprep.subr.bf16.mxu0 0
  %134 = vmatpush1.bf16.msra.mxu0 0
  %135 = vmatprep.subr.bf16.mxu0 0
  %136 = vmatpush1.bf16.msra.mxu0 0
  %137 = vmatprep.mubr.bf16.mxu0 0
  %138 = vmatmul.mubr.bf16.gmra.mrb[0].mxu0 %v100
  %v139 = vpop.f32.mrb[0].mxu0
  %v140 = vadd.f32 %v44, %v139
  %v141 = vpop.f32.mrb[0].mxu0
  %v142 = vadd.f32 %v48, %v141
  %v143 = vpop.f32.mrb[0].mxu0
  %v144 = vadd.f32 %v44, %v143
  %v145 = vpop.f32.mrb[0].mxu0
  %v146 = vadd.f32 %v48, %v145
  %147 = vmatprep.mubr.bf16.mxu0 0
  %148 = vmatmul.mubr.bf16.gmra.mrb[0].mxu0 %v103
  %v149 = vpop.f32.mrb[0].mxu0
  %v150 = vadd.f32 %v44, %v149
  %v151 = vpop.f32.mrb[0].mxu0
  %v152 = vadd.f32 %v48, %v151
  %v153 = vpop.f32.mrb[0].mxu0
  %v154 = vadd.f32 %v44, %v153
  %v155 = vpop.f32.mrb[0].mxu0
  %v156 = vadd.f32 %v48, %v155
  %157 = vdwg.mxu0
  %158 = vmatprep.subr.bf16.mxu0 0
  %159 = vmatpush1.bf16.msra.mxu0 %v88
  %160 = vmatprep.subr.bf16.mxu0 0
  %161 = vmatpush1.bf16.msra.mxu0 %v91
  %162 = vmatprep.subr.bf16.mxu0 0
  %163 = vmatpush1.bf16.msra.mxu0 0
  %164 = vmatprep.subr.bf16.mxu0 0
  %165 = vmatpush1.bf16.msra.mxu0 0
  %166 = vmatprep.subr.bf16.mxu0 0
  %167 = vmatpush1.bf16.msra.mxu0 0
  %168 = vmatprep.subr.bf16.mxu0 0
  %169 = vmatpush1.bf16.msra.mxu0 0
  %170 = vmatprep.subr.bf16.mxu0 0
  %171 = vmatpush1.bf16.msra.mxu0 0
  %172 = vmatprep.subr.bf16.mxu0 0
  %173 = vmatpush1.bf16.msra.mxu0 0
  %174 = vmatprep.subr.bf16.mxu0 0
  %175 = vmatpush1.bf16.msra.mxu0 0
  %176 = vmatprep.subr.bf16.mxu0 0
  %177 = vmatpush1.bf16.msra.mxu0 0
  %178 = vmatprep.subr.bf16.mxu0 0
  %179 = vmatpush1.bf16.msra.mxu0 0
  %180 = vmatprep.subr.bf16.mxu0 0
  %181 = vmatpush1.bf16.msra.mxu0 0
  %182 = vmatprep.subr.bf16.mxu0 0
  %183 = vmatpush1.bf16.msra.mxu0 0
  %184 = vmatprep.subr.bf16.mxu0 0
  %185 = vmatpush1.bf16.msra.mxu0 0
  %186 = vmatprep.subr.bf16.mxu0 0
  %187 = vmatpush1.bf16.msra.mxu0 0
  %188 = vmatprep.subr.bf16.mxu0 0
  %189 = vmatpush1.bf16.msra.mxu0 0
  %190 = vmatprep.mubr.bf16.mxu0 0
  %191 = vmatmul.mubr.bf16.gmra.mrb[0].mxu0 %v100
  %v192 = vpop.f32.mrb[0].mxu0
  %v193 = vadd.f32 %v52, %v192
  %v194 = vpop.f32.mrb[0].mxu0
  %v195 = vpop.f32.mrb[0].mxu0
  %v196 = vadd.f32 %v52, %v195
  %v197 = vpop.f32.mrb[0].mxu0
  %198 = vmatprep.mubr.bf16.mxu0 0
  %199 = vmatmul.mubr.bf16.gmra.mrb[0].mxu0 %v103
  %v200 = vpop.f32.mrb[0].mxu0
  %v201 = vadd.f32 %v52, %v200
  %v202 = vpop.f32.mrb[0].mxu0
  %v203 = vpop.f32.mrb[0].mxu0
  %v204 = vadd.f32 %v52, %v203
  %v205 = vpop.f32.mrb[0].mxu0
  %206 = vdwg.mxu0
  %207 = vst [vmem:[#allocation3] sm:$0xff] %v140
  %208 = vst [vmem:[#allocation3 + $0x8] sm:$0xff] %v142
  %209 = vst [vmem:[#allocation3 + $0x10] sm:$0xff] %v193
  %210 = vst [vmem:[#allocation3 + $0x18] sm:$0xff] %v144
  %211 = vst [vmem:[#allocation3 + $0x20] sm:$0xff] %v146
  %212 = vst [vmem:[#allocation3 + $0x28] sm:$0xff] %v196
  %213 = vst [vmem:[#allocation3 + $0x30] sm:$0xff] %v150
  %214 = vst [vmem:[#allocation3 + $0x38] sm:$0xff] %v152
  %215 = vst [vmem:[#allocation3 + $0x40] sm:$0xff] %v201
  %216 = vst [vmem:[#allocation3 + $0x48] sm:$0xff] %v154
  %217 = vst [vmem:[#allocation3 + $0x50] sm:$0xff] %v156
  %218 = vst [vmem:[#allocation3 + $0x58] sm:$0xff] %v204
  %v219 = vld [vmem:[%s2] sm:$0xff]
  %v220 = vld [vmem:[%s2 + $0x8] sm:$0xf]
  %v221 = vld [vmem:[%s2 + $0xc] sm:$0xff]
  %v222 = vld [vmem:[%s2 + $0x14] sm:$0xf]
  %v223 = vld [vmem:[%s2 + $0x18] sm:$0xff]
  %v224 = vld [vmem:[%s2 + $0x20] sm:$0xf]
  %v225 = vld [vmem:[%s2 + $0x24] sm:$0xff]
  %v226 = vld [vmem:[%s2 + $0x2c] sm:$0xf]
  %v227 = vld [vmem:[%s2 + $0x30] sm:$0xff]
  %v228 = vld [vmem:[%s2 + $0x38] sm:$0xf]
  %v229 = vld [vmem:[%s2 + $0x3c] sm:$0xff]
  %v230 = vld [vmem:[%s2 + $0x44] sm:$0xf]
  %v231 = vld [vmem:[%s2 + $0x48] sm:$0xff]
  %v232 = vld [vmem:[%s2 + $0x50] sm:$0xf]
  %v233 = vld [vmem:[%s2 + $0x54] sm:$0xff]
  %v234 = vld [vmem:[%s2 + $0x5c] sm:$0xf]
  %v235 = vld [vmem:[%s2 + $0x60] sm:$0xff]
  %v236 = vld [vmem:[%s2 + $0x68] sm:$0xf]
  %v237 = vld [vmem:[%s2 + $0x6c] sm:$0xff]
  %v238 = vld [vmem:[%s2 + $0x74] sm:$0xf]
  %v239 = vld [vmem:[%s2 + $0x78] sm:$0xff]
  %v240 = vld [vmem:[%s2 + $0x80] sm:$0xf]
  %v241 = vld [vmem:[%s2 + $0x84] sm:$0xff]
  %v242 = vld [vmem:[%s2 + $0x8c] sm:$0xf]
  %v243 = vld [vmem:[%s2 + $0x90] sm:$0xff]
  %v244 = vld [vmem:[%s2 + $0x98] sm:$0xf]
  %v245 = vld [vmem:[%s2 + $0x9c] sm:$0xff]
  %v246 = vld [vmem:[%s2 + $0xa4] sm:$0xf]
  %v247 = vld [vmem:[%s2 + $0xa8] sm:$0xff]
  %v248 = vld [vmem:[%s2 + $0xb0] sm:$0xf]
  %v249 = vld [vmem:[%s2 + $0xb4] sm:$0xff]
  %v250 = vld [vmem:[%s2 + $0xbc] sm:$0xf]
  %v251 = vld [vmem:[%s4] sm:$0x1]
  %v252 = vld [vmem:[#allocation2] sm:$0xff]
  %v253 = vld [vmem:[#allocation2 + $0x8] sm:$0xff]
  %s254 = smul.u32 0, 3
  %s255 = smul.addr %s254, 8
  %s256 = scalar_lea.vmem [#allocation3], %s255
  %v257 = vld [vmem:[%s256] sm:$0xff]
  %v258 = vld [vmem:[%s256 + $0x8] sm:$0xff]
  %v259 = vld [vmem:[%s256 + $0x10] sm:$0xff]
  %v260 = vld [vmem:[%s256 + $0x18] sm:$0xff]
  %v261 = vld [vmem:[%s256 + $0x20] sm:$0xff]
  %v262 = vld [vmem:[%s256 + $0x28] sm:$0xff]
  %v263 = vpack.c.bf16 %v253, %v252
  %v296 = vunpack.c.l.b16 %v219
  %v297 = vunpack.c.h.b16 %v219
  %v298 = vunpack.c.l.b16 %v220
  %v299 = vunpack.c.l.b16 %v221
  %v300 = vunpack.c.h.b16 %v221
  %v301 = vunpack.c.l.b16 %v222
  %v302 = vunpack.c.l.b16 %v223
  %v303 = vunpack.c.h.b16 %v223
  %v304 = vunpack.c.l.b16 %v224
  %v305 = vunpack.c.l.b16 %v225
  %v306 = vunpack.c.h.b16 %v225
  %v307 = vunpack.c.l.b16 %v226
  %v308 = vunpack.c.l.b16 %v227
  %v309 = vunpack.c.h.b16 %v227
  %v310 = vunpack.c.l.b16 %v228
  %v311 = vunpack.c.l.b16 %v229
  %v312 = vunpack.c.h.b16 %v229
  %v313 = vunpack.c.l.b16 %v230
  %v314 = vunpack.c.l.b16 %v231
  %v315 = vunpack.c.h.b16 %v231
  %v316 = vunpack.c.l.b16 %v232
  %v317 = vunpack.c.l.b16 %v233
  %v318 = vunpack.c.h.b16 %v233
  %v319 = vunpack.c.l.b16 %v234
  %v320 = vunpack.c.l.b16 %v235
  %v321 = vunpack.c.h.b16 %v235
  %v322 = vunpack.c.l.b16 %v236
  %v323 = vunpack.c.l.b16 %v237
  %v324 = vunpack.c.h.b16 %v237
  %v325 = vunpack.c.l.b16 %v238
  %v326 = vunpack.c.l.b16 %v239
  %v327 = vunpack.c.h.b16 %v239
  %v328 = vunpack.c.l.b16 %v240
  %v329 = vunpack.c.l.b16 %v241
  %v330 = vunpack.c.h.b16 %v241
  %v331 = vunpack.c.l.b16 %v242
  %v332 = vunpack.c.l.b16 %v243
  %v333 = vunpack.c.h.b16 %v243
  %v334 = vunpack.c.l.b16 %v244
  %v335 = vunpack.c.l.b16 %v245
  %v336 = vunpack.c.h.b16 %v245
  %v337 = vunpack.c.l.b16 %v246
  %v338 = vunpack.c.l.b16 %v247
  %v339 = vunpack.c.h.b16 %v247
  %v340 = vunpack.c.l.b16 %v248
  %v341 = vunpack.c.l.b16 %v249
  %v342 = vunpack.c.h.b16 %v249
  %v343 = vunpack.c.l.b16 %v250
  %v344 = vpack.c.b16 %v299, %v296
  %v345 = vpack.c.b16 %v300, %v297
  %v346 = vpack.c.b16 %v301, %v298
  %v347 = vpack.c.b16 %v305, %v302
  %v348 = vpack.c.b16 %v306, %v303
  %v349 = vpack.c.b16 %v307, %v304
  %v350 = vpack.c.b16 %v311, %v308
  %v351 = vpack.c.b16 %v312, %v309
  %v352 = vpack.c.b16 %v313, %v310
  %v353 = vpack.c.b16 %v317, %v314
  %v354 = vpack.c.b16 %v318, %v315
  %v355 = vpack.c.b16 %v319, %v316
  %v356 = vpack.c.b16 %v323, %v320
  %v357 = vpack.c.b16 %v324, %v321
  %v358 = vpack.c.b16 %v325, %v322
  %v359 = vpack.c.b16 %v329, %v326
  %v360 = vpack.c.b16 %v330, %v327
  %v361 = vpack.c.b16 %v331, %v328
  %v362 = vpack.c.b16 %v335, %v332
  %v363 = vpack.c.b16 %v336, %v333
  %v364 = vpack.c.b16 %v337, %v334
  %v365 = vpack.c.b16 %v341, %v338
  %v366 = vpack.c.b16 %v342, %v339
  %v367 = vpack.c.b16 %v343, %v340
  %392 = vmatprep.subr.bf16.mxu0 %v345
  %393 = vmatpush1.bf16.msra.mxu0 %v344
  %394 = vmatprep.subr.bf16.mxu0 %v348
  %395 = vmatpush1.bf16.msra.mxu0 %v347
  %396 = vmatprep.subr.bf16.mxu0 %v351
  %397 = vmatpush1.bf16.msra.mxu0 %v350
  %398 = vmatprep.subr.bf16.mxu0 %v354
  %399 = vmatpush1.bf16.msra.mxu0 %v353
  %400 = vmatprep.subr.bf16.mxu0 %v357
  %401 = vmatpush1.bf16.msra.mxu0 %v356
  %402 = vmatprep.subr.bf16.mxu0 %v360
  %403 = vmatpush1.bf16.msra.mxu0 %v359
  %404 = vmatprep.subr.bf16.mxu0 %v363
  %405 = vmatpush1.bf16.msra.mxu0 %v362
  %406 = vmatprep.subr.bf16.mxu0 %v366
  %407 = vmatpush1.bf16.msra.mxu0 %v365
  %408 = vmatprep.subr.bf16.mxu0 0
  %409 = vmatpush1.bf16.msra.mxu0 0
  %410 = vmatprep.subr.bf16.mxu0 0
  %411 = vmatpush1.bf16.msra.mxu0 0
  %412 = vmatprep.subr.bf16.mxu0 0
  %413 = vmatpush1.bf16.msra.mxu0 0
  %414 = vmatprep.subr.bf16.mxu0 0
  %415 = vmatpush1.bf16.msra.mxu0 0
  %416 = vmatprep.subr.bf16.mxu0 0
  %417 = vmatpush1.bf16.msra.mxu0 0
  %418 = vmatprep.subr.bf16.mxu0 0
  %419 = vmatpush1.bf16.msra.mxu0 0
  %420 = vmatprep.subr.bf16.mxu0 0
  %421 = vmatpush1.bf16.msra.mxu0 0
  %422 = vmatprep.subr.bf16.mxu0 0
  %423 = vmatpush1.bf16.msra.mxu0 0
  %424 = vmatprep.mubr.bf16.mxu0 0
  %425 = vmatmul.mubr.bf16.gmra.mrb[0].mxu0 %v263
  %v426 = vpop.f32.mrb[0].mxu0
  %v427 = vadd.f32 0.0, %v426
  %v428 = vpop.f32.mrb[0].mxu0
  %v429 = vadd.f32 0.0, %v428
  %v430 = vpop.f32.mrb[0].mxu0
  %v431 = vadd.f32 0.0, %v430
  %v432 = vpop.f32.mrb[0].mxu0
  %v433 = vadd.f32 0.0, %v432
  %434 = vdwg.mxu0
  %435 = vmatprep.subr.bf16.mxu0 0
  %436 = vmatpush1.bf16.msra.mxu0 %v346
  %437 = vmatprep.subr.bf16.mxu0 0
  %438 = vmatpush1.bf16.msra.mxu0 %v349
  %439 = vmatprep.subr.bf16.mxu0 0
  %440 = vmatpush1.bf16.msra.mxu0 %v352
  %441 = vmatprep.subr.bf16.mxu0 0
  %442 = vmatpush1.bf16.msra.mxu0 %v355
  %443 = vmatprep.subr.bf16.mxu0 0
  %444 = vmatpush1.bf16.msra.mxu0 %v358
  %445 = vmatprep.subr.bf16.mxu0 0
  %446 = vmatpush1.bf16.msra.mxu0 %v361
  %447 = vmatprep.subr.bf16.mxu0 0
  %448 = vmatpush1.bf16.msra.mxu0 %v364
  %449 = vmatprep.subr.bf16.mxu0 0
  %450 = vmatpush1.bf16.msra.mxu0 %v367
  %451 = vmatprep.subr.bf16.mxu0 0
  %452 = vmatpush1.bf16.msra.mxu0 0
  %453 = vmatprep.subr.bf16.mxu0 0
  %454 = vmatpush1.bf16.msra.mxu0 0
  %455 = vmatprep.subr.bf16.mxu0 0
  %456 = vmatpush1.bf16.msra.mxu0 0
  %457 = vmatprep.subr.bf16.mxu0 0
  %458 = vmatpush1.bf16.msra.mxu0 0
  %459 = vmatprep.subr.bf16.mxu0 0
  %460 = vmatpush1.bf16.msra.mxu0 0
  %461 = vmatprep.subr.bf16.mxu0 0
  %462 = vmatpush1.bf16.msra.mxu0 0
  %463 = vmatprep.subr.bf16.mxu0 0
  %464 = vmatpush1.bf16.msra.mxu0 0
  %465 = vmatprep.subr.bf16.mxu0 0
  %466 = vmatpush1.bf16.msra.mxu0 0
  %467 = vmatprep.mubr.bf16.mxu0 0
  %468 = vmatmul.mubr.bf16.gmra.mrb[0].mxu0 %v263
  %v469 = vpop.f32.mrb[0].mxu0
  %v470 = vadd.f32 0.0, %v469
  %v471 = vpop.f32.mrb[0].mxu0
  %v472 = vpop.f32.mrb[0].mxu0
  %v473 = vadd.f32 0.0, %v472
  %v474 = vpop.f32.mrb[0].mxu0
  %475 = vdwg.mxu0
  %v476 = vadd.f32 %v257, %v427
  %v477 = vadd.f32 %v260, %v431
  %v478 = vxor.u32 %v476, 2147483648
  %v479 = vxor.u32 %v477, 2147483648
  %v480 = vmul.f32 %v478, 1.442695
  %v481 = vpow.pop %v480
  %v482 = vmul.f32 %v479, 1.442695
  %v483 = vpow.pop %v482
  %v484 = vadd.f32 %v481, 1.0
  %v485 = vadd.f32 %v483, 1.0
  %v486 = vrcp.pop %v484
  %v487 = vmul.f32 1.0, %v486
  %v488 = vrcp.pop %v485
  %v489 = vmul.f32 1.0, %v488
  %v490 = vadd.f32 %v258, %v429
  %v491 = vadd.f32 %v261, %v433
  %v492 = vxor.u32 %v490, 2147483648
  %v493 = vxor.u32 %v491, 2147483648
  %v494 = vmul.f32 %v492, 1.442695
  %v495 = vpow.pop %v494
  %v496 = vmul.f32 %v493, 1.442695
  %v497 = vpow.pop %v496
  %v498 = vadd.f32 %v495, 1.0
  %v499 = vadd.f32 %v497, 1.0
  %v500 = vrcp.pop %v498
  %v501 = vmul.f32 1.0, %v500
  %v502 = vrcp.pop %v499
  %v503 = vmul.f32 1.0, %v502
  %v505 = vlaneseq
  %v506 = vshrl.u32 %v505, 7
  %v507 = vsub.s32 0, %v506
  %v508 = vrot.slane %v251, %v507
  %v510 = vadd.f32 %v470, %v508
  %v511 = vadd.f32 %v473, %v508
  %v512 = vmul.f32 %v487, %v510
  %v513 = vmul.f32 %v489, %v511
  %v514 = vadd.f32 %v259, %v512
  %v515 = vadd.f32 %v262, %v513
  %v516 = vtanh.pop %v514
  %v517 = vtanh.pop %v515
  %v518 = vsub.f32 1.0, %v501
  %v519 = vsub.f32 1.0, %v503
  %v520 = vmul.f32 %v518, %v516
  %v521 = vmul.f32 %v519, %v517
  %v522 = vmul.f32 %v501, %v252
  %v523 = vmul.f32 %v503, %v253
  %v524 = vadd.f32 %v520, %v522
  %v525 = vadd.f32 %v521, %v523
  %v526 = vpack.c.bf16 %v525, %v524
  %v528 = vunpack.c.l.b16 %v526
  %v529 = vunpack.c.h.b16 %v526
  %v530 = vpack.c.b16 %v528, %v528
  %v531 = vpack.c.b16 %v529, %v529
  %534 = vst [vmem:[%s5] sm:$0xf] %v530
  %535 = vst [vmem:[%s5 + $0x4] sm:$0xf] %v531
  %s536 = smul.u32 2, 3
  %s537 = smul.addr %s536, 8
  %s538 = scalar_lea.vmem [#allocation3], %s537
  %v539 = vld [vmem:[%s538] sm:$0xff]
  %v540 = vld [vmem:[%s538 + $0x8] sm:$0xff]
  %v541 = vld [vmem:[%s538 + $0x10] sm:$0xff]
  %v542 = vld [vmem:[%s538 + $0x18] sm:$0xff]
  %v543 = vld [vmem:[%s538 + $0x20] sm:$0xff]
  %v544 = vld [vmem:[%s538 + $0x28] sm:$0xff]
  %545 = vmatprep.subr.bf16.mxu0 %v345
  %546 = vmatpush1.bf16.msra.mxu0 %v344
  %547 = vmatprep.subr.bf16.mxu0 %v348
  %548 = vmatpush1.bf16.msra.mxu0 %v347
  %549 = vmatprep.subr.bf16.mxu0 %v351
  %550 = vmatpush1.bf16.msra.mxu0 %v350
  %551 = vmatprep.subr.bf16.mxu0 %v354
  %552 = vmatpush1.bf16.msra.mxu0 %v353
  %553 = vmatprep.subr.bf16.mxu0 %v357
  %554 = vmatpush1.bf16.msra.mxu0 %v356
  %555 = vmatprep.subr.bf16.mxu0 %v360
  %556 = vmatpush1.bf16.msra.mxu0 %v359
  %557 = vmatprep.subr.bf16.mxu0 %v363
  %558 = vmatpush1.bf16.msra.mxu0 %v362
  %559 = vmatprep.subr.bf16.mxu0 %v366
  %560 = vmatpush1.bf16.msra.mxu0 %v365
  %561 = vmatprep.subr.bf16.mxu0 0
  %562 = vmatpush1.bf16.msra.mxu0 0
  %563 = vmatprep.subr.bf16.mxu0 0
  %564 = vmatpush1.bf16.msra.mxu0 0
  %565 = vmatprep.subr.bf16.mxu0 0
  %566 = vmatpush1.bf16.msra.mxu0 0
  %567 = vmatprep.subr.bf16.mxu0 0
  %568 = vmatpush1.bf16.msra.mxu0 0
  %569 = vmatprep.subr.bf16.mxu0 0
  %570 = vmatpush1.bf16.msra.mxu0 0
  %571 = vmatprep.subr.bf16.mxu0 0
  %572 = vmatpush1.bf16.msra.mxu0 0
  %573 = vmatprep.subr.bf16.mxu0 0
  %574 = vmatpush1.bf16.msra.mxu0 0
  %575 = vmatprep.subr.bf16.mxu0 0
  %576 = vmatpush1.bf16.msra.mxu0 0
  %577 = vmatprep.mubr.bf16.mxu0 0
  %578 = vmatmul.mubr.bf16.gmra.mrb[0].mxu0 %v526
  %v579 = vpop.f32.mrb[0].mxu0
  %v580 = vadd.f32 0.0, %v579
  %v581 = vpop.f32.mrb[0].mxu0
  %v582 = vadd.f32 0.0, %v581
  %v583 = vpop.f32.mrb[0].mxu0
  %v584 = vadd.f32 0.0, %v583
  %v585 = vpop.f32.mrb[0].mxu0
  %v586 = vadd.f32 0.0, %v585
  %587 = vdwg.mxu0
  %588 = vmatprep.subr.bf16.mxu0 0
  %589 = vmatpush1.bf16.msra.mxu0 %v346
  %590 = vmatprep.subr.bf16.mxu0 0
  %591 = vmatpush1.bf16.msra.mxu0 %v349
  %592 = vmatprep.subr.bf16.mxu0 0
  %593 = vmatpush1.bf16.msra.mxu0 %v352
  %594 = vmatprep.subr.bf16.mxu0 0
  %595 = vmatpush1.bf16.msra.mxu0 %v355
  %596 = vmatprep.subr.bf16.mxu0 0
  %597 = vmatpush1.bf16.msra.mxu0 %v358
  %598 = vmatprep.subr.bf16.mxu0 0
  %599 = vmatpush1.bf16.msra.mxu0 %v361
  %600 = vmatprep.subr.bf16.mxu0 0
  %601 = vmatpush1.bf16.msra.mxu0 %v364
  %602 = vmatprep.subr.bf16.mxu0 0
  %603 = vmatpush1.bf16.msra.mxu0 %v367
  %604 = vmatprep.subr.bf16.mxu0 0
  %605 = vmatpush1.bf16.msra.mxu0 0
  %606 = vmatprep.subr.bf16.mxu0 0
  %607 = vmatpush1.bf16.msra.mxu0 0
  %608 = vmatprep.subr.bf16.mxu0 0
  %609 = vmatpush1.bf16.msra.mxu0 0
  %610 = vmatprep.subr.bf16.mxu0 0
  %611 = vmatpush1.bf16.msra.mxu0 0
  %612 = vmatprep.subr.bf16.mxu0 0
  %613 = vmatpush1.bf16.msra.mxu0 0
  %614 = vmatprep.subr.bf16.mxu0 0
  %615 = vmatpush1.bf16.msra.mxu0 0
  %616 = vmatprep.subr.bf16.mxu0 0
  %617 = vmatpush1.bf16.msra.mxu0 0
  %618 = vmatprep.subr.bf16.mxu0 0
  %619 = vmatpush1.bf16.msra.mxu0 0
  %620 = vmatprep.mubr.bf16.mxu0 0
  %621 = vmatmul.mubr.bf16.gmra.mrb[0].mxu0 %v526
  %v622 = vpop.f32.mrb[0].mxu0
  %v623 = vadd.f32 0.0, %v622
  %v624 = vpop.f32.mrb[0].mxu0
  %v625 = vpop.f32.mrb[0].mxu0
  %v626 = vadd.f32 0.0, %v625
  %v627 = vpop.f32.mrb[0].mxu0
  %628 = vdwg.mxu0
  %v629 = vadd.f32 %v539, %v580
  %v630 = vadd.f32 %v542, %v584
  %v631 = vxor.u32 %v629, 2147483648
  %v632 = vxor.u32 %v630, 2147483648
  %v633 = vmul.f32 %v631, 1.442695
  %v634 = vpow.pop %v633
  %v635 = vmul.f32 %v632, 1.442695
  %v636 = vpow.pop %v635
  %v637 = vadd.f32 %v634, 1.0
  %v638 = vadd.f32 %v636, 1.0
  %v639 = vrcp.pop %v637
  %v640 = vmul.f32 1.0, %v639
  %v641 = vrcp.pop %v638
  %v642 = vmul.f32 1.0, %v641
  %v643 = vadd.f32 %v540, %v582
  %v644 = vadd.f32 %v543, %v586
  %v645 = vxor.u32 %v643, 2147483648
  %v646 = vxor.u32 %v644, 2147483648
  %v647 = vmul.f32 %v645, 1.442695
  %v648 = vpow.pop %v647
  %v649 = vmul.f32 %v646, 1.442695
  %v650 = vpow.pop %v649
  %v651 = vadd.f32 %v648, 1.0
  %v652 = vadd.f32 %v650, 1.0
  %v653 = vrcp.pop %v651
  %v654 = vmul.f32 1.0, %v653
  %v655 = vrcp.pop %v652
  %v656 = vmul.f32 1.0, %v655
  %v657 = vadd.f32 %v623, %v508
  %v658 = vadd.f32 %v626, %v508
  %v659 = vmul.f32 %v640, %v657
  %v660 = vmul.f32 %v642, %v658
  %v661 = vadd.f32 %v541, %v659
  %v662 = vadd.f32 %v544, %v660
  %v663 = vtanh.pop %v661
  %v664 = vtanh.pop %v662
  %v665 = vsub.f32 1.0, %v654
  %v666 = vsub.f32 1.0, %v656
  %v667 = vmul.f32 %v665, %v663
  %v668 = vmul.f32 %v666, %v664
  %v669 = vmul.f32 %v654, %v524
  %v670 = vmul.f32 %v656, %v525
  %v671 = vadd.f32 %v667, %v669
  %v672 = vadd.f32 %v668, %v670
  %v673 = vpack.c.bf16 %v672, %v671
  %v675 = vunpack.c.l.b16 %v673
  %v676 = vunpack.c.h.b16 %v673
  %v677 = vpack.c.b16 %v675, %v675
  %v678 = vpack.c.b16 %v676, %v676
  %s681 = scalar_lea.vmem %s5, 8
  %682 = vst [vmem:[%s681] sm:$0xf] %v677
  %683 = vst [vmem:[%s681 + $0x4] sm:$0xf] %v678
  %684 = vst [vmem:[#allocation2] sm:$0xff] %v671
  %685 = vst [vmem:[#allocation2 + $0x8] sm:$0xff] %v672
  // Predicated region
  $region26: #{_lambda_.4} parent=0 // pred_check
    _
  $region27: #{_lambda_.4} parent=0 // pred_check_branch
    %687 = sbr.rel (0) target = $region29
  $region28: #{_lambda_.4} parent=0 // pred_region
    _
  $region29: #{_lambda_.4} parent=0 // pred_fallthru
    _
  // Predicated region
  $region30: #{_lambda_.4} parent=0 // pred_check
    _
  $region31: #{_lambda_.4} parent=0 // pred_check_branch
    %689 = sbr.rel (0) target = $region33
  $region32: #{_lambda_.4} parent=0 // pred_region
    _
  $region33: #{_lambda_.4} parent=0 // pred_fallthru
    _

// kernel: _lambda_.5
$region0: #{_lambda_.5}
  #allocation0 [shape = 'u32[]', space=smem, size = 0x4, offset = 0x4, fixed_abs, tag = 'smem constant byte address 0x4 - core index']
  #allocation1 [shape = 'u32[144,128]{1,0:T(1,128)}', space=vmem, size = 0x12000, scoped, tag = 'internal scratch']
  #allocation2 [shape = 'f32[32,128]{1,0:T(8,128)}', space=vmem, size = 0x4000, scoped, tag = 'scratch operand']
  #allocation3 [shape = 'f32[32,384]{1,0:T(8,128)}', space=vmem, size = 0xc000, scoped, tag = 'scratch operand']
  %s0 = inlined_call_operand.vmem [shape: bf16[1,32,32], index: 0, kind: input, shape index: {}]
  %s1 = inlined_call_operand.vmem [shape: bf16[32,384], index: 1, kind: input, shape index: {}]
  %s2 = inlined_call_operand.vmem [shape: bf16[128,384], index: 2, kind: input, shape index: {}]
  %s3 = inlined_call_operand.vmem [shape: f32[1,384], index: 3, kind: input, shape index: {}]
  %s4 = inlined_call_operand.vmem [shape: f32[1,128], index: 4, kind: input, shape index: {}]
  %s5 = inlined_call_operand.vmem [shape: bf16[1,32,128], index: 5, kind: output, shape index: {}]
  %s6 = sld [smem:[#allocation0]]
  $region34: #{_lambda_.5} parent=0
    _
  %s8 = ssub.s32 1, %s6
  %s9 = scalar_select 0, %s8, %s6
  // Predicated region
  $region2: #{_lambda_.5} parent=0 // pred_check
    _
  $region3: #{_lambda_.5} parent=0 // pred_check_branch
    %11 = sbr.rel (0) target = $region5
  $region4: #{_lambda_.5} parent=0 // pred_region
    _
  $region5: #{_lambda_.5} parent=0 // pred_fallthru
    _
  // Predicated region
  $region6: #{_lambda_.5} parent=0 // pred_check
    _
  $region7: #{_lambda_.5} parent=0 // pred_check_branch
    %13 = sbr.rel (0) target = $region9
  $region8: #{_lambda_.5} parent=0 // pred_region
    _
  $region9: #{_lambda_.5} parent=0 // pred_fallthru
    _
  // Predicated region
  $region10: #{_lambda_.5} parent=0 // pred_check
    _
  $region11: #{_lambda_.5} parent=0 // pred_check_branch
    %15 = sbr.rel (0) target = $region13
  $region12: #{_lambda_.5} parent=0 // pred_region
    _
  $region13: #{_lambda_.5} parent=0 // pred_fallthru
    _
  // Predicated region
  $region14: #{_lambda_.5} parent=0 // pred_check
    _
  $region15: #{_lambda_.5} parent=0 // pred_check_branch
    %17 = sbr.rel (0) target = $region17
  $region16: #{_lambda_.5} parent=0 // pred_region
    _
  $region17: #{_lambda_.5} parent=0 // pred_fallthru
    _
  // Predicated region
  $region18: #{_lambda_.5} parent=0 // pred_check
    _
  $region19: #{_lambda_.5} parent=0 // pred_check_branch
    %19 = sbr.rel (0) target = $region21
  $region20: #{_lambda_.5} parent=0 // pred_region
    _
  $region21: #{_lambda_.5} parent=0 // pred_fallthru
    _
  %p21 = scmp.eq.s32.totalorder 0, 0
  // Predicated region
  $region22: #{_lambda_.5} parent=0 // pred_check
    %p22 = pneg %p21
  $region23: #{_lambda_.5} parent=0 // pred_check_branch
    %24 = sbr.rel (%p22) target = $region25
  $region24: #{_lambda_.5} parent=0 // pred_region
    %25 = vst [vmem:[#allocation2] sm:$0xff] 0.0
    %26 = vst [vmem:[#allocation2 + $0x8] sm:$0xff] 0.0
    %27 = vst [vmem:[#allocation2 + $0x10] sm:$0xff] 0.0
    %28 = vst [vmem:[#allocation2 + $0x18] sm:$0xff] 0.0
  $region25: #{_lambda_.5} parent=0 // pred_fallthru
    _
  %v29 = vld [vmem:[%s0] sm:$0xf]
  %v30 = vld [vmem:[%s0 + $0x4] sm:$0xf]
  %v31 = vld [vmem:[%s0 + $0x8] sm:$0xf]
  %v32 = vld [vmem:[%s0 + $0xc] sm:$0xf]
  %v33 = vld [vmem:[%s1] sm:$0xff]
  %v34 = vld [vmem:[%s1 + $0x8] sm:$0xf]
  %v35 = vld [vmem:[%s1 + $0xc] sm:$0xff]
  %v36 = vld [vmem:[%s1 + $0x14] sm:$0xf]
  %v37 = vld [vmem:[%s1 + $0x18] sm:$0xff]
  %v38 = vld [vmem:[%s1 + $0x20] sm:$0xf]
  %v39 = vld [vmem:[%s1 + $0x24] sm:$0xff]
  %v40 = vld [vmem:[%s1 + $0x2c] sm:$0xf]
  %v41 = vld [vmem:[%s3] sm:$0x7]
  %v43 = vlaneseq
  %v44 = vshrl.u32 %v43, 7
  %v45 = vsub.s32 0, %v44
  %v46 = vrot.slane %v41, %v45
  %v47 = vlaneseq
  %v48 = vshrl.u32 %v47, 7
  %v49 = vsub.s32 1, %v48
  %v50 = vrot.slane %v41, %v49
  %v51 = vlaneseq
  %v52 = vshrl.u32 %v51, 7
  %v53 = vsub.s32 2, %v52
  %v54 = vrot.slane %v41, %v53
  %v62 = vunpack.c.l.b16 %v29
  %v63 = vunpack.c.l.b16 %v30
  %v64 = vunpack.c.l.b16 %v31
  %v65 = vunpack.c.l.b16 %v32
  %v66 = vpack.c.b16 %v63, %v62
  %v67 = vpack.c.b16 %v65, %v64
  %v76 = vunpack.c.l.b16 %v33
  %v77 = vunpack.c.h.b16 %v33
  %v78 = vunpack.c.l.b16 %v34
  %v79 = vunpack.c.l.b16 %v35
  %v80 = vunpack.c.h.b16 %v35
  %v81 = vunpack.c.l.b16 %v36
  %v82 = vunpack.c.l.b16 %v37
  %v83 = vunpack.c.h.b16 %v37
  %v84 = vunpack.c.l.b16 %v38
  %v85 = vunpack.c.l.b16 %v39
  %v86 = vunpack.c.h.b16 %v39
  %v87 = vunpack.c.l.b16 %v40
  %v88 = vpack.c.b16 %v79, %v76
  %v89 = vpack.c.b16 %v80, %v77
  %v90 = vpack.c.b16 %v81, %v78
  %v91 = vpack.c.b16 %v85, %v82
  %v92 = vpack.c.b16 %v86, %v83
  %v93 = vpack.c.b16 %v87, %v84
  %vm100 = vcmask 261120
  %v102 = vsel %vm100, %v66, 0
  %v105 = vsel %vm100, %v67, 0
  %107 = vmatprep.subr.bf16.mxu0 %v89
  %108 = vmatpush1.bf16.msra.mxu0 %v88
  %109 = vmatprep.subr.bf16.mxu0 %v92
  %110 = vmatpush1.bf16.msra.mxu0 %v91
  %111 = vmatprep.subr.bf16.mxu0 0
  %112 = vmatpush1.bf16.msra.mxu0 0
  %113 = vmatprep.subr.bf16.mxu0 0
  %114 = vmatpush1.bf16.msra.mxu0 0
  %115 = vmatprep.subr.bf16.mxu0 0
  %116 = vmatpush1.bf16.msra.mxu0 0
  %117 = vmatprep.subr.bf16.mxu0 0
  %118 = vmatpush1.bf16.msra.mxu0 0
  %119 = vmatprep.subr.bf16.mxu0 0
  %120 = vmatpush1.bf16.msra.mxu0 0
  %121 = vmatprep.subr.bf16.mxu0 0
  %122 = vmatpush1.bf16.msra.mxu0 0
  %123 = vmatprep.subr.bf16.mxu0 0
  %124 = vmatpush1.bf16.msra.mxu0 0
  %125 = vmatprep.subr.bf16.mxu0 0
  %126 = vmatpush1.bf16.msra.mxu0 0
  %127 = vmatprep.subr.bf16.mxu0 0
  %128 = vmatpush1.bf16.msra.mxu0 0
  %129 = vmatprep.subr.bf16.mxu0 0
  %130 = vmatpush1.bf16.msra.mxu0 0
  %131 = vmatprep.subr.bf16.mxu0 0
  %132 = vmatpush1.bf16.msra.mxu0 0
  %133 = vmatprep.subr.bf16.mxu0 0
  %134 = vmatpush1.bf16.msra.mxu0 0
  %135 = vmatprep.subr.bf16.mxu0 0
  %136 = vmatpush1.bf16.msra.mxu0 0
  %137 = vmatprep.subr.bf16.mxu0 0
  %138 = vmatpush1.bf16.msra.mxu0 0
  %139 = vmatprep.mubr.bf16.mxu0 0
  %140 = vmatmul.mubr.bf16.gmra.mrb[0].mxu0 %v102
  %v141 = vpop.f32.mrb[0].mxu0
  %v142 = vadd.f32 %v46, %v141
  %v143 = vpop.f32.mrb[0].mxu0
  %v144 = vadd.f32 %v50, %v143
  %v145 = vpop.f32.mrb[0].mxu0
  %v146 = vadd.f32 %v46, %v145
  %v147 = vpop.f32.mrb[0].mxu0
  %v148 = vadd.f32 %v50, %v147
  %149 = vmatprep.mubr.bf16.mxu0 0
  %150 = vmatmul.mubr.bf16.gmra.mrb[0].mxu0 %v105
  %v151 = vpop.f32.mrb[0].mxu0
  %v152 = vadd.f32 %v46, %v151
  %v153 = vpop.f32.mrb[0].mxu0
  %v154 = vadd.f32 %v50, %v153
  %v155 = vpop.f32.mrb[0].mxu0
  %v156 = vadd.f32 %v46, %v155
  %v157 = vpop.f32.mrb[0].mxu0
  %v158 = vadd.f32 %v50, %v157
  %159 = vdwg.mxu0
  %160 = vmatprep.subr.bf16.mxu0 0
  %161 = vmatpush1.bf16.msra.mxu0 %v90
  %162 = vmatprep.subr.bf16.mxu0 0
  %163 = vmatpush1.bf16.msra.mxu0 %v93
  %164 = vmatprep.subr.bf16.mxu0 0
  %165 = vmatpush1.bf16.msra.mxu0 0
  %166 = vmatprep.subr.bf16.mxu0 0
  %167 = vmatpush1.bf16.msra.mxu0 0
  %168 = vmatprep.subr.bf16.mxu0 0
  %169 = vmatpush1.bf16.msra.mxu0 0
  %170 = vmatprep.subr.bf16.mxu0 0
  %171 = vmatpush1.bf16.msra.mxu0 0
  %172 = vmatprep.subr.bf16.mxu0 0
  %173 = vmatpush1.bf16.msra.mxu0 0
  %174 = vmatprep.subr.bf16.mxu0 0
  %175 = vmatpush1.bf16.msra.mxu0 0
  %176 = vmatprep.subr.bf16.mxu0 0
  %177 = vmatpush1.bf16.msra.mxu0 0
  %178 = vmatprep.subr.bf16.mxu0 0
  %179 = vmatpush1.bf16.msra.mxu0 0
  %180 = vmatprep.subr.bf16.mxu0 0
  %181 = vmatpush1.bf16.msra.mxu0 0
  %182 = vmatprep.subr.bf16.mxu0 0
  %183 = vmatpush1.bf16.msra.mxu0 0
  %184 = vmatprep.subr.bf16.mxu0 0
  %185 = vmatpush1.bf16.msra.mxu0 0
  %186 = vmatprep.subr.bf16.mxu0 0
  %187 = vmatpush1.bf16.msra.mxu0 0
  %188 = vmatprep.subr.bf16.mxu0 0
  %189 = vmatpush1.bf16.msra.mxu0 0
  %190 = vmatprep.subr.bf16.mxu0 0
  %191 = vmatpush1.bf16.msra.mxu0 0
  %192 = vmatprep.mubr.bf16.mxu0 0
  %193 = vmatmul.mubr.bf16.gmra.mrb[0].mxu0 %v102
  %v194 = vpop.f32.mrb[0].mxu0
  %v195 = vadd.f32 %v54, %v194
  %v196 = vpop.f32.mrb[0].mxu0
  %v197 = vpop.f32.mrb[0].mxu0
  %v198 = vadd.f32 %v54, %v197
  %v199 = vpop.f32.mrb[0].mxu0
  %200 = vmatprep.mubr.bf16.mxu0 0
  %201 = vmatmul.mubr.bf16.gmra.mrb[0].mxu0 %v105
  %v202 = vpop.f32.mrb[0].mxu0
  %v203 = vadd.f32 %v54, %v202
  %v204 = vpop.f32.mrb[0].mxu0
  %v205 = vpop.f32.mrb[0].mxu0
  %v206 = vadd.f32 %v54, %v205
  %v207 = vpop.f32.mrb[0].mxu0
  %208 = vdwg.mxu0
  %209 = vst [vmem:[#allocation3] sm:$0xff] %v142
  %210 = vst [vmem:[#allocation3 + $0x8] sm:$0xff] %v144
  %211 = vst [vmem:[#allocation3 + $0x10] sm:$0xff] %v195
  %212 = vst [vmem:[#allocation3 + $0x18] sm:$0xff] %v146
  %213 = vst [vmem:[#allocation3 + $0x20] sm:$0xff] %v148
  %214 = vst [vmem:[#allocation3 + $0x28] sm:$0xff] %v198
  %215 = vst [vmem:[#allocation3 + $0x30] sm:$0xff] %v152
  %216 = vst [vmem:[#allocation3 + $0x38] sm:$0xff] %v154
  %217 = vst [vmem:[#allocation3 + $0x40] sm:$0xff] %v203
  %218 = vst [vmem:[#allocation3 + $0x48] sm:$0xff] %v156
  %219 = vst [vmem:[#allocation3 + $0x50] sm:$0xff] %v158
  %220 = vst [vmem:[#allocation3 + $0x58] sm:$0xff] %v206
  %v221 = vld [vmem:[%s2] sm:$0xff]
  %v222 = vld [vmem:[%s2 + $0x8] sm:$0xf]
  %v223 = vld [vmem:[%s2 + $0xc] sm:$0xff]
  %v224 = vld [vmem:[%s2 + $0x14] sm:$0xf]
  %v225 = vld [vmem:[%s2 + $0x18] sm:$0xff]
  %v226 = vld [vmem:[%s2 + $0x20] sm:$0xf]
  %v227 = vld [vmem:[%s2 + $0x24] sm:$0xff]
  %v228 = vld [vmem:[%s2 + $0x2c] sm:$0xf]
  %v229 = vld [vmem:[%s2 + $0x30] sm:$0xff]
  %v230 = vld [vmem:[%s2 + $0x38] sm:$0xf]
  %v231 = vld [vmem:[%s2 + $0x3c] sm:$0xff]
  %v232 = vld [vmem:[%s2 + $0x44] sm:$0xf]
  %v233 = vld [vmem:[%s2 + $0x48] sm:$0xff]
  %v234 = vld [vmem:[%s2 + $0x50] sm:$0xf]
  %v235 = vld [vmem:[%s2 + $0x54] sm:$0xff]
  %v236 = vld [vmem:[%s2 + $0x5c] sm:$0xf]
  %v237 = vld [vmem:[%s2 + $0x60] sm:$0xff]
  %v238 = vld [vmem:[%s2 + $0x68] sm:$0xf]
  %v239 = vld [vmem:[%s2 + $0x6c] sm:$0xff]
  %v240 = vld [vmem:[%s2 + $0x74] sm:$0xf]
  %v241 = vld [vmem:[%s2 + $0x78] sm:$0xff]
  %v242 = vld [vmem:[%s2 + $0x80] sm:$0xf]
  %v243 = vld [vmem:[%s2 + $0x84] sm:$0xff]
  %v244 = vld [vmem:[%s2 + $0x8c] sm:$0xf]
  %v245 = vld [vmem:[%s2 + $0x90] sm:$0xff]
  %v246 = vld [vmem:[%s2 + $0x98] sm:$0xf]
  %v247 = vld [vmem:[%s2 + $0x9c] sm:$0xff]
  %v248 = vld [vmem:[%s2 + $0xa4] sm:$0xf]
  %v249 = vld [vmem:[%s2 + $0xa8] sm:$0xff]
  %v250 = vld [vmem:[%s2 + $0xb0] sm:$0xf]
  %v251 = vld [vmem:[%s2 + $0xb4] sm:$0xff]
  %v252 = vld [vmem:[%s2 + $0xbc] sm:$0xf]
  %v253 = vld [vmem:[%s4] sm:$0x1]
  %v254 = vld [vmem:[#allocation2] sm:$0xff]
  %v255 = vld [vmem:[#allocation2 + $0x8] sm:$0xff]
  %v256 = vld [vmem:[#allocation2 + $0x10] sm:$0xff]
  %v257 = vld [vmem:[#allocation2 + $0x18] sm:$0xff]
  %s258 = smul.u32 0, 3
  %s259 = smul.addr %s258, 8
  %s260 = scalar_lea.vmem [#allocation3], %s259
  %v261 = vld [vmem:[%s260] sm:$0xff]
  %v262 = vld [vmem:[%s260 + $0x8] sm:$0xff]
  %v263 = vld [vmem:[%s260 + $0x10] sm:$0xff]
  %v264 = vld [vmem:[%s260 + $0x18] sm:$0xff]
  %v265 = vld [vmem:[%s260 + $0x20] sm:$0xff]
  %v266 = vld [vmem:[%s260 + $0x28] sm:$0xff]
  %v267 = vld [vmem:[%s260 + $0x30] sm:$0xff]
  %v268 = vld [vmem:[%s260 + $0x38] sm:$0xff]
  %v269 = vld [vmem:[%s260 + $0x40] sm:$0xff]
  %v270 = vld [vmem:[%s260 + $0x48] sm:$0xff]
  %v271 = vld [vmem:[%s260 + $0x50] sm:$0xff]
  %v272 = vld [vmem:[%s260 + $0x58] sm:$0xff]
  %v273 = vpack.c.bf16 %v255, %v254
  %v274 = vpack.c.bf16 %v257, %v256
  %v307 = vunpack.c.l.b16 %v221
  %v308 = vunpack.c.h.b16 %v221
  %v309 = vunpack.c.l.b16 %v222
  %v310 = vunpack.c.l.b16 %v223
  %v311 = vunpack.c.h.b16 %v223
  %v312 = vunpack.c.l.b16 %v224
  %v313 = vunpack.c.l.b16 %v225
  %v314 = vunpack.c.h.b16 %v225
  %v315 = vunpack.c.l.b16 %v226
  %v316 = vunpack.c.l.b16 %v227
  %v317 = vunpack.c.h.b16 %v227
  %v318 = vunpack.c.l.b16 %v228
  %v319 = vunpack.c.l.b16 %v229
  %v320 = vunpack.c.h.b16 %v229
  %v321 = vunpack.c.l.b16 %v230
  %v322 = vunpack.c.l.b16 %v231
  %v323 = vunpack.c.h.b16 %v231
  %v324 = vunpack.c.l.b16 %v232
  %v325 = vunpack.c.l.b16 %v233
  %v326 = vunpack.c.h.b16 %v233
  %v327 = vunpack.c.l.b16 %v234
  %v328 = vunpack.c.l.b16 %v235
  %v329 = vunpack.c.h.b16 %v235
  %v330 = vunpack.c.l.b16 %v236
  %v331 = vunpack.c.l.b16 %v237
  %v332 = vunpack.c.h.b16 %v237
  %v333 = vunpack.c.l.b16 %v238
  %v334 = vunpack.c.l.b16 %v239
  %v335 = vunpack.c.h.b16 %v239
  %v336 = vunpack.c.l.b16 %v240
  %v337 = vunpack.c.l.b16 %v241
  %v338 = vunpack.c.h.b16 %v241
  %v339 = vunpack.c.l.b16 %v242
  %v340 = vunpack.c.l.b16 %v243
  %v341 = vunpack.c.h.b16 %v243
  %v342 = vunpack.c.l.b16 %v244
  %v343 = vunpack.c.l.b16 %v245
  %v344 = vunpack.c.h.b16 %v245
  %v345 = vunpack.c.l.b16 %v246
  %v346 = vunpack.c.l.b16 %v247
  %v347 = vunpack.c.h.b16 %v247
  %v348 = vunpack.c.l.b16 %v248
  %v349 = vunpack.c.l.b16 %v249
  %v350 = vunpack.c.h.b16 %v249
  %v351 = vunpack.c.l.b16 %v250
  %v352 = vunpack.c.l.b16 %v251
  %v353 = vunpack.c.h.b16 %v251
  %v354 = vunpack.c.l.b16 %v252
  %v355 = vpack.c.b16 %v310, %v307
  %v356 = vpack.c.b16 %v311, %v308
  %v357 = vpack.c.b16 %v312, %v309
  %v358 = vpack.c.b16 %v316, %v313
  %v359 = vpack.c.b16 %v317, %v314
  %v360 = vpack.c.b16 %v318, %v315
  %v361 = vpack.c.b16 %v322, %v319
  %v362 = vpack.c.b16 %v323, %v320
  %v363 = vpack.c.b16 %v324, %v321
  %v364 = vpack.c.b16 %v328, %v325
  %v365 = vpack.c.b16 %v329, %v326
  %v366 = vpack.c.b16 %v330, %v327
  %v367 = vpack.c.b16 %v334, %v331
  %v368 = vpack.c.b16 %v335, %v332
  %v369 = vpack.c.b16 %v336, %v333
  %v370 = vpack.c.b16 %v340, %v337
  %v371 = vpack.c.b16 %v341, %v338
  %v372 = vpack.c.b16 %v342, %v339
  %v373 = vpack.c.b16 %v346, %v343
  %v374 = vpack.c.b16 %v347, %v344
  %v375 = vpack.c.b16 %v348, %v345
  %v376 = vpack.c.b16 %v352, %v349
  %v377 = vpack.c.b16 %v353, %v350
  %v378 = vpack.c.b16 %v354, %v351
  %403 = vmatprep.subr.bf16.mxu0 %v356
  %404 = vmatpush1.bf16.msra.mxu0 %v355
  %405 = vmatprep.subr.bf16.mxu0 %v359
  %406 = vmatpush1.bf16.msra.mxu0 %v358
  %407 = vmatprep.subr.bf16.mxu0 %v362
  %408 = vmatpush1.bf16.msra.mxu0 %v361
  %409 = vmatprep.subr.bf16.mxu0 %v365
  %410 = vmatpush1.bf16.msra.mxu0 %v364
  %411 = vmatprep.subr.bf16.mxu0 %v368
  %412 = vmatpush1.bf16.msra.mxu0 %v367
  %413 = vmatprep.subr.bf16.mxu0 %v371
  %414 = vmatpush1.bf16.msra.mxu0 %v370
  %415 = vmatprep.subr.bf16.mxu0 %v374
  %416 = vmatpush1.bf16.msra.mxu0 %v373
  %417 = vmatprep.subr.bf16.mxu0 %v377
  %418 = vmatpush1.bf16.msra.mxu0 %v376
  %419 = vmatprep.subr.bf16.mxu0 0
  %420 = vmatpush1.bf16.msra.mxu0 0
  %421 = vmatprep.subr.bf16.mxu0 0
  %422 = vmatpush1.bf16.msra.mxu0 0
  %423 = vmatprep.subr.bf16.mxu0 0
  %424 = vmatpush1.bf16.msra.mxu0 0
  %425 = vmatprep.subr.bf16.mxu0 0
  %426 = vmatpush1.bf16.msra.mxu0 0
  %427 = vmatprep.subr.bf16.mxu0 0
  %428 = vmatpush1.bf16.msra.mxu0 0
  %429 = vmatprep.subr.bf16.mxu0 0
  %430 = vmatpush1.bf16.msra.mxu0 0
  %431 = vmatprep.subr.bf16.mxu0 0
  %432 = vmatpush1.bf16.msra.mxu0 0
  %433 = vmatprep.subr.bf16.mxu0 0
  %434 = vmatpush1.bf16.msra.mxu0 0
  %435 = vmatprep.mubr.bf16.mxu0 0
  %436 = vmatmul.mubr.bf16.gmra.mrb[0].mxu0 %v273
  %v437 = vpop.f32.mrb[0].mxu0
  %v438 = vadd.f32 0.0, %v437
  %v439 = vpop.f32.mrb[0].mxu0
  %v440 = vadd.f32 0.0, %v439
  %v441 = vpop.f32.mrb[0].mxu0
  %v442 = vadd.f32 0.0, %v441
  %v443 = vpop.f32.mrb[0].mxu0
  %v444 = vadd.f32 0.0, %v443
  %445 = vmatprep.mubr.bf16.mxu0 0
  %446 = vmatmul.mubr.bf16.gmra.mrb[0].mxu0 %v274
  %v447 = vpop.f32.mrb[0].mxu0
  %v448 = vadd.f32 0.0, %v447
  %v449 = vpop.f32.mrb[0].mxu0
  %v450 = vadd.f32 0.0, %v449
  %v451 = vpop.f32.mrb[0].mxu0
  %v452 = vadd.f32 0.0, %v451
  %v453 = vpop.f32.mrb[0].mxu0
  %v454 = vadd.f32 0.0, %v453
  %455 = vdwg.mxu0
  %456 = vmatprep.subr.bf16.mxu0 0
  %457 = vmatpush1.bf16.msra.mxu0 %v357
  %458 = vmatprep.subr.bf16.mxu0 0
  %459 = vmatpush1.bf16.msra.mxu0 %v360
  %460 = vmatprep.subr.bf16.mxu0 0
  %461 = vmatpush1.bf16.msra.mxu0 %v363
  %462 = vmatprep.subr.bf16.mxu0 0
  %463 = vmatpush1.bf16.msra.mxu0 %v366
  %464 = vmatprep.subr.bf16.mxu0 0
  %465 = vmatpush1.bf16.msra.mxu0 %v369
  %466 = vmatprep.subr.bf16.mxu0 0
  %467 = vmatpush1.bf16.msra.mxu0 %v372
  %468 = vmatprep.subr.bf16.mxu0 0
  %469 = vmatpush1.bf16.msra.mxu0 %v375
  %470 = vmatprep.subr.bf16.mxu0 0
  %471 = vmatpush1.bf16.msra.mxu0 %v378
  %472 = vmatprep.subr.bf16.mxu0 0
  %473 = vmatpush1.bf16.msra.mxu0 0
  %474 = vmatprep.subr.bf16.mxu0 0
  %475 = vmatpush1.bf16.msra.mxu0 0
  %476 = vmatprep.subr.bf16.mxu0 0
  %477 = vmatpush1.bf16.msra.mxu0 0
  %478 = vmatprep.subr.bf16.mxu0 0
  %479 = vmatpush1.bf16.msra.mxu0 0
  %480 = vmatprep.subr.bf16.mxu0 0
  %481 = vmatpush1.bf16.msra.mxu0 0
  %482 = vmatprep.subr.bf16.mxu0 0
  %483 = vmatpush1.bf16.msra.mxu0 0
  %484 = vmatprep.subr.bf16.mxu0 0
  %485 = vmatpush1.bf16.msra.mxu0 0
  %486 = vmatprep.subr.bf16.mxu0 0
  %487 = vmatpush1.bf16.msra.mxu0 0
  %488 = vmatprep.mubr.bf16.mxu0 0
  %489 = vmatmul.mubr.bf16.gmra.mrb[0].mxu0 %v273
  %v490 = vpop.f32.mrb[0].mxu0
  %v491 = vadd.f32 0.0, %v490
  %v492 = vpop.f32.mrb[0].mxu0
  %v493 = vpop.f32.mrb[0].mxu0
  %v494 = vadd.f32 0.0, %v493
  %v495 = vpop.f32.mrb[0].mxu0
  %496 = vmatprep.mubr.bf16.mxu0 0
  %497 = vmatmul.mubr.bf16.gmra.mrb[0].mxu0 %v274
  %v498 = vpop.f32.mrb[0].mxu0
  %v499 = vadd.f32 0.0, %v498
  %v500 = vpop.f32.mrb[0].mxu0
  %v501 = vpop.f32.mrb[0].mxu0
  %v502 = vadd.f32 0.0, %v501
  %v503 = vpop.f32.mrb[0].mxu0
  %504 = vdwg.mxu0
  %v505 = vadd.f32 %v261, %v438
  %v506 = vadd.f32 %v264, %v442
  %v507 = vadd.f32 %v267, %v448
  %v508 = vadd.f32 %v270, %v452
  %v509 = vxor.u32 %v505, 2147483648
  %v510 = vxor.u32 %v506, 2147483648
  %v511 = vxor.u32 %v507, 2147483648
  %v512 = vxor.u32 %v508, 2147483648
  %v513 = vmul.f32 %v509, 1.442695
  %v514 = vpow.pop %v513
  %v515 = vmul.f32 %v510, 1.442695
  %v516 = vpow.pop %v515
  %v517 = vmul.f32 %v511, 1.442695
  %v518 = vpow.pop %v517
  %v519 = vmul.f32 %v512, 1.442695
  %v520 = vpow.pop %v519
  %v521 = vadd.f32 %v514, 1.0
  %v522 = vadd.f32 %v516, 1.0
  %v523 = vadd.f32 %v518, 1.0
  %v524 = vadd.f32 %v520, 1.0
  %v525 = vrcp.pop %v521
  %v526 = vmul.f32 1.0, %v525
  %v527 = vrcp.pop %v522
  %v528 = vmul.f32 1.0, %v527
  %v529 = vrcp.pop %v523
  %v530 = vmul.f32 1.0, %v529
  %v531 = vrcp.pop %v524
  %v532 = vmul.f32 1.0, %v531
  %v533 = vadd.f32 %v262, %v440
  %v534 = vadd.f32 %v265, %v444
  %v535 = vadd.f32 %v268, %v450
  %v536 = vadd.f32 %v271, %v454
  %v537 = vxor.u32 %v533, 2147483648
  %v538 = vxor.u32 %v534, 2147483648
  %v539 = vxor.u32 %v535, 2147483648
  %v540 = vxor.u32 %v536, 2147483648
  %v541 = vmul.f32 %v537, 1.442695
  %v542 = vpow.pop %v541
  %v543 = vmul.f32 %v538, 1.442695
  %v544 = vpow.pop %v543
  %v545 = vmul.f32 %v539, 1.442695
  %v546 = vpow.pop %v545
  %v547 = vmul.f32 %v540, 1.442695
  %v548 = vpow.pop %v547
  %v549 = vadd.f32 %v542, 1.0
  %v550 = vadd.f32 %v544, 1.0
  %v551 = vadd.f32 %v546, 1.0
  %v552 = vadd.f32 %v548, 1.0
  %v553 = vrcp.pop %v549
  %v554 = vmul.f32 1.0, %v553
  %v555 = vrcp.pop %v550
  %v556 = vmul.f32 1.0, %v555
  %v557 = vrcp.pop %v551
  %v558 = vmul.f32 1.0, %v557
  %v559 = vrcp.pop %v552
  %v560 = vmul.f32 1.0, %v559
  %v562 = vlaneseq
  %v563 = vshrl.u32 %v562, 7
  %v564 = vsub.s32 0, %v563
  %v565 = vrot.slane %v253, %v564
  %v567 = vadd.f32 %v491, %v565
  %v568 = vadd.f32 %v494, %v565
  %v569 = vadd.f32 %v499, %v565
  %v570 = vadd.f32 %v502, %v565
  %v571 = vmul.f32 %v526, %v567
  %v572 = vmul.f32 %v528, %v568
  %v573 = vmul.f32 %v530, %v569
  %v574 = vmul.f32 %v532, %v570
  %v575 = vadd.f32 %v263, %v571
  %v576 = vadd.f32 %v266, %v572
  %v577 = vadd.f32 %v269, %v573
  %v578 = vadd.f32 %v272, %v574
  %v579 = vtanh.pop %v575
  %v580 = vtanh.pop %v576
  %v581 = vtanh.pop %v577
  %v582 = vtanh.pop %v578
  %v583 = vsub.f32 1.0, %v554
  %v584 = vsub.f32 1.0, %v556
  %v585 = vsub.f32 1.0, %v558
  %v586 = vsub.f32 1.0, %v560
  %v587 = vmul.f32 %v583, %v579
  %v588 = vmul.f32 %v584, %v580
  %v589 = vmul.f32 %v585, %v581
  %v590 = vmul.f32 %v586, %v582
  %v591 = vmul.f32 %v554, %v254
  %v592 = vmul.f32 %v556, %v255
  %v593 = vmul.f32 %v558, %v256
  %v594 = vmul.f32 %v560, %v257
  %v595 = vadd.f32 %v587, %v591
  %v596 = vadd.f32 %v588, %v592
  %v597 = vadd.f32 %v589, %v593
  %v598 = vadd.f32 %v590, %v594
  %v599 = vpack.c.bf16 %v596, %v595
  %v600 = vpack.c.bf16 %v598, %v597
  %v603 = vunpack.c.l.b16 %v599
  %v604 = vunpack.c.h.b16 %v599
  %v605 = vunpack.c.l.b16 %v600
  %v606 = vunpack.c.h.b16 %v600
  %v607 = vpack.c.b16 %v603, %v603
  %v608 = vpack.c.b16 %v604, %v604
  %v609 = vpack.c.b16 %v605, %v605
  %v610 = vpack.c.b16 %v606, %v606
  %615 = vst [vmem:[%s5] sm:$0xf] %v607
  %616 = vst [vmem:[%s5 + $0x4] sm:$0xf] %v608
  %617 = vst [vmem:[%s5 + $0x8] sm:$0xf] %v609
  %618 = vst [vmem:[%s5 + $0xc] sm:$0xf] %v610
  %619 = vst [vmem:[#allocation2] sm:$0xff] %v595
  %620 = vst [vmem:[#allocation2 + $0x8] sm:$0xff] %v596
  %621 = vst [vmem:[#allocation2 + $0x10] sm:$0xff] %v597
  %622 = vst [vmem:[#allocation2 + $0x18] sm:$0xff] %v598
  // Predicated region
  $region26: #{_lambda_.5} parent=0 // pred_check
    _
  $region27: #{_lambda_.5} parent=0 // pred_check_branch
    %624 = sbr.rel (0) target = $region29
  $region28: #{_lambda_.5} parent=0 // pred_region
    _
  $region29: #{_lambda_.5} parent=0 // pred_fallthru
    _
  // Predicated region
  $region30: #{_lambda_.5} parent=0 // pred_check
    _
  $region31: #{_lambda_.5} parent=0 // pred_check_branch
    %626 = sbr.rel (0) target = $region33
  $region32: #{_lambda_.5} parent=0 // pred_region
    _
  $region33: #{_lambda_.5} parent=0 // pred_fallthru
    _

// kernel: _lambda_.3
$region0: #{_lambda_.3}
  #allocation0 [shape = 'u32[]', space=smem, size = 0x4, offset = 0x4, fixed_abs, tag = 'smem constant byte address 0x4 - core index']
  #allocation1 [shape = 'u32[144,128]{1,0:T(1,128)}', space=vmem, size = 0x12000, scoped, tag = 'internal scratch']
  #allocation2 [shape = 'f32[16,128]{1,0:T(8,128)}', space=vmem, size = 0x2000, scoped, tag = 'scratch operand']
  #allocation3 [shape = 'f32[128,384]{1,0:T(8,128)}', space=vmem, size = 0x30000, scoped, tag = 'scratch operand']
  %s0 = inlined_call_operand.vmem [shape: f32[8,16,16], index: 0, kind: input, shape index: {}]
  %s1 = inlined_call_operand.vmem [shape: bf16[16,384], index: 1, kind: input, shape index: {}]
  %s2 = inlined_call_operand.vmem [shape: bf16[128,384], index: 2, kind: input, shape index: {}]
  %s3 = inlined_call_operand.vmem [shape: f32[1,384], index: 3, kind: input, shape index: {}]
  %s4 = inlined_call_operand.vmem [shape: f32[1,128], index: 4, kind: input, shape index: {}]
  %s5 = inlined_call_operand.vmem [shape: bf16[8,16,128], index: 5, kind: output, shape index: {}]
  %s6 = sld [smem:[#allocation0]]
  $region34: #{_lambda_.3} parent=0
    _
  %s8 = ssub.s32 1, %s6
  %s9 = scalar_select 0, %s8, %s6
  // Predicated region
  $region2: #{_lambda_.3} parent=0 // pred_check
    _
  $region3: #{_lambda_.3} parent=0 // pred_check_branch
    %11 = sbr.rel (0) target = $region5
  $region4: #{_lambda_.3} parent=0 // pred_region
    _
  $region5: #{_lambda_.3} parent=0 // pred_fallthru
    _
  // Predicated region
  $region6: #{_lambda_.3} parent=0 // pred_check
    _
  $region7: #{_lambda_.3} parent=0 // pred_check_branch
    %13 = sbr.rel (0) target = $region9
  $region8: #{_lambda_.3} parent=0 // pred_region
    _
  $region9: #{_lambda_.3} parent=0 // pred_fallthru
    _
  // Predicated region
  $region10: #{_lambda_.3} parent=0 // pred_check
    _
  $region11: #{_lambda_.3} parent=0 // pred_check_branch
    %15 = sbr.rel (0) target = $region13
  $region12: #{_lambda_.3} parent=0 // pred_region
    _
  $region13: #{_lambda_.3} parent=0 // pred_fallthru
    _
  // Predicated region
  $region14: #{_lambda_.3} parent=0 // pred_check
    _
  $region15: #{_lambda_.3} parent=0 // pred_check_branch
    %17 = sbr.rel (0) target = $region17
  $region16: #{_lambda_.3} parent=0 // pred_region
    _
  $region17: #{_lambda_.3} parent=0 // pred_fallthru
    _
  // Predicated region
  $region18: #{_lambda_.3} parent=0 // pred_check
    _
  $region19: #{_lambda_.3} parent=0 // pred_check_branch
    %19 = sbr.rel (0) target = $region21
  $region20: #{_lambda_.3} parent=0 // pred_region
    _
  $region21: #{_lambda_.3} parent=0 // pred_fallthru
    _
  %p21 = scmp.eq.s32.totalorder 0, 0
  // Predicated region
  $region22: #{_lambda_.3} parent=0 // pred_check
    %p22 = pneg %p21
  $region23: #{_lambda_.3} parent=0 // pred_check_branch
    %24 = sbr.rel (%p22) target = $region25
  $region24: #{_lambda_.3} parent=0 // pred_region
    %25 = vst [vmem:[#allocation2] sm:$0xff] 0.0
    %26 = vst [vmem:[#allocation2 + $0x8] sm:$0xff] 0.0
  $region25: #{_lambda_.3} parent=0 // pred_fallthru
    _
  %v27 = vld [vmem:[%s0] sm:$0xff]
  %v28 = vld [vmem:[%s0 + $0x8] sm:$0xff]
  %v29 = vld [vmem:[%s0 + $0x10] sm:$0xff]
  %v30 = vld [vmem:[%s0 + $0x18] sm:$0xff]
  %v31 = vld [vmem:[%s0 + $0x20] sm:$0xff]
  %v32 = vld [vmem:[%s0 + $0x28] sm:$0xff]
  %v33 = vld [vmem:[%s0 + $0x30] sm:$0xff]
  %v34 = vld [vmem:[%s0 + $0x38] sm:$0xff]
  %v35 = vld [vmem:[%s0 + $0x40] sm:$0xff]
  %v36 = vld [vmem:[%s0 + $0x48] sm:$0xff]
  %v37 = vld [vmem:[%s0 + $0x50] sm:$0xff]
  %v38 = vld [vmem:[%s0 + $0x58] sm:$0xff]
  %v39 = vld [vmem:[%s0 + $0x60] sm:$0xff]
  %v40 = vld [vmem:[%s0 + $0x68] sm:$0xff]
  %v41 = vld [vmem:[%s0 + $0x70] sm:$0xff]
  %v42 = vld [vmem:[%s0 + $0x78] sm:$0xff]
  %v43 = vpack.c.bf16 %v28, %v27
  %v44 = vpack.c.bf16 %v30, %v29
  %v45 = vpack.c.bf16 %v32, %v31
  %v46 = vpack.c.bf16 %v34, %v33
  %v47 = vpack.c.bf16 %v36, %v35
  %v48 = vpack.c.bf16 %v38, %v37
  %v49 = vpack.c.bf16 %v40, %v39
  %v50 = vpack.c.bf16 %v42, %v41
  %v51 = vld [vmem:[%s1] sm:$0xff]
  %v52 = vld [vmem:[%s1 + $0x8] sm:$0xf]
  %v53 = vld [vmem:[%s1 + $0xc] sm:$0xff]
  %v54 = vld [vmem:[%s1 + $0x14] sm:$0xf]
  %v55 = vld [vmem:[%s3] sm:$0x7]
  %v57 = vlaneseq
  %v58 = vshrl.u32 %v57, 7
  %v59 = vsub.s32 0, %v58
  %v60 = vrot.slane %v55, %v59
  %v61 = vlaneseq
  %v62 = vshrl.u32 %v61, 7
  %v63 = vsub.s32 1, %v62
  %v64 = vrot.slane %v55, %v63
  %v65 = vlaneseq
  %v66 = vshrl.u32 %v65, 7
  %v67 = vsub.s32 2, %v66
  %v68 = vrot.slane %v55, %v67
  %v76 = vunpack.c.l.b16 %v51
  %v77 = vunpack.c.h.b16 %v51
  %v78 = vunpack.c.l.b16 %v52
  %v79 = vunpack.c.l.b16 %v53
  %v80 = vunpack.c.h.b16 %v53
  %v81 = vunpack.c.l.b16 %v54
  %v82 = vpack.c.b16 %v79, %v76
  %v83 = vpack.c.b16 %v80, %v77
  %v84 = vpack.c.b16 %v81, %v78
  %vm88 = vcmask 130048
  %v90 = vsel %vm88, %v43, 0
  %v93 = vsel %vm88, %v44, 0
  %v96 = vsel %vm88, %v45, 0
  %v99 = vsel %vm88, %v46, 0
  %v102 = vsel %vm88, %v47, 0
  %v105 = vsel %vm88, %v48, 0
  %v108 = vsel %vm88, %v49, 0
  %v111 = vsel %vm88, %v50, 0
  %113 = vmatprep.subr.bf16.mxu0 %v83
  %114 = vmatpush1.bf16.msra.mxu0 %v82
  %115 = vmatprep.subr.bf16.mxu0 0
  %116 = vmatpush1.bf16.msra.mxu0 0
  %117 = vmatprep.subr.bf16.mxu0 0
  %118 = vmatpush1.bf16.msra.mxu0 0
  %119 = vmatprep.subr.bf16.mxu0 0
  %120 = vmatpush1.bf16.msra.mxu0 0
  %121 = vmatprep.subr.bf16.mxu0 0
  %122 = vmatpush1.bf16.msra.mxu0 0
  %123 = vmatprep.subr.bf16.mxu0 0
  %124 = vmatpush1.bf16.msra.mxu0 0
  %125 = vmatprep.subr.bf16.mxu0 0
  %126 = vmatpush1.bf16.msra.mxu0 0
  %127 = vmatprep.subr.bf16.mxu0 0
  %128 = vmatpush1.bf16.msra.mxu0 0
  %129 = vmatprep.subr.bf16.mxu0 0
  %130 = vmatpush1.bf16.msra.mxu0 0
  %131 = vmatprep.subr.bf16.mxu0 0
  %132 = vmatpush1.bf16.msra.mxu0 0
  %133 = vmatprep.subr.bf16.mxu0 0
  %134 = vmatpush1.bf16.msra.mxu0 0
  %135 = vmatprep.subr.bf16.mxu0 0
  %136 = vmatpush1.bf16.msra.mxu0 0
  %137 = vmatprep.subr.bf16.mxu0 0
  %138 = vmatpush1.bf16.msra.mxu0 0
  %139 = vmatprep.subr.bf16.mxu0 0
  %140 = vmatpush1.bf16.msra.mxu0 0
  %141 = vmatprep.subr.bf16.mxu0 0
  %142 = vmatpush1.bf16.msra.mxu0 0
  %143 = vmatprep.subr.bf16.mxu0 0
  %144 = vmatpush1.bf16.msra.mxu0 0
  %145 = vmatprep.mubr.bf16.mxu0 0
  %146 = vmatmul.mubr.bf16.gmra.mrb[0].mxu0 %v90
  %v147 = vpop.f32.mrb[0].mxu0
  %v148 = vadd.f32 %v60, %v147
  %v149 = vpop.f32.mrb[0].mxu0
  %v150 = vadd.f32 %v64, %v149
  %v151 = vpop.f32.mrb[0].mxu0
  %v152 = vadd.f32 %v60, %v151
  %v153 = vpop.f32.mrb[0].mxu0
  %v154 = vadd.f32 %v64, %v153
  %155 = vmatprep.mubr.bf16.mxu0 0
  %156 = vmatmul.mubr.bf16.gmra.mrb[0].mxu0 %v93
  %v157 = vpop.f32.mrb[0].mxu0
  %v158 = vadd.f32 %v60, %v157
  %v159 = vpop.f32.mrb[0].mxu0
  %v160 = vadd.f32 %v64, %v159
  %v161 = vpop.f32.mrb[0].mxu0
  %v162 = vadd.f32 %v60, %v161
  %v163 = vpop.f32.mrb[0].mxu0
  %v164 = vadd.f32 %v64, %v163
  %165 = vmatprep.mubr.bf16.mxu0 0
  %166 = vmatmul.mubr.bf16.gmra.mrb[0].mxu0 %v96
  %v167 = vpop.f32.mrb[0].mxu0
  %v168 = vadd.f32 %v60, %v167
  %v169 = vpop.f32.mrb[0].mxu0
  %v170 = vadd.f32 %v64, %v169
  %v171 = vpop.f32.mrb[0].mxu0
  %v172 = vadd.f32 %v60, %v171
  %v173 = vpop.f32.mrb[0].mxu0
  %v174 = vadd.f32 %v64, %v173
  %175 = vmatprep.mubr.bf16.mxu0 0
  %176 = vmatmul.mubr.bf16.gmra.mrb[0].mxu0 %v99
  %v177 = vpop.f32.mrb[0].mxu0
  %v178 = vadd.f32 %v60, %v177
  %v179 = vpop.f32.mrb[0].mxu0
  %v180 = vadd.f32 %v64, %v179
  %v181 = vpop.f32.mrb[0].mxu0
  %v182 = vadd.f32 %v60, %v181
  %v183 = vpop.f32.mrb[0].mxu0
  %v184 = vadd.f32 %v64, %v183
  %185 = vmatprep.mubr.bf16.mxu0 0
  %186 = vmatmul.mubr.bf16.gmra.mrb[0].mxu0 %v102
  %v187 = vpop.f32.mrb[0].mxu0
  %v188 = vadd.f32 %v60, %v187
  %v189 = vpop.f32.mrb[0].mxu0
  %v190 = vadd.f32 %v64, %v189
  %v191 = vpop.f32.mrb[0].mxu0
  %v192 = vadd.f32 %v60, %v191
  %v193 = vpop.f32.mrb[0].mxu0
  %v194 = vadd.f32 %v64, %v193
  %195 = vmatprep.mubr.bf16.mxu0 0
  %196 = vmatmul.mubr.bf16.gmra.mrb[0].mxu0 %v105
  %v197 = vpop.f32.mrb[0].mxu0
  %v198 = vadd.f32 %v60, %v197
  %v199 = vpop.f32.mrb[0].mxu0
  %v200 = vadd.f32 %v64, %v199
  %v201 = vpop.f32.mrb[0].mxu0
  %v202 = vadd.f32 %v60, %v201
  %v203 = vpop.f32.mrb[0].mxu0
  %v204 = vadd.f32 %v64, %v203
  %205 = vmatprep.mubr.bf16.mxu0 0
  %206 = vmatmul.mubr.bf16.gmra.mrb[0].mxu0 %v108
  %v207 = vpop.f32.mrb[0].mxu0
  %v208 = vadd.f32 %v60, %v207
  %v209 = vpop.f32.mrb[0].mxu0
  %v210 = vadd.f32 %v64, %v209
  %v211 = vpop.f32.mrb[0].mxu0
  %v212 = vadd.f32 %v60, %v211
  %v213 = vpop.f32.mrb[0].mxu0
  %v214 = vadd.f32 %v64, %v213
  %215 = vmatprep.mubr.bf16.mxu0 0
  %216 = vmatmul.mubr.bf16.gmra.mrb[0].mxu0 %v111
  %v217 = vpop.f32.mrb[0].mxu0
  %v218 = vadd.f32 %v60, %v217
  %v219 = vpop.f32.mrb[0].mxu0
  %v220 = vadd.f32 %v64, %v219
  %v221 = vpop.f32.mrb[0].mxu0
  %v222 = vadd.f32 %v60, %v221
  %v223 = vpop.f32.mrb[0].mxu0
  %v224 = vadd.f32 %v64, %v223
  %225 = vdwg.mxu0
  %226 = vmatprep.subr.bf16.mxu0 0
  %227 = vmatpush1.bf16.msra.mxu0 %v84
  %228 = vmatprep.subr.bf16.mxu0 0
  %229 = vmatpush1.bf16.msra.mxu0 0
  %230 = vmatprep.subr.bf16.mxu0 0
  %231 = vmatpush1.bf16.msra.mxu0 0
  %232 = vmatprep.subr.bf16.mxu0 0
  %233 = vmatpush1.bf16.msra.mxu0 0
  %234 = vmatprep.subr.bf16.mxu0 0
  %235 = vmatpush1.bf16.msra.mxu0 0
  %236 = vmatprep.subr.bf16.mxu0 0
  %237 = vmatpush1.bf16.msra.mxu0 0
  %238 = vmatprep.subr.bf16.mxu0 0
  %239 = vmatpush1.bf16.msra.mxu0 0
  %240 = vmatprep.subr.bf16.mxu0 0
  %241 = vmatpush1.bf16.msra.mxu0 0
  %242 = vmatprep.subr.bf16.mxu0 0
  %243 = vmatpush1.bf16.msra.mxu0 0
  %244 = vmatprep.subr.bf16.mxu0 0
  %245 = vmatpush1.bf16.msra.mxu0 0
  %246 = vmatprep.subr.bf16.mxu0 0
  %247 = vmatpush1.bf16.msra.mxu0 0
  %248 = vmatprep.subr.bf16.mxu0 0
  %249 = vmatpush1.bf16.msra.mxu0 0
  %250 = vmatprep.subr.bf16.mxu0 0
  %251 = vmatpush1.bf16.msra.mxu0 0
  %252 = vmatprep.subr.bf16.mxu0 0
  %253 = vmatpush1.bf16.msra.mxu0 0
  %254 = vmatprep.subr.bf16.mxu0 0
  %255 = vmatpush1.bf16.msra.mxu0 0
  %256 = vmatprep.subr.bf16.mxu0 0
  %257 = vmatpush1.bf16.msra.mxu0 0
  %258 = vmatprep.mubr.bf16.mxu0 0
  %259 = vmatmul.mubr.bf16.gmra.mrb[0].mxu0 %v90
  %v260 = vpop.f32.mrb[0].mxu0
  %v261 = vadd.f32 %v68, %v260
  %v262 = vpop.f32.mrb[0].mxu0
  %v263 = vpop.f32.mrb[0].mxu0
  %v264 = vadd.f32 %v68, %v263
  %v265 = vpop.f32.mrb[0].mxu0
  %266 = vmatprep.mubr.bf16.mxu0 0
  %267 = vmatmul.mubr.bf16.gmra.mrb[0].mxu0 %v93
  %v268 = vpop.f32.mrb[0].mxu0
  %v269 = vadd.f32 %v68, %v268
  %v270 = vpop.f32.mrb[0].mxu0
  %v271 = vpop.f32.mrb[0].mxu0
  %v272 = vadd.f32 %v68, %v271
  %v273 = vpop.f32.mrb[0].mxu0
  %274 = vmatprep.mubr.bf16.mxu0 0
  %275 = vmatmul.mubr.bf16.gmra.mrb[0].mxu0 %v96
  %v276 = vpop.f32.mrb[0].mxu0
  %v277 = vadd.f32 %v68, %v276
  %v278 = vpop.f32.mrb[0].mxu0
  %v279 = vpop.f32.mrb[0].mxu0
  %v280 = vadd.f32 %v68, %v279
  %v281 = vpop.f32.mrb[0].mxu0
  %282 = vmatprep.mubr.bf16.mxu0 0
  %283 = vmatmul.mubr.bf16.gmra.mrb[0].mxu0 %v99
  %v284 = vpop.f32.mrb[0].mxu0
  %v285 = vadd.f32 %v68, %v284
  %v286 = vpop.f32.mrb[0].mxu0
  %v287 = vpop.f32.mrb[0].mxu0
  %v288 = vadd.f32 %v68, %v287
  %v289 = vpop.f32.mrb[0].mxu0
  %290 = vmatprep.mubr.bf16.mxu0 0
  %291 = vmatmul.mubr.bf16.gmra.mrb[0].mxu0 %v102
  %v292 = vpop.f32.mrb[0].mxu0
  %v293 = vadd.f32 %v68, %v292
  %v294 = vpop.f32.mrb[0].mxu0
  %v295 = vpop.f32.mrb[0].mxu0
  %v296 = vadd.f32 %v68, %v295
  %v297 = vpop.f32.mrb[0].mxu0
  %298 = vmatprep.mubr.bf16.mxu0 0
  %299 = vmatmul.mubr.bf16.gmra.mrb[0].mxu0 %v105
  %v300 = vpop.f32.mrb[0].mxu0
  %v301 = vadd.f32 %v68, %v300
  %v302 = vpop.f32.mrb[0].mxu0
  %v303 = vpop.f32.mrb[0].mxu0
  %v304 = vadd.f32 %v68, %v303
  %v305 = vpop.f32.mrb[0].mxu0
  %306 = vmatprep.mubr.bf16.mxu0 0
  %307 = vmatmul.mubr.bf16.gmra.mrb[0].mxu0 %v108
  %v308 = vpop.f32.mrb[0].mxu0
  %v309 = vadd.f32 %v68, %v308
  %v310 = vpop.f32.mrb[0].mxu0
  %v311 = vpop.f32.mrb[0].mxu0
  %v312 = vadd.f32 %v68, %v311
  %v313 = vpop.f32.mrb[0].mxu0
  %314 = vmatprep.mubr.bf16.mxu0 0
  %315 = vmatmul.mubr.bf16.gmra.mrb[0].mxu0 %v111
  %v316 = vpop.f32.mrb[0].mxu0
  %v317 = vadd.f32 %v68, %v316
  %v318 = vpop.f32.mrb[0].mxu0
  %v319 = vpop.f32.mrb[0].mxu0
  %v320 = vadd.f32 %v68, %v319
  %v321 = vpop.f32.mrb[0].mxu0
  %322 = vdwg.mxu0
  %323 = vst [vmem:[#allocation3] sm:$0xff] %v148
  %324 = vst [vmem:[#allocation3 + $0x8] sm:$0xff] %v150
  %325 = vst [vmem:[#allocation3 + $0x10] sm:$0xff] %v261
  %326 = vst [vmem:[#allocation3 + $0x18] sm:$0xff] %v152
  %327 = vst [vmem:[#allocation3 + $0x20] sm:$0xff] %v154
  %328 = vst [vmem:[#allocation3 + $0x28] sm:$0xff] %v264
  %329 = vst [vmem:[#allocation3 + $0x30] sm:$0xff] %v158
  %330 = vst [vmem:[#allocation3 + $0x38] sm:$0xff] %v160
  %331 = vst [vmem:[#allocation3 + $0x40] sm:$0xff] %v269
  %332 = vst [vmem:[#allocation3 + $0x48] sm:$0xff] %v162
  %333 = vst [vmem:[#allocation3 + $0x50] sm:$0xff] %v164
  %334 = vst [vmem:[#allocation3 + $0x58] sm:$0xff] %v272
  %335 = vst [vmem:[#allocation3 + $0x60] sm:$0xff] %v168
  %336 = vst [vmem:[#allocation3 + $0x68] sm:$0xff] %v170
  %337 = vst [vmem:[#allocation3 + $0x70] sm:$0xff] %v277
  %338 = vst [vmem:[#allocation3 + $0x78] sm:$0xff] %v172
  %339 = vst [vmem:[#allocation3 + $0x80] sm:$0xff] %v174
  %340 = vst [vmem:[#allocation3 + $0x88] sm:$0xff] %v280
  %341 = vst [vmem:[#allocation3 + $0x90] sm:$0xff] %v178
  %342 = vst [vmem:[#allocation3 + $0x98] sm:$0xff] %v180
  %343 = vst [vmem:[#allocation3 + $0xa0] sm:$0xff] %v285
  %344 = vst [vmem:[#allocation3 + $0xa8] sm:$0xff] %v182
  %345 = vst [vmem:[#allocation3 + $0xb0] sm:$0xff] %v184
  %346 = vst [vmem:[#allocation3 + $0xb8] sm:$0xff] %v288
  %347 = vst [vmem:[#allocation3 + $0xc0] sm:$0xff] %v188
  %348 = vst [vmem:[#allocation3 + $0xc8] sm:$0xff] %v190
  %349 = vst [vmem:[#allocation3 + $0xd0] sm:$0xff] %v293
  %350 = vst [vmem:[#allocation3 + $0xd8] sm:$0xff] %v192
  %351 = vst [vmem:[#allocation3 + $0xe0] sm:$0xff] %v194
  %352 = vst [vmem:[#allocation3 + $0xe8] sm:$0xff] %v296
  %353 = vst [vmem:[#allocation3 + $0xf0] sm:$0xff] %v198
  %354 = vst [vmem:[#allocation3 + $0xf8] sm:$0xff] %v200
  %355 = vst [vmem:[#allocation3 + $0x100] sm:$0xff] %v301
  %356 = vst [vmem:[#allocation3 + $0x108] sm:$0xff] %v202
  %357 = vst [vmem:[#allocation3 + $0x110] sm:$0xff] %v204
  %358 = vst [vmem:[#allocation3 + $0x118] sm:$0xff] %v304
  %359 = vst [vmem:[#allocation3 + $0x120] sm:$0xff] %v208
  %360 = vst [vmem:[#allocation3 + $0x128] sm:$0xff] %v210
  %361 = vst [vmem:[#allocation3 + $0x130] sm:$0xff] %v309
  %362 = vst [vmem:[#allocation3 + $0x138] sm:$0xff] %v212
  %363 = vst [vmem:[#allocation3 + $0x140] sm:$0xff] %v214
  %364 = vst [vmem:[#allocation3 + $0x148] sm:$0xff] %v312
  %365 = vst [vmem:[#allocation3 + $0x150] sm:$0xff] %v218
  %366 = vst [vmem:[#allocation3 + $0x158] sm:$0xff] %v220
  %367 = vst [vmem:[#allocation3 + $0x160] sm:$0xff] %v317
  %368 = vst [vmem:[#allocation3 + $0x168] sm:$0xff] %v222
  %369 = vst [vmem:[#allocation3 + $0x170] sm:$0xff] %v224
  %370 = vst [vmem:[#allocation3 + $0x178] sm:$0xff] %v320
  %v371 = vld [vmem:[%s2] sm:$0xff]
  %v372 = vld [vmem:[%s2 + $0x8] sm:$0xf]
  %v373 = vld [vmem:[%s2 + $0xc] sm:$0xff]
  %v374 = vld [vmem:[%s2 + $0x14] sm:$0xf]
  %v375 = vld [vmem:[%s2 + $0x18] sm:$0xff]
  %v376 = vld [vmem:[%s2 + $0x20] sm:$0xf]
  %v377 = vld [vmem:[%s2 + $0x24] sm:$0xff]
  %v378 = vld [vmem:[%s2 + $0x2c] sm:$0xf]
  %v379 = vld [vmem:[%s2 + $0x30] sm:$0xff]
  %v380 = vld [vmem:[%s2 + $0x38] sm:$0xf]
  %v381 = vld [vmem:[%s2 + $0x3c] sm:$0xff]
  %v382 = vld [vmem:[%s2 + $0x44] sm:$0xf]
  %v383 = vld [vmem:[%s2 + $0x48] sm:$0xff]
  %v384 = vld [vmem:[%s2 + $0x50] sm:$0xf]
  %v385 = vld [vmem:[%s2 + $0x54] sm:$0xff]
  %v386 = vld [vmem:[%s2 + $0x5c] sm:$0xf]
  %v387 = vld [vmem:[%s2 + $0x60] sm:$0xff]
  %v388 = vld [vmem:[%s2 + $0x68] sm:$0xf]
  %v389 = vld [vmem:[%s2 + $0x6c] sm:$0xff]
  %v390 = vld [vmem:[%s2 + $0x74] sm:$0xf]
  %v391 = vld [vmem:[%s2 + $0x78] sm:$0xff]
  %v392 = vld [vmem:[%s2 + $0x80] sm:$0xf]
  %v393 = vld [vmem:[%s2 + $0x84] sm:$0xff]
  %v394 = vld [vmem:[%s2 + $0x8c] sm:$0xf]
  %v395 = vld [vmem:[%s2 + $0x90] sm:$0xff]
  %v396 = vld [vmem:[%s2 + $0x98] sm:$0xf]
  %v397 = vld [vmem:[%s2 + $0x9c] sm:$0xff]
  %v398 = vld [vmem:[%s2 + $0xa4] sm:$0xf]
  %v399 = vld [vmem:[%s2 + $0xa8] sm:$0xff]
  %v400 = vld [vmem:[%s2 + $0xb0] sm:$0xf]
  %v401 = vld [vmem:[%s2 + $0xb4] sm:$0xff]
  %v402 = vld [vmem:[%s2 + $0xbc] sm:$0xf]
  %v403 = vld [vmem:[%s4] sm:$0x1]
  %v404 = vld [vmem:[#allocation2] sm:$0xff]
  %v405 = vld [vmem:[#allocation2 + $0x8] sm:$0xff]
  %s406 = smul.u32 0, 3
  %s407 = smul.addr %s406, 8
  %s408 = scalar_lea.vmem [#allocation3], %s407
  %v409 = vld [vmem:[%s408] sm:$0xff]
  %v410 = vld [vmem:[%s408 + $0x8] sm:$0xff]
  %v411 = vld [vmem:[%s408 + $0x10] sm:$0xff]
  %v412 = vld [vmem:[%s408 + $0x18] sm:$0xff]
  %v413 = vld [vmem:[%s408 + $0x20] sm:$0xff]
  %v414 = vld [vmem:[%s408 + $0x28] sm:$0xff]
  %v415 = vpack.c.bf16 %v405, %v404
  %v448 = vunpack.c.l.b16 %v371
  %v449 = vunpack.c.h.b16 %v371
  %v450 = vunpack.c.l.b16 %v372
  %v451 = vunpack.c.l.b16 %v373
  %v452 = vunpack.c.h.b16 %v373
  %v453 = vunpack.c.l.b16 %v374
  %v454 = vunpack.c.l.b16 %v375
  %v455 = vunpack.c.h.b16 %v375
  %v456 = vunpack.c.l.b16 %v376
  %v457 = vunpack.c.l.b16 %v377
  %v458 = vunpack.c.h.b16 %v377
  %v459 = vunpack.c.l.b16 %v378
  %v460 = vunpack.c.l.b16 %v379
  %v461 = vunpack.c.h.b16 %v379
  %v462 = vunpack.c.l.b16 %v380
  %v463 = vunpack.c.l.b16 %v381
  %v464 = vunpack.c.h.b16 %v381
  %v465 = vunpack.c.l.b16 %v382
  %v466 = vunpack.c.l.b16 %v383
  %v467 = vunpack.c.h.b16 %v383
  %v468 = vunpack.c.l.b16 %v384
  %v469 = vunpack.c.l.b16 %v385
  %v470 = vunpack.c.h.b16 %v385
  %v471 = vunpack.c.l.b16 %v386
  %v472 = vunpack.c.l.b16 %v387
  %v473 = vunpack.c.h.b16 %v387
  %v474 = vunpack.c.l.b16 %v388
  %v475 = vunpack.c.l.b16 %v389
  %v476 = vunpack.c.h.b16 %v389
  %v477 = vunpack.c.l.b16 %v390
  %v478 = vunpack.c.l.b16 %v391
  %v479 = vunpack.c.h.b16 %v391
  %v480 = vunpack.c.l.b16 %v392
  %v481 = vunpack.c.l.b16 %v393
  %v482 = vunpack.c.h.b16 %v393
  %v483 = vunpack.c.l.b16 %v394
  %v484 = vunpack.c.l.b16 %v395
  %v485 = vunpack.c.h.b16 %v395
  %v486 = vunpack.c.l.b16 %v396
  %v487 = vunpack.c.l.b16 %v397
  %v488 = vunpack.c.h.b16 %v397
  %v489 = vunpack.c.l.b16 %v398
  %v490 = vunpack.c.l.b16 %v399
  %v491 = vunpack.c.h.b16 %v399
  %v492 = vunpack.c.l.b16 %v400
  %v493 = vunpack.c.l.b16 %v401
  %v494 = vunpack.c.h.b16 %v401
  %v495 = vunpack.c.l.b16 %v402
  %v496 = vpack.c.b16 %v451, %v448
  %v497 = vpack.c.b16 %v452, %v449
  %v498 = vpack.c.b16 %v453, %v450
  %v499 = vpack.c.b16 %v457, %v454
  %v500 = vpack.c.b16 %v458, %v455
  %v501 = vpack.c.b16 %v459, %v456
  %v502 = vpack.c.b16 %v463, %v460
  %v503 = vpack.c.b16 %v464, %v461
  %v504 = vpack.c.b16 %v465, %v462
  %v505 = vpack.c.b16 %v469, %v466
  %v506 = vpack.c.b16 %v470, %v467
  %v507 = vpack.c.b16 %v471, %v468
  %v508 = vpack.c.b16 %v475, %v472
  %v509 = vpack.c.b16 %v476, %v473
  %v510 = vpack.c.b16 %v477, %v474
  %v511 = vpack.c.b16 %v481, %v478
  %v512 = vpack.c.b16 %v482, %v479
  %v513 = vpack.c.b16 %v483, %v480
  %v514 = vpack.c.b16 %v487, %v484
  %v515 = vpack.c.b16 %v488, %v485
  %v516 = vpack.c.b16 %v489, %v486
  %v517 = vpack.c.b16 %v493, %v490
  %v518 = vpack.c.b16 %v494, %v491
  %v519 = vpack.c.b16 %v495, %v492
  %544 = vmatprep.subr.bf16.mxu0 %v497
  %545 = vmatpush1.bf16.msra.mxu0 %v496
  %546 = vmatprep.subr.bf16.mxu0 %v500
  %547 = vmatpush1.bf16.msra.mxu0 %v499
  %548 = vmatprep.subr.bf16.mxu0 %v503
  %549 = vmatpush1.bf16.msra.mxu0 %v502
  %550 = vmatprep.subr.bf16.mxu0 %v506
  %551 = vmatpush1.bf16.msra.mxu0 %v505
  %552 = vmatprep.subr.bf16.mxu0 %v509
  %553 = vmatpush1.bf16.msra.mxu0 %v508
  %554 = vmatprep.subr.bf16.mxu0 %v512
  %555 = vmatpush1.bf16.msra.mxu0 %v511
  %556 = vmatprep.subr.bf16.mxu0 %v515
  %557 = vmatpush1.bf16.msra.mxu0 %v514
  %558 = vmatprep.subr.bf16.mxu0 %v518
  %559 = vmatpush1.bf16.msra.mxu0 %v517
  %560 = vmatprep.subr.bf16.mxu0 0
  %561 = vmatpush1.bf16.msra.mxu0 0
  %562 = vmatprep.subr.bf16.mxu0 0
  %563 = vmatpush1.bf16.msra.mxu0 0
  %564 = vmatprep.subr.bf16.mxu0 0
  %565 = vmatpush1.bf16.msra.mxu0 0
  %566 = vmatprep.subr.bf16.mxu0 0
  %567 = vmatpush1.bf16.msra.mxu0 0
  %568 = vmatprep.subr.bf16.mxu0 0
  %569 = vmatpush1.bf16.msra.mxu0 0
  %570 = vmatprep.subr.bf16.mxu0 0
  %571 = vmatpush1.bf16.msra.mxu0 0
  %572 = vmatprep.subr.bf16.mxu0 0
  %573 = vmatpush1.bf16.msra.mxu0 0
  %574 = vmatprep.subr.bf16.mxu0 0
  %575 = vmatpush1.bf16.msra.mxu0 0
  %576 = vmatprep.mubr.bf16.mxu0 0
  %577 = vmatmul.mubr.bf16.gmra.mrb[0].mxu0 %v415
  %v578 = vpop.f32.mrb[0].mxu0
  %v579 = vadd.f32 0.0, %v578
  %v580 = vpop.f32.mrb[0].mxu0
  %v581 = vadd.f32 0.0, %v580
  %v582 = vpop.f32.mrb[0].mxu0
  %v583 = vadd.f32 0.0, %v582
  %v584 = vpop.f32.mrb[0].mxu0
  %v585 = vadd.f32 0.0, %v584
  %586 = vdwg.mxu0
  %587 = vmatprep.subr.bf16.mxu0 0
  %588 = vmatpush1.bf16.msra.mxu0 %v498
  %589 = vmatprep.subr.bf16.mxu0 0
  %590 = vmatpush1.bf16.msra.mxu0 %v501
  %591 = vmatprep.subr.bf16.mxu0 0
  %592 = vmatpush1.bf16.msra.mxu0 %v504
  %593 = vmatprep.subr.bf16.mxu0 0
  %594 = vmatpush1.bf16.msra.mxu0 %v507
  %595 = vmatprep.subr.bf16.mxu0 0
  %596 = vmatpush1.bf16.msra.mxu0 %v510
  %597 = vmatprep.subr.bf16.mxu0 0
  %598 = vmatpush1.bf16.msra.mxu0 %v513
  %599 = vmatprep.subr.bf16.mxu0 0
  %600 = vmatpush1.bf16.msra.mxu0 %v516
  %601 = vmatprep.subr.bf16.mxu0 0
  %602 = vmatpush1.bf16.msra.mxu0 %v519
  %603 = vmatprep.subr.bf16.mxu0 0
  %604 = vmatpush1.bf16.msra.mxu0 0
  %605 = vmatprep.subr.bf16.mxu0 0
  %606 = vmatpush1.bf16.msra.mxu0 0
  %607 = vmatprep.subr.bf16.mxu0 0
  %608 = vmatpush1.bf16.msra.mxu0 0
  %609 = vmatprep.subr.bf16.mxu0 0
  %610 = vmatpush1.bf16.msra.mxu0 0
  %611 = vmatprep.subr.bf16.mxu0 0
  %612 = vmatpush1.bf16.msra.mxu0 0
  %613 = vmatprep.subr.bf16.mxu0 0
  %614 = vmatpush1.bf16.msra.mxu0 0
  %615 = vmatprep.subr.bf16.mxu0 0
  %616 = vmatpush1.bf16.msra.mxu0 0
  %617 = vmatprep.subr.bf16.mxu0 0
  %618 = vmatpush1.bf16.msra.mxu0 0
  %619 = vmatprep.mubr.bf16.mxu0 0
  %620 = vmatmul.mubr.bf16.gmra.mrb[0].mxu0 %v415
  %v621 = vpop.f32.mrb[0].mxu0
  %v622 = vadd.f32 0.0, %v621
  %v623 = vpop.f32.mrb[0].mxu0
  %v624 = vpop.f32.mrb[0].mxu0
  %v625 = vadd.f32 0.0, %v624
  %v626 = vpop.f32.mrb[0].mxu0
  %627 = vdwg.mxu0
  %v628 = vadd.f32 %v409, %v579
  %v629 = vadd.f32 %v412, %v583
  %v630 = vxor.u32 %v628, 2147483648
  %v631 = vxor.u32 %v629, 2147483648
  %v632 = vmul.f32 %v630, 1.442695
  %v633 = vpow.pop %v632
  %v634 = vmul.f32 %v631, 1.442695
  %v635 = vpow.pop %v634
  %v636 = vadd.f32 %v633, 1.0
  %v637 = vadd.f32 %v635, 1.0
  %v638 = vrcp.pop %v636
  %v639 = vmul.f32 1.0, %v638
  %v640 = vrcp.pop %v637
  %v641 = vmul.f32 1.0, %v640
  %v642 = vadd.f32 %v410, %v581
  %v643 = vadd.f32 %v413, %v585
  %v644 = vxor.u32 %v642, 2147483648
  %v645 = vxor.u32 %v643, 2147483648
  %v646 = vmul.f32 %v644, 1.442695
  %v647 = vpow.pop %v646
  %v648 = vmul.f32 %v645, 1.442695
  %v649 = vpow.pop %v648
  %v650 = vadd.f32 %v647, 1.0
  %v651 = vadd.f32 %v649, 1.0
  %v652 = vrcp.pop %v650
  %v653 = vmul.f32 1.0, %v652
  %v654 = vrcp.pop %v651
  %v655 = vmul.f32 1.0, %v654
  %v657 = vlaneseq
  %v658 = vshrl.u32 %v657, 7
  %v659 = vsub.s32 0, %v658
  %v660 = vrot.slane %v403, %v659
  %v662 = vadd.f32 %v622, %v660
  %v663 = vadd.f32 %v625, %v660
  %v664 = vmul.f32 %v639, %v662
  %v665 = vmul.f32 %v641, %v663
  %v666 = vadd.f32 %v411, %v664
  %v667 = vadd.f32 %v414, %v665
  %v668 = vtanh.pop %v666
  %v669 = vtanh.pop %v667
  %v670 = vsub.f32 1.0, %v653
  %v671 = vsub.f32 1.0, %v655
  %v672 = vmul.f32 %v670, %v668
  %v673 = vmul.f32 %v671, %v669
  %v674 = vmul.f32 %v653, %v404
  %v675 = vmul.f32 %v655, %v405
  %v676 = vadd.f32 %v672, %v674
  %v677 = vadd.f32 %v673, %v675
  %v678 = vpack.c.bf16 %v677, %v676
  %v680 = vunpack.c.l.b16 %v678
  %v681 = vunpack.c.h.b16 %v678
  %v682 = vpack.c.b16 %v680, %v680
  %v683 = vpack.c.b16 %v681, %v681
  %686 = vst [vmem:[%s5] sm:$0xf] %v682
  %687 = vst [vmem:[%s5 + $0x4] sm:$0xf] %v683
  %s688 = smul.u32 2, 3
  %s689 = smul.addr %s688, 8
  %s690 = scalar_lea.vmem [#allocation3], %s689
  %v691 = vld [vmem:[%s690] sm:$0xff]
  %v692 = vld [vmem:[%s690 + $0x8] sm:$0xff]
  %v693 = vld [vmem:[%s690 + $0x10] sm:$0xff]
  %v694 = vld [vmem:[%s690 + $0x18] sm:$0xff]
  %v695 = vld [vmem:[%s690 + $0x20] sm:$0xff]
  %v696 = vld [vmem:[%s690 + $0x28] sm:$0xff]
  %697 = vmatprep.subr.bf16.mxu0 %v497
  %698 = vmatpush1.bf16.msra.mxu0 %v496
  %699 = vmatprep.subr.bf16.mxu0 %v500
  %700 = vmatpush1.bf16.msra.mxu0 %v499
  %701 = vmatprep.subr.bf16.mxu0 %v503
  %702 = vmatpush1.bf16.msra.mxu0 %v502
  %703 = vmatprep.subr.bf16.mxu0 %v506
  %704 = vmatpush1.bf16.msra.mxu0 %v505
  %705 = vmatprep.subr.bf16.mxu0 %v509
  %706 = vmatpush1.bf16.msra.mxu0 %v508
  %707 = vmatprep.subr.bf16.mxu0 %v512
  %708 = vmatpush1.bf16.msra.mxu0 %v511
  %709 = vmatprep.subr.bf16.mxu0 %v515
  %710 = vmatpush1.bf16.msra.mxu0 %v514
  %711 = vmatprep.subr.bf16.mxu0 %v518
  %712 = vmatpush1.bf16.msra.mxu0 %v517
  %713 = vmatprep.subr.bf16.mxu0 0
  %714 = vmatpush1.bf16.msra.mxu0 0
  %715 = vmatprep.subr.bf16.mxu0 0
  %716 = vmatpush1.bf16.msra.mxu0 0
  %717 = vmatprep.subr.bf16.mxu0 0
  %718 = vmatpush1.bf16.msra.mxu0 0
  %719 = vmatprep.subr.bf16.mxu0 0
  %720 = vmatpush1.bf16.msra.mxu0 0
  %721 = vmatprep.subr.bf16.mxu0 0
  %722 = vmatpush1.bf16.msra.mxu0 0
  %723 = vmatprep.subr.bf16.mxu0 0
  %724 = vmatpush1.bf16.msra.mxu0 0
  %725 = vmatprep.subr.bf16.mxu0 0
  %726 = vmatpush1.bf16.msra.mxu0 0
  %727 = vmatprep.subr.bf16.mxu0 0
  %728 = vmatpush1.bf16.msra.mxu0 0
  %729 = vmatprep.mubr.bf16.mxu0 0
  %730 = vmatmul.mubr.bf16.gmra.mrb[0].mxu0 %v678
  %v731 = vpop.f32.mrb[0].mxu0
  %v732 = vadd.f32 0.0, %v731
  %v733 = vpop.f32.mrb[0].mxu0
  %v734 = vadd.f32 0.0, %v733
  %v735 = vpop.f32.mrb[0].mxu0
  %v736 = vadd.f32 0.0, %v735
  %v737 = vpop.f32.mrb[0].mxu0
  %v738 = vadd.f32 0.0, %v737
  %739 = vdwg.mxu0
  %740 = vmatprep.subr.bf16.mxu0 0
  %741 = vmatpush1.bf16.msra.mxu0 %v498
  %742 = vmatprep.subr.bf16.mxu0 0
  %743 = vmatpush1.bf16.msra.mxu0 %v501
  %744 = vmatprep.subr.bf16.mxu0 0
  %745 = vmatpush1.bf16.msra.mxu0 %v504
  %746 = vmatprep.subr.bf16.mxu0 0
  %747 = vmatpush1.bf16.msra.mxu0 %v507
  %748 = vmatprep.subr.bf16.mxu0 0
  %749 = vmatpush1.bf16.msra.mxu0 %v510
  %750 = vmatprep.subr.bf16.mxu0 0
  %751 = vmatpush1.bf16.msra.mxu0 %v513
  %752 = vmatprep.subr.bf16.mxu0 0
  %753 = vmatpush1.bf16.msra.mxu0 %v516
  %754 = vmatprep.subr.bf16.mxu0 0
  %755 = vmatpush1.bf16.msra.mxu0 %v519
  %756 = vmatprep.subr.bf16.mxu0 0
  %757 = vmatpush1.bf16.msra.mxu0 0
  %758 = vmatprep.subr.bf16.mxu0 0
  %759 = vmatpush1.bf16.msra.mxu0 0
  %760 = vmatprep.subr.bf16.mxu0 0
  %761 = vmatpush1.bf16.msra.mxu0 0
  %762 = vmatprep.subr.bf16.mxu0 0
  %763 = vmatpush1.bf16.msra.mxu0 0
  %764 = vmatprep.subr.bf16.mxu0 0
  %765 = vmatpush1.bf16.msra.mxu0 0
  %766 = vmatprep.subr.bf16.mxu0 0
  %767 = vmatpush1.bf16.msra.mxu0 0
  %768 = vmatprep.subr.bf16.mxu0 0
  %769 = vmatpush1.bf16.msra.mxu0 0
  %770 = vmatprep.subr.bf16.mxu0 0
  %771 = vmatpush1.bf16.msra.mxu0 0
  %772 = vmatprep.mubr.bf16.mxu0 0
  %773 = vmatmul.mubr.bf16.gmra.mrb[0].mxu0 %v678
  %v774 = vpop.f32.mrb[0].mxu0
  %v775 = vadd.f32 0.0, %v774
  %v776 = vpop.f32.mrb[0].mxu0
  %v777 = vpop.f32.mrb[0].mxu0
  %v778 = vadd.f32 0.0, %v777
  %v779 = vpop.f32.mrb[0].mxu0
  %780 = vdwg.mxu0
  %v781 = vadd.f32 %v691, %v732
  %v782 = vadd.f32 %v694, %v736
  %v783 = vxor.u32 %v781, 2147483648
  %v784 = vxor.u32 %v782, 2147483648
  %v785 = vmul.f32 %v783, 1.442695
  %v786 = vpow.pop %v785
  %v787 = vmul.f32 %v784, 1.442695
  %v788 = vpow.pop %v787
  %v789 = vadd.f32 %v786, 1.0
  %v790 = vadd.f32 %v788, 1.0
  %v791 = vrcp.pop %v789
  %v792 = vmul.f32 1.0, %v791
  %v793 = vrcp.pop %v790
  %v794 = vmul.f32 1.0, %v793
  %v795 = vadd.f32 %v692, %v734
  %v796 = vadd.f32 %v695, %v738
  %v797 = vxor.u32 %v795, 2147483648
  %v798 = vxor.u32 %v796, 2147483648
  %v799 = vmul.f32 %v797, 1.442695
  %v800 = vpow.pop %v799
  %v801 = vmul.f32 %v798, 1.442695
  %v802 = vpow.pop %v801
  %v803 = vadd.f32 %v800, 1.0
  %v804 = vadd.f32 %v802, 1.0
  %v805 = vrcp.pop %v803
  %v806 = vmul.f32 1.0, %v805
  %v807 = vrcp.pop %v804
  %v808 = vmul.f32 1.0, %v807
  %v809 = vadd.f32 %v775, %v660
  %v810 = vadd.f32 %v778, %v660
  %v811 = vmul.f32 %v792, %v809
  %v812 = vmul.f32 %v794, %v810
  %v813 = vadd.f32 %v693, %v811
  %v814 = vadd.f32 %v696, %v812
  %v815 = vtanh.pop %v813
  %v816 = vtanh.pop %v814
  %v817 = vsub.f32 1.0, %v806
  %v818 = vsub.f32 1.0, %v808
  %v819 = vmul.f32 %v817, %v815
  %v820 = vmul.f32 %v818, %v816
  %v821 = vmul.f32 %v806, %v676
  %v822 = vmul.f32 %v808, %v677
  %v823 = vadd.f32 %v819, %v821
  %v824 = vadd.f32 %v820, %v822
  %v825 = vpack.c.bf16 %v824, %v823
  %v827 = vunpack.c.l.b16 %v825
  %v828 = vunpack.c.h.b16 %v825
  %v829 = vpack.c.b16 %v827, %v827
  %v830 = vpack.c.b16 %v828, %v828
  %s833 = scalar_lea.vmem %s5, 8
  %834 = vst [vmem:[%s833] sm:$0xf] %v829
  %835 = vst [vmem:[%s833 + $0x4] sm:$0xf] %v830
  %s836 = smul.u32 4, 3
  %s837 = smul.addr %s836, 8
  %s838 = scalar_lea.vmem [#allocation3], %s837
  %v839 = vld [vmem:[%s838] sm:$0xff]
  %v840 = vld [vmem:[%s838 + $0x8] sm:$0xff]
  %v841 = vld [vmem:[%s838 + $0x10] sm:$0xff]
  %v842 = vld [vmem:[%s838 + $0x18] sm:$0xff]
  %v843 = vld [vmem:[%s838 + $0x20] sm:$0xff]
  %v844 = vld [vmem:[%s838 + $0x28] sm:$0xff]
  %845 = vmatprep.subr.bf16.mxu0 %v497
  %846 = vmatpush1.bf16.msra.mxu0 %v496
  %847 = vmatprep.subr.bf16.mxu0 %v500
  %848 = vmatpush1.bf16.msra.mxu0 %v499
  %849 = vmatprep.subr.bf16.mxu0 %v503
  %850 = vmatpush1.bf16.msra.mxu0 %v502
  %851 = vmatprep.subr.bf16.mxu0 %v506
  %852 = vmatpush1.bf16.msra.mxu0 %v505
  %853 = vmatprep.subr.bf16.mxu0 %v509
  %854 = vmatpush1.bf16.msra.mxu0 %v508
  %855 = vmatprep.subr.bf16.mxu0 %v512
  %856 = vmatpush1.bf16.msra.mxu0 %v511
  %857 = vmatprep.subr.bf16.mxu0 %v515
  %858 = vmatpush1.bf16.msra.mxu0 %v514
  %859 = vmatprep.subr.bf16.mxu0 %v518
  %860 = vmatpush1.bf16.msra.mxu0 %v517
  %861 = vmatprep.subr.bf16.mxu0 0
  %862 = vmatpush1.bf16.msra.mxu0 0
  %863 = vmatprep.subr.bf16.mxu0 0
  %864 = vmatpush1.bf16.msra.mxu0 0
  %865 = vmatprep.subr.bf16.mxu0 0
  %866 = vmatpush1.bf16.msra.mxu0 0
  %867 = vmatprep.subr.bf16.mxu0 0
  %868 = vmatpush1.bf16.msra.mxu0 0
  %869 = vmatprep.subr.bf16.mxu0 0
  %870 = vmatpush1.bf16.msra.mxu0 0
  %871 = vmatprep.subr.bf16.mxu0 0
  %872 = vmatpush1.bf16.msra.mxu0 0
  %873 = vmatprep.subr.bf16.mxu0 0
  %874 = vmatpush1.bf16.msra.mxu0 0
  %875 = vmatprep.subr.bf16.mxu0 0
  %876 = vmatpush1.bf16.msra.mxu0 0
  %877 = vmatprep.mubr.bf16.mxu0 0
  %878 = vmatmul.mubr.bf16.gmra.mrb[0].mxu0 %v825
  %v879 = vpop.f32.mrb[0].mxu0
  %v880 = vadd.f32 0.0, %v879
  %v881 = vpop.f32.mrb[0].mxu0
  %v882 = vadd.f32 0.0, %v881
  %v883 = vpop.f32.mrb[0].mxu0
  %v884 = vadd.f32 0.0, %v883
  %v885 = vpop.f32.mrb[0].mxu0
  %v886 = vadd.f32 0.0, %v885
  %887 = vdwg.mxu0
  %888 = vmatprep.subr.bf16.mxu0 0
  %889 = vmatpush1.bf16.msra.mxu0 %v498
  %890 = vmatprep.subr.bf16.mxu0 0
  %891 = vmatpush1.bf16.msra.mxu0 %v501
  %892 = vmatprep.subr.bf16.mxu0 0
  %893 = vmatpush1.bf16.msra.mxu0 %v504
  %894 = vmatprep.subr.bf16.mxu0 0
  %895 = vmatpush1.bf16.msra.mxu0 %v507
  %896 = vmatprep.subr.bf16.mxu0 0
  %897 = vmatpush1.bf16.msra.mxu0 %v510
  %898 = vmatprep.subr.bf16.mxu0 0
  %899 = vmatpush1.bf16.msra.mxu0 %v513
  %900 = vmatprep.subr.bf16.mxu0 0
  %901 = vmatpush1.bf16.msra.mxu0 %v516
  %902 = vmatprep.subr.bf16.mxu0 0
  %903 = vmatpush1.bf16.msra.mxu0 %v519
  %904 = vmatprep.subr.bf16.mxu0 0
  %905 = vmatpush1.bf16.msra.mxu0 0
  %906 = vmatprep.subr.bf16.mxu0 0
  %907 = vmatpush1.bf16.msra.mxu0 0
  %908 = vmatprep.subr.bf16.mxu0 0
  %909 = vmatpush1.bf16.msra.mxu0 0
  %910 = vmatprep.subr.bf16.mxu0 0
  %911 = vmatpush1.bf16.msra.mxu0 0
  %912 = vmatprep.subr.bf16.mxu0 0
  %913 = vmatpush1.bf16.msra.mxu0 0
  %914 = vmatprep.subr.bf16.mxu0 0
  %915 = vmatpush1.bf16.msra.mxu0 0
  %916 = vmatprep.subr.bf16.mxu0 0
  %917 = vmatpush1.bf16.msra.mxu0 0
  %918 = vmatprep.subr.bf16.mxu0 0
  %919 = vmatpush1.bf16.msra.mxu0 0
  %920 = vmatprep.mubr.bf16.mxu0 0
  %921 = vmatmul.mubr.bf16.gmra.mrb[0].mxu0 %v825
  %v922 = vpop.f32.mrb[0].mxu0
  %v923 = vadd.f32 0.0, %v922
  %v924 = vpop.f32.mrb[0].mxu0
  %v925 = vpop.f32.mrb[0].mxu0
  %v926 = vadd.f32 0.0, %v925
  %v927 = vpop.f32.mrb[0].mxu0
  %928 = vdwg.mxu0
  %v929 = vadd.f32 %v839, %v880
  %v930 = vadd.f32 %v842, %v884
  %v931 = vxor.u32 %v929, 2147483648
  %v932 = vxor.u32 %v930, 2147483648
  %v933 = vmul.f32 %v931, 1.442695
  %v934 = vpow.pop %v933
  %v935 = vmul.f32 %v932, 1.442695
  %v936 = vpow.pop %v935
  %v937 = vadd.f32 %v934, 1.0
  %v938 = vadd.f32 %v936, 1.0
  %v939 = vrcp.pop %v937
  %v940 = vmul.f32 1.0, %v939
  %v941 = vrcp.pop %v938
  %v942 = vmul.f32 1.0, %v941
  %v943 = vadd.f32 %v840, %v882
  %v944 = vadd.f32 %v843, %v886
  %v945 = vxor.u32 %v943, 2147483648
  %v946 = vxor.u32 %v944, 2147483648
  %v947 = vmul.f32 %v945, 1.442695
  %v948 = vpow.pop %v947
  %v949 = vmul.f32 %v946, 1.442695
  %v950 = vpow.pop %v949
  %v951 = vadd.f32 %v948, 1.0
  %v952 = vadd.f32 %v950, 1.0
  %v953 = vrcp.pop %v951
  %v954 = vmul.f32 1.0, %v953
  %v955 = vrcp.pop %v952
  %v956 = vmul.f32 1.0, %v955
  %v957 = vadd.f32 %v923, %v660
  %v958 = vadd.f32 %v926, %v660
  %v959 = vmul.f32 %v940, %v957
  %v960 = vmul.f32 %v942, %v958
  %v961 = vadd.f32 %v841, %v959
  %v962 = vadd.f32 %v844, %v960
  %v963 = vtanh.pop %v961
  %v964 = vtanh.pop %v962
  %v965 = vsub.f32 1.0, %v954
  %v966 = vsub.f32 1.0, %v956
  %v967 = vmul.f32 %v965, %v963
  %v968 = vmul.f32 %v966, %v964
  %v969 = vmul.f32 %v954, %v823
  %v970 = vmul.f32 %v956, %v824
  %v971 = vadd.f32 %v967, %v969
  %v972 = vadd.f32 %v968, %v970
  %v973 = vpack.c.bf16 %v972, %v971
  %v975 = vunpack.c.l.b16 %v973
  %v976 = vunpack.c.h.b16 %v973
  %v977 = vpack.c.b16 %v975, %v975
  %v978 = vpack.c.b16 %v976, %v976
  %s981 = scalar_lea.vmem %s5, 16
  %982 = vst [vmem:[%s981] sm:$0xf] %v977
  %983 = vst [vmem:[%s981 + $0x4] sm:$0xf] %v978
  %s984 = smul.u32 6, 3
  %s985 = smul.addr %s984, 8
  %s986 = scalar_lea.vmem [#allocation3], %s985
  %v987 = vld [vmem:[%s986] sm:$0xff]
  %v988 = vld [vmem:[%s986 + $0x8] sm:$0xff]
  %v989 = vld [vmem:[%s986 + $0x10] sm:$0xff]
  %v990 = vld [vmem:[%s986 + $0x18] sm:$0xff]
  %v991 = vld [vmem:[%s986 + $0x20] sm:$0xff]
  %v992 = vld [vmem:[%s986 + $0x28] sm:$0xff]
  %993 = vmatprep.subr.bf16.mxu0 %v497
  %994 = vmatpush1.bf16.msra.mxu0 %v496
  %995 = vmatprep.subr.bf16.mxu0 %v500
  %996 = vmatpush1.bf16.msra.mxu0 %v499
  %997 = vmatprep.subr.bf16.mxu0 %v503
  %998 = vmatpush1.bf16.msra.mxu0 %v502
  %999 = vmatprep.subr.bf16.mxu0 %v506
  %1000 = vmatpush1.bf16.msra.mxu0 %v505
  %1001 = vmatprep.subr.bf16.mxu0 %v509
  %1002 = vmatpush1.bf16.msra.mxu0 %v508
  %1003 = vmatprep.subr.bf16.mxu0 %v512
  %1004 = vmatpush1.bf16.msra.mxu0 %v511
  %1005 = vmatprep.subr.bf16.mxu0 %v515
  %1006 = vmatpush1.bf16.msra.mxu0 %v514
  %1007 = vmatprep.subr.bf16.mxu0 %v518
  %1008 = vmatpush1.bf16.msra.mxu0 %v517
  %1009 = vmatprep.subr.bf16.mxu0 0
  %1010 = vmatpush1.bf16.msra.mxu0 0
  %1011 = vmatprep.subr.bf16.mxu0 0
  %1012 = vmatpush1.bf16.msra.mxu0 0
  %1013 = vmatprep.subr.bf16.mxu0 0
  %1014 = vmatpush1.bf16.msra.mxu0 0
  %1015 = vmatprep.subr.bf16.mxu0 0
  %1016 = vmatpush1.bf16.msra.mxu0 0
  %1017 = vmatprep.subr.bf16.mxu0 0
  %1018 = vmatpush1.bf16.msra.mxu0 0
  %1019 = vmatprep.subr.bf16.mxu0 0
  %1020 = vmatpush1.bf16.msra.mxu0 0
  %1021 = vmatprep.subr.bf16.mxu0 0
  %1022 = vmatpush1.bf16.msra.mxu0 0
  %1023 = vmatprep.subr.bf16.mxu0 0
  %1024 = vmatpush1.bf16.msra.mxu0 0
  %1025 = vmatprep.mubr.bf16.mxu0 0
  %1026 = vmatmul.mubr.bf16.gmra.mrb[0].mxu0 %v973
  %v1027 = vpop.f32.mrb[0].mxu0
  %v1028 = vadd.f32 0.0, %v1027
  %v1029 = vpop.f32.mrb[0].mxu0
  %v1030 = vadd.f32 0.0, %v1029
  %v1031 = vpop.f32.mrb[0].mxu0
  %v1032 = vadd.f32 0.0, %v1031
  %v1033 = vpop.f32.mrb[0].mxu0
  %v1034 = vadd.f32 0.0, %v1033
  %1035 = vdwg.mxu0
  %1036 = vmatprep.subr.bf16.mxu0 0
  %1037 = vmatpush1.bf16.msra.mxu0 %v498
  %1038 = vmatprep.subr.bf16.mxu0 0
  %1039 = vmatpush1.bf16.msra.mxu0 %v501
  %1040 = vmatprep.subr.bf16.mxu0 0
  %1041 = vmatpush1.bf16.msra.mxu0 %v504
  %1042 = vmatprep.subr.bf16.mxu0 0
  %1043 = vmatpush1.bf16.msra.mxu0 %v507
  %1044 = vmatprep.subr.bf16.mxu0 0
  %1045 = vmatpush1.bf16.msra.mxu0 %v510
  %1046 = vmatprep.subr.bf16.mxu0 0
  %1047 = vmatpush1.bf16.msra.mxu0 %v513
  %1048 = vmatprep.subr.bf16.mxu0 0
  %1049 = vmatpush1.bf16.msra.mxu0 %v516
  %1050 = vmatprep.subr.bf16.mxu0 0
  %1051 = vmatpush1.bf16.msra.mxu0 %v519
  %1052 = vmatprep.subr.bf16.mxu0 0
  %1053 = vmatpush1.bf16.msra.mxu0 0
  %1054 = vmatprep.subr.bf16.mxu0 0
  %1055 = vmatpush1.bf16.msra.mxu0 0
  %1056 = vmatprep.subr.bf16.mxu0 0
  %1057 = vmatpush1.bf16.msra.mxu0 0
  %1058 = vmatprep.subr.bf16.mxu0 0
  %1059 = vmatpush1.bf16.msra.mxu0 0
  %1060 = vmatprep.subr.bf16.mxu0 0
  %1061 = vmatpush1.bf16.msra.mxu0 0
  %1062 = vmatprep.subr.bf16.mxu0 0
  %1063 = vmatpush1.bf16.msra.mxu0 0
  %1064 = vmatprep.subr.bf16.mxu0 0
  %1065 = vmatpush1.bf16.msra.mxu0 0
  %1066 = vmatprep.subr.bf16.mxu0 0
  %1067 = vmatpush1.bf16.msra.mxu0 0
  %1068 = vmatprep.mubr.bf16.mxu0 0
  %1069 = vmatmul.mubr.bf16.gmra.mrb[0].mxu0 %v973
  %v1070 = vpop.f32.mrb[0].mxu0
  %v1071 = vadd.f32 0.0, %v1070
  %v1072 = vpop.f32.mrb[0].mxu0
  %v1073 = vpop.f32.mrb[0].mxu0
  %v1074 = vadd.f32 0.0, %v1073
  %v1075 = vpop.f32.mrb[0].mxu0
  %1076 = vdwg.mxu0
  %v1077 = vadd.f32 %v987, %v1028
  %v1078 = vadd.f32 %v990, %v1032
  %v1079 = vxor.u32 %v1077, 2147483648
  %v1080 = vxor.u32 %v1078, 2147483648
  %v1081 = vmul.f32 %v1079, 1.442695
  %v1082 = vpow.pop %v1081
  %v1083 = vmul.f32 %v1080, 1.442695
  %v1084 = vpow.pop %v1083
  %v1085 = vadd.f32 %v1082, 1.0
  %v1086 = vadd.f32 %v1084, 1.0
  %v1087 = vrcp.pop %v1085
  %v1088 = vmul.f32 1.0, %v1087
  %v1089 = vrcp.pop %v1086
  %v1090 = vmul.f32 1.0, %v1089
  %v1091 = vadd.f32 %v988, %v1030
  %v1092 = vadd.f32 %v991, %v1034
  %v1093 = vxor.u32 %v1091, 2147483648
  %v1094 = vxor.u32 %v1092, 2147483648
  %v1095 = vmul.f32 %v1093, 1.442695
  %v1096 = vpow.pop %v1095
  %v1097 = vmul.f32 %v1094, 1.442695
  %v1098 = vpow.pop %v1097
  %v1099 = vadd.f32 %v1096, 1.0
  %v1100 = vadd.f32 %v1098, 1.0
  %v1101 = vrcp.pop %v1099
  %v1102 = vmul.f32 1.0, %v1101
  %v1103 = vrcp.pop %v1100
  %v1104 = vmul.f32 1.0, %v1103
  %v1105 = vadd.f32 %v1071, %v660
  %v1106 = vadd.f32 %v1074, %v660
  %v1107 = vmul.f32 %v1088, %v1105
  %v1108 = vmul.f32 %v1090, %v1106
  %v1109 = vadd.f32 %v989, %v1107
  %v1110 = vadd.f32 %v992, %v1108
  %v1111 = vtanh.pop %v1109
  %v1112 = vtanh.pop %v1110
  %v1113 = vsub.f32 1.0, %v1102
  %v1114 = vsub.f32 1.0, %v1104
  %v1115 = vmul.f32 %v1113, %v1111
  %v1116 = vmul.f32 %v1114, %v1112
  %v1117 = vmul.f32 %v1102, %v971
  %v1118 = vmul.f32 %v1104, %v972
  %v1119 = vadd.f32 %v1115, %v1117
  %v1120 = vadd.f32 %v1116, %v1118
  %v1121 = vpack.c.bf16 %v1120, %v1119
  %v1123 = vunpack.c.l.b16 %v1121
  %v1124 = vunpack.c.h.b16 %v1121
  %v1125 = vpack.c.b16 %v1123, %v1123
  %v1126 = vpack.c.b16 %v1124, %v1124
  %s1129 = scalar_lea.vmem %s5, 24
  %1130 = vst [vmem:[%s1129] sm:$0xf] %v1125
  %1131 = vst [vmem:[%s1129 + $0x4] sm:$0xf] %v1126
  %s1132 = smul.u32 8, 3
  %s1133 = smul.addr %s1132, 8
  %s1134 = scalar_lea.vmem [#allocation3], %s1133
  %v1135 = vld [vmem:[%s1134] sm:$0xff]
  %v1136 = vld [vmem:[%s1134 + $0x8] sm:$0xff]
  %v1137 = vld [vmem:[%s1134 + $0x10] sm:$0xff]
  %v1138 = vld [vmem:[%s1134 + $0x18] sm:$0xff]
  %v1139 = vld [vmem:[%s1134 + $0x20] sm:$0xff]
  %v1140 = vld [vmem:[%s1134 + $0x28] sm:$0xff]
  %1141 = vmatprep.subr.bf16.mxu0 %v497
  %1142 = vmatpush1.bf16.msra.mxu0 %v496
  %1143 = vmatprep.subr.bf16.mxu0 %v500
  %1144 = vmatpush1.bf16.msra.mxu0 %v499
  %1145 = vmatprep.subr.bf16.mxu0 %v503
  %1146 = vmatpush1.bf16.msra.mxu0 %v502
  %1147 = vmatprep.subr.bf16.mxu0 %v506
  %1148 = vmatpush1.bf16.msra.mxu0 %v505
  %1149 = vmatprep.subr.bf16.mxu0 %v509
  %1150 = vmatpush1.bf16.msra.mxu0 %v508
  %1151 = vmatprep.subr.bf16.mxu0 %v512
  %1152 = vmatpush1.bf16.msra.mxu0 %v511
  %1153 = vmatprep.subr.bf16.mxu0 %v515
  %1154 = vmatpush1.bf16.msra.mxu0 %v514
  %1155 = vmatprep.subr.bf16.mxu0 %v518
  %1156 = vmatpush1.bf16.msra.mxu0 %v517
  %1157 = vmatprep.subr.bf16.mxu0 0
  %1158 = vmatpush1.bf16.msra.mxu0 0
  %1159 = vmatprep.subr.bf16.mxu0 0
  %1160 = vmatpush1.bf16.msra.mxu0 0
  %1161 = vmatprep.subr.bf16.mxu0 0
  %1162 = vmatpush1.bf16.msra.mxu0 0
  %1163 = vmatprep.subr.bf16.mxu0 0
  %1164 = vmatpush1.bf16.msra.mxu0 0
  %1165 = vmatprep.subr.bf16.mxu0 0
  %1166 = vmatpush1.bf16.msra.mxu0 0
  %1167 = vmatprep.subr.bf16.mxu0 0
  %1168 = vmatpush1.bf16.msra.mxu0 0
  %1169 = vmatprep.subr.bf16.mxu0 0
  %1170 = vmatpush1.bf16.msra.mxu0 0
  %1171 = vmatprep.subr.bf16.mxu0 0
  %1172 = vmatpush1.bf16.msra.mxu0 0
  %1173 = vmatprep.mubr.bf16.mxu0 0
  %1174 = vmatmul.mubr.bf16.gmra.mrb[0].mxu0 %v1121
  %v1175 = vpop.f32.mrb[0].mxu0
  %v1176 = vadd.f32 0.0, %v1175
  %v1177 = vpop.f32.mrb[0].mxu0
  %v1178 = vadd.f32 0.0, %v1177
  %v1179 = vpop.f32.mrb[0].mxu0
  %v1180 = vadd.f32 0.0, %v1179
  %v1181 = vpop.f32.mrb[0].mxu0
  %v1182 = vadd.f32 0.0, %v1181
  %1183 = vdwg.mxu0
  %1184 = vmatprep.subr.bf16.mxu0 0
  %1185 = vmatpush1.bf16.msra.mxu0 %v498
  %1186 = vmatprep.subr.bf16.mxu0 0
  %1187 = vmatpush1.bf16.msra.mxu0 %v501
  %1188 = vmatprep.subr.bf16.mxu0 0
  %1189 = vmatpush1.bf16.msra.mxu0 %v504
  %1190 = vmatprep.subr.bf16.mxu0 0
  %1191 = vmatpush1.bf16.msra.mxu0 %v507
  %1192 = vmatprep.subr.bf16.mxu0 0
  %1193 = vmatpush1.bf16.msra.mxu0 %v510
  %1194 = vmatprep.subr.bf16.mxu0 0
  %1195 = vmatpush1.bf16.msra.mxu0 %v513
  %1196 = vmatprep.subr.bf16.mxu0 0
  %1197 = vmatpush1.bf16.msra.mxu0 %v516
  %1198 = vmatprep.subr.bf16.mxu0 0
  %1199 = vmatpush1.bf16.msra.mxu0 %v519
  %1200 = vmatprep.subr.bf16.mxu0 0
  %1201 = vmatpush1.bf16.msra.mxu0 0
  %1202 = vmatprep.subr.bf16.mxu0 0
  %1203 = vmatpush1.bf16.msra.mxu0 0
  %1204 = vmatprep.subr.bf16.mxu0 0
  %1205 = vmatpush1.bf16.msra.mxu0 0
  %1206 = vmatprep.subr.bf16.mxu0 0
  %1207 = vmatpush1.bf16.msra.mxu0 0
  %1208 = vmatprep.subr.bf16.mxu0 0
  %1209 = vmatpush1.bf16.msra.mxu0 0
  %1210 = vmatprep.subr.bf16.mxu0 0
  %1211 = vmatpush1.bf16.msra.mxu0 0
  %1212 = vmatprep.subr.bf16.mxu0 0
  %1213 = vmatpush1.bf16.msra.mxu0 0
  %1214 = vmatprep.subr.bf16.mxu0 0
  %1215 = vmatpush1.bf16.msra.mxu0 0
  %1216 = vmatprep.mubr.bf16.mxu0 0
  %1217 = vmatmul.mubr.bf16.gmra.mrb[0].mxu0 %v1121
  %v1218 = vpop.f32.mrb[0].mxu0
  %v1219 = vadd.f32 0.0, %v1218
  %v1220 = vpop.f32.mrb[0].mxu0
  %v1221 = vpop.f32.mrb[0].mxu0
  %v1222 = vadd.f32 0.0, %v1221
  %v1223 = vpop.f32.mrb[0].mxu0
  %1224 = vdwg.mxu0
  %v1225 = vadd.f32 %v1135, %v1176
  %v1226 = vadd.f32 %v1138, %v1180
  %v1227 = vxor.u32 %v1225, 2147483648
  %v1228 = vxor.u32 %v1226, 2147483648
  %v1229 = vmul.f32 %v1227, 1.442695
  %v1230 = vpow.pop %v1229
  %v1231 = vmul.f32 %v1228, 1.442695
  %v1232 = vpow.pop %v1231
  %v1233 = vadd.f32 %v1230, 1.0
  %v1234 = vadd.f32 %v1232, 1.0
  %v1235 = vrcp.pop %v1233
  %v1236 = vmul.f32 1.0, %v1235
  %v1237 = vrcp.pop %v1234
  %v1238 = vmul.f32 1.0, %v1237
  %v1239 = vadd.f32 %v1136, %v1178
  %v1240 = vadd.f32 %v1139, %v1182
  %v1241 = vxor.u32 %v1239, 2147483648
  %v1242 = vxor.u32 %v1240, 2147483648
  %v1243 = vmul.f32 %v1241, 1.442695
  %v1244 = vpow.pop %v1243
  %v1245 = vmul.f32 %v1242, 1.442695
  %v1246 = vpow.pop %v1245
  %v1247 = vadd.f32 %v1244, 1.0
  %v1248 = vadd.f32 %v1246, 1.0
  %v1249 = vrcp.pop %v1247
  %v1250 = vmul.f32 1.0, %v1249
  %v1251 = vrcp.pop %v1248
  %v1252 = vmul.f32 1.0, %v1251
  %v1253 = vadd.f32 %v1219, %v660
  %v1254 = vadd.f32 %v1222, %v660
  %v1255 = vmul.f32 %v1236, %v1253
  %v1256 = vmul.f32 %v1238, %v1254
  %v1257 = vadd.f32 %v1137, %v1255
  %v1258 = vadd.f32 %v1140, %v1256
  %v1259 = vtanh.pop %v1257
  %v1260 = vtanh.pop %v1258
  %v1261 = vsub.f32 1.0, %v1250
  %v1262 = vsub.f32 1.0, %v1252
  %v1263 = vmul.f32 %v1261, %v1259
  %v1264 = vmul.f32 %v1262, %v1260
  %v1265 = vmul.f32 %v1250, %v1119
  %v1266 = vmul.f32 %v1252, %v1120
  %v1267 = vadd.f32 %v1263, %v1265
  %v1268 = vadd.f32 %v1264, %v1266
  %v1269 = vpack.c.bf16 %v1268, %v1267
  %v1271 = vunpack.c.l.b16 %v1269
  %v1272 = vunpack.c.h.b16 %v1269
  %v1273 = vpack.c.b16 %v1271, %v1271
  %v1274 = vpack.c.b16 %v1272, %v1272
  %s1277 = scalar_lea.vmem %s5, 32
  %1278 = vst [vmem:[%s1277] sm:$0xf] %v1273
  %1279 = vst [vmem:[%s1277 + $0x4] sm:$0xf] %v1274
  %s1280 = smul.u32 10, 3
  %s1281 = smul.addr %s1280, 8
  %s1282 = scalar_lea.vmem [#allocation3], %s1281
  %v1283 = vld [vmem:[%s1282] sm:$0xff]
  %v1284 = vld [vmem:[%s1282 + $0x8] sm:$0xff]
  %v1285 = vld [vmem:[%s1282 + $0x10] sm:$0xff]
  %v1286 = vld [vmem:[%s1282 + $0x18] sm:$0xff]
  %v1287 = vld [vmem:[%s1282 + $0x20] sm:$0xff]
  %v1288 = vld [vmem:[%s1282 + $0x28] sm:$0xff]
  %1289 = vmatprep.subr.bf16.mxu0 %v497
  %1290 = vmatpush1.bf16.msra.mxu0 %v496
  %1291 = vmatprep.subr.bf16.mxu0 %v500
  %1292 = vmatpush1.bf16.msra.mxu0 %v499
  %1293 = vmatprep.subr.bf16.mxu0 %v503
  %1294 = vmatpush1.bf16.msra.mxu0 %v502
  %1295 = vmatprep.subr.bf16.mxu0 %v506
  %1296 = vmatpush1.bf16.msra.mxu0 %v505
  %1297 = vmatprep.subr.bf16.mxu0 %v509
  %1298 = vmatpush1.bf16.msra.mxu0 %v508
  %1299 = vmatprep.subr.bf16.mxu0 %v512
  %1300 = vmatpush1.bf16.msra.mxu0 %v511
  %1301 = vmatprep.subr.bf16.mxu0 %v515
  %1302 = vmatpush1.bf16.msra.mxu0 %v514
  %1303 = vmatprep.subr.bf16.mxu0 %v518
  %1304 = vmatpush1.bf16.msra.mxu0 %v517
  %1305 = vmatprep.subr.bf16.mxu0 0
  %1306 = vmatpush1.bf16.msra.mxu0 0
  %1307 = vmatprep.subr.bf16.mxu0 0
  %1308 = vmatpush1.bf16.msra.mxu0 0
  %1309 = vmatprep.subr.bf16.mxu0 0
  %1310 = vmatpush1.bf16.msra.mxu0 0
  %1311 = vmatprep.subr.bf16.mxu0 0
  %1312 = vmatpush1.bf16.msra.mxu0 0
  %1313 = vmatprep.subr.bf16.mxu0 0
  %1314 = vmatpush1.bf16.msra.mxu0 0
  %1315 = vmatprep.subr.bf16.mxu0 0
  %1316 = vmatpush1.bf16.msra.mxu0 0
  %1317 = vmatprep.subr.bf16.mxu0 0
  %1318 = vmatpush1.bf16.msra.mxu0 0
  %1319 = vmatprep.subr.bf16.mxu0 0
  %1320 = vmatpush1.bf16.msra.mxu0 0
  %1321 = vmatprep.mubr.bf16.mxu0 0
  %1322 = vmatmul.mubr.bf16.gmra.mrb[0].mxu0 %v1269
  %v1323 = vpop.f32.mrb[0].mxu0
  %v1324 = vadd.f32 0.0, %v1323
  %v1325 = vpop.f32.mrb[0].mxu0
  %v1326 = vadd.f32 0.0, %v1325
  %v1327 = vpop.f32.mrb[0].mxu0
  %v1328 = vadd.f32 0.0, %v1327
  %v1329 = vpop.f32.mrb[0].mxu0
  %v1330 = vadd.f32 0.0, %v1329
  %1331 = vdwg.mxu0
  %1332 = vmatprep.subr.bf16.mxu0 0
  %1333 = vmatpush1.bf16.msra.mxu0 %v498
  %1334 = vmatprep.subr.bf16.mxu0 0
  %1335 = vmatpush1.bf16.msra.mxu0 %v501
  %1336 = vmatprep.subr.bf16.mxu0 0
  %1337 = vmatpush1.bf16.msra.mxu0 %v504
  %1338 = vmatprep.subr.bf16.mxu0 0
  %1339 = vmatpush1.bf16.msra.mxu0 %v507
  %1340 = vmatprep.subr.bf16.mxu0 0
  %1341 = vmatpush1.bf16.msra.mxu0 %v510
  %1342 = vmatprep.subr.bf16.mxu0 0
  %1343 = vmatpush1.bf16.msra.mxu0 %v513
  %1344 = vmatprep.subr.bf16.mxu0 0
  %1345 = vmatpush1.bf16.msra.mxu0 %v516
  %1346 = vmatprep.subr.bf16.mxu0 0
  %1347 = vmatpush1.bf16.msra.mxu0 %v519
  %1348 = vmatprep.subr.bf16.mxu0 0
  %1349 = vmatpush1.bf16.msra.mxu0 0
  %1350 = vmatprep.subr.bf16.mxu0 0
  %1351 = vmatpush1.bf16.msra.mxu0 0
  %1352 = vmatprep.subr.bf16.mxu0 0
  %1353 = vmatpush1.bf16.msra.mxu0 0
  %1354 = vmatprep.subr.bf16.mxu0 0
  %1355 = vmatpush1.bf16.msra.mxu0 0
  %1356 = vmatprep.subr.bf16.mxu0 0
  %1357 = vmatpush1.bf16.msra.mxu0 0
  %1358 = vmatprep.subr.bf16.mxu0 0
  %1359 = vmatpush1.bf16.msra.mxu0 0
  %1360 = vmatprep.subr.bf16.mxu0 0
  %1361 = vmatpush1.bf16.msra.mxu0 0
  %1362 = vmatprep.subr.bf16.mxu0 0
  %1363 = vmatpush1.bf16.msra.mxu0 0
  %1364 = vmatprep.mubr.bf16.mxu0 0
  %1365 = vmatmul.mubr.bf16.gmra.mrb[0].mxu0 %v1269
  %v1366 = vpop.f32.mrb[0].mxu0
  %v1367 = vadd.f32 0.0, %v1366
  %v1368 = vpop.f32.mrb[0].mxu0
  %v1369 = vpop.f32.mrb[0].mxu0
  %v1370 = vadd.f32 0.0, %v1369
  %v1371 = vpop.f32.mrb[0].mxu0
  %1372 = vdwg.mxu0
  %v1373 = vadd.f32 %v1283, %v1324
  %v1374 = vadd.f32 %v1286, %v1328
  %v1375 = vxor.u32 %v1373, 2147483648
  %v1376 = vxor.u32 %v1374, 2147483648
  %v1377 = vmul.f32 %v1375, 1.442695
  %v1378 = vpow.pop %v1377
  %v1379 = vmul.f32 %v1376, 1.442695
  %v1380 = vpow.pop %v1379
  %v1381 = vadd.f32 %v1378, 1.0
  %v1382 = vadd.f32 %v1380, 1.0
  %v1383 = vrcp.pop %v1381
  %v1384 = vmul.f32 1.0, %v1383
  %v1385 = vrcp.pop %v1382
  %v1386 = vmul.f32 1.0, %v1385
  %v1387 = vadd.f32 %v1284, %v1326
  %v1388 = vadd.f32 %v1287, %v1330
  %v1389 = vxor.u32 %v1387, 2147483648
  %v1390 = vxor.u32 %v1388, 2147483648
  %v1391 = vmul.f32 %v1389, 1.442695
  %v1392 = vpow.pop %v1391
  %v1393 = vmul.f32 %v1390, 1.442695
  %v1394 = vpow.pop %v1393
  %v1395 = vadd.f32 %v1392, 1.0
  %v1396 = vadd.f32 %v1394, 1.0
  %v1397 = vrcp.pop %v1395
  %v1398 = vmul.f32 1.0, %v1397
  %v1399 = vrcp.pop %v1396
  %v1400 = vmul.f32 1.0, %v1399
  %v1401 = vadd.f32 %v1367, %v660
  %v1402 = vadd.f32 %v1370, %v660
  %v1403 = vmul.f32 %v1384, %v1401
  %v1404 = vmul.f32 %v1386, %v1402
  %v1405 = vadd.f32 %v1285, %v1403
  %v1406 = vadd.f32 %v1288, %v1404
  %v1407 = vtanh.pop %v1405
  %v1408 = vtanh.pop %v1406
  %v1409 = vsub.f32 1.0, %v1398
  %v1410 = vsub.f32 1.0, %v1400
  %v1411 = vmul.f32 %v1409, %v1407
  %v1412 = vmul.f32 %v1410, %v1408
  %v1413 = vmul.f32 %v1398, %v1267
  %v1414 = vmul.f32 %v1400, %v1268
  %v1415 = vadd.f32 %v1411, %v1413
  %v1416 = vadd.f32 %v1412, %v1414
  %v1417 = vpack.c.bf16 %v1416, %v1415
  %v1419 = vunpack.c.l.b16 %v1417
  %v1420 = vunpack.c.h.b16 %v1417
  %v1421 = vpack.c.b16 %v1419, %v1419
  %v1422 = vpack.c.b16 %v1420, %v1420
  %s1425 = scalar_lea.vmem %s5, 40
  %1426 = vst [vmem:[%s1425] sm:$0xf] %v1421
  %1427 = vst [vmem:[%s1425 + $0x4] sm:$0xf] %v1422
  %s1428 = smul.u32 12, 3
  %s1429 = smul.addr %s1428, 8
  %s1430 = scalar_lea.vmem [#allocation3], %s1429
  %v1431 = vld [vmem:[%s1430] sm:$0xff]
  %v1432 = vld [vmem:[%s1430 + $0x8] sm:$0xff]
  %v1433 = vld [vmem:[%s1430 + $0x10] sm:$0xff]
  %v1434 = vld [vmem:[%s1430 + $0x18] sm:$0xff]
  %v1435 = vld [vmem:[%s1430 + $0x20] sm:$0xff]
  %v1436 = vld [vmem:[%s1430 + $0x28] sm:$0xff]
  %1437 = vmatprep.subr.bf16.mxu0 %v497
  %1438 = vmatpush1.bf16.msra.mxu0 %v496
  %1439 = vmatprep.subr.bf16.mxu0 %v500
  %1440 = vmatpush1.bf16.msra.mxu0 %v499
  %1441 = vmatprep.subr.bf16.mxu0 %v503
  %1442 = vmatpush1.bf16.msra.mxu0 %v502
  %1443 = vmatprep.subr.bf16.mxu0 %v506
  %1444 = vmatpush1.bf16.msra.mxu0 %v505
  %1445 = vmatprep.subr.bf16.mxu0 %v509
  %1446 = vmatpush1.bf16.msra.mxu0 %v508
  %1447 = vmatprep.subr.bf16.mxu0 %v512
  %1448 = vmatpush1.bf16.msra.mxu0 %v511
  %1449 = vmatprep.subr.bf16.mxu0 %v515
  %1450 = vmatpush1.bf16.msra.mxu0 %v514
  %1451 = vmatprep.subr.bf16.mxu0 %v518
  %1452 = vmatpush1.bf16.msra.mxu0 %v517
  %1453 = vmatprep.subr.bf16.mxu0 0
  %1454 = vmatpush1.bf16.msra.mxu0 0
  %1455 = vmatprep.subr.bf16.mxu0 0
  %1456 = vmatpush1.bf16.msra.mxu0 0
  %1457 = vmatprep.subr.bf16.mxu0 0
  %1458 = vmatpush1.bf16.msra.mxu0 0
  %1459 = vmatprep.subr.bf16.mxu0 0
  %1460 = vmatpush1.bf16.msra.mxu0 0
  %1461 = vmatprep.subr.bf16.mxu0 0
  %1462 = vmatpush1.bf16.msra.mxu0 0
  %1463 = vmatprep.subr.bf16.mxu0 0
  %1464 = vmatpush1.bf16.msra.mxu0 0
  %1465 = vmatprep.subr.bf16.mxu0 0
  %1466 = vmatpush1.bf16.msra.mxu0 0
  %1467 = vmatprep.subr.bf16.mxu0 0
  %1468 = vmatpush1.bf16.msra.mxu0 0
  %1469 = vmatprep.mubr.bf16.mxu0 0
  %1470 = vmatmul.mubr.bf16.gmra.mrb[0].mxu0 %v1417
  %v1471 = vpop.f32.mrb[0].mxu0
  %v1472 = vadd.f32 0.0, %v1471
  %v1473 = vpop.f32.mrb[0].mxu0
  %v1474 = vadd.f32 0.0, %v1473
  %v1475 = vpop.f32.mrb[0].mxu0
  %v1476 = vadd.f32 0.0, %v1475
  %v1477 = vpop.f32.mrb[0].mxu0
  %v1478 = vadd.f32 0.0, %v1477
  %1479 = vdwg.mxu0
  %1480 = vmatprep.subr.bf16.mxu0 0
  %1481 = vmatpush1.bf16.msra.mxu0 %v498
  %1482 = vmatprep.subr.bf16.mxu0 0
  %1483 = vmatpush1.bf16.msra.mxu0 %v501
  %1484 = vmatprep.subr.bf16.mxu0 0
  %1485 = vmatpush1.bf16.msra.mxu0 %v504
  %1486 = vmatprep.subr.bf16.mxu0 0
  %1487 = vmatpush1.bf16.msra.mxu0 %v507
  %1488 = vmatprep.subr.bf16.mxu0 0
  %1489 = vmatpush1.bf16.msra.mxu0 %v510
  %1490 = vmatprep.subr.bf16.mxu0 0
  %1491 = vmatpush1.bf16.msra.mxu0 %v513
  %1492 = vmatprep.subr.bf16.mxu0 0
  %1493 = vmatpush1.bf16.msra.mxu0 %v516
  %1494 = vmatprep.subr.bf16.mxu0 0
  %1495 = vmatpush1.bf16.msra.mxu0 %v519
  %1496 = vmatprep.subr.bf16.mxu0 0
  %1497 = vmatpush1.bf16.msra.mxu0 0
  %1498 = vmatprep.subr.bf16.mxu0 0
  %1499 = vmatpush1.bf16.msra.mxu0 0
  %1500 = vmatprep.subr.bf16.mxu0 0
  %1501 = vmatpush1.bf16.msra.mxu0 0
  %1502 = vmatprep.subr.bf16.mxu0 0
  %1503 = vmatpush1.bf16.msra.mxu0 0
  %1504 = vmatprep.subr.bf16.mxu0 0
  %1505 = vmatpush1.bf16.msra.mxu0 0
  %1506 = vmatprep.subr.bf16.mxu0 0
  %1507 = vmatpush1.bf16.msra.mxu0 0
  %1508 = vmatprep.subr.bf16.mxu0 0
  %1509 = vmatpush1.bf16.msra.mxu0 0
  %1510 = vmatprep.subr.bf16.mxu0 0
  %1511 = vmatpush1.bf16.msra.mxu0 0
  %1512 = vmatprep.mubr.bf16.mxu0 0
  %1513 = vmatmul.mubr.bf16.gmra.mrb[0].mxu0 %v1417
  %v1514 = vpop.f32.mrb[0].mxu0
  %v1515 = vadd.f32 0.0, %v1514
  %v1516 = vpop.f32.mrb[0].mxu0
  %v1517 = vpop.f32.mrb[0].mxu0
  %v1518 = vadd.f32 0.0, %v1517
  %v1519 = vpop.f32.mrb[0].mxu0
  %1520 = vdwg.mxu0
  %v1521 = vadd.f32 %v1431, %v1472
  %v1522 = vadd.f32 %v1434, %v1476
  %v1523 = vxor.u32 %v1521, 2147483648
  %v1524 = vxor.u32 %v1522, 2147483648
  %v1525 = vmul.f32 %v1523, 1.442695
  %v1526 = vpow.pop %v1525
  %v1527 = vmul.f32 %v1524, 1.442695
  %v1528 = vpow.pop %v1527
  %v1529 = vadd.f32 %v1526, 1.0
  %v1530 = vadd.f32 %v1528, 1.0
  %v1531 = vrcp.pop %v1529
  %v1532 = vmul.f32 1.0, %v1531
  %v1533 = vrcp.pop %v1530
  %v1534 = vmul.f32 1.0, %v1533
  %v1535 = vadd.f32 %v1432, %v1474
  %v1536 = vadd.f32 %v1435, %v1478
  %v1537 = vxor.u32 %v1535, 2147483648
  %v1538 = vxor.u32 %v1536, 2147483648
  %v1539 = vmul.f32 %v1537, 1.442695
  %v1540 = vpow.pop %v1539
  %v1541 = vmul.f32 %v1538, 1.442695
  %v1542 = vpow.pop %v1541
  %v1543 = vadd.f32 %v1540, 1.0
  %v1544 = vadd.f32 %v1542, 1.0
  %v1545 = vrcp.pop %v1543
  %v1546 = vmul.f32 1.0, %v1545
  %v1547 = vrcp.pop %v1544
  %v1548 = vmul.f32 1.0, %v1547
  %v1549 = vadd.f32 %v1515, %v660
  %v1550 = vadd.f32 %v1518, %v660
  %v1551 = vmul.f32 %v1532, %v1549
  %v1552 = vmul.f32 %v1534, %v1550
  %v1553 = vadd.f32 %v1433, %v1551
  %v1554 = vadd.f32 %v1436, %v1552
  %v1555 = vtanh.pop %v1553
  %v1556 = vtanh.pop %v1554
  %v1557 = vsub.f32 1.0, %v1546
  %v1558 = vsub.f32 1.0, %v1548
  %v1559 = vmul.f32 %v1557, %v1555
  %v1560 = vmul.f32 %v1558, %v1556
  %v1561 = vmul.f32 %v1546, %v1415
  %v1562 = vmul.f32 %v1548, %v1416
  %v1563 = vadd.f32 %v1559, %v1561
  %v1564 = vadd.f32 %v1560, %v1562
  %v1565 = vpack.c.bf16 %v1564, %v1563
  %v1567 = vunpack.c.l.b16 %v1565
  %v1568 = vunpack.c.h.b16 %v1565
  %v1569 = vpack.c.b16 %v1567, %v1567
  %v1570 = vpack.c.b16 %v1568, %v1568
  %s1573 = scalar_lea.vmem %s5, 48
  %1574 = vst [vmem:[%s1573] sm:$0xf] %v1569
  %1575 = vst [vmem:[%s1573 + $0x4] sm:$0xf] %v1570
  %s1576 = smul.u32 14, 3
  %s1577 = smul.addr %s1576, 8
  %s1578 = scalar_lea.vmem [#allocation3], %s1577
  %v1579 = vld [vmem:[%s1578] sm:$0xff]
  %v1580 = vld [vmem:[%s1578 + $0x8] sm:$0xff]
  %v1581 = vld [vmem:[%s1578 + $0x10] sm:$0xff]
  %v1582 = vld [vmem:[%s1578 + $0x18] sm:$0xff]
  %v1583 = vld [vmem:[%s1578 + $0x20] sm:$0xff]
  %v1584 = vld [vmem:[%s1578 + $0x28] sm:$0xff]
  %1585 = vmatprep.subr.bf16.mxu0 %v497
  %1586 = vmatpush1.bf16.msra.mxu0 %v496
  %1587 = vmatprep.subr.bf16.mxu0 %v500
  %1588 = vmatpush1.bf16.msra.mxu0 %v499
  %1589 = vmatprep.subr.bf16.mxu0 %v503
  %1590 = vmatpush1.bf16.msra.mxu0 %v502
  %1591 = vmatprep.subr.bf16.mxu0 %v506
  %1592 = vmatpush1.bf16.msra.mxu0 %v505
  %1593 = vmatprep.subr.bf16.mxu0 %v509
  %1594 = vmatpush1.bf16.msra.mxu0 %v508
  %1595 = vmatprep.subr.bf16.mxu0 %v512
  %1596 = vmatpush1.bf16.msra.mxu0 %v511
  %1597 = vmatprep.subr.bf16.mxu0 %v515
  %1598 = vmatpush1.bf16.msra.mxu0 %v514
  %1599 = vmatprep.subr.bf16.mxu0 %v518
  %1600 = vmatpush1.bf16.msra.mxu0 %v517
  %1601 = vmatprep.subr.bf16.mxu0 0
  %1602 = vmatpush1.bf16.msra.mxu0 0
  %1603 = vmatprep.subr.bf16.mxu0 0
  %1604 = vmatpush1.bf16.msra.mxu0 0
  %1605 = vmatprep.subr.bf16.mxu0 0
  %1606 = vmatpush1.bf16.msra.mxu0 0
  %1607 = vmatprep.subr.bf16.mxu0 0
  %1608 = vmatpush1.bf16.msra.mxu0 0
  %1609 = vmatprep.subr.bf16.mxu0 0
  %1610 = vmatpush1.bf16.msra.mxu0 0
  %1611 = vmatprep.subr.bf16.mxu0 0
  %1612 = vmatpush1.bf16.msra.mxu0 0
  %1613 = vmatprep.subr.bf16.mxu0 0
  %1614 = vmatpush1.bf16.msra.mxu0 0
  %1615 = vmatprep.subr.bf16.mxu0 0
  %1616 = vmatpush1.bf16.msra.mxu0 0
  %1617 = vmatprep.mubr.bf16.mxu0 0
  %1618 = vmatmul.mubr.bf16.gmra.mrb[0].mxu0 %v1565
  %v1619 = vpop.f32.mrb[0].mxu0
  %v1620 = vadd.f32 0.0, %v1619
  %v1621 = vpop.f32.mrb[0].mxu0
  %v1622 = vadd.f32 0.0, %v1621
  %v1623 = vpop.f32.mrb[0].mxu0
  %v1624 = vadd.f32 0.0, %v1623
  %v1625 = vpop.f32.mrb[0].mxu0
  %v1626 = vadd.f32 0.0, %v1625
  %1627 = vdwg.mxu0
  %1628 = vmatprep.subr.bf16.mxu0 0
  %1629 = vmatpush1.bf16.msra.mxu0 %v498
  %1630 = vmatprep.subr.bf16.mxu0 0
  %1631 = vmatpush1.bf16.msra.mxu0 %v501
  %1632 = vmatprep.subr.bf16.mxu0 0
  %1633 = vmatpush1.bf16.msra.mxu0 %v504
  %1634 = vmatprep.subr.bf16.mxu0 0
  %1635 = vmatpush1.bf16.msra.mxu0 %v507
  %1636 = vmatprep.subr.bf16.mxu0 0
  %1637 = vmatpush1.bf16.msra.mxu0 %v510
  %1638 = vmatprep.subr.bf16.mxu0 0
  %1639 = vmatpush1.bf16.msra.mxu0 %v513
  %1640 = vmatprep.subr.bf16.mxu0 0
  %1641 = vmatpush1.bf16.msra.mxu0 %v516
  %1642 = vmatprep.subr.bf16.mxu0 0
  %1643 = vmatpush1.bf16.msra.mxu0 %v519
  %1644 = vmatprep.subr.bf16.mxu0 0
  %1645 = vmatpush1.bf16.msra.mxu0 0
  %1646 = vmatprep.subr.bf16.mxu0 0
  %1647 = vmatpush1.bf16.msra.mxu0 0
  %1648 = vmatprep.subr.bf16.mxu0 0
  %1649 = vmatpush1.bf16.msra.mxu0 0
  %1650 = vmatprep.subr.bf16.mxu0 0
  %1651 = vmatpush1.bf16.msra.mxu0 0
  %1652 = vmatprep.subr.bf16.mxu0 0
  %1653 = vmatpush1.bf16.msra.mxu0 0
  %1654 = vmatprep.subr.bf16.mxu0 0
  %1655 = vmatpush1.bf16.msra.mxu0 0
  %1656 = vmatprep.subr.bf16.mxu0 0
  %1657 = vmatpush1.bf16.msra.mxu0 0
  %1658 = vmatprep.subr.bf16.mxu0 0
  %1659 = vmatpush1.bf16.msra.mxu0 0
  %1660 = vmatprep.mubr.bf16.mxu0 0
  %1661 = vmatmul.mubr.bf16.gmra.mrb[0].mxu0 %v1565
  %v1662 = vpop.f32.mrb[0].mxu0
  %v1663 = vadd.f32 0.0, %v1662
  %v1664 = vpop.f32.mrb[0].mxu0
  %v1665 = vpop.f32.mrb[0].mxu0
  %v1666 = vadd.f32 0.0, %v1665
  %v1667 = vpop.f32.mrb[0].mxu0
  %1668 = vdwg.mxu0
  %v1669 = vadd.f32 %v1579, %v1620
  %v1670 = vadd.f32 %v1582, %v1624
  %v1671 = vxor.u32 %v1669, 2147483648
  %v1672 = vxor.u32 %v1670, 2147483648
  %v1673 = vmul.f32 %v1671, 1.442695
  %v1674 = vpow.pop %v1673
  %v1675 = vmul.f32 %v1672, 1.442695
  %v1676 = vpow.pop %v1675
  %v1677 = vadd.f32 %v1674, 1.0
  %v1678 = vadd.f32 %v1676, 1.0
  %v1679 = vrcp.pop %v1677
  %v1680 = vmul.f32 1.0, %v1679
  %v1681 = vrcp.pop %v1678
  %v1682 = vmul.f32 1.0, %v1681
  %v1683 = vadd.f32 %v1580, %v1622
  %v1684 = vadd.f32 %v1583, %v1626
  %v1685 = vxor.u32 %v1683, 2147483648
  %v1686 = vxor.u32 %v1684, 2147483648
  %v1687 = vmul.f32 %v1685, 1.442695
  %v1688 = vpow.pop %v1687
  %v1689 = vmul.f32 %v1686, 1.442695
  %v1690 = vpow.pop %v1689
  %v1691 = vadd.f32 %v1688, 1.0
  %v1692 = vadd.f32 %v1690, 1.0
  %v1693 = vrcp.pop %v1691
  %v1694 = vmul.f32 1.0, %v1693
  %v1695 = vrcp.pop %v1692
  %v1696 = vmul.f32 1.0, %v1695
  %v1697 = vadd.f32 %v1663, %v660
  %v1698 = vadd.f32 %v1666, %v660
  %v1699 = vmul.f32 %v1680, %v1697
  %v1700 = vmul.f32 %v1682, %v1698
  %v1701 = vadd.f32 %v1581, %v1699
  %v1702 = vadd.f32 %v1584, %v1700
  %v1703 = vtanh.pop %v1701
  %v1704 = vtanh.pop %v1702
  %v1705 = vsub.f32 1.0, %v1694
  %v1706 = vsub.f32 1.0, %v1696
  %v1707 = vmul.f32 %v1705, %v1703
  %v1708 = vmul.f32 %v1706, %v1704
  %v1709 = vmul.f32 %v1694, %v1563
  %v1710 = vmul.f32 %v1696, %v1564
  %v1711 = vadd.f32 %v1707, %v1709
  %v1712 = vadd.f32 %v1708, %v1710
  %v1713 = vpack.c.bf16 %v1712, %v1711
  %v1715 = vunpack.c.l.b16 %v1713
  %v1716 = vunpack.c.h.b16 %v1713
  %v1717 = vpack.c.b16 %v1715, %v1715
  %v1718 = vpack.c.b16 %v1716, %v1716
  %s1721 = scalar_lea.vmem %s5, 56
  %1722 = vst [vmem:[%s1721] sm:$0xf] %v1717
  %1723 = vst [vmem:[%s1721 + $0x4] sm:$0xf] %v1718
  %1724 = vst [vmem:[#allocation2] sm:$0xff] %v1711
  %1725 = vst [vmem:[#allocation2 + $0x8] sm:$0xff] %v1712
  // Predicated region
  $region26: #{_lambda_.3} parent=0 // pred_check
    _
  $region27: #{_lambda_.3} parent=0 // pred_check_branch
    %1727 = sbr.rel (0) target = $region29
  $region28: #{_lambda_.3} parent=0 // pred_region
    _
  $region29: #{_lambda_.3} parent=0 // pred_fallthru
    _
  // Predicated region
  $region30: #{_lambda_.3} parent=0 // pred_check
    _
  $region31: #{_lambda_.3} parent=0 // pred_check_branch
    %1729 = sbr.rel (0) target = $region33
  $region32: #{_lambda_.3} parent=0 // pred_region
    _
  $region33: #{_lambda_.3} parent=0 // pred_fallthru
    _

// kernel: _lambda_.5
$region0: #{_lambda_.5}
  #allocation0 [shape = 'u32[]', space=smem, size = 0x4, offset = 0x4, fixed_abs, tag = 'smem constant byte address 0x4 - core index']
  #allocation1 [shape = 'u32[144,128]{1,0:T(1,128)}', space=vmem, size = 0x12000, scoped, tag = 'internal scratch']
  #allocation2 [shape = 'f32[32,128]{1,0:T(8,128)}', space=vmem, size = 0x4000, scoped, tag = 'scratch operand']
  #allocation3 [shape = 'f32[32,384]{1,0:T(8,128)}', space=vmem, size = 0xc000, scoped, tag = 'scratch operand']
  %s0 = inlined_call_operand.vmem [shape: bf16[1,32,32], index: 0, kind: input, shape index: {}]
  %s1 = inlined_call_operand.vmem [shape: bf16[32,384], index: 1, kind: input, shape index: {}]
  %s2 = inlined_call_operand.vmem [shape: bf16[128,384], index: 2, kind: input, shape index: {}]
  %s3 = inlined_call_operand.vmem [shape: f32[1,384], index: 3, kind: input, shape index: {}]
  %s4 = inlined_call_operand.vmem [shape: f32[1,128], index: 4, kind: input, shape index: {}]
  %s5 = inlined_call_operand.vmem [shape: bf16[1,32,128], index: 5, kind: output, shape index: {}]
  %s6 = sld [smem:[#allocation0]]
  $region34: #{_lambda_.5} parent=0
    _
  %s8 = ssub.s32 1, %s6
  %s9 = scalar_select 0, %s8, %s6
  // Predicated region
  $region2: #{_lambda_.5} parent=0 // pred_check
    _
  $region3: #{_lambda_.5} parent=0 // pred_check_branch
    %11 = sbr.rel (0) target = $region5
  $region4: #{_lambda_.5} parent=0 // pred_region
    _
  $region5: #{_lambda_.5} parent=0 // pred_fallthru
    _
  // Predicated region
  $region6: #{_lambda_.5} parent=0 // pred_check
    _
  $region7: #{_lambda_.5} parent=0 // pred_check_branch
    %13 = sbr.rel (0) target = $region9
  $region8: #{_lambda_.5} parent=0 // pred_region
    _
  $region9: #{_lambda_.5} parent=0 // pred_fallthru
    _
  // Predicated region
  $region10: #{_lambda_.5} parent=0 // pred_check
    _
  $region11: #{_lambda_.5} parent=0 // pred_check_branch
    %15 = sbr.rel (0) target = $region13
  $region12: #{_lambda_.5} parent=0 // pred_region
    _
  $region13: #{_lambda_.5} parent=0 // pred_fallthru
    _
  // Predicated region
  $region14: #{_lambda_.5} parent=0 // pred_check
    _
  $region15: #{_lambda_.5} parent=0 // pred_check_branch
    %17 = sbr.rel (0) target = $region17
  $region16: #{_lambda_.5} parent=0 // pred_region
    _
  $region17: #{_lambda_.5} parent=0 // pred_fallthru
    _
  // Predicated region
  $region18: #{_lambda_.5} parent=0 // pred_check
    _
  $region19: #{_lambda_.5} parent=0 // pred_check_branch
    %19 = sbr.rel (0) target = $region21
  $region20: #{_lambda_.5} parent=0 // pred_region
    _
  $region21: #{_lambda_.5} parent=0 // pred_fallthru
    _
  %p21 = scmp.eq.s32.totalorder 0, 0
  // Predicated region
  $region22: #{_lambda_.5} parent=0 // pred_check
    %p22 = pneg %p21
  $region23: #{_lambda_.5} parent=0 // pred_check_branch
    %24 = sbr.rel (%p22) target = $region25
  $region24: #{_lambda_.5} parent=0 // pred_region
    %25 = vst [vmem:[#allocation2] sm:$0xff] 0.0
    %26 = vst [vmem:[#allocation2 + $0x8] sm:$0xff] 0.0
    %27 = vst [vmem:[#allocation2 + $0x10] sm:$0xff] 0.0
    %28 = vst [vmem:[#allocation2 + $0x18] sm:$0xff] 0.0
  $region25: #{_lambda_.5} parent=0 // pred_fallthru
    _
  %v29 = vld [vmem:[%s0] sm:$0xf]
  %v30 = vld [vmem:[%s0 + $0x4] sm:$0xf]
  %v31 = vld [vmem:[%s0 + $0x8] sm:$0xf]
  %v32 = vld [vmem:[%s0 + $0xc] sm:$0xf]
  %v33 = vld [vmem:[%s1] sm:$0xff]
  %v34 = vld [vmem:[%s1 + $0x8] sm:$0xf]
  %v35 = vld [vmem:[%s1 + $0xc] sm:$0xff]
  %v36 = vld [vmem:[%s1 + $0x14] sm:$0xf]
  %v37 = vld [vmem:[%s1 + $0x18] sm:$0xff]
  %v38 = vld [vmem:[%s1 + $0x20] sm:$0xf]
  %v39 = vld [vmem:[%s1 + $0x24] sm:$0xff]
  %v40 = vld [vmem:[%s1 + $0x2c] sm:$0xf]
  %v41 = vld [vmem:[%s3] sm:$0x7]
  %v43 = vlaneseq
  %v44 = vshrl.u32 %v43, 7
  %v45 = vsub.s32 0, %v44
  %v46 = vrot.slane %v41, %v45
  %v47 = vlaneseq
  %v48 = vshrl.u32 %v47, 7
  %v49 = vsub.s32 1, %v48
  %v50 = vrot.slane %v41, %v49
  %v51 = vlaneseq
  %v52 = vshrl.u32 %v51, 7
  %v53 = vsub.s32 2, %v52
  %v54 = vrot.slane %v41, %v53
  %v62 = vunpack.c.l.b16 %v29
  %v63 = vunpack.c.l.b16 %v30
  %v64 = vunpack.c.l.b16 %v31
  %v65 = vunpack.c.l.b16 %v32
  %v66 = vpack.c.b16 %v63, %v62
  %v67 = vpack.c.b16 %v65, %v64
  %v76 = vunpack.c.l.b16 %v33
  %v77 = vunpack.c.h.b16 %v33
  %v78 = vunpack.c.l.b16 %v34
  %v79 = vunpack.c.l.b16 %v35
  %v80 = vunpack.c.h.b16 %v35
  %v81 = vunpack.c.l.b16 %v36
  %v82 = vunpack.c.l.b16 %v37
  %v83 = vunpack.c.h.b16 %v37
  %v84 = vunpack.c.l.b16 %v38
  %v85 = vunpack.c.l.b16 %v39
  %v86 = vunpack.c.h.b16 %v39
  %v87 = vunpack.c.l.b16 %v40
  %v88 = vpack.c.b16 %v79, %v76
  %v89 = vpack.c.b16 %v80, %v77
  %v90 = vpack.c.b16 %v81, %v78
  %v91 = vpack.c.b16 %v85, %v82
  %v92 = vpack.c.b16 %v86, %v83
  %v93 = vpack.c.b16 %v87, %v84
  %vm100 = vcmask 261120
  %v102 = vsel %vm100, %v66, 0
  %v105 = vsel %vm100, %v67, 0
  %107 = vmatprep.subr.bf16.mxu0 %v89
  %108 = vmatpush1.bf16.msra.mxu0 %v88
  %109 = vmatprep.subr.bf16.mxu0 %v92
  %110 = vmatpush1.bf16.msra.mxu0 %v91
  %111 = vmatprep.subr.bf16.mxu0 0
  %112 = vmatpush1.bf16.msra.mxu0 0
  %113 = vmatprep.subr.bf16.mxu0 0
  %114 = vmatpush1.bf16.msra.mxu0 0
  %115 = vmatprep.subr.bf16.mxu0 0
  %116 = vmatpush1.bf16.msra.mxu0 0
  %117 = vmatprep.subr.bf16.mxu0 0
  %118 = vmatpush1.bf16.msra.mxu0 0
  %119 = vmatprep.subr.bf16.mxu0 0
  %120 = vmatpush1.bf16.msra.mxu0 0
  %121 = vmatprep.subr.bf16.mxu0 0
  %122 = vmatpush1.bf16.msra.mxu0 0
  %123 = vmatprep.subr.bf16.mxu0 0
  %124 = vmatpush1.bf16.msra.mxu0 0
  %125 = vmatprep.subr.bf16.mxu0 0
  %126 = vmatpush1.bf16.msra.mxu0 0
  %127 = vmatprep.subr.bf16.mxu0 0
  %128 = vmatpush1.bf16.msra.mxu0 0
  %129 = vmatprep.subr.bf16.mxu0 0
  %130 = vmatpush1.bf16.msra.mxu0 0
  %131 = vmatprep.subr.bf16.mxu0 0
  %132 = vmatpush1.bf16.msra.mxu0 0
  %133 = vmatprep.subr.bf16.mxu0 0
  %134 = vmatpush1.bf16.msra.mxu0 0
  %135 = vmatprep.subr.bf16.mxu0 0
  %136 = vmatpush1.bf16.msra.mxu0 0
  %137 = vmatprep.subr.bf16.mxu0 0
  %138 = vmatpush1.bf16.msra.mxu0 0
  %139 = vmatprep.mubr.bf16.mxu0 0
  %140 = vmatmul.mubr.bf16.gmra.mrb[0].mxu0 %v102
  %v141 = vpop.f32.mrb[0].mxu0
  %v142 = vadd.f32 %v46, %v141
  %v143 = vpop.f32.mrb[0].mxu0
  %v144 = vadd.f32 %v50, %v143
  %v145 = vpop.f32.mrb[0].mxu0
  %v146 = vadd.f32 %v46, %v145
  %v147 = vpop.f32.mrb[0].mxu0
  %v148 = vadd.f32 %v50, %v147
  %149 = vmatprep.mubr.bf16.mxu0 0
  %150 = vmatmul.mubr.bf16.gmra.mrb[0].mxu0 %v105
  %v151 = vpop.f32.mrb[0].mxu0
  %v152 = vadd.f32 %v46, %v151
  %v153 = vpop.f32.mrb[0].mxu0
  %v154 = vadd.f32 %v50, %v153
  %v155 = vpop.f32.mrb[0].mxu0
  %v156 = vadd.f32 %v46, %v155
  %v157 = vpop.f32.mrb[0].mxu0
  %v158 = vadd.f32 %v50, %v157
  %159 = vdwg.mxu0
  %160 = vmatprep.subr.bf16.mxu0 0
  %161 = vmatpush1.bf16.msra.mxu0 %v90
  %162 = vmatprep.subr.bf16.mxu0 0
  %163 = vmatpush1.bf16.msra.mxu0 %v93
  %164 = vmatprep.subr.bf16.mxu0 0
  %165 = vmatpush1.bf16.msra.mxu0 0
  %166 = vmatprep.subr.bf16.mxu0 0
  %167 = vmatpush1.bf16.msra.mxu0 0
  %168 = vmatprep.subr.bf16.mxu0 0
  %169 = vmatpush1.bf16.msra.mxu0 0
  %170 = vmatprep.subr.bf16.mxu0 0
  %171 = vmatpush1.bf16.msra.mxu0 0
  %172 = vmatprep.subr.bf16.mxu0 0
  %173 = vmatpush1.bf16.msra.mxu0 0
  %174 = vmatprep.subr.bf16.mxu0 0
  %175 = vmatpush1.bf16.msra.mxu0 0
  %176 = vmatprep.subr.bf16.mxu0 0
  %177 = vmatpush1.bf16.msra.mxu0 0
  %178 = vmatprep.subr.bf16.mxu0 0
  %179 = vmatpush1.bf16.msra.mxu0 0
  %180 = vmatprep.subr.bf16.mxu0 0
  %181 = vmatpush1.bf16.msra.mxu0 0
  %182 = vmatprep.subr.bf16.mxu0 0
  %183 = vmatpush1.bf16.msra.mxu0 0
  %184 = vmatprep.subr.bf16.mxu0 0
  %185 = vmatpush1.bf16.msra.mxu0 0
  %186 = vmatprep.subr.bf16.mxu0 0
  %187 = vmatpush1.bf16.msra.mxu0 0
  %188 = vmatprep.subr.bf16.mxu0 0
  %189 = vmatpush1.bf16.msra.mxu0 0
  %190 = vmatprep.subr.bf16.mxu0 0
  %191 = vmatpush1.bf16.msra.mxu0 0
  %192 = vmatprep.mubr.bf16.mxu0 0
  %193 = vmatmul.mubr.bf16.gmra.mrb[0].mxu0 %v102
  %v194 = vpop.f32.mrb[0].mxu0
  %v195 = vadd.f32 %v54, %v194
  %v196 = vpop.f32.mrb[0].mxu0
  %v197 = vpop.f32.mrb[0].mxu0
  %v198 = vadd.f32 %v54, %v197
  %v199 = vpop.f32.mrb[0].mxu0
  %200 = vmatprep.mubr.bf16.mxu0 0
  %201 = vmatmul.mubr.bf16.gmra.mrb[0].mxu0 %v105
  %v202 = vpop.f32.mrb[0].mxu0
  %v203 = vadd.f32 %v54, %v202
  %v204 = vpop.f32.mrb[0].mxu0
  %v205 = vpop.f32.mrb[0].mxu0
  %v206 = vadd.f32 %v54, %v205
  %v207 = vpop.f32.mrb[0].mxu0
  %208 = vdwg.mxu0
  %209 = vst [vmem:[#allocation3] sm:$0xff] %v142
  %210 = vst [vmem:[#allocation3 + $0x8] sm:$0xff] %v144
  %211 = vst [vmem:[#allocation3 + $0x10] sm:$0xff] %v195
  %212 = vst [vmem:[#allocation3 + $0x18] sm:$0xff] %v146
  %213 = vst [vmem:[#allocation3 + $0x20] sm:$0xff] %v148
  %214 = vst [vmem:[#allocation3 + $0x28] sm:$0xff] %v198
  %215 = vst [vmem:[#allocation3 + $0x30] sm:$0xff] %v152
  %216 = vst [vmem:[#allocation3 + $0x38] sm:$0xff] %v154
  %217 = vst [vmem:[#allocation3 + $0x40] sm:$0xff] %v203
  %218 = vst [vmem:[#allocation3 + $0x48] sm:$0xff] %v156
  %219 = vst [vmem:[#allocation3 + $0x50] sm:$0xff] %v158
  %220 = vst [vmem:[#allocation3 + $0x58] sm:$0xff] %v206
  %v221 = vld [vmem:[%s2] sm:$0xff]
  %v222 = vld [vmem:[%s2 + $0x8] sm:$0xf]
  %v223 = vld [vmem:[%s2 + $0xc] sm:$0xff]
  %v224 = vld [vmem:[%s2 + $0x14] sm:$0xf]
  %v225 = vld [vmem:[%s2 + $0x18] sm:$0xff]
  %v226 = vld [vmem:[%s2 + $0x20] sm:$0xf]
  %v227 = vld [vmem:[%s2 + $0x24] sm:$0xff]
  %v228 = vld [vmem:[%s2 + $0x2c] sm:$0xf]
  %v229 = vld [vmem:[%s2 + $0x30] sm:$0xff]
  %v230 = vld [vmem:[%s2 + $0x38] sm:$0xf]
  %v231 = vld [vmem:[%s2 + $0x3c] sm:$0xff]
  %v232 = vld [vmem:[%s2 + $0x44] sm:$0xf]
  %v233 = vld [vmem:[%s2 + $0x48] sm:$0xff]
  %v234 = vld [vmem:[%s2 + $0x50] sm:$0xf]
  %v235 = vld [vmem:[%s2 + $0x54] sm:$0xff]
  %v236 = vld [vmem:[%s2 + $0x5c] sm:$0xf]
  %v237 = vld [vmem:[%s2 + $0x60] sm:$0xff]
  %v238 = vld [vmem:[%s2 + $0x68] sm:$0xf]
  %v239 = vld [vmem:[%s2 + $0x6c] sm:$0xff]
  %v240 = vld [vmem:[%s2 + $0x74] sm:$0xf]
  %v241 = vld [vmem:[%s2 + $0x78] sm:$0xff]
  %v242 = vld [vmem:[%s2 + $0x80] sm:$0xf]
  %v243 = vld [vmem:[%s2 + $0x84] sm:$0xff]
  %v244 = vld [vmem:[%s2 + $0x8c] sm:$0xf]
  %v245 = vld [vmem:[%s2 + $0x90] sm:$0xff]
  %v246 = vld [vmem:[%s2 + $0x98] sm:$0xf]
  %v247 = vld [vmem:[%s2 + $0x9c] sm:$0xff]
  %v248 = vld [vmem:[%s2 + $0xa4] sm:$0xf]
  %v249 = vld [vmem:[%s2 + $0xa8] sm:$0xff]
  %v250 = vld [vmem:[%s2 + $0xb0] sm:$0xf]
  %v251 = vld [vmem:[%s2 + $0xb4] sm:$0xff]
  %v252 = vld [vmem:[%s2 + $0xbc] sm:$0xf]
  %v253 = vld [vmem:[%s4] sm:$0x1]
  %v254 = vld [vmem:[#allocation2] sm:$0xff]
  %v255 = vld [vmem:[#allocation2 + $0x8] sm:$0xff]
  %v256 = vld [vmem:[#allocation2 + $0x10] sm:$0xff]
  %v257 = vld [vmem:[#allocation2 + $0x18] sm:$0xff]
  %s258 = smul.u32 0, 3
  %s259 = smul.addr %s258, 8
  %s260 = scalar_lea.vmem [#allocation3], %s259
  %v261 = vld [vmem:[%s260] sm:$0xff]
  %v262 = vld [vmem:[%s260 + $0x8] sm:$0xff]
  %v263 = vld [vmem:[%s260 + $0x10] sm:$0xff]
  %v264 = vld [vmem:[%s260 + $0x18] sm:$0xff]
  %v265 = vld [vmem:[%s260 + $0x20] sm:$0xff]
  %v266 = vld [vmem:[%s260 + $0x28] sm:$0xff]
  %v267 = vld [vmem:[%s260 + $0x30] sm:$0xff]
  %v268 = vld [vmem:[%s260 + $0x38] sm:$0xff]
  %v269 = vld [vmem:[%s260 + $0x40] sm:$0xff]
  %v270 = vld [vmem:[%s260 + $0x48] sm:$0xff]
  %v271 = vld [vmem:[%s260 + $0x50] sm:$0xff]
  %v272 = vld [vmem:[%s260 + $0x58] sm:$0xff]
  %v273 = vpack.c.bf16 %v255, %v254
  %v274 = vpack.c.bf16 %v257, %v256
  %v307 = vunpack.c.l.b16 %v221
  %v308 = vunpack.c.h.b16 %v221
  %v309 = vunpack.c.l.b16 %v222
  %v310 = vunpack.c.l.b16 %v223
  %v311 = vunpack.c.h.b16 %v223
  %v312 = vunpack.c.l.b16 %v224
  %v313 = vunpack.c.l.b16 %v225
  %v314 = vunpack.c.h.b16 %v225
  %v315 = vunpack.c.l.b16 %v226
  %v316 = vunpack.c.l.b16 %v227
  %v317 = vunpack.c.h.b16 %v227
  %v318 = vunpack.c.l.b16 %v228
  %v319 = vunpack.c.l.b16 %v229
  %v320 = vunpack.c.h.b16 %v229
  %v321 = vunpack.c.l.b16 %v230
  %v322 = vunpack.c.l.b16 %v231
  %v323 = vunpack.c.h.b16 %v231
  %v324 = vunpack.c.l.b16 %v232
  %v325 = vunpack.c.l.b16 %v233
  %v326 = vunpack.c.h.b16 %v233
  %v327 = vunpack.c.l.b16 %v234
  %v328 = vunpack.c.l.b16 %v235
  %v329 = vunpack.c.h.b16 %v235
  %v330 = vunpack.c.l.b16 %v236
  %v331 = vunpack.c.l.b16 %v237
  %v332 = vunpack.c.h.b16 %v237
  %v333 = vunpack.c.l.b16 %v238
  %v334 = vunpack.c.l.b16 %v239
  %v335 = vunpack.c.h.b16 %v239
  %v336 = vunpack.c.l.b16 %v240
  %v337 = vunpack.c.l.b16 %v241
  %v338 = vunpack.c.h.b16 %v241
  %v339 = vunpack.c.l.b16 %v242
  %v340 = vunpack.c.l.b16 %v243
  %v341 = vunpack.c.h.b16 %v243
  %v342 = vunpack.c.l.b16 %v244
  %v343 = vunpack.c.l.b16 %v245
  %v344 = vunpack.c.h.b16 %v245
  %v345 = vunpack.c.l.b16 %v246
  %v346 = vunpack.c.l.b16 %v247
  %v347 = vunpack.c.h.b16 %v247
  %v348 = vunpack.c.l.b16 %v248
  %v349 = vunpack.c.l.b16 %v249
  %v350 = vunpack.c.h.b16 %v249
  %v351 = vunpack.c.l.b16 %v250
  %v352 = vunpack.c.l.b16 %v251
  %v353 = vunpack.c.h.b16 %v251
  %v354 = vunpack.c.l.b16 %v252
  %v355 = vpack.c.b16 %v310, %v307
  %v356 = vpack.c.b16 %v311, %v308
  %v357 = vpack.c.b16 %v312, %v309
  %v358 = vpack.c.b16 %v316, %v313
  %v359 = vpack.c.b16 %v317, %v314
  %v360 = vpack.c.b16 %v318, %v315
  %v361 = vpack.c.b16 %v322, %v319
  %v362 = vpack.c.b16 %v323, %v320
  %v363 = vpack.c.b16 %v324, %v321
  %v364 = vpack.c.b16 %v328, %v325
  %v365 = vpack.c.b16 %v329, %v326
  %v366 = vpack.c.b16 %v330, %v327
  %v367 = vpack.c.b16 %v334, %v331
  %v368 = vpack.c.b16 %v335, %v332
  %v369 = vpack.c.b16 %v336, %v333
  %v370 = vpack.c.b16 %v340, %v337
  %v371 = vpack.c.b16 %v341, %v338
  %v372 = vpack.c.b16 %v342, %v339
  %v373 = vpack.c.b16 %v346, %v343
  %v374 = vpack.c.b16 %v347, %v344
  %v375 = vpack.c.b16 %v348, %v345
  %v376 = vpack.c.b16 %v352, %v349
  %v377 = vpack.c.b16 %v353, %v350
  %v378 = vpack.c.b16 %v354, %v351
  %403 = vmatprep.subr.bf16.mxu0 %v356
  %404 = vmatpush1.bf16.msra.mxu0 %v355
  %405 = vmatprep.subr.bf16.mxu0 %v359
  %406 = vmatpush1.bf16.msra.mxu0 %v358
  %407 = vmatprep.subr.bf16.mxu0 %v362
  %408 = vmatpush1.bf16.msra.mxu0 %v361
  %409 = vmatprep.subr.bf16.mxu0 %v365
  %410 = vmatpush1.bf16.msra.mxu0 %v364
  %411 = vmatprep.subr.bf16.mxu0 %v368
  %412 = vmatpush1.bf16.msra.mxu0 %v367
  %413 = vmatprep.subr.bf16.mxu0 %v371
  %414 = vmatpush1.bf16.msra.mxu0 %v370
  %415 = vmatprep.subr.bf16.mxu0 %v374
  %416 = vmatpush1.bf16.msra.mxu0 %v373
  %417 = vmatprep.subr.bf16.mxu0 %v377
  %418 = vmatpush1.bf16.msra.mxu0 %v376
  %419 = vmatprep.subr.bf16.mxu0 0
  %420 = vmatpush1.bf16.msra.mxu0 0
  %421 = vmatprep.subr.bf16.mxu0 0
  %422 = vmatpush1.bf16.msra.mxu0 0
  %423 = vmatprep.subr.bf16.mxu0 0
  %424 = vmatpush1.bf16.msra.mxu0 0
  %425 = vmatprep.subr.bf16.mxu0 0
  %426 = vmatpush1.bf16.msra.mxu0 0
  %427 = vmatprep.subr.bf16.mxu0 0
  %428 = vmatpush1.bf16.msra.mxu0 0
  %429 = vmatprep.subr.bf16.mxu0 0
  %430 = vmatpush1.bf16.msra.mxu0 0
  %431 = vmatprep.subr.bf16.mxu0 0
  %432 = vmatpush1.bf16.msra.mxu0 0
  %433 = vmatprep.subr.bf16.mxu0 0
  %434 = vmatpush1.bf16.msra.mxu0 0
  %435 = vmatprep.mubr.bf16.mxu0 0
  %436 = vmatmul.mubr.bf16.gmra.mrb[0].mxu0 %v273
  %v437 = vpop.f32.mrb[0].mxu0
  %v438 = vadd.f32 0.0, %v437
  %v439 = vpop.f32.mrb[0].mxu0
  %v440 = vadd.f32 0.0, %v439
  %v441 = vpop.f32.mrb[0].mxu0
  %v442 = vadd.f32 0.0, %v441
  %v443 = vpop.f32.mrb[0].mxu0
  %v444 = vadd.f32 0.0, %v443
  %445 = vmatprep.mubr.bf16.mxu0 0
  %446 = vmatmul.mubr.bf16.gmra.mrb[0].mxu0 %v274
  %v447 = vpop.f32.mrb[0].mxu0
  %v448 = vadd.f32 0.0, %v447
  %v449 = vpop.f32.mrb[0].mxu0
  %v450 = vadd.f32 0.0, %v449
  %v451 = vpop.f32.mrb[0].mxu0
  %v452 = vadd.f32 0.0, %v451
  %v453 = vpop.f32.mrb[0].mxu0
  %v454 = vadd.f32 0.0, %v453
  %455 = vdwg.mxu0
  %456 = vmatprep.subr.bf16.mxu0 0
  %457 = vmatpush1.bf16.msra.mxu0 %v357
  %458 = vmatprep.subr.bf16.mxu0 0
  %459 = vmatpush1.bf16.msra.mxu0 %v360
  %460 = vmatprep.subr.bf16.mxu0 0
  %461 = vmatpush1.bf16.msra.mxu0 %v363
  %462 = vmatprep.subr.bf16.mxu0 0
  %463 = vmatpush1.bf16.msra.mxu0 %v366
  %464 = vmatprep.subr.bf16.mxu0 0
  %465 = vmatpush1.bf16.msra.mxu0 %v369
  %466 = vmatprep.subr.bf16.mxu0 0
  %467 = vmatpush1.bf16.msra.mxu0 %v372
  %468 = vmatprep.subr.bf16.mxu0 0
  %469 = vmatpush1.bf16.msra.mxu0 %v375
  %470 = vmatprep.subr.bf16.mxu0 0
  %471 = vmatpush1.bf16.msra.mxu0 %v378
  %472 = vmatprep.subr.bf16.mxu0 0
  %473 = vmatpush1.bf16.msra.mxu0 0
  %474 = vmatprep.subr.bf16.mxu0 0
  %475 = vmatpush1.bf16.msra.mxu0 0
  %476 = vmatprep.subr.bf16.mxu0 0
  %477 = vmatpush1.bf16.msra.mxu0 0
  %478 = vmatprep.subr.bf16.mxu0 0
  %479 = vmatpush1.bf16.msra.mxu0 0
  %480 = vmatprep.subr.bf16.mxu0 0
  %481 = vmatpush1.bf16.msra.mxu0 0
  %482 = vmatprep.subr.bf16.mxu0 0
  %483 = vmatpush1.bf16.msra.mxu0 0
  %484 = vmatprep.subr.bf16.mxu0 0
  %485 = vmatpush1.bf16.msra.mxu0 0
  %486 = vmatprep.subr.bf16.mxu0 0
  %487 = vmatpush1.bf16.msra.mxu0 0
  %488 = vmatprep.mubr.bf16.mxu0 0
  %489 = vmatmul.mubr.bf16.gmra.mrb[0].mxu0 %v273
  %v490 = vpop.f32.mrb[0].mxu0
  %v491 = vadd.f32 0.0, %v490
  %v492 = vpop.f32.mrb[0].mxu0
  %v493 = vpop.f32.mrb[0].mxu0
  %v494 = vadd.f32 0.0, %v493
  %v495 = vpop.f32.mrb[0].mxu0
  %496 = vmatprep.mubr.bf16.mxu0 0
  %497 = vmatmul.mubr.bf16.gmra.mrb[0].mxu0 %v274
  %v498 = vpop.f32.mrb[0].mxu0
  %v499 = vadd.f32 0.0, %v498
  %v500 = vpop.f32.mrb[0].mxu0
  %v501 = vpop.f32.mrb[0].mxu0
  %v502 = vadd.f32 0.0, %v501
  %v503 = vpop.f32.mrb[0].mxu0
  %504 = vdwg.mxu0
  %v505 = vadd.f32 %v261, %v438
  %v506 = vadd.f32 %v264, %v442
  %v507 = vadd.f32 %v267, %v448
  %v508 = vadd.f32 %v270, %v452
  %v509 = vxor.u32 %v505, 2147483648
  %v510 = vxor.u32 %v506, 2147483648
  %v511 = vxor.u32 %v507, 2147483648
  %v512 = vxor.u32 %v508, 2147483648
  %v513 = vmul.f32 %v509, 1.442695
  %v514 = vpow.pop %v513
  %v515 = vmul.f32 %v510, 1.442695
  %v516 = vpow.pop %v515
  %v517 = vmul.f32 %v511, 1.442695
  %v518 = vpow.pop %v517
  %v519 = vmul.f32 %v512, 1.442695
  %v520 = vpow.pop %v519
  %v521 = vadd.f32 %v514, 1.0
  %v522 = vadd.f32 %v516, 1.0
  %v523 = vadd.f32 %v518, 1.0
  %v524 = vadd.f32 %v520, 1.0
  %v525 = vrcp.pop %v521
  %v526 = vmul.f32 1.0, %v525
  %v527 = vrcp.pop %v522
  %v528 = vmul.f32 1.0, %v527
  %v529 = vrcp.pop %v523
  %v530 = vmul.f32 1.0, %v529
  %v531 = vrcp.pop %v524
  %v532 = vmul.f32 1.0, %v531
  %v533 = vadd.f32 %v262, %v440
  %v534 = vadd.f32 %v265, %v444
  %v535 = vadd.f32 %v268, %v450
  %v536 = vadd.f32 %v271, %v454
  %v537 = vxor.u32 %v533, 2147483648
  %v538 = vxor.u32 %v534, 2147483648
  %v539 = vxor.u32 %v535, 2147483648
  %v540 = vxor.u32 %v536, 2147483648
  %v541 = vmul.f32 %v537, 1.442695
  %v542 = vpow.pop %v541
  %v543 = vmul.f32 %v538, 1.442695
  %v544 = vpow.pop %v543
  %v545 = vmul.f32 %v539, 1.442695
  %v546 = vpow.pop %v545
  %v547 = vmul.f32 %v540, 1.442695
  %v548 = vpow.pop %v547
  %v549 = vadd.f32 %v542, 1.0
  %v550 = vadd.f32 %v544, 1.0
  %v551 = vadd.f32 %v546, 1.0
  %v552 = vadd.f32 %v548, 1.0
  %v553 = vrcp.pop %v549
  %v554 = vmul.f32 1.0, %v553
  %v555 = vrcp.pop %v550
  %v556 = vmul.f32 1.0, %v555
  %v557 = vrcp.pop %v551
  %v558 = vmul.f32 1.0, %v557
  %v559 = vrcp.pop %v552
  %v560 = vmul.f32 1.0, %v559
  %v562 = vlaneseq
  %v563 = vshrl.u32 %v562, 7
  %v564 = vsub.s32 0, %v563
  %v565 = vrot.slane %v253, %v564
  %v567 = vadd.f32 %v491, %v565
  %v568 = vadd.f32 %v494, %v565
  %v569 = vadd.f32 %v499, %v565
  %v570 = vadd.f32 %v502, %v565
  %v571 = vmul.f32 %v526, %v567
  %v572 = vmul.f32 %v528, %v568
  %v573 = vmul.f32 %v530, %v569
  %v574 = vmul.f32 %v532, %v570
  %v575 = vadd.f32 %v263, %v571
  %v576 = vadd.f32 %v266, %v572
  %v577 = vadd.f32 %v269, %v573
  %v578 = vadd.f32 %v272, %v574
  %v579 = vtanh.pop %v575
  %v580 = vtanh.pop %v576
  %v581 = vtanh.pop %v577
  %v582 = vtanh.pop %v578
  %v583 = vsub.f32 1.0, %v554
  %v584 = vsub.f32 1.0, %v556
  %v585 = vsub.f32 1.0, %v558
  %v586 = vsub.f32 1.0, %v560
  %v587 = vmul.f32 %v583, %v579
  %v588 = vmul.f32 %v584, %v580
  %v589 = vmul.f32 %v585, %v581
  %v590 = vmul.f32 %v586, %v582
  %v591 = vmul.f32 %v554, %v254
  %v592 = vmul.f32 %v556, %v255
  %v593 = vmul.f32 %v558, %v256
  %v594 = vmul.f32 %v560, %v257
  %v595 = vadd.f32 %v587, %v591
  %v596 = vadd.f32 %v588, %v592
  %v597 = vadd.f32 %v589, %v593
  %v598 = vadd.f32 %v590, %v594
  %v599 = vpack.c.bf16 %v596, %v595
  %v600 = vpack.c.bf16 %v598, %v597
  %v603 = vunpack.c.l.b16 %v599
  %v604 = vunpack.c.h.b16 %v599
  %v605 = vunpack.c.l.b16 %v600
  %v606 = vunpack.c.h.b16 %v600
  %v607 = vpack.c.b16 %v603, %v603
  %v608 = vpack.c.b16 %v604, %v604
  %v609 = vpack.c.b16 %v605, %v605
  %v610 = vpack.c.b16 %v606, %v606
  %615 = vst [vmem:[%s5] sm:$0xf] %v607
  %616 = vst [vmem:[%s5 + $0x4] sm:$0xf] %v608
  %617 = vst [vmem:[%s5 + $0x8] sm:$0xf] %v609
  %618 = vst [vmem:[%s5 + $0xc] sm:$0xf] %v610
  %619 = vst [vmem:[#allocation2] sm:$0xff] %v595
  %620 = vst [vmem:[#allocation2 + $0x8] sm:$0xff] %v596
  %621 = vst [vmem:[#allocation2 + $0x10] sm:$0xff] %v597
  %622 = vst [vmem:[#allocation2 + $0x18] sm:$0xff] %v598
  // Predicated region
  $region26: #{_lambda_.5} parent=0 // pred_check
    _
  $region27: #{_lambda_.5} parent=0 // pred_check_branch
    %624 = sbr.rel (0) target = $region29
  $region28: #{_lambda_.5} parent=0 // pred_region
    _
  $region29: #{_lambda_.5} parent=0 // pred_fallthru
    _
  // Predicated region
  $region30: #{_lambda_.5} parent=0 // pred_check
    _
  $region31: #{_lambda_.5} parent=0 // pred_check_branch
    %626 = sbr.rel (0) target = $region33
  $region32: #{_lambda_.5} parent=0 // pred_region
    _
  $region33: #{_lambda_.5} parent=0 // pred_fallthru
    _

// kernel: _lambda_.4
$region0: #{_lambda_.4}
  #allocation0 [shape = 'u32[]', space=smem, size = 0x4, offset = 0x4, fixed_abs, tag = 'smem constant byte address 0x4 - core index']
  #allocation1 [shape = 'u32[144,128]{1,0:T(1,128)}', space=vmem, size = 0x12000, scoped, tag = 'internal scratch']
  #allocation2 [shape = 'f32[16,128]{1,0:T(8,128)}', space=vmem, size = 0x2000, scoped, tag = 'scratch operand']
  #allocation3 [shape = 'f32[32,384]{1,0:T(8,128)}', space=vmem, size = 0xc000, scoped, tag = 'scratch operand']
  %s0 = inlined_call_operand.vmem [shape: bf16[2,16,32], index: 0, kind: input, shape index: {}]
  %s1 = inlined_call_operand.vmem [shape: bf16[32,384], index: 1, kind: input, shape index: {}]
  %s2 = inlined_call_operand.vmem [shape: bf16[128,384], index: 2, kind: input, shape index: {}]
  %s3 = inlined_call_operand.vmem [shape: f32[1,384], index: 3, kind: input, shape index: {}]
  %s4 = inlined_call_operand.vmem [shape: f32[1,128], index: 4, kind: input, shape index: {}]
  %s5 = inlined_call_operand.vmem [shape: bf16[2,16,128], index: 5, kind: output, shape index: {}]
  %s6 = sld [smem:[#allocation0]]
  $region34: #{_lambda_.4} parent=0
    _
  %s8 = ssub.s32 1, %s6
  %s9 = scalar_select 0, %s8, %s6
  // Predicated region
  $region2: #{_lambda_.4} parent=0 // pred_check
    _
  $region3: #{_lambda_.4} parent=0 // pred_check_branch
    %11 = sbr.rel (0) target = $region5
  $region4: #{_lambda_.4} parent=0 // pred_region
    _
  $region5: #{_lambda_.4} parent=0 // pred_fallthru
    _
  // Predicated region
  $region6: #{_lambda_.4} parent=0 // pred_check
    _
  $region7: #{_lambda_.4} parent=0 // pred_check_branch
    %13 = sbr.rel (0) target = $region9
  $region8: #{_lambda_.4} parent=0 // pred_region
    _
  $region9: #{_lambda_.4} parent=0 // pred_fallthru
    _
  // Predicated region
  $region10: #{_lambda_.4} parent=0 // pred_check
    _
  $region11: #{_lambda_.4} parent=0 // pred_check_branch
    %15 = sbr.rel (0) target = $region13
  $region12: #{_lambda_.4} parent=0 // pred_region
    _
  $region13: #{_lambda_.4} parent=0 // pred_fallthru
    _
  // Predicated region
  $region14: #{_lambda_.4} parent=0 // pred_check
    _
  $region15: #{_lambda_.4} parent=0 // pred_check_branch
    %17 = sbr.rel (0) target = $region17
  $region16: #{_lambda_.4} parent=0 // pred_region
    _
  $region17: #{_lambda_.4} parent=0 // pred_fallthru
    _
  // Predicated region
  $region18: #{_lambda_.4} parent=0 // pred_check
    _
  $region19: #{_lambda_.4} parent=0 // pred_check_branch
    %19 = sbr.rel (0) target = $region21
  $region20: #{_lambda_.4} parent=0 // pred_region
    _
  $region21: #{_lambda_.4} parent=0 // pred_fallthru
    _
  %p21 = scmp.eq.s32.totalorder 0, 0
  // Predicated region
  $region22: #{_lambda_.4} parent=0 // pred_check
    %p22 = pneg %p21
  $region23: #{_lambda_.4} parent=0 // pred_check_branch
    %24 = sbr.rel (%p22) target = $region25
  $region24: #{_lambda_.4} parent=0 // pred_region
    %25 = vst [vmem:[#allocation2] sm:$0xff] 0.0
    %26 = vst [vmem:[#allocation2 + $0x8] sm:$0xff] 0.0
  $region25: #{_lambda_.4} parent=0 // pred_fallthru
    _
  %v27 = vld [vmem:[%s0] sm:$0xf]
  %v28 = vld [vmem:[%s0 + $0x4] sm:$0xf]
  %v29 = vld [vmem:[%s0 + $0x8] sm:$0xf]
  %v30 = vld [vmem:[%s0 + $0xc] sm:$0xf]
  %v31 = vld [vmem:[%s1] sm:$0xff]
  %v32 = vld [vmem:[%s1 + $0x8] sm:$0xf]
  %v33 = vld [vmem:[%s1 + $0xc] sm:$0xff]
  %v34 = vld [vmem:[%s1 + $0x14] sm:$0xf]
  %v35 = vld [vmem:[%s1 + $0x18] sm:$0xff]
  %v36 = vld [vmem:[%s1 + $0x20] sm:$0xf]
  %v37 = vld [vmem:[%s1 + $0x24] sm:$0xff]
  %v38 = vld [vmem:[%s1 + $0x2c] sm:$0xf]
  %v39 = vld [vmem:[%s3] sm:$0x7]
  %v41 = vlaneseq
  %v42 = vshrl.u32 %v41, 7
  %v43 = vsub.s32 0, %v42
  %v44 = vrot.slane %v39, %v43
  %v45 = vlaneseq
  %v46 = vshrl.u32 %v45, 7
  %v47 = vsub.s32 1, %v46
  %v48 = vrot.slane %v39, %v47
  %v49 = vlaneseq
  %v50 = vshrl.u32 %v49, 7
  %v51 = vsub.s32 2, %v50
  %v52 = vrot.slane %v39, %v51
  %v60 = vunpack.c.l.b16 %v27
  %v61 = vunpack.c.l.b16 %v28
  %v62 = vunpack.c.l.b16 %v29
  %v63 = vunpack.c.l.b16 %v30
  %v64 = vpack.c.b16 %v61, %v60
  %v65 = vpack.c.b16 %v63, %v62
  %v74 = vunpack.c.l.b16 %v31
  %v75 = vunpack.c.h.b16 %v31
  %v76 = vunpack.c.l.b16 %v32
  %v77 = vunpack.c.l.b16 %v33
  %v78 = vunpack.c.h.b16 %v33
  %v79 = vunpack.c.l.b16 %v34
  %v80 = vunpack.c.l.b16 %v35
  %v81 = vunpack.c.h.b16 %v35
  %v82 = vunpack.c.l.b16 %v36
  %v83 = vunpack.c.l.b16 %v37
  %v84 = vunpack.c.h.b16 %v37
  %v85 = vunpack.c.l.b16 %v38
  %v86 = vpack.c.b16 %v77, %v74
  %v87 = vpack.c.b16 %v78, %v75
  %v88 = vpack.c.b16 %v79, %v76
  %v89 = vpack.c.b16 %v83, %v80
  %v90 = vpack.c.b16 %v84, %v81
  %v91 = vpack.c.b16 %v85, %v82
  %vm98 = vcmask 261120
  %v100 = vsel %vm98, %v64, 0
  %v103 = vsel %vm98, %v65, 0
  %105 = vmatprep.subr.bf16.mxu0 %v87
  %106 = vmatpush1.bf16.msra.mxu0 %v86
  %107 = vmatprep.subr.bf16.mxu0 %v90
  %108 = vmatpush1.bf16.msra.mxu0 %v89
  %109 = vmatprep.subr.bf16.mxu0 0
  %110 = vmatpush1.bf16.msra.mxu0 0
  %111 = vmatprep.subr.bf16.mxu0 0
  %112 = vmatpush1.bf16.msra.mxu0 0
  %113 = vmatprep.subr.bf16.mxu0 0
  %114 = vmatpush1.bf16.msra.mxu0 0
  %115 = vmatprep.subr.bf16.mxu0 0
  %116 = vmatpush1.bf16.msra.mxu0 0
  %117 = vmatprep.subr.bf16.mxu0 0
  %118 = vmatpush1.bf16.msra.mxu0 0
  %119 = vmatprep.subr.bf16.mxu0 0
  %120 = vmatpush1.bf16.msra.mxu0 0
  %121 = vmatprep.subr.bf16.mxu0 0
  %122 = vmatpush1.bf16.msra.mxu0 0
  %123 = vmatprep.subr.bf16.mxu0 0
  %124 = vmatpush1.bf16.msra.mxu0 0
  %125 = vmatprep.subr.bf16.mxu0 0
  %126 = vmatpush1.bf16.msra.mxu0 0
  %127 = vmatprep.subr.bf16.mxu0 0
  %128 = vmatpush1.bf16.msra.mxu0 0
  %129 = vmatprep.subr.bf16.mxu0 0
  %130 = vmatpush1.bf16.msra.mxu0 0
  %131 = vmatprep.subr.bf16.mxu0 0
  %132 = vmatpush1.bf16.msra.mxu0 0
  %133 = vmatprep.subr.bf16.mxu0 0
  %134 = vmatpush1.bf16.msra.mxu0 0
  %135 = vmatprep.subr.bf16.mxu0 0
  %136 = vmatpush1.bf16.msra.mxu0 0
  %137 = vmatprep.mubr.bf16.mxu0 0
  %138 = vmatmul.mubr.bf16.gmra.mrb[0].mxu0 %v100
  %v139 = vpop.f32.mrb[0].mxu0
  %v140 = vadd.f32 %v44, %v139
  %v141 = vpop.f32.mrb[0].mxu0
  %v142 = vadd.f32 %v48, %v141
  %v143 = vpop.f32.mrb[0].mxu0
  %v144 = vadd.f32 %v44, %v143
  %v145 = vpop.f32.mrb[0].mxu0
  %v146 = vadd.f32 %v48, %v145
  %147 = vmatprep.mubr.bf16.mxu0 0
  %148 = vmatmul.mubr.bf16.gmra.mrb[0].mxu0 %v103
  %v149 = vpop.f32.mrb[0].mxu0
  %v150 = vadd.f32 %v44, %v149
  %v151 = vpop.f32.mrb[0].mxu0
  %v152 = vadd.f32 %v48, %v151
  %v153 = vpop.f32.mrb[0].mxu0
  %v154 = vadd.f32 %v44, %v153
  %v155 = vpop.f32.mrb[0].mxu0
  %v156 = vadd.f32 %v48, %v155
  %157 = vdwg.mxu0
  %158 = vmatprep.subr.bf16.mxu0 0
  %159 = vmatpush1.bf16.msra.mxu0 %v88
  %160 = vmatprep.subr.bf16.mxu0 0
  %161 = vmatpush1.bf16.msra.mxu0 %v91
  %162 = vmatprep.subr.bf16.mxu0 0
  %163 = vmatpush1.bf16.msra.mxu0 0
  %164 = vmatprep.subr.bf16.mxu0 0
  %165 = vmatpush1.bf16.msra.mxu0 0
  %166 = vmatprep.subr.bf16.mxu0 0
  %167 = vmatpush1.bf16.msra.mxu0 0
  %168 = vmatprep.subr.bf16.mxu0 0
  %169 = vmatpush1.bf16.msra.mxu0 0
  %170 = vmatprep.subr.bf16.mxu0 0
  %171 = vmatpush1.bf16.msra.mxu0 0
  %172 = vmatprep.subr.bf16.mxu0 0
  %173 = vmatpush1.bf16.msra.mxu0 0
  %174 = vmatprep.subr.bf16.mxu0 0
  %175 = vmatpush1.bf16.msra.mxu0 0
  %176 = vmatprep.subr.bf16.mxu0 0
  %177 = vmatpush1.bf16.msra.mxu0 0
  %178 = vmatprep.subr.bf16.mxu0 0
  %179 = vmatpush1.bf16.msra.mxu0 0
  %180 = vmatprep.subr.bf16.mxu0 0
  %181 = vmatpush1.bf16.msra.mxu0 0
  %182 = vmatprep.subr.bf16.mxu0 0
  %183 = vmatpush1.bf16.msra.mxu0 0
  %184 = vmatprep.subr.bf16.mxu0 0
  %185 = vmatpush1.bf16.msra.mxu0 0
  %186 = vmatprep.subr.bf16.mxu0 0
  %187 = vmatpush1.bf16.msra.mxu0 0
  %188 = vmatprep.subr.bf16.mxu0 0
  %189 = vmatpush1.bf16.msra.mxu0 0
  %190 = vmatprep.mubr.bf16.mxu0 0
  %191 = vmatmul.mubr.bf16.gmra.mrb[0].mxu0 %v100
  %v192 = vpop.f32.mrb[0].mxu0
  %v193 = vadd.f32 %v52, %v192
  %v194 = vpop.f32.mrb[0].mxu0
  %v195 = vpop.f32.mrb[0].mxu0
  %v196 = vadd.f32 %v52, %v195
  %v197 = vpop.f32.mrb[0].mxu0
  %198 = vmatprep.mubr.bf16.mxu0 0
  %199 = vmatmul.mubr.bf16.gmra.mrb[0].mxu0 %v103
  %v200 = vpop.f32.mrb[0].mxu0
  %v201 = vadd.f32 %v52, %v200
  %v202 = vpop.f32.mrb[0].mxu0
  %v203 = vpop.f32.mrb[0].mxu0
  %v204 = vadd.f32 %v52, %v203
  %v205 = vpop.f32.mrb[0].mxu0
  %206 = vdwg.mxu0
  %207 = vst [vmem:[#allocation3] sm:$0xff] %v140
  %208 = vst [vmem:[#allocation3 + $0x8] sm:$0xff] %v142
  %209 = vst [vmem:[#allocation3 + $0x10] sm:$0xff] %v193
  %210 = vst [vmem:[#allocation3 + $0x18] sm:$0xff] %v144
  %211 = vst [vmem:[#allocation3 + $0x20] sm:$0xff] %v146
  %212 = vst [vmem:[#allocation3 + $0x28] sm:$0xff] %v196
  %213 = vst [vmem:[#allocation3 + $0x30] sm:$0xff] %v150
  %214 = vst [vmem:[#allocation3 + $0x38] sm:$0xff] %v152
  %215 = vst [vmem:[#allocation3 + $0x40] sm:$0xff] %v201
  %216 = vst [vmem:[#allocation3 + $0x48] sm:$0xff] %v154
  %217 = vst [vmem:[#allocation3 + $0x50] sm:$0xff] %v156
  %218 = vst [vmem:[#allocation3 + $0x58] sm:$0xff] %v204
  %v219 = vld [vmem:[%s2] sm:$0xff]
  %v220 = vld [vmem:[%s2 + $0x8] sm:$0xf]
  %v221 = vld [vmem:[%s2 + $0xc] sm:$0xff]
  %v222 = vld [vmem:[%s2 + $0x14] sm:$0xf]
  %v223 = vld [vmem:[%s2 + $0x18] sm:$0xff]
  %v224 = vld [vmem:[%s2 + $0x20] sm:$0xf]
  %v225 = vld [vmem:[%s2 + $0x24] sm:$0xff]
  %v226 = vld [vmem:[%s2 + $0x2c] sm:$0xf]
  %v227 = vld [vmem:[%s2 + $0x30] sm:$0xff]
  %v228 = vld [vmem:[%s2 + $0x38] sm:$0xf]
  %v229 = vld [vmem:[%s2 + $0x3c] sm:$0xff]
  %v230 = vld [vmem:[%s2 + $0x44] sm:$0xf]
  %v231 = vld [vmem:[%s2 + $0x48] sm:$0xff]
  %v232 = vld [vmem:[%s2 + $0x50] sm:$0xf]
  %v233 = vld [vmem:[%s2 + $0x54] sm:$0xff]
  %v234 = vld [vmem:[%s2 + $0x5c] sm:$0xf]
  %v235 = vld [vmem:[%s2 + $0x60] sm:$0xff]
  %v236 = vld [vmem:[%s2 + $0x68] sm:$0xf]
  %v237 = vld [vmem:[%s2 + $0x6c] sm:$0xff]
  %v238 = vld [vmem:[%s2 + $0x74] sm:$0xf]
  %v239 = vld [vmem:[%s2 + $0x78] sm:$0xff]
  %v240 = vld [vmem:[%s2 + $0x80] sm:$0xf]
  %v241 = vld [vmem:[%s2 + $0x84] sm:$0xff]
  %v242 = vld [vmem:[%s2 + $0x8c] sm:$0xf]
  %v243 = vld [vmem:[%s2 + $0x90] sm:$0xff]
  %v244 = vld [vmem:[%s2 + $0x98] sm:$0xf]
  %v245 = vld [vmem:[%s2 + $0x9c] sm:$0xff]
  %v246 = vld [vmem:[%s2 + $0xa4] sm:$0xf]
  %v247 = vld [vmem:[%s2 + $0xa8] sm:$0xff]
  %v248 = vld [vmem:[%s2 + $0xb0] sm:$0xf]
  %v249 = vld [vmem:[%s2 + $0xb4] sm:$0xff]
  %v250 = vld [vmem:[%s2 + $0xbc] sm:$0xf]
  %v251 = vld [vmem:[%s4] sm:$0x1]
  %v252 = vld [vmem:[#allocation2] sm:$0xff]
  %v253 = vld [vmem:[#allocation2 + $0x8] sm:$0xff]
  %s254 = smul.u32 0, 3
  %s255 = smul.addr %s254, 8
  %s256 = scalar_lea.vmem [#allocation3], %s255
  %v257 = vld [vmem:[%s256] sm:$0xff]
  %v258 = vld [vmem:[%s256 + $0x8] sm:$0xff]
  %v259 = vld [vmem:[%s256 + $0x10] sm:$0xff]
  %v260 = vld [vmem:[%s256 + $0x18] sm:$0xff]
  %v261 = vld [vmem:[%s256 + $0x20] sm:$0xff]
  %v262 = vld [vmem:[%s256 + $0x28] sm:$0xff]
  %v263 = vpack.c.bf16 %v253, %v252
  %v296 = vunpack.c.l.b16 %v219
  %v297 = vunpack.c.h.b16 %v219
  %v298 = vunpack.c.l.b16 %v220
  %v299 = vunpack.c.l.b16 %v221
  %v300 = vunpack.c.h.b16 %v221
  %v301 = vunpack.c.l.b16 %v222
  %v302 = vunpack.c.l.b16 %v223
  %v303 = vunpack.c.h.b16 %v223
  %v304 = vunpack.c.l.b16 %v224
  %v305 = vunpack.c.l.b16 %v225
  %v306 = vunpack.c.h.b16 %v225
  %v307 = vunpack.c.l.b16 %v226
  %v308 = vunpack.c.l.b16 %v227
  %v309 = vunpack.c.h.b16 %v227
  %v310 = vunpack.c.l.b16 %v228
  %v311 = vunpack.c.l.b16 %v229
  %v312 = vunpack.c.h.b16 %v229
  %v313 = vunpack.c.l.b16 %v230
  %v314 = vunpack.c.l.b16 %v231
  %v315 = vunpack.c.h.b16 %v231
  %v316 = vunpack.c.l.b16 %v232
  %v317 = vunpack.c.l.b16 %v233
  %v318 = vunpack.c.h.b16 %v233
  %v319 = vunpack.c.l.b16 %v234
  %v320 = vunpack.c.l.b16 %v235
  %v321 = vunpack.c.h.b16 %v235
  %v322 = vunpack.c.l.b16 %v236
  %v323 = vunpack.c.l.b16 %v237
  %v324 = vunpack.c.h.b16 %v237
  %v325 = vunpack.c.l.b16 %v238
  %v326 = vunpack.c.l.b16 %v239
  %v327 = vunpack.c.h.b16 %v239
  %v328 = vunpack.c.l.b16 %v240
  %v329 = vunpack.c.l.b16 %v241
  %v330 = vunpack.c.h.b16 %v241
  %v331 = vunpack.c.l.b16 %v242
  %v332 = vunpack.c.l.b16 %v243
  %v333 = vunpack.c.h.b16 %v243
  %v334 = vunpack.c.l.b16 %v244
  %v335 = vunpack.c.l.b16 %v245
  %v336 = vunpack.c.h.b16 %v245
  %v337 = vunpack.c.l.b16 %v246
  %v338 = vunpack.c.l.b16 %v247
  %v339 = vunpack.c.h.b16 %v247
  %v340 = vunpack.c.l.b16 %v248
  %v341 = vunpack.c.l.b16 %v249
  %v342 = vunpack.c.h.b16 %v249
  %v343 = vunpack.c.l.b16 %v250
  %v344 = vpack.c.b16 %v299, %v296
  %v345 = vpack.c.b16 %v300, %v297
  %v346 = vpack.c.b16 %v301, %v298
  %v347 = vpack.c.b16 %v305, %v302
  %v348 = vpack.c.b16 %v306, %v303
  %v349 = vpack.c.b16 %v307, %v304
  %v350 = vpack.c.b16 %v311, %v308
  %v351 = vpack.c.b16 %v312, %v309
  %v352 = vpack.c.b16 %v313, %v310
  %v353 = vpack.c.b16 %v317, %v314
  %v354 = vpack.c.b16 %v318, %v315
  %v355 = vpack.c.b16 %v319, %v316
  %v356 = vpack.c.b16 %v323, %v320
  %v357 = vpack.c.b16 %v324, %v321
  %v358 = vpack.c.b16 %v325, %v322
  %v359 = vpack.c.b16 %v329, %v326
  %v360 = vpack.c.b16 %v330, %v327
  %v361 = vpack.c.b16 %v331, %v328
  %v362 = vpack.c.b16 %v335, %v332
  %v363 = vpack.c.b16 %v336, %v333
  %v364 = vpack.c.b16 %v337, %v334
  %v365 = vpack.c.b16 %v341, %v338
  %v366 = vpack.c.b16 %v342, %v339
  %v367 = vpack.c.b16 %v343, %v340
  %392 = vmatprep.subr.bf16.mxu0 %v345
  %393 = vmatpush1.bf16.msra.mxu0 %v344
  %394 = vmatprep.subr.bf16.mxu0 %v348
  %395 = vmatpush1.bf16.msra.mxu0 %v347
  %396 = vmatprep.subr.bf16.mxu0 %v351
  %397 = vmatpush1.bf16.msra.mxu0 %v350
  %398 = vmatprep.subr.bf16.mxu0 %v354
  %399 = vmatpush1.bf16.msra.mxu0 %v353
  %400 = vmatprep.subr.bf16.mxu0 %v357
  %401 = vmatpush1.bf16.msra.mxu0 %v356
  %402 = vmatprep.subr.bf16.mxu0 %v360
  %403 = vmatpush1.bf16.msra.mxu0 %v359
  %404 = vmatprep.subr.bf16.mxu0 %v363
  %405 = vmatpush1.bf16.msra.mxu0 %v362
  %406 = vmatprep.subr.bf16.mxu0 %v366
  %407 = vmatpush1.bf16.msra.mxu0 %v365
  %408 = vmatprep.subr.bf16.mxu0 0
  %409 = vmatpush1.bf16.msra.mxu0 0
  %410 = vmatprep.subr.bf16.mxu0 0
  %411 = vmatpush1.bf16.msra.mxu0 0
  %412 = vmatprep.subr.bf16.mxu0 0
  %413 = vmatpush1.bf16.msra.mxu0 0
  %414 = vmatprep.subr.bf16.mxu0 0
  %415 = vmatpush1.bf16.msra.mxu0 0
  %416 = vmatprep.subr.bf16.mxu0 0
  %417 = vmatpush1.bf16.msra.mxu0 0
  %418 = vmatprep.subr.bf16.mxu0 0
  %419 = vmatpush1.bf16.msra.mxu0 0
  %420 = vmatprep.subr.bf16.mxu0 0
  %421 = vmatpush1.bf16.msra.mxu0 0
  %422 = vmatprep.subr.bf16.mxu0 0
  %423 = vmatpush1.bf16.msra.mxu0 0
  %424 = vmatprep.mubr.bf16.mxu0 0
  %425 = vmatmul.mubr.bf16.gmra.mrb[0].mxu0 %v263
  %v426 = vpop.f32.mrb[0].mxu0
  %v427 = vadd.f32 0.0, %v426
  %v428 = vpop.f32.mrb[0].mxu0
  %v429 = vadd.f32 0.0, %v428
  %v430 = vpop.f32.mrb[0].mxu0
  %v431 = vadd.f32 0.0, %v430
  %v432 = vpop.f32.mrb[0].mxu0
  %v433 = vadd.f32 0.0, %v432
  %434 = vdwg.mxu0
  %435 = vmatprep.subr.bf16.mxu0 0
  %436 = vmatpush1.bf16.msra.mxu0 %v346
  %437 = vmatprep.subr.bf16.mxu0 0
  %438 = vmatpush1.bf16.msra.mxu0 %v349
  %439 = vmatprep.subr.bf16.mxu0 0
  %440 = vmatpush1.bf16.msra.mxu0 %v352
  %441 = vmatprep.subr.bf16.mxu0 0
  %442 = vmatpush1.bf16.msra.mxu0 %v355
  %443 = vmatprep.subr.bf16.mxu0 0
  %444 = vmatpush1.bf16.msra.mxu0 %v358
  %445 = vmatprep.subr.bf16.mxu0 0
  %446 = vmatpush1.bf16.msra.mxu0 %v361
  %447 = vmatprep.subr.bf16.mxu0 0
  %448 = vmatpush1.bf16.msra.mxu0 %v364
  %449 = vmatprep.subr.bf16.mxu0 0
  %450 = vmatpush1.bf16.msra.mxu0 %v367
  %451 = vmatprep.subr.bf16.mxu0 0
  %452 = vmatpush1.bf16.msra.mxu0 0
  %453 = vmatprep.subr.bf16.mxu0 0
  %454 = vmatpush1.bf16.msra.mxu0 0
  %455 = vmatprep.subr.bf16.mxu0 0
  %456 = vmatpush1.bf16.msra.mxu0 0
  %457 = vmatprep.subr.bf16.mxu0 0
  %458 = vmatpush1.bf16.msra.mxu0 0
  %459 = vmatprep.subr.bf16.mxu0 0
  %460 = vmatpush1.bf16.msra.mxu0 0
  %461 = vmatprep.subr.bf16.mxu0 0
  %462 = vmatpush1.bf16.msra.mxu0 0
  %463 = vmatprep.subr.bf16.mxu0 0
  %464 = vmatpush1.bf16.msra.mxu0 0
  %465 = vmatprep.subr.bf16.mxu0 0
  %466 = vmatpush1.bf16.msra.mxu0 0
  %467 = vmatprep.mubr.bf16.mxu0 0
  %468 = vmatmul.mubr.bf16.gmra.mrb[0].mxu0 %v263
  %v469 = vpop.f32.mrb[0].mxu0
  %v470 = vadd.f32 0.0, %v469
  %v471 = vpop.f32.mrb[0].mxu0
  %v472 = vpop.f32.mrb[0].mxu0
  %v473 = vadd.f32 0.0, %v472
  %v474 = vpop.f32.mrb[0].mxu0
  %475 = vdwg.mxu0
  %v476 = vadd.f32 %v257, %v427
  %v477 = vadd.f32 %v260, %v431
  %v478 = vxor.u32 %v476, 2147483648
  %v479 = vxor.u32 %v477, 2147483648
  %v480 = vmul.f32 %v478, 1.442695
  %v481 = vpow.pop %v480
  %v482 = vmul.f32 %v479, 1.442695
  %v483 = vpow.pop %v482
  %v484 = vadd.f32 %v481, 1.0
  %v485 = vadd.f32 %v483, 1.0
  %v486 = vrcp.pop %v484
  %v487 = vmul.f32 1.0, %v486
  %v488 = vrcp.pop %v485
  %v489 = vmul.f32 1.0, %v488
  %v490 = vadd.f32 %v258, %v429
  %v491 = vadd.f32 %v261, %v433
  %v492 = vxor.u32 %v490, 2147483648
  %v493 = vxor.u32 %v491, 2147483648
  %v494 = vmul.f32 %v492, 1.442695
  %v495 = vpow.pop %v494
  %v496 = vmul.f32 %v493, 1.442695
  %v497 = vpow.pop %v496
  %v498 = vadd.f32 %v495, 1.0
  %v499 = vadd.f32 %v497, 1.0
  %v500 = vrcp.pop %v498
  %v501 = vmul.f32 1.0, %v500
  %v502 = vrcp.pop %v499
  %v503 = vmul.f32 1.0, %v502
  %v505 = vlaneseq
  %v506 = vshrl.u32 %v505, 7
  %v507 = vsub.s32 0, %v506
  %v508 = vrot.slane %v251, %v507
  %v510 = vadd.f32 %v470, %v508
  %v511 = vadd.f32 %v473, %v508
  %v512 = vmul.f32 %v487, %v510
  %v513 = vmul.f32 %v489, %v511
  %v514 = vadd.f32 %v259, %v512
  %v515 = vadd.f32 %v262, %v513
  %v516 = vtanh.pop %v514
  %v517 = vtanh.pop %v515
  %v518 = vsub.f32 1.0, %v501
  %v519 = vsub.f32 1.0, %v503
  %v520 = vmul.f32 %v518, %v516
  %v521 = vmul.f32 %v519, %v517
  %v522 = vmul.f32 %v501, %v252
  %v523 = vmul.f32 %v503, %v253
  %v524 = vadd.f32 %v520, %v522
  %v525 = vadd.f32 %v521, %v523
  %v526 = vpack.c.bf16 %v525, %v524
  %v528 = vunpack.c.l.b16 %v526
  %v529 = vunpack.c.h.b16 %v526
  %v530 = vpack.c.b16 %v528, %v528
  %v531 = vpack.c.b16 %v529, %v529
  %534 = vst [vmem:[%s5] sm:$0xf] %v530
  %535 = vst [vmem:[%s5 + $0x4] sm:$0xf] %v531
  %s536 = smul.u32 2, 3
  %s537 = smul.addr %s536, 8
  %s538 = scalar_lea.vmem [#allocation3], %s537
  %v539 = vld [vmem:[%s538] sm:$0xff]
  %v540 = vld [vmem:[%s538 + $0x8] sm:$0xff]
  %v541 = vld [vmem:[%s538 + $0x10] sm:$0xff]
  %v542 = vld [vmem:[%s538 + $0x18] sm:$0xff]
  %v543 = vld [vmem:[%s538 + $0x20] sm:$0xff]
  %v544 = vld [vmem:[%s538 + $0x28] sm:$0xff]
  %545 = vmatprep.subr.bf16.mxu0 %v345
  %546 = vmatpush1.bf16.msra.mxu0 %v344
  %547 = vmatprep.subr.bf16.mxu0 %v348
  %548 = vmatpush1.bf16.msra.mxu0 %v347
  %549 = vmatprep.subr.bf16.mxu0 %v351
  %550 = vmatpush1.bf16.msra.mxu0 %v350
  %551 = vmatprep.subr.bf16.mxu0 %v354
  %552 = vmatpush1.bf16.msra.mxu0 %v353
  %553 = vmatprep.subr.bf16.mxu0 %v357
  %554 = vmatpush1.bf16.msra.mxu0 %v356
  %555 = vmatprep.subr.bf16.mxu0 %v360
  %556 = vmatpush1.bf16.msra.mxu0 %v359
  %557 = vmatprep.subr.bf16.mxu0 %v363
  %558 = vmatpush1.bf16.msra.mxu0 %v362
  %559 = vmatprep.subr.bf16.mxu0 %v366
  %560 = vmatpush1.bf16.msra.mxu0 %v365
  %561 = vmatprep.subr.bf16.mxu0 0
  %562 = vmatpush1.bf16.msra.mxu0 0
  %563 = vmatprep.subr.bf16.mxu0 0
  %564 = vmatpush1.bf16.msra.mxu0 0
  %565 = vmatprep.subr.bf16.mxu0 0
  %566 = vmatpush1.bf16.msra.mxu0 0
  %567 = vmatprep.subr.bf16.mxu0 0
  %568 = vmatpush1.bf16.msra.mxu0 0
  %569 = vmatprep.subr.bf16.mxu0 0
  %570 = vmatpush1.bf16.msra.mxu0 0
  %571 = vmatprep.subr.bf16.mxu0 0
  %572 = vmatpush1.bf16.msra.mxu0 0
  %573 = vmatprep.subr.bf16.mxu0 0
  %574 = vmatpush1.bf16.msra.mxu0 0
  %575 = vmatprep.subr.bf16.mxu0 0
  %576 = vmatpush1.bf16.msra.mxu0 0
  %577 = vmatprep.mubr.bf16.mxu0 0
  %578 = vmatmul.mubr.bf16.gmra.mrb[0].mxu0 %v526
  %v579 = vpop.f32.mrb[0].mxu0
  %v580 = vadd.f32 0.0, %v579
  %v581 = vpop.f32.mrb[0].mxu0
  %v582 = vadd.f32 0.0, %v581
  %v583 = vpop.f32.mrb[0].mxu0
  %v584 = vadd.f32 0.0, %v583
  %v585 = vpop.f32.mrb[0].mxu0
  %v586 = vadd.f32 0.0, %v585
  %587 = vdwg.mxu0
  %588 = vmatprep.subr.bf16.mxu0 0
  %589 = vmatpush1.bf16.msra.mxu0 %v346
  %590 = vmatprep.subr.bf16.mxu0 0
  %591 = vmatpush1.bf16.msra.mxu0 %v349
  %592 = vmatprep.subr.bf16.mxu0 0
  %593 = vmatpush1.bf16.msra.mxu0 %v352
  %594 = vmatprep.subr.bf16.mxu0 0
  %595 = vmatpush1.bf16.msra.mxu0 %v355
  %596 = vmatprep.subr.bf16.mxu0 0
  %597 = vmatpush1.bf16.msra.mxu0 %v358
  %598 = vmatprep.subr.bf16.mxu0 0
  %599 = vmatpush1.bf16.msra.mxu0 %v361
  %600 = vmatprep.subr.bf16.mxu0 0
  %601 = vmatpush1.bf16.msra.mxu0 %v364
  %602 = vmatprep.subr.bf16.mxu0 0
  %603 = vmatpush1.bf16.msra.mxu0 %v367
  %604 = vmatprep.subr.bf16.mxu0 0
  %605 = vmatpush1.bf16.msra.mxu0 0
  %606 = vmatprep.subr.bf16.mxu0 0
  %607 = vmatpush1.bf16.msra.mxu0 0
  %608 = vmatprep.subr.bf16.mxu0 0
  %609 = vmatpush1.bf16.msra.mxu0 0
  %610 = vmatprep.subr.bf16.mxu0 0
  %611 = vmatpush1.bf16.msra.mxu0 0
  %612 = vmatprep.subr.bf16.mxu0 0
  %613 = vmatpush1.bf16.msra.mxu0 0
  %614 = vmatprep.subr.bf16.mxu0 0
  %615 = vmatpush1.bf16.msra.mxu0 0
  %616 = vmatprep.subr.bf16.mxu0 0
  %617 = vmatpush1.bf16.msra.mxu0 0
  %618 = vmatprep.subr.bf16.mxu0 0
  %619 = vmatpush1.bf16.msra.mxu0 0
  %620 = vmatprep.mubr.bf16.mxu0 0
  %621 = vmatmul.mubr.bf16.gmra.mrb[0].mxu0 %v526
  %v622 = vpop.f32.mrb[0].mxu0
  %v623 = vadd.f32 0.0, %v622
  %v624 = vpop.f32.mrb[0].mxu0
  %v625 = vpop.f32.mrb[0].mxu0
  %v626 = vadd.f32 0.0, %v625
  %v627 = vpop.f32.mrb[0].mxu0
  %628 = vdwg.mxu0
  %v629 = vadd.f32 %v539, %v580
  %v630 = vadd.f32 %v542, %v584
  %v631 = vxor.u32 %v629, 2147483648
  %v632 = vxor.u32 %v630, 2147483648
  %v633 = vmul.f32 %v631, 1.442695
  %v634 = vpow.pop %v633
  %v635 = vmul.f32 %v632, 1.442695
  %v636 = vpow.pop %v635
  %v637 = vadd.f32 %v634, 1.0
  %v638 = vadd.f32 %v636, 1.0
  %v639 = vrcp.pop %v637
  %v640 = vmul.f32 1.0, %v639
  %v641 = vrcp.pop %v638
  %v642 = vmul.f32 1.0, %v641
  %v643 = vadd.f32 %v540, %v582
  %v644 = vadd.f32 %v543, %v586
  %v645 = vxor.u32 %v643, 2147483648
  %v646 = vxor.u32 %v644, 2147483648
  %v647 = vmul.f32 %v645, 1.442695
  %v648 = vpow.pop %v647
  %v649 = vmul.f32 %v646, 1.442695
  %v650 = vpow.pop %v649
  %v651 = vadd.f32 %v648, 1.0
  %v652 = vadd.f32 %v650, 1.0
  %v653 = vrcp.pop %v651
  %v654 = vmul.f32 1.0, %v653
  %v655 = vrcp.pop %v652
  %v656 = vmul.f32 1.0, %v655
  %v657 = vadd.f32 %v623, %v508
  %v658 = vadd.f32 %v626, %v508
  %v659 = vmul.f32 %v640, %v657
  %v660 = vmul.f32 %v642, %v658
  %v661 = vadd.f32 %v541, %v659
  %v662 = vadd.f32 %v544, %v660
  %v663 = vtanh.pop %v661
  %v664 = vtanh.pop %v662
  %v665 = vsub.f32 1.0, %v654
  %v666 = vsub.f32 1.0, %v656
  %v667 = vmul.f32 %v665, %v663
  %v668 = vmul.f32 %v666, %v664
  %v669 = vmul.f32 %v654, %v524
  %v670 = vmul.f32 %v656, %v525
  %v671 = vadd.f32 %v667, %v669
  %v672 = vadd.f32 %v668, %v670
  %v673 = vpack.c.bf16 %v672, %v671
  %v675 = vunpack.c.l.b16 %v673
  %v676 = vunpack.c.h.b16 %v673
  %v677 = vpack.c.b16 %v675, %v675
  %v678 = vpack.c.b16 %v676, %v676
  %s681 = scalar_lea.vmem %s5, 8
  %682 = vst [vmem:[%s681] sm:$0xf] %v677
  %683 = vst [vmem:[%s681 + $0x4] sm:$0xf] %v678
  %684 = vst [vmem:[#allocation2] sm:$0xff] %v671
  %685 = vst [vmem:[#allocation2 + $0x8] sm:$0xff] %v672
  // Predicated region
  $region26: #{_lambda_.4} parent=0 // pred_check
    _
  $region27: #{_lambda_.4} parent=0 // pred_check_branch
    %687 = sbr.rel (0) target = $region29
  $region28: #{_lambda_.4} parent=0 // pred_region
    _
  $region29: #{_lambda_.4} parent=0 // pred_fallthru
    _
  // Predicated region
  $region30: #{_lambda_.4} parent=0 // pred_check
    _
  $region31: #{_lambda_.4} parent=0 // pred_check_branch
    %689 = sbr.rel (0) target = $region33
  $region32: #{_lambda_.4} parent=0 // pred_region
    _
  $region33: #{_lambda_.4} parent=0 // pred_fallthru
    _

// kernel: _lambda_.3
$region0: #{_lambda_.3}
  #allocation0 [shape = 'u32[]', space=smem, size = 0x4, offset = 0x4, fixed_abs, tag = 'smem constant byte address 0x4 - core index']
  #allocation1 [shape = 'u32[144,128]{1,0:T(1,128)}', space=vmem, size = 0x12000, scoped, tag = 'internal scratch']
  #allocation2 [shape = 'f32[16,128]{1,0:T(8,128)}', space=vmem, size = 0x2000, scoped, tag = 'scratch operand']
  #allocation3 [shape = 'f32[128,384]{1,0:T(8,128)}', space=vmem, size = 0x30000, scoped, tag = 'scratch operand']
  %s0 = inlined_call_operand.vmem [shape: f32[8,16,16], index: 0, kind: input, shape index: {}]
  %s1 = inlined_call_operand.vmem [shape: bf16[16,384], index: 1, kind: input, shape index: {}]
  %s2 = inlined_call_operand.vmem [shape: bf16[128,384], index: 2, kind: input, shape index: {}]
  %s3 = inlined_call_operand.vmem [shape: f32[1,384], index: 3, kind: input, shape index: {}]
  %s4 = inlined_call_operand.vmem [shape: f32[1,128], index: 4, kind: input, shape index: {}]
  %s5 = inlined_call_operand.vmem [shape: bf16[8,16,128], index: 5, kind: output, shape index: {}]
  %s6 = sld [smem:[#allocation0]]
  $region34: #{_lambda_.3} parent=0
    _
  %s8 = ssub.s32 1, %s6
  %s9 = scalar_select 0, %s8, %s6
  // Predicated region
  $region2: #{_lambda_.3} parent=0 // pred_check
    _
  $region3: #{_lambda_.3} parent=0 // pred_check_branch
    %11 = sbr.rel (0) target = $region5
  $region4: #{_lambda_.3} parent=0 // pred_region
    _
  $region5: #{_lambda_.3} parent=0 // pred_fallthru
    _
  // Predicated region
  $region6: #{_lambda_.3} parent=0 // pred_check
    _
  $region7: #{_lambda_.3} parent=0 // pred_check_branch
    %13 = sbr.rel (0) target = $region9
  $region8: #{_lambda_.3} parent=0 // pred_region
    _
  $region9: #{_lambda_.3} parent=0 // pred_fallthru
    _
  // Predicated region
  $region10: #{_lambda_.3} parent=0 // pred_check
    _
  $region11: #{_lambda_.3} parent=0 // pred_check_branch
    %15 = sbr.rel (0) target = $region13
  $region12: #{_lambda_.3} parent=0 // pred_region
    _
  $region13: #{_lambda_.3} parent=0 // pred_fallthru
    _
  // Predicated region
  $region14: #{_lambda_.3} parent=0 // pred_check
    _
  $region15: #{_lambda_.3} parent=0 // pred_check_branch
    %17 = sbr.rel (0) target = $region17
  $region16: #{_lambda_.3} parent=0 // pred_region
    _
  $region17: #{_lambda_.3} parent=0 // pred_fallthru
    _
  // Predicated region
  $region18: #{_lambda_.3} parent=0 // pred_check
    _
  $region19: #{_lambda_.3} parent=0 // pred_check_branch
    %19 = sbr.rel (0) target = $region21
  $region20: #{_lambda_.3} parent=0 // pred_region
    _
  $region21: #{_lambda_.3} parent=0 // pred_fallthru
    _
  %p21 = scmp.eq.s32.totalorder 0, 0
  // Predicated region
  $region22: #{_lambda_.3} parent=0 // pred_check
    %p22 = pneg %p21
  $region23: #{_lambda_.3} parent=0 // pred_check_branch
    %24 = sbr.rel (%p22) target = $region25
  $region24: #{_lambda_.3} parent=0 // pred_region
    %25 = vst [vmem:[#allocation2] sm:$0xff] 0.0
    %26 = vst [vmem:[#allocation2 + $0x8] sm:$0xff] 0.0
  $region25: #{_lambda_.3} parent=0 // pred_fallthru
    _
  %v27 = vld [vmem:[%s0] sm:$0xff]
  %v28 = vld [vmem:[%s0 + $0x8] sm:$0xff]
  %v29 = vld [vmem:[%s0 + $0x10] sm:$0xff]
  %v30 = vld [vmem:[%s0 + $0x18] sm:$0xff]
  %v31 = vld [vmem:[%s0 + $0x20] sm:$0xff]
  %v32 = vld [vmem:[%s0 + $0x28] sm:$0xff]
  %v33 = vld [vmem:[%s0 + $0x30] sm:$0xff]
  %v34 = vld [vmem:[%s0 + $0x38] sm:$0xff]
  %v35 = vld [vmem:[%s0 + $0x40] sm:$0xff]
  %v36 = vld [vmem:[%s0 + $0x48] sm:$0xff]
  %v37 = vld [vmem:[%s0 + $0x50] sm:$0xff]
  %v38 = vld [vmem:[%s0 + $0x58] sm:$0xff]
  %v39 = vld [vmem:[%s0 + $0x60] sm:$0xff]
  %v40 = vld [vmem:[%s0 + $0x68] sm:$0xff]
  %v41 = vld [vmem:[%s0 + $0x70] sm:$0xff]
  %v42 = vld [vmem:[%s0 + $0x78] sm:$0xff]
  %v43 = vpack.c.bf16 %v28, %v27
  %v44 = vpack.c.bf16 %v30, %v29
  %v45 = vpack.c.bf16 %v32, %v31
  %v46 = vpack.c.bf16 %v34, %v33
  %v47 = vpack.c.bf16 %v36, %v35
  %v48 = vpack.c.bf16 %v38, %v37
  %v49 = vpack.c.bf16 %v40, %v39
  %v50 = vpack.c.bf16 %v42, %v41
  %v51 = vld [vmem:[%s1] sm:$0xff]
  %v52 = vld [vmem:[%s1 + $0x8] sm:$0xf]
  %v53 = vld [vmem:[%s1 + $0xc] sm:$0xff]
  %v54 = vld [vmem:[%s1 + $0x14] sm:$0xf]
  %v55 = vld [vmem:[%s3] sm:$0x7]
  %v57 = vlaneseq
  %v58 = vshrl.u32 %v57, 7
  %v59 = vsub.s32 0, %v58
  %v60 = vrot.slane %v55, %v59
  %v61 = vlaneseq
  %v62 = vshrl.u32 %v61, 7
  %v63 = vsub.s32 1, %v62
  %v64 = vrot.slane %v55, %v63
  %v65 = vlaneseq
  %v66 = vshrl.u32 %v65, 7
  %v67 = vsub.s32 2, %v66
  %v68 = vrot.slane %v55, %v67
  %v76 = vunpack.c.l.b16 %v51
  %v77 = vunpack.c.h.b16 %v51
  %v78 = vunpack.c.l.b16 %v52
  %v79 = vunpack.c.l.b16 %v53
  %v80 = vunpack.c.h.b16 %v53
  %v81 = vunpack.c.l.b16 %v54
  %v82 = vpack.c.b16 %v79, %v76
  %v83 = vpack.c.b16 %v80, %v77
  %v84 = vpack.c.b16 %v81, %v78
  %vm88 = vcmask 130048
  %v90 = vsel %vm88, %v43, 0
  %v93 = vsel %vm88, %v44, 0
  %v96 = vsel %vm88, %v45, 0
  %v99 = vsel %vm88, %v46, 0
  %v102 = vsel %vm88, %v47, 0
  %v105 = vsel %vm88, %v48, 0
  %v108 = vsel %vm88, %v49, 0
  %v111 = vsel %vm88, %v50, 0
  %113 = vmatprep.subr.bf16.mxu0 %v83
  %114 = vmatpush1.bf16.msra.mxu0 %v82
  %115 = vmatprep.subr.bf16.mxu0 0
  %116 = vmatpush1.bf16.msra.mxu0 0
  %117 = vmatprep.subr.bf16.mxu0 0
  %118 = vmatpush1.bf16.msra.mxu0 0
  %119 = vmatprep.subr.bf16.mxu0 0
  %120 = vmatpush1.bf16.msra.mxu0 0
  %121 = vmatprep.subr.bf16.mxu0 0
  %122 = vmatpush1.bf16.msra.mxu0 0
  %123 = vmatprep.subr.bf16.mxu0 0
  %124 = vmatpush1.bf16.msra.mxu0 0
  %125 = vmatprep.subr.bf16.mxu0 0
  %126 = vmatpush1.bf16.msra.mxu0 0
  %127 = vmatprep.subr.bf16.mxu0 0
  %128 = vmatpush1.bf16.msra.mxu0 0
  %129 = vmatprep.subr.bf16.mxu0 0
  %130 = vmatpush1.bf16.msra.mxu0 0
  %131 = vmatprep.subr.bf16.mxu0 0
  %132 = vmatpush1.bf16.msra.mxu0 0
  %133 = vmatprep.subr.bf16.mxu0 0
  %134 = vmatpush1.bf16.msra.mxu0 0
  %135 = vmatprep.subr.bf16.mxu0 0
  %136 = vmatpush1.bf16.msra.mxu0 0
  %137 = vmatprep.subr.bf16.mxu0 0
  %138 = vmatpush1.bf16.msra.mxu0 0
  %139 = vmatprep.subr.bf16.mxu0 0
  %140 = vmatpush1.bf16.msra.mxu0 0
  %141 = vmatprep.subr.bf16.mxu0 0
  %142 = vmatpush1.bf16.msra.mxu0 0
  %143 = vmatprep.subr.bf16.mxu0 0
  %144 = vmatpush1.bf16.msra.mxu0 0
  %145 = vmatprep.mubr.bf16.mxu0 0
  %146 = vmatmul.mubr.bf16.gmra.mrb[0].mxu0 %v90
  %v147 = vpop.f32.mrb[0].mxu0
  %v148 = vadd.f32 %v60, %v147
  %v149 = vpop.f32.mrb[0].mxu0
  %v150 = vadd.f32 %v64, %v149
  %v151 = vpop.f32.mrb[0].mxu0
  %v152 = vadd.f32 %v60, %v151
  %v153 = vpop.f32.mrb[0].mxu0
  %v154 = vadd.f32 %v64, %v153
  %155 = vmatprep.mubr.bf16.mxu0 0
  %156 = vmatmul.mubr.bf16.gmra.mrb[0].mxu0 %v93
  %v157 = vpop.f32.mrb[0].mxu0
  %v158 = vadd.f32 %v60, %v157
  %v159 = vpop.f32.mrb[0].mxu0
  %v160 = vadd.f32 %v64, %v159
  %v161 = vpop.f32.mrb[0].mxu0
  %v162 = vadd.f32 %v60, %v161
  %v163 = vpop.f32.mrb[0].mxu0
  %v164 = vadd.f32 %v64, %v163
  %165 = vmatprep.mubr.bf16.mxu0 0
  %166 = vmatmul.mubr.bf16.gmra.mrb[0].mxu0 %v96
  %v167 = vpop.f32.mrb[0].mxu0
  %v168 = vadd.f32 %v60, %v167
  %v169 = vpop.f32.mrb[0].mxu0
  %v170 = vadd.f32 %v64, %v169
  %v171 = vpop.f32.mrb[0].mxu0
  %v172 = vadd.f32 %v60, %v171
  %v173 = vpop.f32.mrb[0].mxu0
  %v174 = vadd.f32 %v64, %v173
  %175 = vmatprep.mubr.bf16.mxu0 0
  %176 = vmatmul.mubr.bf16.gmra.mrb[0].mxu0 %v99
  %v177 = vpop.f32.mrb[0].mxu0
  %v178 = vadd.f32 %v60, %v177
  %v179 = vpop.f32.mrb[0].mxu0
  %v180 = vadd.f32 %v64, %v179
  %v181 = vpop.f32.mrb[0].mxu0
  %v182 = vadd.f32 %v60, %v181
  %v183 = vpop.f32.mrb[0].mxu0
  %v184 = vadd.f32 %v64, %v183
  %185 = vmatprep.mubr.bf16.mxu0 0
  %186 = vmatmul.mubr.bf16.gmra.mrb[0].mxu0 %v102
  %v187 = vpop.f32.mrb[0].mxu0
  %v188 = vadd.f32 %v60, %v187
  %v189 = vpop.f32.mrb[0].mxu0
  %v190 = vadd.f32 %v64, %v189
  %v191 = vpop.f32.mrb[0].mxu0
  %v192 = vadd.f32 %v60, %v191
  %v193 = vpop.f32.mrb[0].mxu0
  %v194 = vadd.f32 %v64, %v193
  %195 = vmatprep.mubr.bf16.mxu0 0
  %196 = vmatmul.mubr.bf16.gmra.mrb[0].mxu0 %v105
  %v197 = vpop.f32.mrb[0].mxu0
  %v198 = vadd.f32 %v60, %v197
  %v199 = vpop.f32.mrb[0].mxu0
  %v200 = vadd.f32 %v64, %v199
  %v201 = vpop.f32.mrb[0].mxu0
  %v202 = vadd.f32 %v60, %v201
  %v203 = vpop.f32.mrb[0].mxu0
  %v204 = vadd.f32 %v64, %v203
  %205 = vmatprep.mubr.bf16.mxu0 0
  %206 = vmatmul.mubr.bf16.gmra.mrb[0].mxu0 %v108
  %v207 = vpop.f32.mrb[0].mxu0
  %v208 = vadd.f32 %v60, %v207
  %v209 = vpop.f32.mrb[0].mxu0
  %v210 = vadd.f32 %v64, %v209
  %v211 = vpop.f32.mrb[0].mxu0
  %v212 = vadd.f32 %v60, %v211
  %v213 = vpop.f32.mrb[0].mxu0
  %v214 = vadd.f32 %v64, %v213
  %215 = vmatprep.mubr.bf16.mxu0 0
  %216 = vmatmul.mubr.bf16.gmra.mrb[0].mxu0 %v111
  %v217 = vpop.f32.mrb[0].mxu0
  %v218 = vadd.f32 %v60, %v217
  %v219 = vpop.f32.mrb[0].mxu0
  %v220 = vadd.f32 %v64, %v219
  %v221 = vpop.f32.mrb[0].mxu0
  %v222 = vadd.f32 %v60, %v221
  %v223 = vpop.f32.mrb[0].mxu0
  %v224 = vadd.f32 %v64, %v223
  %225 = vdwg.mxu0
  %226 = vmatprep.subr.bf16.mxu0 0
  %227 = vmatpush1.bf16.msra.mxu0 %v84
  %228 = vmatprep.subr.bf16.mxu0 0
  %229 = vmatpush1.bf16.msra.mxu0 0
  %230 = vmatprep.subr.bf16.mxu0 0
  %231 = vmatpush1.bf16.msra.mxu0 0
  %232 = vmatprep.subr.bf16.mxu0 0
  %233 = vmatpush1.bf16.msra.mxu0 0
  %234 = vmatprep.subr.bf16.mxu0 0
  %235 = vmatpush1.bf16.msra.mxu0 0
  %236 = vmatprep.subr.bf16.mxu0 0
  %237 = vmatpush1.bf16.msra.mxu0 0
  %238 = vmatprep.subr.bf16.mxu0 0
  %239 = vmatpush1.bf16.msra.mxu0 0
  %240 = vmatprep.subr.bf16.mxu0 0
  %241 = vmatpush1.bf16.msra.mxu0 0
  %242 = vmatprep.subr.bf16.mxu0 0
  %243 = vmatpush1.bf16.msra.mxu0 0
  %244 = vmatprep.subr.bf16.mxu0 0
  %245 = vmatpush1.bf16.msra.mxu0 0
  %246 = vmatprep.subr.bf16.mxu0 0
  %247 = vmatpush1.bf16.msra.mxu0 0
  %248 = vmatprep.subr.bf16.mxu0 0
  %249 = vmatpush1.bf16.msra.mxu0 0
  %250 = vmatprep.subr.bf16.mxu0 0
  %251 = vmatpush1.bf16.msra.mxu0 0
  %252 = vmatprep.subr.bf16.mxu0 0
  %253 = vmatpush1.bf16.msra.mxu0 0
  %254 = vmatprep.subr.bf16.mxu0 0
  %255 = vmatpush1.bf16.msra.mxu0 0
  %256 = vmatprep.subr.bf16.mxu0 0
  %257 = vmatpush1.bf16.msra.mxu0 0
  %258 = vmatprep.mubr.bf16.mxu0 0
  %259 = vmatmul.mubr.bf16.gmra.mrb[0].mxu0 %v90
  %v260 = vpop.f32.mrb[0].mxu0
  %v261 = vadd.f32 %v68, %v260
  %v262 = vpop.f32.mrb[0].mxu0
  %v263 = vpop.f32.mrb[0].mxu0
  %v264 = vadd.f32 %v68, %v263
  %v265 = vpop.f32.mrb[0].mxu0
  %266 = vmatprep.mubr.bf16.mxu0 0
  %267 = vmatmul.mubr.bf16.gmra.mrb[0].mxu0 %v93
  %v268 = vpop.f32.mrb[0].mxu0
  %v269 = vadd.f32 %v68, %v268
  %v270 = vpop.f32.mrb[0].mxu0
  %v271 = vpop.f32.mrb[0].mxu0
  %v272 = vadd.f32 %v68, %v271
  %v273 = vpop.f32.mrb[0].mxu0
  %274 = vmatprep.mubr.bf16.mxu0 0
  %275 = vmatmul.mubr.bf16.gmra.mrb[0].mxu0 %v96
  %v276 = vpop.f32.mrb[0].mxu0
  %v277 = vadd.f32 %v68, %v276
  %v278 = vpop.f32.mrb[0].mxu0
  %v279 = vpop.f32.mrb[0].mxu0
  %v280 = vadd.f32 %v68, %v279
  %v281 = vpop.f32.mrb[0].mxu0
  %282 = vmatprep.mubr.bf16.mxu0 0
  %283 = vmatmul.mubr.bf16.gmra.mrb[0].mxu0 %v99
  %v284 = vpop.f32.mrb[0].mxu0
  %v285 = vadd.f32 %v68, %v284
  %v286 = vpop.f32.mrb[0].mxu0
  %v287 = vpop.f32.mrb[0].mxu0
  %v288 = vadd.f32 %v68, %v287
  %v289 = vpop.f32.mrb[0].mxu0
  %290 = vmatprep.mubr.bf16.mxu0 0
  %291 = vmatmul.mubr.bf16.gmra.mrb[0].mxu0 %v102
  %v292 = vpop.f32.mrb[0].mxu0
  %v293 = vadd.f32 %v68, %v292
  %v294 = vpop.f32.mrb[0].mxu0
  %v295 = vpop.f32.mrb[0].mxu0
  %v296 = vadd.f32 %v68, %v295
  %v297 = vpop.f32.mrb[0].mxu0
  %298 = vmatprep.mubr.bf16.mxu0 0
  %299 = vmatmul.mubr.bf16.gmra.mrb[0].mxu0 %v105
  %v300 = vpop.f32.mrb[0].mxu0
  %v301 = vadd.f32 %v68, %v300
  %v302 = vpop.f32.mrb[0].mxu0
  %v303 = vpop.f32.mrb[0].mxu0
  %v304 = vadd.f32 %v68, %v303
  %v305 = vpop.f32.mrb[0].mxu0
  %306 = vmatprep.mubr.bf16.mxu0 0
  %307 = vmatmul.mubr.bf16.gmra.mrb[0].mxu0 %v108
  %v308 = vpop.f32.mrb[0].mxu0
  %v309 = vadd.f32 %v68, %v308
  %v310 = vpop.f32.mrb[0].mxu0
  %v311 = vpop.f32.mrb[0].mxu0
  %v312 = vadd.f32 %v68, %v311
  %v313 = vpop.f32.mrb[0].mxu0
  %314 = vmatprep.mubr.bf16.mxu0 0
  %315 = vmatmul.mubr.bf16.gmra.mrb[0].mxu0 %v111
  %v316 = vpop.f32.mrb[0].mxu0
  %v317 = vadd.f32 %v68, %v316
  %v318 = vpop.f32.mrb[0].mxu0
  %v319 = vpop.f32.mrb[0].mxu0
  %v320 = vadd.f32 %v68, %v319
  %v321 = vpop.f32.mrb[0].mxu0
  %322 = vdwg.mxu0
  %323 = vst [vmem:[#allocation3] sm:$0xff] %v148
  %324 = vst [vmem:[#allocation3 + $0x8] sm:$0xff] %v150
  %325 = vst [vmem:[#allocation3 + $0x10] sm:$0xff] %v261
  %326 = vst [vmem:[#allocation3 + $0x18] sm:$0xff] %v152
  %327 = vst [vmem:[#allocation3 + $0x20] sm:$0xff] %v154
  %328 = vst [vmem:[#allocation3 + $0x28] sm:$0xff] %v264
  %329 = vst [vmem:[#allocation3 + $0x30] sm:$0xff] %v158
  %330 = vst [vmem:[#allocation3 + $0x38] sm:$0xff] %v160
  %331 = vst [vmem:[#allocation3 + $0x40] sm:$0xff] %v269
  %332 = vst [vmem:[#allocation3 + $0x48] sm:$0xff] %v162
  %333 = vst [vmem:[#allocation3 + $0x50] sm:$0xff] %v164
  %334 = vst [vmem:[#allocation3 + $0x58] sm:$0xff] %v272
  %335 = vst [vmem:[#allocation3 + $0x60] sm:$0xff] %v168
  %336 = vst [vmem:[#allocation3 + $0x68] sm:$0xff] %v170
  %337 = vst [vmem:[#allocation3 + $0x70] sm:$0xff] %v277
  %338 = vst [vmem:[#allocation3 + $0x78] sm:$0xff] %v172
  %339 = vst [vmem:[#allocation3 + $0x80] sm:$0xff] %v174
  %340 = vst [vmem:[#allocation3 + $0x88] sm:$0xff] %v280
  %341 = vst [vmem:[#allocation3 + $0x90] sm:$0xff] %v178
  %342 = vst [vmem:[#allocation3 + $0x98] sm:$0xff] %v180
  %343 = vst [vmem:[#allocation3 + $0xa0] sm:$0xff] %v285
  %344 = vst [vmem:[#allocation3 + $0xa8] sm:$0xff] %v182
  %345 = vst [vmem:[#allocation3 + $0xb0] sm:$0xff] %v184
  %346 = vst [vmem:[#allocation3 + $0xb8] sm:$0xff] %v288
  %347 = vst [vmem:[#allocation3 + $0xc0] sm:$0xff] %v188
  %348 = vst [vmem:[#allocation3 + $0xc8] sm:$0xff] %v190
  %349 = vst [vmem:[#allocation3 + $0xd0] sm:$0xff] %v293
  %350 = vst [vmem:[#allocation3 + $0xd8] sm:$0xff] %v192
  %351 = vst [vmem:[#allocation3 + $0xe0] sm:$0xff] %v194
  %352 = vst [vmem:[#allocation3 + $0xe8] sm:$0xff] %v296
  %353 = vst [vmem:[#allocation3 + $0xf0] sm:$0xff] %v198
  %354 = vst [vmem:[#allocation3 + $0xf8] sm:$0xff] %v200
  %355 = vst [vmem:[#allocation3 + $0x100] sm:$0xff] %v301
  %356 = vst [vmem:[#allocation3 + $0x108] sm:$0xff] %v202
  %357 = vst [vmem:[#allocation3 + $0x110] sm:$0xff] %v204
  %358 = vst [vmem:[#allocation3 + $0x118] sm:$0xff] %v304
  %359 = vst [vmem:[#allocation3 + $0x120] sm:$0xff] %v208
  %360 = vst [vmem:[#allocation3 + $0x128] sm:$0xff] %v210
  %361 = vst [vmem:[#allocation3 + $0x130] sm:$0xff] %v309
  %362 = vst [vmem:[#allocation3 + $0x138] sm:$0xff] %v212
  %363 = vst [vmem:[#allocation3 + $0x140] sm:$0xff] %v214
  %364 = vst [vmem:[#allocation3 + $0x148] sm:$0xff] %v312
  %365 = vst [vmem:[#allocation3 + $0x150] sm:$0xff] %v218
  %366 = vst [vmem:[#allocation3 + $0x158] sm:$0xff] %v220
  %367 = vst [vmem:[#allocation3 + $0x160] sm:$0xff] %v317
  %368 = vst [vmem:[#allocation3 + $0x168] sm:$0xff] %v222
  %369 = vst [vmem:[#allocation3 + $0x170] sm:$0xff] %v224
  %370 = vst [vmem:[#allocation3 + $0x178] sm:$0xff] %v320
  %v371 = vld [vmem:[%s2] sm:$0xff]
  %v372 = vld [vmem:[%s2 + $0x8] sm:$0xf]
  %v373 = vld [vmem:[%s2 + $0xc] sm:$0xff]
  %v374 = vld [vmem:[%s2 + $0x14] sm:$0xf]
  %v375 = vld [vmem:[%s2 + $0x18] sm:$0xff]
  %v376 = vld [vmem:[%s2 + $0x20] sm:$0xf]
  %v377 = vld [vmem:[%s2 + $0x24] sm:$0xff]
  %v378 = vld [vmem:[%s2 + $0x2c] sm:$0xf]
  %v379 = vld [vmem:[%s2 + $0x30] sm:$0xff]
  %v380 = vld [vmem:[%s2 + $0x38] sm:$0xf]
  %v381 = vld [vmem:[%s2 + $0x3c] sm:$0xff]
  %v382 = vld [vmem:[%s2 + $0x44] sm:$0xf]
  %v383 = vld [vmem:[%s2 + $0x48] sm:$0xff]
  %v384 = vld [vmem:[%s2 + $0x50] sm:$0xf]
  %v385 = vld [vmem:[%s2 + $0x54] sm:$0xff]
  %v386 = vld [vmem:[%s2 + $0x5c] sm:$0xf]
  %v387 = vld [vmem:[%s2 + $0x60] sm:$0xff]
  %v388 = vld [vmem:[%s2 + $0x68] sm:$0xf]
  %v389 = vld [vmem:[%s2 + $0x6c] sm:$0xff]
  %v390 = vld [vmem:[%s2 + $0x74] sm:$0xf]
  %v391 = vld [vmem:[%s2 + $0x78] sm:$0xff]
  %v392 = vld [vmem:[%s2 + $0x80] sm:$0xf]
  %v393 = vld [vmem:[%s2 + $0x84] sm:$0xff]
  %v394 = vld [vmem:[%s2 + $0x8c] sm:$0xf]
  %v395 = vld [vmem:[%s2 + $0x90] sm:$0xff]
  %v396 = vld [vmem:[%s2 + $0x98] sm:$0xf]
  %v397 = vld [vmem:[%s2 + $0x9c] sm:$0xff]
  %v398 = vld [vmem:[%s2 + $0xa4] sm:$0xf]
  %v399 = vld [vmem:[%s2 + $0xa8] sm:$0xff]
  %v400 = vld [vmem:[%s2 + $0xb0] sm:$0xf]
  %v401 = vld [vmem:[%s2 + $0xb4] sm:$0xff]
  %v402 = vld [vmem:[%s2 + $0xbc] sm:$0xf]
  %v403 = vld [vmem:[%s4] sm:$0x1]
  %v404 = vld [vmem:[#allocation2] sm:$0xff]
  %v405 = vld [vmem:[#allocation2 + $0x8] sm:$0xff]
  %s406 = smul.u32 0, 3
  %s407 = smul.addr %s406, 8
  %s408 = scalar_lea.vmem [#allocation3], %s407
  %v409 = vld [vmem:[%s408] sm:$0xff]
  %v410 = vld [vmem:[%s408 + $0x8] sm:$0xff]
  %v411 = vld [vmem:[%s408 + $0x10] sm:$0xff]
  %v412 = vld [vmem:[%s408 + $0x18] sm:$0xff]
  %v413 = vld [vmem:[%s408 + $0x20] sm:$0xff]
  %v414 = vld [vmem:[%s408 + $0x28] sm:$0xff]
  %v415 = vpack.c.bf16 %v405, %v404
  %v448 = vunpack.c.l.b16 %v371
  %v449 = vunpack.c.h.b16 %v371
  %v450 = vunpack.c.l.b16 %v372
  %v451 = vunpack.c.l.b16 %v373
  %v452 = vunpack.c.h.b16 %v373
  %v453 = vunpack.c.l.b16 %v374
  %v454 = vunpack.c.l.b16 %v375
  %v455 = vunpack.c.h.b16 %v375
  %v456 = vunpack.c.l.b16 %v376
  %v457 = vunpack.c.l.b16 %v377
  %v458 = vunpack.c.h.b16 %v377
  %v459 = vunpack.c.l.b16 %v378
  %v460 = vunpack.c.l.b16 %v379
  %v461 = vunpack.c.h.b16 %v379
  %v462 = vunpack.c.l.b16 %v380
  %v463 = vunpack.c.l.b16 %v381
  %v464 = vunpack.c.h.b16 %v381
  %v465 = vunpack.c.l.b16 %v382
  %v466 = vunpack.c.l.b16 %v383
  %v467 = vunpack.c.h.b16 %v383
  %v468 = vunpack.c.l.b16 %v384
  %v469 = vunpack.c.l.b16 %v385
  %v470 = vunpack.c.h.b16 %v385
  %v471 = vunpack.c.l.b16 %v386
  %v472 = vunpack.c.l.b16 %v387
  %v473 = vunpack.c.h.b16 %v387
  %v474 = vunpack.c.l.b16 %v388
  %v475 = vunpack.c.l.b16 %v389
  %v476 = vunpack.c.h.b16 %v389
  %v477 = vunpack.c.l.b16 %v390
  %v478 = vunpack.c.l.b16 %v391
  %v479 = vunpack.c.h.b16 %v391
  %v480 = vunpack.c.l.b16 %v392
  %v481 = vunpack.c.l.b16 %v393
  %v482 = vunpack.c.h.b16 %v393
  %v483 = vunpack.c.l.b16 %v394
  %v484 = vunpack.c.l.b16 %v395
  %v485 = vunpack.c.h.b16 %v395
  %v486 = vunpack.c.l.b16 %v396
  %v487 = vunpack.c.l.b16 %v397
  %v488 = vunpack.c.h.b16 %v397
  %v489 = vunpack.c.l.b16 %v398
  %v490 = vunpack.c.l.b16 %v399
  %v491 = vunpack.c.h.b16 %v399
  %v492 = vunpack.c.l.b16 %v400
  %v493 = vunpack.c.l.b16 %v401
  %v494 = vunpack.c.h.b16 %v401
  %v495 = vunpack.c.l.b16 %v402
  %v496 = vpack.c.b16 %v451, %v448
  %v497 = vpack.c.b16 %v452, %v449
  %v498 = vpack.c.b16 %v453, %v450
  %v499 = vpack.c.b16 %v457, %v454
  %v500 = vpack.c.b16 %v458, %v455
  %v501 = vpack.c.b16 %v459, %v456
  %v502 = vpack.c.b16 %v463, %v460
  %v503 = vpack.c.b16 %v464, %v461
  %v504 = vpack.c.b16 %v465, %v462
  %v505 = vpack.c.b16 %v469, %v466
  %v506 = vpack.c.b16 %v470, %v467
  %v507 = vpack.c.b16 %v471, %v468
  %v508 = vpack.c.b16 %v475, %v472
  %v509 = vpack.c.b16 %v476, %v473
  %v510 = vpack.c.b16 %v477, %v474
  %v511 = vpack.c.b16 %v481, %v478
  %v512 = vpack.c.b16 %v482, %v479
  %v513 = vpack.c.b16 %v483, %v480
  %v514 = vpack.c.b16 %v487, %v484
  %v515 = vpack.c.b16 %v488, %v485
  %v516 = vpack.c.b16 %v489, %v486
  %v517 = vpack.c.b16 %v493, %v490
  %v518 = vpack.c.b16 %v494, %v491
  %v519 = vpack.c.b16 %v495, %v492
  %544 = vmatprep.subr.bf16.mxu0 %v497
  %545 = vmatpush1.bf16.msra.mxu0 %v496
  %546 = vmatprep.subr.bf16.mxu0 %v500
  %547 = vmatpush1.bf16.msra.mxu0 %v499
  %548 = vmatprep.subr.bf16.mxu0 %v503
  %549 = vmatpush1.bf16.msra.mxu0 %v502
  %550 = vmatprep.subr.bf16.mxu0 %v506
  %551 = vmatpush1.bf16.msra.mxu0 %v505
  %552 = vmatprep.subr.bf16.mxu0 %v509
  %553 = vmatpush1.bf16.msra.mxu0 %v508
  %554 = vmatprep.subr.bf16.mxu0 %v512
  %555 = vmatpush1.bf16.msra.mxu0 %v511
  %556 = vmatprep.subr.bf16.mxu0 %v515
  %557 = vmatpush1.bf16.msra.mxu0 %v514
  %558 = vmatprep.subr.bf16.mxu0 %v518
  %559 = vmatpush1.bf16.msra.mxu0 %v517
  %560 = vmatprep.subr.bf16.mxu0 0
  %561 = vmatpush1.bf16.msra.mxu0 0
  %562 = vmatprep.subr.bf16.mxu0 0
  %563 = vmatpush1.bf16.msra.mxu0 0
  %564 = vmatprep.subr.bf16.mxu0 0
  %565 = vmatpush1.bf16.msra.mxu0 0
  %566 = vmatprep.subr.bf16.mxu0 0
  %567 = vmatpush1.bf16.msra.mxu0 0
  %568 = vmatprep.subr.bf16.mxu0 0
  %569 = vmatpush1.bf16.msra.mxu0 0
  %570 = vmatprep.subr.bf16.mxu0 0
  %571 = vmatpush1.bf16.msra.mxu0 0
  %572 = vmatprep.subr.bf16.mxu0 0
  %573 = vmatpush1.bf16.msra.mxu0 0
  %574 = vmatprep.subr.bf16.mxu0 0
  %575 = vmatpush1.bf16.msra.mxu0 0
  %576 = vmatprep.mubr.bf16.mxu0 0
  %577 = vmatmul.mubr.bf16.gmra.mrb[0].mxu0 %v415
  %v578 = vpop.f32.mrb[0].mxu0
  %v579 = vadd.f32 0.0, %v578
  %v580 = vpop.f32.mrb[0].mxu0
  %v581 = vadd.f32 0.0, %v580
  %v582 = vpop.f32.mrb[0].mxu0
  %v583 = vadd.f32 0.0, %v582
  %v584 = vpop.f32.mrb[0].mxu0
  %v585 = vadd.f32 0.0, %v584
  %586 = vdwg.mxu0
  %587 = vmatprep.subr.bf16.mxu0 0
  %588 = vmatpush1.bf16.msra.mxu0 %v498
  %589 = vmatprep.subr.bf16.mxu0 0
  %590 = vmatpush1.bf16.msra.mxu0 %v501
  %591 = vmatprep.subr.bf16.mxu0 0
  %592 = vmatpush1.bf16.msra.mxu0 %v504
  %593 = vmatprep.subr.bf16.mxu0 0
  %594 = vmatpush1.bf16.msra.mxu0 %v507
  %595 = vmatprep.subr.bf16.mxu0 0
  %596 = vmatpush1.bf16.msra.mxu0 %v510
  %597 = vmatprep.subr.bf16.mxu0 0
  %598 = vmatpush1.bf16.msra.mxu0 %v513
  %599 = vmatprep.subr.bf16.mxu0 0
  %600 = vmatpush1.bf16.msra.mxu0 %v516
  %601 = vmatprep.subr.bf16.mxu0 0
  %602 = vmatpush1.bf16.msra.mxu0 %v519
  %603 = vmatprep.subr.bf16.mxu0 0
  %604 = vmatpush1.bf16.msra.mxu0 0
  %605 = vmatprep.subr.bf16.mxu0 0
  %606 = vmatpush1.bf16.msra.mxu0 0
  %607 = vmatprep.subr.bf16.mxu0 0
  %608 = vmatpush1.bf16.msra.mxu0 0
  %609 = vmatprep.subr.bf16.mxu0 0
  %610 = vmatpush1.bf16.msra.mxu0 0
  %611 = vmatprep.subr.bf16.mxu0 0
  %612 = vmatpush1.bf16.msra.mxu0 0
  %613 = vmatprep.subr.bf16.mxu0 0
  %614 = vmatpush1.bf16.msra.mxu0 0
  %615 = vmatprep.subr.bf16.mxu0 0
  %616 = vmatpush1.bf16.msra.mxu0 0
  %617 = vmatprep.subr.bf16.mxu0 0
  %618 = vmatpush1.bf16.msra.mxu0 0
  %619 = vmatprep.mubr.bf16.mxu0 0
  %620 = vmatmul.mubr.bf16.gmra.mrb[0].mxu0 %v415
  %v621 = vpop.f32.mrb[0].mxu0
  %v622 = vadd.f32 0.0, %v621
  %v623 = vpop.f32.mrb[0].mxu0
  %v624 = vpop.f32.mrb[0].mxu0
  %v625 = vadd.f32 0.0, %v624
  %v626 = vpop.f32.mrb[0].mxu0
  %627 = vdwg.mxu0
  %v628 = vadd.f32 %v409, %v579
  %v629 = vadd.f32 %v412, %v583
  %v630 = vxor.u32 %v628, 2147483648
  %v631 = vxor.u32 %v629, 2147483648
  %v632 = vmul.f32 %v630, 1.442695
  %v633 = vpow.pop %v632
  %v634 = vmul.f32 %v631, 1.442695
  %v635 = vpow.pop %v634
  %v636 = vadd.f32 %v633, 1.0
  %v637 = vadd.f32 %v635, 1.0
  %v638 = vrcp.pop %v636
  %v639 = vmul.f32 1.0, %v638
  %v640 = vrcp.pop %v637
  %v641 = vmul.f32 1.0, %v640
  %v642 = vadd.f32 %v410, %v581
  %v643 = vadd.f32 %v413, %v585
  %v644 = vxor.u32 %v642, 2147483648
  %v645 = vxor.u32 %v643, 2147483648
  %v646 = vmul.f32 %v644, 1.442695
  %v647 = vpow.pop %v646
  %v648 = vmul.f32 %v645, 1.442695
  %v649 = vpow.pop %v648
  %v650 = vadd.f32 %v647, 1.0
  %v651 = vadd.f32 %v649, 1.0
  %v652 = vrcp.pop %v650
  %v653 = vmul.f32 1.0, %v652
  %v654 = vrcp.pop %v651
  %v655 = vmul.f32 1.0, %v654
  %v657 = vlaneseq
  %v658 = vshrl.u32 %v657, 7
  %v659 = vsub.s32 0, %v658
  %v660 = vrot.slane %v403, %v659
  %v662 = vadd.f32 %v622, %v660
  %v663 = vadd.f32 %v625, %v660
  %v664 = vmul.f32 %v639, %v662
  %v665 = vmul.f32 %v641, %v663
  %v666 = vadd.f32 %v411, %v664
  %v667 = vadd.f32 %v414, %v665
  %v668 = vtanh.pop %v666
  %v669 = vtanh.pop %v667
  %v670 = vsub.f32 1.0, %v653
  %v671 = vsub.f32 1.0, %v655
  %v672 = vmul.f32 %v670, %v668
  %v673 = vmul.f32 %v671, %v669
  %v674 = vmul.f32 %v653, %v404
  %v675 = vmul.f32 %v655, %v405
  %v676 = vadd.f32 %v672, %v674
  %v677 = vadd.f32 %v673, %v675
  %v678 = vpack.c.bf16 %v677, %v676
  %v680 = vunpack.c.l.b16 %v678
  %v681 = vunpack.c.h.b16 %v678
  %v682 = vpack.c.b16 %v680, %v680
  %v683 = vpack.c.b16 %v681, %v681
  %686 = vst [vmem:[%s5] sm:$0xf] %v682
  %687 = vst [vmem:[%s5 + $0x4] sm:$0xf] %v683
  %s688 = smul.u32 2, 3
  %s689 = smul.addr %s688, 8
  %s690 = scalar_lea.vmem [#allocation3], %s689
  %v691 = vld [vmem:[%s690] sm:$0xff]
  %v692 = vld [vmem:[%s690 + $0x8] sm:$0xff]
  %v693 = vld [vmem:[%s690 + $0x10] sm:$0xff]
  %v694 = vld [vmem:[%s690 + $0x18] sm:$0xff]
  %v695 = vld [vmem:[%s690 + $0x20] sm:$0xff]
  %v696 = vld [vmem:[%s690 + $0x28] sm:$0xff]
  %697 = vmatprep.subr.bf16.mxu0 %v497
  %698 = vmatpush1.bf16.msra.mxu0 %v496
  %699 = vmatprep.subr.bf16.mxu0 %v500
  %700 = vmatpush1.bf16.msra.mxu0 %v499
  %701 = vmatprep.subr.bf16.mxu0 %v503
  %702 = vmatpush1.bf16.msra.mxu0 %v502
  %703 = vmatprep.subr.bf16.mxu0 %v506
  %704 = vmatpush1.bf16.msra.mxu0 %v505
  %705 = vmatprep.subr.bf16.mxu0 %v509
  %706 = vmatpush1.bf16.msra.mxu0 %v508
  %707 = vmatprep.subr.bf16.mxu0 %v512
  %708 = vmatpush1.bf16.msra.mxu0 %v511
  %709 = vmatprep.subr.bf16.mxu0 %v515
  %710 = vmatpush1.bf16.msra.mxu0 %v514
  %711 = vmatprep.subr.bf16.mxu0 %v518
  %712 = vmatpush1.bf16.msra.mxu0 %v517
  %713 = vmatprep.subr.bf16.mxu0 0
  %714 = vmatpush1.bf16.msra.mxu0 0
  %715 = vmatprep.subr.bf16.mxu0 0
  %716 = vmatpush1.bf16.msra.mxu0 0
  %717 = vmatprep.subr.bf16.mxu0 0
  %718 = vmatpush1.bf16.msra.mxu0 0
  %719 = vmatprep.subr.bf16.mxu0 0
  %720 = vmatpush1.bf16.msra.mxu0 0
  %721 = vmatprep.subr.bf16.mxu0 0
  %722 = vmatpush1.bf16.msra.mxu0 0
  %723 = vmatprep.subr.bf16.mxu0 0
  %724 = vmatpush1.bf16.msra.mxu0 0
  %725 = vmatprep.subr.bf16.mxu0 0
  %726 = vmatpush1.bf16.msra.mxu0 0
  %727 = vmatprep.subr.bf16.mxu0 0
  %728 = vmatpush1.bf16.msra.mxu0 0
  %729 = vmatprep.mubr.bf16.mxu0 0
  %730 = vmatmul.mubr.bf16.gmra.mrb[0].mxu0 %v678
  %v731 = vpop.f32.mrb[0].mxu0
  %v732 = vadd.f32 0.0, %v731
  %v733 = vpop.f32.mrb[0].mxu0
  %v734 = vadd.f32 0.0, %v733
  %v735 = vpop.f32.mrb[0].mxu0
  %v736 = vadd.f32 0.0, %v735
  %v737 = vpop.f32.mrb[0].mxu0
  %v738 = vadd.f32 0.0, %v737
  %739 = vdwg.mxu0
  %740 = vmatprep.subr.bf16.mxu0 0
  %741 = vmatpush1.bf16.msra.mxu0 %v498
  %742 = vmatprep.subr.bf16.mxu0 0
  %743 = vmatpush1.bf16.msra.mxu0 %v501
  %744 = vmatprep.subr.bf16.mxu0 0
  %745 = vmatpush1.bf16.msra.mxu0 %v504
  %746 = vmatprep.subr.bf16.mxu0 0
  %747 = vmatpush1.bf16.msra.mxu0 %v507
  %748 = vmatprep.subr.bf16.mxu0 0
  %749 = vmatpush1.bf16.msra.mxu0 %v510
  %750 = vmatprep.subr.bf16.mxu0 0
  %751 = vmatpush1.bf16.msra.mxu0 %v513
  %752 = vmatprep.subr.bf16.mxu0 0
  %753 = vmatpush1.bf16.msra.mxu0 %v516
  %754 = vmatprep.subr.bf16.mxu0 0
  %755 = vmatpush1.bf16.msra.mxu0 %v519
  %756 = vmatprep.subr.bf16.mxu0 0
  %757 = vmatpush1.bf16.msra.mxu0 0
  %758 = vmatprep.subr.bf16.mxu0 0
  %759 = vmatpush1.bf16.msra.mxu0 0
  %760 = vmatprep.subr.bf16.mxu0 0
  %761 = vmatpush1.bf16.msra.mxu0 0
  %762 = vmatprep.subr.bf16.mxu0 0
  %763 = vmatpush1.bf16.msra.mxu0 0
  %764 = vmatprep.subr.bf16.mxu0 0
  %765 = vmatpush1.bf16.msra.mxu0 0
  %766 = vmatprep.subr.bf16.mxu0 0
  %767 = vmatpush1.bf16.msra.mxu0 0
  %768 = vmatprep.subr.bf16.mxu0 0
  %769 = vmatpush1.bf16.msra.mxu0 0
  %770 = vmatprep.subr.bf16.mxu0 0
  %771 = vmatpush1.bf16.msra.mxu0 0
  %772 = vmatprep.mubr.bf16.mxu0 0
  %773 = vmatmul.mubr.bf16.gmra.mrb[0].mxu0 %v678
  %v774 = vpop.f32.mrb[0].mxu0
  %v775 = vadd.f32 0.0, %v774
  %v776 = vpop.f32.mrb[0].mxu0
  %v777 = vpop.f32.mrb[0].mxu0
  %v778 = vadd.f32 0.0, %v777
  %v779 = vpop.f32.mrb[0].mxu0
  %780 = vdwg.mxu0
  %v781 = vadd.f32 %v691, %v732
  %v782 = vadd.f32 %v694, %v736
  %v783 = vxor.u32 %v781, 2147483648
  %v784 = vxor.u32 %v782, 2147483648
  %v785 = vmul.f32 %v783, 1.442695
  %v786 = vpow.pop %v785
  %v787 = vmul.f32 %v784, 1.442695
  %v788 = vpow.pop %v787
  %v789 = vadd.f32 %v786, 1.0
  %v790 = vadd.f32 %v788, 1.0
  %v791 = vrcp.pop %v789
  %v792 = vmul.f32 1.0, %v791
  %v793 = vrcp.pop %v790
  %v794 = vmul.f32 1.0, %v793
  %v795 = vadd.f32 %v692, %v734
  %v796 = vadd.f32 %v695, %v738
  %v797 = vxor.u32 %v795, 2147483648
  %v798 = vxor.u32 %v796, 2147483648
  %v799 = vmul.f32 %v797, 1.442695
  %v800 = vpow.pop %v799
  %v801 = vmul.f32 %v798, 1.442695
  %v802 = vpow.pop %v801
  %v803 = vadd.f32 %v800, 1.0
  %v804 = vadd.f32 %v802, 1.0
  %v805 = vrcp.pop %v803
  %v806 = vmul.f32 1.0, %v805
  %v807 = vrcp.pop %v804
  %v808 = vmul.f32 1.0, %v807
  %v809 = vadd.f32 %v775, %v660
  %v810 = vadd.f32 %v778, %v660
  %v811 = vmul.f32 %v792, %v809
  %v812 = vmul.f32 %v794, %v810
  %v813 = vadd.f32 %v693, %v811
  %v814 = vadd.f32 %v696, %v812
  %v815 = vtanh.pop %v813
  %v816 = vtanh.pop %v814
  %v817 = vsub.f32 1.0, %v806
  %v818 = vsub.f32 1.0, %v808
  %v819 = vmul.f32 %v817, %v815
  %v820 = vmul.f32 %v818, %v816
  %v821 = vmul.f32 %v806, %v676
  %v822 = vmul.f32 %v808, %v677
  %v823 = vadd.f32 %v819, %v821
  %v824 = vadd.f32 %v820, %v822
  %v825 = vpack.c.bf16 %v824, %v823
  %v827 = vunpack.c.l.b16 %v825
  %v828 = vunpack.c.h.b16 %v825
  %v829 = vpack.c.b16 %v827, %v827
  %v830 = vpack.c.b16 %v828, %v828
  %s833 = scalar_lea.vmem %s5, 8
  %834 = vst [vmem:[%s833] sm:$0xf] %v829
  %835 = vst [vmem:[%s833 + $0x4] sm:$0xf] %v830
  %s836 = smul.u32 4, 3
  %s837 = smul.addr %s836, 8
  %s838 = scalar_lea.vmem [#allocation3], %s837
  %v839 = vld [vmem:[%s838] sm:$0xff]
  %v840 = vld [vmem:[%s838 + $0x8] sm:$0xff]
  %v841 = vld [vmem:[%s838 + $0x10] sm:$0xff]
  %v842 = vld [vmem:[%s838 + $0x18] sm:$0xff]
  %v843 = vld [vmem:[%s838 + $0x20] sm:$0xff]
  %v844 = vld [vmem:[%s838 + $0x28] sm:$0xff]
  %845 = vmatprep.subr.bf16.mxu0 %v497
  %846 = vmatpush1.bf16.msra.mxu0 %v496
  %847 = vmatprep.subr.bf16.mxu0 %v500
  %848 = vmatpush1.bf16.msra.mxu0 %v499
  %849 = vmatprep.subr.bf16.mxu0 %v503
  %850 = vmatpush1.bf16.msra.mxu0 %v502
  %851 = vmatprep.subr.bf16.mxu0 %v506
  %852 = vmatpush1.bf16.msra.mxu0 %v505
  %853 = vmatprep.subr.bf16.mxu0 %v509
  %854 = vmatpush1.bf16.msra.mxu0 %v508
  %855 = vmatprep.subr.bf16.mxu0 %v512
  %856 = vmatpush1.bf16.msra.mxu0 %v511
  %857 = vmatprep.subr.bf16.mxu0 %v515
  %858 = vmatpush1.bf16.msra.mxu0 %v514
  %859 = vmatprep.subr.bf16.mxu0 %v518
  %860 = vmatpush1.bf16.msra.mxu0 %v517
  %861 = vmatprep.subr.bf16.mxu0 0
  %862 = vmatpush1.bf16.msra.mxu0 0
  %863 = vmatprep.subr.bf16.mxu0 0
  %864 = vmatpush1.bf16.msra.mxu0 0
  %865 = vmatprep.subr.bf16.mxu0 0
  %866 = vmatpush1.bf16.msra.mxu0 0
  %867 = vmatprep.subr.bf16.mxu0 0
  %868 = vmatpush1.bf16.msra.mxu0 0
  %869 = vmatprep.subr.bf16.mxu0 0
  %870 = vmatpush1.bf16.msra.mxu0 0
  %871 = vmatprep.subr.bf16.mxu0 0
  %872 = vmatpush1.bf16.msra.mxu0 0
  %873 = vmatprep.subr.bf16.mxu0 0
  %874 = vmatpush1.bf16.msra.mxu0 0
  %875 = vmatprep.subr.bf16.mxu0 0
  %876 = vmatpush1.bf16.msra.mxu0 0
  %877 = vmatprep.mubr.bf16.mxu0 0
  %878 = vmatmul.mubr.bf16.gmra.mrb[0].mxu0 %v825
  %v879 = vpop.f32.mrb[0].mxu0
  %v880 = vadd.f32 0.0, %v879
  %v881 = vpop.f32.mrb[0].mxu0
  %v882 = vadd.f32 0.0, %v881
  %v883 = vpop.f32.mrb[0].mxu0
  %v884 = vadd.f32 0.0, %v883
  %v885 = vpop.f32.mrb[0].mxu0
  %v886 = vadd.f32 0.0, %v885
  %887 = vdwg.mxu0
  %888 = vmatprep.subr.bf16.mxu0 0
  %889 = vmatpush1.bf16.msra.mxu0 %v498
  %890 = vmatprep.subr.bf16.mxu0 0
  %891 = vmatpush1.bf16.msra.mxu0 %v501
  %892 = vmatprep.subr.bf16.mxu0 0
  %893 = vmatpush1.bf16.msra.mxu0 %v504
  %894 = vmatprep.subr.bf16.mxu0 0
  %895 = vmatpush1.bf16.msra.mxu0 %v507
  %896 = vmatprep.subr.bf16.mxu0 0
  %897 = vmatpush1.bf16.msra.mxu0 %v510
  %898 = vmatprep.subr.bf16.mxu0 0
  %899 = vmatpush1.bf16.msra.mxu0 %v513
  %900 = vmatprep.subr.bf16.mxu0 0
  %901 = vmatpush1.bf16.msra.mxu0 %v516
  %902 = vmatprep.subr.bf16.mxu0 0
  %903 = vmatpush1.bf16.msra.mxu0 %v519
  %904 = vmatprep.subr.bf16.mxu0 0
  %905 = vmatpush1.bf16.msra.mxu0 0
  %906 = vmatprep.subr.bf16.mxu0 0
  %907 = vmatpush1.bf16.msra.mxu0 0
  %908 = vmatprep.subr.bf16.mxu0 0
  %909 = vmatpush1.bf16.msra.mxu0 0
  %910 = vmatprep.subr.bf16.mxu0 0
  %911 = vmatpush1.bf16.msra.mxu0 0
  %912 = vmatprep.subr.bf16.mxu0 0
  %913 = vmatpush1.bf16.msra.mxu0 0
  %914 = vmatprep.subr.bf16.mxu0 0
  %915 = vmatpush1.bf16.msra.mxu0 0
  %916 = vmatprep.subr.bf16.mxu0 0
  %917 = vmatpush1.bf16.msra.mxu0 0
  %918 = vmatprep.subr.bf16.mxu0 0
  %919 = vmatpush1.bf16.msra.mxu0 0
  %920 = vmatprep.mubr.bf16.mxu0 0
  %921 = vmatmul.mubr.bf16.gmra.mrb[0].mxu0 %v825
  %v922 = vpop.f32.mrb[0].mxu0
  %v923 = vadd.f32 0.0, %v922
  %v924 = vpop.f32.mrb[0].mxu0
  %v925 = vpop.f32.mrb[0].mxu0
  %v926 = vadd.f32 0.0, %v925
  %v927 = vpop.f32.mrb[0].mxu0
  %928 = vdwg.mxu0
  %v929 = vadd.f32 %v839, %v880
  %v930 = vadd.f32 %v842, %v884
  %v931 = vxor.u32 %v929, 2147483648
  %v932 = vxor.u32 %v930, 2147483648
  %v933 = vmul.f32 %v931, 1.442695
  %v934 = vpow.pop %v933
  %v935 = vmul.f32 %v932, 1.442695
  %v936 = vpow.pop %v935
  %v937 = vadd.f32 %v934, 1.0
  %v938 = vadd.f32 %v936, 1.0
  %v939 = vrcp.pop %v937
  %v940 = vmul.f32 1.0, %v939
  %v941 = vrcp.pop %v938
  %v942 = vmul.f32 1.0, %v941
  %v943 = vadd.f32 %v840, %v882
  %v944 = vadd.f32 %v843, %v886
  %v945 = vxor.u32 %v943, 2147483648
  %v946 = vxor.u32 %v944, 2147483648
  %v947 = vmul.f32 %v945, 1.442695
  %v948 = vpow.pop %v947
  %v949 = vmul.f32 %v946, 1.442695
  %v950 = vpow.pop %v949
  %v951 = vadd.f32 %v948, 1.0
  %v952 = vadd.f32 %v950, 1.0
  %v953 = vrcp.pop %v951
  %v954 = vmul.f32 1.0, %v953
  %v955 = vrcp.pop %v952
  %v956 = vmul.f32 1.0, %v955
  %v957 = vadd.f32 %v923, %v660
  %v958 = vadd.f32 %v926, %v660
  %v959 = vmul.f32 %v940, %v957
  %v960 = vmul.f32 %v942, %v958
  %v961 = vadd.f32 %v841, %v959
  %v962 = vadd.f32 %v844, %v960
  %v963 = vtanh.pop %v961
  %v964 = vtanh.pop %v962
  %v965 = vsub.f32 1.0, %v954
  %v966 = vsub.f32 1.0, %v956
  %v967 = vmul.f32 %v965, %v963
  %v968 = vmul.f32 %v966, %v964
  %v969 = vmul.f32 %v954, %v823
  %v970 = vmul.f32 %v956, %v824
  %v971 = vadd.f32 %v967, %v969
  %v972 = vadd.f32 %v968, %v970
  %v973 = vpack.c.bf16 %v972, %v971
  %v975 = vunpack.c.l.b16 %v973
  %v976 = vunpack.c.h.b16 %v973
  %v977 = vpack.c.b16 %v975, %v975
  %v978 = vpack.c.b16 %v976, %v976
  %s981 = scalar_lea.vmem %s5, 16
  %982 = vst [vmem:[%s981] sm:$0xf] %v977
  %983 = vst [vmem:[%s981 + $0x4] sm:$0xf] %v978
  %s984 = smul.u32 6, 3
  %s985 = smul.addr %s984, 8
  %s986 = scalar_lea.vmem [#allocation3], %s985
  %v987 = vld [vmem:[%s986] sm:$0xff]
  %v988 = vld [vmem:[%s986 + $0x8] sm:$0xff]
  %v989 = vld [vmem:[%s986 + $0x10] sm:$0xff]
  %v990 = vld [vmem:[%s986 + $0x18] sm:$0xff]
  %v991 = vld [vmem:[%s986 + $0x20] sm:$0xff]
  %v992 = vld [vmem:[%s986 + $0x28] sm:$0xff]
  %993 = vmatprep.subr.bf16.mxu0 %v497
  %994 = vmatpush1.bf16.msra.mxu0 %v496
  %995 = vmatprep.subr.bf16.mxu0 %v500
  %996 = vmatpush1.bf16.msra.mxu0 %v499
  %997 = vmatprep.subr.bf16.mxu0 %v503
  %998 = vmatpush1.bf16.msra.mxu0 %v502
  %999 = vmatprep.subr.bf16.mxu0 %v506
  %1000 = vmatpush1.bf16.msra.mxu0 %v505
  %1001 = vmatprep.subr.bf16.mxu0 %v509
  %1002 = vmatpush1.bf16.msra.mxu0 %v508
  %1003 = vmatprep.subr.bf16.mxu0 %v512
  %1004 = vmatpush1.bf16.msra.mxu0 %v511
  %1005 = vmatprep.subr.bf16.mxu0 %v515
  %1006 = vmatpush1.bf16.msra.mxu0 %v514
  %1007 = vmatprep.subr.bf16.mxu0 %v518
  %1008 = vmatpush1.bf16.msra.mxu0 %v517
  %1009 = vmatprep.subr.bf16.mxu0 0
  %1010 = vmatpush1.bf16.msra.mxu0 0
  %1011 = vmatprep.subr.bf16.mxu0 0
  %1012 = vmatpush1.bf16.msra.mxu0 0
  %1013 = vmatprep.subr.bf16.mxu0 0
  %1014 = vmatpush1.bf16.msra.mxu0 0
  %1015 = vmatprep.subr.bf16.mxu0 0
  %1016 = vmatpush1.bf16.msra.mxu0 0
  %1017 = vmatprep.subr.bf16.mxu0 0
  %1018 = vmatpush1.bf16.msra.mxu0 0
  %1019 = vmatprep.subr.bf16.mxu0 0
  %1020 = vmatpush1.bf16.msra.mxu0 0
  %1021 = vmatprep.subr.bf16.mxu0 0
  %1022 = vmatpush1.bf16.msra.mxu0 0
  %1023 = vmatprep.subr.bf16.mxu0 0
  %1024 = vmatpush1.bf16.msra.mxu0 0
  %1025 = vmatprep.mubr.bf16.mxu0 0
  %1026 = vmatmul.mubr.bf16.gmra.mrb[0].mxu0 %v973
  %v1027 = vpop.f32.mrb[0].mxu0
  %v1028 = vadd.f32 0.0, %v1027
  %v1029 = vpop.f32.mrb[0].mxu0
  %v1030 = vadd.f32 0.0, %v1029
  %v1031 = vpop.f32.mrb[0].mxu0
  %v1032 = vadd.f32 0.0, %v1031
  %v1033 = vpop.f32.mrb[0].mxu0
  %v1034 = vadd.f32 0.0, %v1033
  %1035 = vdwg.mxu0
  %1036 = vmatprep.subr.bf16.mxu0 0
  %1037 = vmatpush1.bf16.msra.mxu0 %v498
  %1038 = vmatprep.subr.bf16.mxu0 0
  %1039 = vmatpush1.bf16.msra.mxu0 %v501
  %1040 = vmatprep.subr.bf16.mxu0 0
  %1041 = vmatpush1.bf16.msra.mxu0 %v504
  %1042 = vmatprep.subr.bf16.mxu0 0
  %1043 = vmatpush1.bf16.msra.mxu0 %v507
  %1044 = vmatprep.subr.bf16.mxu0 0
  %1045 = vmatpush1.bf16.msra.mxu0 %v510
  %1046 = vmatprep.subr.bf16.mxu0 0
  %1047 = vmatpush1.bf16.msra.mxu0 %v513
  %1048 = vmatprep.subr.bf16.mxu0 0
  %1049 = vmatpush1.bf16.msra.mxu0 %v516
  %1050 = vmatprep.subr.bf16.mxu0 0
  %1051 = vmatpush1.bf16.msra.mxu0 %v519
  %1052 = vmatprep.subr.bf16.mxu0 0
  %1053 = vmatpush1.bf16.msra.mxu0 0
  %1054 = vmatprep.subr.bf16.mxu0 0
  %1055 = vmatpush1.bf16.msra.mxu0 0
  %1056 = vmatprep.subr.bf16.mxu0 0
  %1057 = vmatpush1.bf16.msra.mxu0 0
  %1058 = vmatprep.subr.bf16.mxu0 0
  %1059 = vmatpush1.bf16.msra.mxu0 0
  %1060 = vmatprep.subr.bf16.mxu0 0
  %1061 = vmatpush1.bf16.msra.mxu0 0
  %1062 = vmatprep.subr.bf16.mxu0 0
  %1063 = vmatpush1.bf16.msra.mxu0 0
  %1064 = vmatprep.subr.bf16.mxu0 0
  %1065 = vmatpush1.bf16.msra.mxu0 0
  %1066 = vmatprep.subr.bf16.mxu0 0
  %1067 = vmatpush1.bf16.msra.mxu0 0
  %1068 = vmatprep.mubr.bf16.mxu0 0
  %1069 = vmatmul.mubr.bf16.gmra.mrb[0].mxu0 %v973
  %v1070 = vpop.f32.mrb[0].mxu0
  %v1071 = vadd.f32 0.0, %v1070
  %v1072 = vpop.f32.mrb[0].mxu0
  %v1073 = vpop.f32.mrb[0].mxu0
  %v1074 = vadd.f32 0.0, %v1073
  %v1075 = vpop.f32.mrb[0].mxu0
  %1076 = vdwg.mxu0
  %v1077 = vadd.f32 %v987, %v1028
  %v1078 = vadd.f32 %v990, %v1032
  %v1079 = vxor.u32 %v1077, 2147483648
  %v1080 = vxor.u32 %v1078, 2147483648
  %v1081 = vmul.f32 %v1079, 1.442695
  %v1082 = vpow.pop %v1081
  %v1083 = vmul.f32 %v1080, 1.442695
  %v1084 = vpow.pop %v1083
  %v1085 = vadd.f32 %v1082, 1.0
  %v1086 = vadd.f32 %v1084, 1.0
  %v1087 = vrcp.pop %v1085
  %v1088 = vmul.f32 1.0, %v1087
  %v1089 = vrcp.pop %v1086
  %v1090 = vmul.f32 1.0, %v1089
  %v1091 = vadd.f32 %v988, %v1030
  %v1092 = vadd.f32 %v991, %v1034
  %v1093 = vxor.u32 %v1091, 2147483648
  %v1094 = vxor.u32 %v1092, 2147483648
  %v1095 = vmul.f32 %v1093, 1.442695
  %v1096 = vpow.pop %v1095
  %v1097 = vmul.f32 %v1094, 1.442695
  %v1098 = vpow.pop %v1097
  %v1099 = vadd.f32 %v1096, 1.0
  %v1100 = vadd.f32 %v1098, 1.0
  %v1101 = vrcp.pop %v1099
  %v1102 = vmul.f32 1.0, %v1101
  %v1103 = vrcp.pop %v1100
  %v1104 = vmul.f32 1.0, %v1103
  %v1105 = vadd.f32 %v1071, %v660
  %v1106 = vadd.f32 %v1074, %v660
  %v1107 = vmul.f32 %v1088, %v1105
  %v1108 = vmul.f32 %v1090, %v1106
  %v1109 = vadd.f32 %v989, %v1107
  %v1110 = vadd.f32 %v992, %v1108
  %v1111 = vtanh.pop %v1109
  %v1112 = vtanh.pop %v1110
  %v1113 = vsub.f32 1.0, %v1102
  %v1114 = vsub.f32 1.0, %v1104
  %v1115 = vmul.f32 %v1113, %v1111
  %v1116 = vmul.f32 %v1114, %v1112
  %v1117 = vmul.f32 %v1102, %v971
  %v1118 = vmul.f32 %v1104, %v972
  %v1119 = vadd.f32 %v1115, %v1117
  %v1120 = vadd.f32 %v1116, %v1118
  %v1121 = vpack.c.bf16 %v1120, %v1119
  %v1123 = vunpack.c.l.b16 %v1121
  %v1124 = vunpack.c.h.b16 %v1121
  %v1125 = vpack.c.b16 %v1123, %v1123
  %v1126 = vpack.c.b16 %v1124, %v1124
  %s1129 = scalar_lea.vmem %s5, 24
  %1130 = vst [vmem:[%s1129] sm:$0xf] %v1125
  %1131 = vst [vmem:[%s1129 + $0x4] sm:$0xf] %v1126
  %s1132 = smul.u32 8, 3
  %s1133 = smul.addr %s1132, 8
  %s1134 = scalar_lea.vmem [#allocation3], %s1133
  %v1135 = vld [vmem:[%s1134] sm:$0xff]
  %v1136 = vld [vmem:[%s1134 + $0x8] sm:$0xff]
  %v1137 = vld [vmem:[%s1134 + $0x10] sm:$0xff]
  %v1138 = vld [vmem:[%s1134 + $0x18] sm:$0xff]
  %v1139 = vld [vmem:[%s1134 + $0x20] sm:$0xff]
  %v1140 = vld [vmem:[%s1134 + $0x28] sm:$0xff]
  %1141 = vmatprep.subr.bf16.mxu0 %v497
  %1142 = vmatpush1.bf16.msra.mxu0 %v496
  %1143 = vmatprep.subr.bf16.mxu0 %v500
  %1144 = vmatpush1.bf16.msra.mxu0 %v499
  %1145 = vmatprep.subr.bf16.mxu0 %v503
  %1146 = vmatpush1.bf16.msra.mxu0 %v502
  %1147 = vmatprep.subr.bf16.mxu0 %v506
  %1148 = vmatpush1.bf16.msra.mxu0 %v505
  %1149 = vmatprep.subr.bf16.mxu0 %v509
  %1150 = vmatpush1.bf16.msra.mxu0 %v508
  %1151 = vmatprep.subr.bf16.mxu0 %v512
  %1152 = vmatpush1.bf16.msra.mxu0 %v511
  %1153 = vmatprep.subr.bf16.mxu0 %v515
  %1154 = vmatpush1.bf16.msra.mxu0 %v514
  %1155 = vmatprep.subr.bf16.mxu0 %v518
  %1156 = vmatpush1.bf16.msra.mxu0 %v517
  %1157 = vmatprep.subr.bf16.mxu0 0
  %1158 = vmatpush1.bf16.msra.mxu0 0
  %1159 = vmatprep.subr.bf16.mxu0 0
  %1160 = vmatpush1.bf16.msra.mxu0 0
  %1161 = vmatprep.subr.bf16.mxu0 0
  %1162 = vmatpush1.bf16.msra.mxu0 0
  %1163 = vmatprep.subr.bf16.mxu0 0
  %1164 = vmatpush1.bf16.msra.mxu0 0
  %1165 = vmatprep.subr.bf16.mxu0 0
  %1166 = vmatpush1.bf16.msra.mxu0 0
  %1167 = vmatprep.subr.bf16.mxu0 0
  %1168 = vmatpush1.bf16.msra.mxu0 0
  %1169 = vmatprep.subr.bf16.mxu0 0
  %1170 = vmatpush1.bf16.msra.mxu0 0
  %1171 = vmatprep.subr.bf16.mxu0 0
  %1172 = vmatpush1.bf16.msra.mxu0 0
  %1173 = vmatprep.mubr.bf16.mxu0 0
  %1174 = vmatmul.mubr.bf16.gmra.mrb[0].mxu0 %v1121
  %v1175 = vpop.f32.mrb[0].mxu0
  %v1176 = vadd.f32 0.0, %v1175
  %v1177 = vpop.f32.mrb[0].mxu0
  %v1178 = vadd.f32 0.0, %v1177
  %v1179 = vpop.f32.mrb[0].mxu0
  %v1180 = vadd.f32 0.0, %v1179
  %v1181 = vpop.f32.mrb[0].mxu0
  %v1182 = vadd.f32 0.0, %v1181
  %1183 = vdwg.mxu0
  %1184 = vmatprep.subr.bf16.mxu0 0
  %1185 = vmatpush1.bf16.msra.mxu0 %v498
  %1186 = vmatprep.subr.bf16.mxu0 0
  %1187 = vmatpush1.bf16.msra.mxu0 %v501
  %1188 = vmatprep.subr.bf16.mxu0 0
  %1189 = vmatpush1.bf16.msra.mxu0 %v504
  %1190 = vmatprep.subr.bf16.mxu0 0
  %1191 = vmatpush1.bf16.msra.mxu0 %v507
  %1192 = vmatprep.subr.bf16.mxu0 0
  %1193 = vmatpush1.bf16.msra.mxu0 %v510
  %1194 = vmatprep.subr.bf16.mxu0 0
  %1195 = vmatpush1.bf16.msra.mxu0 %v513
  %1196 = vmatprep.subr.bf16.mxu0 0
  %1197 = vmatpush1.bf16.msra.mxu0 %v516
  %1198 = vmatprep.subr.bf16.mxu0 0
  %1199 = vmatpush1.bf16.msra.mxu0 %v519
  %1200 = vmatprep.subr.bf16.mxu0 0
  %1201 = vmatpush1.bf16.msra.mxu0 0
  %1202 = vmatprep.subr.bf16.mxu0 0
  %1203 = vmatpush1.bf16.msra.mxu0 0
  %1204 = vmatprep.subr.bf16.mxu0 0
  %1205 = vmatpush1.bf16.msra.mxu0 0
  %1206 = vmatprep.subr.bf16.mxu0 0
  %1207 = vmatpush1.bf16.msra.mxu0 0
  %1208 = vmatprep.subr.bf16.mxu0 0
  %1209 = vmatpush1.bf16.msra.mxu0 0
  %1210 = vmatprep.subr.bf16.mxu0 0
  %1211 = vmatpush1.bf16.msra.mxu0 0
  %1212 = vmatprep.subr.bf16.mxu0 0
  %1213 = vmatpush1.bf16.msra.mxu0 0
  %1214 = vmatprep.subr.bf16.mxu0 0
  %1215 = vmatpush1.bf16.msra.mxu0 0
  %1216 = vmatprep.mubr.bf16.mxu0 0
  %1217 = vmatmul.mubr.bf16.gmra.mrb[0].mxu0 %v1121
  %v1218 = vpop.f32.mrb[0].mxu0
  %v1219 = vadd.f32 0.0, %v1218
  %v1220 = vpop.f32.mrb[0].mxu0
  %v1221 = vpop.f32.mrb[0].mxu0
  %v1222 = vadd.f32 0.0, %v1221
  %v1223 = vpop.f32.mrb[0].mxu0
  %1224 = vdwg.mxu0
  %v1225 = vadd.f32 %v1135, %v1176
  %v1226 = vadd.f32 %v1138, %v1180
  %v1227 = vxor.u32 %v1225, 2147483648
  %v1228 = vxor.u32 %v1226, 2147483648
  %v1229 = vmul.f32 %v1227, 1.442695
  %v1230 = vpow.pop %v1229
  %v1231 = vmul.f32 %v1228, 1.442695
  %v1232 = vpow.pop %v1231
  %v1233 = vadd.f32 %v1230, 1.0
  %v1234 = vadd.f32 %v1232, 1.0
  %v1235 = vrcp.pop %v1233
  %v1236 = vmul.f32 1.0, %v1235
  %v1237 = vrcp.pop %v1234
  %v1238 = vmul.f32 1.0, %v1237
  %v1239 = vadd.f32 %v1136, %v1178
  %v1240 = vadd.f32 %v1139, %v1182
  %v1241 = vxor.u32 %v1239, 2147483648
  %v1242 = vxor.u32 %v1240, 2147483648
  %v1243 = vmul.f32 %v1241, 1.442695
  %v1244 = vpow.pop %v1243
  %v1245 = vmul.f32 %v1242, 1.442695
  %v1246 = vpow.pop %v1245
  %v1247 = vadd.f32 %v1244, 1.0
  %v1248 = vadd.f32 %v1246, 1.0
  %v1249 = vrcp.pop %v1247
  %v1250 = vmul.f32 1.0, %v1249
  %v1251 = vrcp.pop %v1248
  %v1252 = vmul.f32 1.0, %v1251
  %v1253 = vadd.f32 %v1219, %v660
  %v1254 = vadd.f32 %v1222, %v660
  %v1255 = vmul.f32 %v1236, %v1253
  %v1256 = vmul.f32 %v1238, %v1254
  %v1257 = vadd.f32 %v1137, %v1255
  %v1258 = vadd.f32 %v1140, %v1256
  %v1259 = vtanh.pop %v1257
  %v1260 = vtanh.pop %v1258
  %v1261 = vsub.f32 1.0, %v1250
  %v1262 = vsub.f32 1.0, %v1252
  %v1263 = vmul.f32 %v1261, %v1259
  %v1264 = vmul.f32 %v1262, %v1260
  %v1265 = vmul.f32 %v1250, %v1119
  %v1266 = vmul.f32 %v1252, %v1120
  %v1267 = vadd.f32 %v1263, %v1265
  %v1268 = vadd.f32 %v1264, %v1266
  %v1269 = vpack.c.bf16 %v1268, %v1267
  %v1271 = vunpack.c.l.b16 %v1269
  %v1272 = vunpack.c.h.b16 %v1269
  %v1273 = vpack.c.b16 %v1271, %v1271
  %v1274 = vpack.c.b16 %v1272, %v1272
  %s1277 = scalar_lea.vmem %s5, 32
  %1278 = vst [vmem:[%s1277] sm:$0xf] %v1273
  %1279 = vst [vmem:[%s1277 + $0x4] sm:$0xf] %v1274
  %s1280 = smul.u32 10, 3
  %s1281 = smul.addr %s1280, 8
  %s1282 = scalar_lea.vmem [#allocation3], %s1281
  %v1283 = vld [vmem:[%s1282] sm:$0xff]
  %v1284 = vld [vmem:[%s1282 + $0x8] sm:$0xff]
  %v1285 = vld [vmem:[%s1282 + $0x10] sm:$0xff]
  %v1286 = vld [vmem:[%s1282 + $0x18] sm:$0xff]
  %v1287 = vld [vmem:[%s1282 + $0x20] sm:$0xff]
  %v1288 = vld [vmem:[%s1282 + $0x28] sm:$0xff]
  %1289 = vmatprep.subr.bf16.mxu0 %v497
  %1290 = vmatpush1.bf16.msra.mxu0 %v496
  %1291 = vmatprep.subr.bf16.mxu0 %v500
  %1292 = vmatpush1.bf16.msra.mxu0 %v499
  %1293 = vmatprep.subr.bf16.mxu0 %v503
  %1294 = vmatpush1.bf16.msra.mxu0 %v502
  %1295 = vmatprep.subr.bf16.mxu0 %v506
  %1296 = vmatpush1.bf16.msra.mxu0 %v505
  %1297 = vmatprep.subr.bf16.mxu0 %v509
  %1298 = vmatpush1.bf16.msra.mxu0 %v508
  %1299 = vmatprep.subr.bf16.mxu0 %v512
  %1300 = vmatpush1.bf16.msra.mxu0 %v511
  %1301 = vmatprep.subr.bf16.mxu0 %v515
  %1302 = vmatpush1.bf16.msra.mxu0 %v514
  %1303 = vmatprep.subr.bf16.mxu0 %v518
  %1304 = vmatpush1.bf16.msra.mxu0 %v517
  %1305 = vmatprep.subr.bf16.mxu0 0
  %1306 = vmatpush1.bf16.msra.mxu0 0
  %1307 = vmatprep.subr.bf16.mxu0 0
  %1308 = vmatpush1.bf16.msra.mxu0 0
  %1309 = vmatprep.subr.bf16.mxu0 0
  %1310 = vmatpush1.bf16.msra.mxu0 0
  %1311 = vmatprep.subr.bf16.mxu0 0
  %1312 = vmatpush1.bf16.msra.mxu0 0
  %1313 = vmatprep.subr.bf16.mxu0 0
  %1314 = vmatpush1.bf16.msra.mxu0 0
  %1315 = vmatprep.subr.bf16.mxu0 0
  %1316 = vmatpush1.bf16.msra.mxu0 0
  %1317 = vmatprep.subr.bf16.mxu0 0
  %1318 = vmatpush1.bf16.msra.mxu0 0
  %1319 = vmatprep.subr.bf16.mxu0 0
  %1320 = vmatpush1.bf16.msra.mxu0 0
  %1321 = vmatprep.mubr.bf16.mxu0 0
  %1322 = vmatmul.mubr.bf16.gmra.mrb[0].mxu0 %v1269
  %v1323 = vpop.f32.mrb[0].mxu0
  %v1324 = vadd.f32 0.0, %v1323
  %v1325 = vpop.f32.mrb[0].mxu0
  %v1326 = vadd.f32 0.0, %v1325
  %v1327 = vpop.f32.mrb[0].mxu0
  %v1328 = vadd.f32 0.0, %v1327
  %v1329 = vpop.f32.mrb[0].mxu0
  %v1330 = vadd.f32 0.0, %v1329
  %1331 = vdwg.mxu0
  %1332 = vmatprep.subr.bf16.mxu0 0
  %1333 = vmatpush1.bf16.msra.mxu0 %v498
  %1334 = vmatprep.subr.bf16.mxu0 0
  %1335 = vmatpush1.bf16.msra.mxu0 %v501
  %1336 = vmatprep.subr.bf16.mxu0 0
  %1337 = vmatpush1.bf16.msra.mxu0 %v504
  %1338 = vmatprep.subr.bf16.mxu0 0
  %1339 = vmatpush1.bf16.msra.mxu0 %v507
  %1340 = vmatprep.subr.bf16.mxu0 0
  %1341 = vmatpush1.bf16.msra.mxu0 %v510
  %1342 = vmatprep.subr.bf16.mxu0 0
  %1343 = vmatpush1.bf16.msra.mxu0 %v513
  %1344 = vmatprep.subr.bf16.mxu0 0
  %1345 = vmatpush1.bf16.msra.mxu0 %v516
  %1346 = vmatprep.subr.bf16.mxu0 0
  %1347 = vmatpush1.bf16.msra.mxu0 %v519
  %1348 = vmatprep.subr.bf16.mxu0 0
  %1349 = vmatpush1.bf16.msra.mxu0 0
  %1350 = vmatprep.subr.bf16.mxu0 0
  %1351 = vmatpush1.bf16.msra.mxu0 0
  %1352 = vmatprep.subr.bf16.mxu0 0
  %1353 = vmatpush1.bf16.msra.mxu0 0
  %1354 = vmatprep.subr.bf16.mxu0 0
  %1355 = vmatpush1.bf16.msra.mxu0 0
  %1356 = vmatprep.subr.bf16.mxu0 0
  %1357 = vmatpush1.bf16.msra.mxu0 0
  %1358 = vmatprep.subr.bf16.mxu0 0
  %1359 = vmatpush1.bf16.msra.mxu0 0
  %1360 = vmatprep.subr.bf16.mxu0 0
  %1361 = vmatpush1.bf16.msra.mxu0 0
  %1362 = vmatprep.subr.bf16.mxu0 0
  %1363 = vmatpush1.bf16.msra.mxu0 0
  %1364 = vmatprep.mubr.bf16.mxu0 0
  %1365 = vmatmul.mubr.bf16.gmra.mrb[0].mxu0 %v1269
  %v1366 = vpop.f32.mrb[0].mxu0
  %v1367 = vadd.f32 0.0, %v1366
  %v1368 = vpop.f32.mrb[0].mxu0
  %v1369 = vpop.f32.mrb[0].mxu0
  %v1370 = vadd.f32 0.0, %v1369
  %v1371 = vpop.f32.mrb[0].mxu0
  %1372 = vdwg.mxu0
  %v1373 = vadd.f32 %v1283, %v1324
  %v1374 = vadd.f32 %v1286, %v1328
  %v1375 = vxor.u32 %v1373, 2147483648
  %v1376 = vxor.u32 %v1374, 2147483648
  %v1377 = vmul.f32 %v1375, 1.442695
  %v1378 = vpow.pop %v1377
  %v1379 = vmul.f32 %v1376, 1.442695
  %v1380 = vpow.pop %v1379
  %v1381 = vadd.f32 %v1378, 1.0
  %v1382 = vadd.f32 %v1380, 1.0
  %v1383 = vrcp.pop %v1381
  %v1384 = vmul.f32 1.0, %v1383
  %v1385 = vrcp.pop %v1382
  %v1386 = vmul.f32 1.0, %v1385
  %v1387 = vadd.f32 %v1284, %v1326
  %v1388 = vadd.f32 %v1287, %v1330
  %v1389 = vxor.u32 %v1387, 2147483648
  %v1390 = vxor.u32 %v1388, 2147483648
  %v1391 = vmul.f32 %v1389, 1.442695
  %v1392 = vpow.pop %v1391
  %v1393 = vmul.f32 %v1390, 1.442695
  %v1394 = vpow.pop %v1393
  %v1395 = vadd.f32 %v1392, 1.0
  %v1396 = vadd.f32 %v1394, 1.0
  %v1397 = vrcp.pop %v1395
  %v1398 = vmul.f32 1.0, %v1397
  %v1399 = vrcp.pop %v1396
  %v1400 = vmul.f32 1.0, %v1399
  %v1401 = vadd.f32 %v1367, %v660
  %v1402 = vadd.f32 %v1370, %v660
  %v1403 = vmul.f32 %v1384, %v1401
  %v1404 = vmul.f32 %v1386, %v1402
  %v1405 = vadd.f32 %v1285, %v1403
  %v1406 = vadd.f32 %v1288, %v1404
  %v1407 = vtanh.pop %v1405
  %v1408 = vtanh.pop %v1406
  %v1409 = vsub.f32 1.0, %v1398
  %v1410 = vsub.f32 1.0, %v1400
  %v1411 = vmul.f32 %v1409, %v1407
  %v1412 = vmul.f32 %v1410, %v1408
  %v1413 = vmul.f32 %v1398, %v1267
  %v1414 = vmul.f32 %v1400, %v1268
  %v1415 = vadd.f32 %v1411, %v1413
  %v1416 = vadd.f32 %v1412, %v1414
  %v1417 = vpack.c.bf16 %v1416, %v1415
  %v1419 = vunpack.c.l.b16 %v1417
  %v1420 = vunpack.c.h.b16 %v1417
  %v1421 = vpack.c.b16 %v1419, %v1419
  %v1422 = vpack.c.b16 %v1420, %v1420
  %s1425 = scalar_lea.vmem %s5, 40
  %1426 = vst [vmem:[%s1425] sm:$0xf] %v1421
  %1427 = vst [vmem:[%s1425 + $0x4] sm:$0xf] %v1422
  %s1428 = smul.u32 12, 3
  %s1429 = smul.addr %s1428, 8
  %s1430 = scalar_lea.vmem [#allocation3], %s1429
  %v1431 = vld [vmem:[%s1430] sm:$0xff]
  %v1432 = vld [vmem:[%s1430 + $0x8] sm:$0xff]
  %v1433 = vld [vmem:[%s1430 + $0x10] sm:$0xff]
  %v1434 = vld [vmem:[%s1430 + $0x18] sm:$0xff]
  %v1435 = vld [vmem:[%s1430 + $0x20] sm:$0xff]
  %v1436 = vld [vmem:[%s1430 + $0x28] sm:$0xff]
  %1437 = vmatprep.subr.bf16.mxu0 %v497
  %1438 = vmatpush1.bf16.msra.mxu0 %v496
  %1439 = vmatprep.subr.bf16.mxu0 %v500
  %1440 = vmatpush1.bf16.msra.mxu0 %v499
  %1441 = vmatprep.subr.bf16.mxu0 %v503
  %1442 = vmatpush1.bf16.msra.mxu0 %v502
  %1443 = vmatprep.subr.bf16.mxu0 %v506
  %1444 = vmatpush1.bf16.msra.mxu0 %v505
  %1445 = vmatprep.subr.bf16.mxu0 %v509
  %1446 = vmatpush1.bf16.msra.mxu0 %v508
  %1447 = vmatprep.subr.bf16.mxu0 %v512
  %1448 = vmatpush1.bf16.msra.mxu0 %v511
  %1449 = vmatprep.subr.bf16.mxu0 %v515
  %1450 = vmatpush1.bf16.msra.mxu0 %v514
  %1451 = vmatprep.subr.bf16.mxu0 %v518
  %1452 = vmatpush1.bf16.msra.mxu0 %v517
  %1453 = vmatprep.subr.bf16.mxu0 0
  %1454 = vmatpush1.bf16.msra.mxu0 0
  %1455 = vmatprep.subr.bf16.mxu0 0
  %1456 = vmatpush1.bf16.msra.mxu0 0
  %1457 = vmatprep.subr.bf16.mxu0 0
  %1458 = vmatpush1.bf16.msra.mxu0 0
  %1459 = vmatprep.subr.bf16.mxu0 0
  %1460 = vmatpush1.bf16.msra.mxu0 0
  %1461 = vmatprep.subr.bf16.mxu0 0
  %1462 = vmatpush1.bf16.msra.mxu0 0
  %1463 = vmatprep.subr.bf16.mxu0 0
  %1464 = vmatpush1.bf16.msra.mxu0 0
  %1465 = vmatprep.subr.bf16.mxu0 0
  %1466 = vmatpush1.bf16.msra.mxu0 0
  %1467 = vmatprep.subr.bf16.mxu0 0
  %1468 = vmatpush1.bf16.msra.mxu0 0
  %1469 = vmatprep.mubr.bf16.mxu0 0
  %1470 = vmatmul.mubr.bf16.gmra.mrb[0].mxu0 %v1417
  %v1471 = vpop.f32.mrb[0].mxu0
  %v1472 = vadd.f32 0.0, %v1471
  %v1473 = vpop.f32.mrb[0].mxu0
  %v1474 = vadd.f32 0.0, %v1473
  %v1475 = vpop.f32.mrb[0].mxu0
  %v1476 = vadd.f32 0.0, %v1475
  %v1477 = vpop.f32.mrb[0].mxu0
  %v1478 = vadd.f32 0.0, %v1477
  %1479 = vdwg.mxu0
  %1480 = vmatprep.subr.bf16.mxu0 0
  %1481 = vmatpush1.bf16.msra.mxu0 %v498
  %1482 = vmatprep.subr.bf16.mxu0 0
  %1483 = vmatpush1.bf16.msra.mxu0 %v501
  %1484 = vmatprep.subr.bf16.mxu0 0
  %1485 = vmatpush1.bf16.msra.mxu0 %v504
  %1486 = vmatprep.subr.bf16.mxu0 0
  %1487 = vmatpush1.bf16.msra.mxu0 %v507
  %1488 = vmatprep.subr.bf16.mxu0 0
  %1489 = vmatpush1.bf16.msra.mxu0 %v510
  %1490 = vmatprep.subr.bf16.mxu0 0
  %1491 = vmatpush1.bf16.msra.mxu0 %v513
  %1492 = vmatprep.subr.bf16.mxu0 0
  %1493 = vmatpush1.bf16.msra.mxu0 %v516
  %1494 = vmatprep.subr.bf16.mxu0 0
  %1495 = vmatpush1.bf16.msra.mxu0 %v519
  %1496 = vmatprep.subr.bf16.mxu0 0
  %1497 = vmatpush1.bf16.msra.mxu0 0
  %1498 = vmatprep.subr.bf16.mxu0 0
  %1499 = vmatpush1.bf16.msra.mxu0 0
  %1500 = vmatprep.subr.bf16.mxu0 0
  %1501 = vmatpush1.bf16.msra.mxu0 0
  %1502 = vmatprep.subr.bf16.mxu0 0
  %1503 = vmatpush1.bf16.msra.mxu0 0
  %1504 = vmatprep.subr.bf16.mxu0 0
  %1505 = vmatpush1.bf16.msra.mxu0 0
  %1506 = vmatprep.subr.bf16.mxu0 0
  %1507 = vmatpush1.bf16.msra.mxu0 0
  %1508 = vmatprep.subr.bf16.mxu0 0
  %1509 = vmatpush1.bf16.msra.mxu0 0
  %1510 = vmatprep.subr.bf16.mxu0 0
  %1511 = vmatpush1.bf16.msra.mxu0 0
  %1512 = vmatprep.mubr.bf16.mxu0 0
  %1513 = vmatmul.mubr.bf16.gmra.mrb[0].mxu0 %v1417
  %v1514 = vpop.f32.mrb[0].mxu0
  %v1515 = vadd.f32 0.0, %v1514
  %v1516 = vpop.f32.mrb[0].mxu0
  %v1517 = vpop.f32.mrb[0].mxu0
  %v1518 = vadd.f32 0.0, %v1517
  %v1519 = vpop.f32.mrb[0].mxu0
  %1520 = vdwg.mxu0
  %v1521 = vadd.f32 %v1431, %v1472
  %v1522 = vadd.f32 %v1434, %v1476
  %v1523 = vxor.u32 %v1521, 2147483648
  %v1524 = vxor.u32 %v1522, 2147483648
  %v1525 = vmul.f32 %v1523, 1.442695
  %v1526 = vpow.pop %v1525
  %v1527 = vmul.f32 %v1524, 1.442695
  %v1528 = vpow.pop %v1527
  %v1529 = vadd.f32 %v1526, 1.0
  %v1530 = vadd.f32 %v1528, 1.0
  %v1531 = vrcp.pop %v1529
  %v1532 = vmul.f32 1.0, %v1531
  %v1533 = vrcp.pop %v1530
  %v1534 = vmul.f32 1.0, %v1533
  %v1535 = vadd.f32 %v1432, %v1474
  %v1536 = vadd.f32 %v1435, %v1478
  %v1537 = vxor.u32 %v1535, 2147483648
  %v1538 = vxor.u32 %v1536, 2147483648
  %v1539 = vmul.f32 %v1537, 1.442695
  %v1540 = vpow.pop %v1539
  %v1541 = vmul.f32 %v1538, 1.442695
  %v1542 = vpow.pop %v1541
  %v1543 = vadd.f32 %v1540, 1.0
  %v1544 = vadd.f32 %v1542, 1.0
  %v1545 = vrcp.pop %v1543
  %v1546 = vmul.f32 1.0, %v1545
  %v1547 = vrcp.pop %v1544
  %v1548 = vmul.f32 1.0, %v1547
  %v1549 = vadd.f32 %v1515, %v660
  %v1550 = vadd.f32 %v1518, %v660
  %v1551 = vmul.f32 %v1532, %v1549
  %v1552 = vmul.f32 %v1534, %v1550
  %v1553 = vadd.f32 %v1433, %v1551
  %v1554 = vadd.f32 %v1436, %v1552
  %v1555 = vtanh.pop %v1553
  %v1556 = vtanh.pop %v1554
  %v1557 = vsub.f32 1.0, %v1546
  %v1558 = vsub.f32 1.0, %v1548
  %v1559 = vmul.f32 %v1557, %v1555
  %v1560 = vmul.f32 %v1558, %v1556
  %v1561 = vmul.f32 %v1546, %v1415
  %v1562 = vmul.f32 %v1548, %v1416
  %v1563 = vadd.f32 %v1559, %v1561
  %v1564 = vadd.f32 %v1560, %v1562
  %v1565 = vpack.c.bf16 %v1564, %v1563
  %v1567 = vunpack.c.l.b16 %v1565
  %v1568 = vunpack.c.h.b16 %v1565
  %v1569 = vpack.c.b16 %v1567, %v1567
  %v1570 = vpack.c.b16 %v1568, %v1568
  %s1573 = scalar_lea.vmem %s5, 48
  %1574 = vst [vmem:[%s1573] sm:$0xf] %v1569
  %1575 = vst [vmem:[%s1573 + $0x4] sm:$0xf] %v1570
  %s1576 = smul.u32 14, 3
  %s1577 = smul.addr %s1576, 8
  %s1578 = scalar_lea.vmem [#allocation3], %s1577
  %v1579 = vld [vmem:[%s1578] sm:$0xff]
  %v1580 = vld [vmem:[%s1578 + $0x8] sm:$0xff]
  %v1581 = vld [vmem:[%s1578 + $0x10] sm:$0xff]
  %v1582 = vld [vmem:[%s1578 + $0x18] sm:$0xff]
  %v1583 = vld [vmem:[%s1578 + $0x20] sm:$0xff]
  %v1584 = vld [vmem:[%s1578 + $0x28] sm:$0xff]
  %1585 = vmatprep.subr.bf16.mxu0 %v497
  %1586 = vmatpush1.bf16.msra.mxu0 %v496
  %1587 = vmatprep.subr.bf16.mxu0 %v500
  %1588 = vmatpush1.bf16.msra.mxu0 %v499
  %1589 = vmatprep.subr.bf16.mxu0 %v503
  %1590 = vmatpush1.bf16.msra.mxu0 %v502
  %1591 = vmatprep.subr.bf16.mxu0 %v506
  %1592 = vmatpush1.bf16.msra.mxu0 %v505
  %1593 = vmatprep.subr.bf16.mxu0 %v509
  %1594 = vmatpush1.bf16.msra.mxu0 %v508
  %1595 = vmatprep.subr.bf16.mxu0 %v512
  %1596 = vmatpush1.bf16.msra.mxu0 %v511
  %1597 = vmatprep.subr.bf16.mxu0 %v515
  %1598 = vmatpush1.bf16.msra.mxu0 %v514
  %1599 = vmatprep.subr.bf16.mxu0 %v518
  %1600 = vmatpush1.bf16.msra.mxu0 %v517
  %1601 = vmatprep.subr.bf16.mxu0 0
  %1602 = vmatpush1.bf16.msra.mxu0 0
  %1603 = vmatprep.subr.bf16.mxu0 0
  %1604 = vmatpush1.bf16.msra.mxu0 0
  %1605 = vmatprep.subr.bf16.mxu0 0
  %1606 = vmatpush1.bf16.msra.mxu0 0
  %1607 = vmatprep.subr.bf16.mxu0 0
  %1608 = vmatpush1.bf16.msra.mxu0 0
  %1609 = vmatprep.subr.bf16.mxu0 0
  %1610 = vmatpush1.bf16.msra.mxu0 0
  %1611 = vmatprep.subr.bf16.mxu0 0
  %1612 = vmatpush1.bf16.msra.mxu0 0
  %1613 = vmatprep.subr.bf16.mxu0 0
  %1614 = vmatpush1.bf16.msra.mxu0 0
  %1615 = vmatprep.subr.bf16.mxu0 0
  %1616 = vmatpush1.bf16.msra.mxu0 0
  %1617 = vmatprep.mubr.bf16.mxu0 0
  %1618 = vmatmul.mubr.bf16.gmra.mrb[0].mxu0 %v1565
  %v1619 = vpop.f32.mrb[0].mxu0
  %v1620 = vadd.f32 0.0, %v1619
  %v1621 = vpop.f32.mrb[0].mxu0
  %v1622 = vadd.f32 0.0, %v1621
  %v1623 = vpop.f32.mrb[0].mxu0
  %v1624 = vadd.f32 0.0, %v1623
  %v1625 = vpop.f32.mrb[0].mxu0
  %v1626 = vadd.f32 0.0, %v1625
  %1627 = vdwg.mxu0
  %1628 = vmatprep.subr.bf16.mxu0 0
  %1629 = vmatpush1.bf16.msra.mxu0 %v498
  %1630 = vmatprep.subr.bf16.mxu0 0
  %1631 = vmatpush1.bf16.msra.mxu0 %v501
  %1632 = vmatprep.subr.bf16.mxu0 0
  %1633 = vmatpush1.bf16.msra.mxu0 %v504
  %1634 = vmatprep.subr.bf16.mxu0 0
  %1635 = vmatpush1.bf16.msra.mxu0 %v507
  %1636 = vmatprep.subr.bf16.mxu0 0
  %1637 = vmatpush1.bf16.msra.mxu0 %v510
  %1638 = vmatprep.subr.bf16.mxu0 0
  %1639 = vmatpush1.bf16.msra.mxu0 %v513
  %1640 = vmatprep.subr.bf16.mxu0 0
  %1641 = vmatpush1.bf16.msra.mxu0 %v516
  %1642 = vmatprep.subr.bf16.mxu0 0
  %1643 = vmatpush1.bf16.msra.mxu0 %v519
  %1644 = vmatprep.subr.bf16.mxu0 0
  %1645 = vmatpush1.bf16.msra.mxu0 0
  %1646 = vmatprep.subr.bf16.mxu0 0
  %1647 = vmatpush1.bf16.msra.mxu0 0
  %1648 = vmatprep.subr.bf16.mxu0 0
  %1649 = vmatpush1.bf16.msra.mxu0 0
  %1650 = vmatprep.subr.bf16.mxu0 0
  %1651 = vmatpush1.bf16.msra.mxu0 0
  %1652 = vmatprep.subr.bf16.mxu0 0
  %1653 = vmatpush1.bf16.msra.mxu0 0
  %1654 = vmatprep.subr.bf16.mxu0 0
  %1655 = vmatpush1.bf16.msra.mxu0 0
  %1656 = vmatprep.subr.bf16.mxu0 0
  %1657 = vmatpush1.bf16.msra.mxu0 0
  %1658 = vmatprep.subr.bf16.mxu0 0
  %1659 = vmatpush1.bf16.msra.mxu0 0
  %1660 = vmatprep.mubr.bf16.mxu0 0
  %1661 = vmatmul.mubr.bf16.gmra.mrb[0].mxu0 %v1565
  %v1662 = vpop.f32.mrb[0].mxu0
  %v1663 = vadd.f32 0.0, %v1662
  %v1664 = vpop.f32.mrb[0].mxu0
  %v1665 = vpop.f32.mrb[0].mxu0
  %v1666 = vadd.f32 0.0, %v1665
  %v1667 = vpop.f32.mrb[0].mxu0
  %1668 = vdwg.mxu0
  %v1669 = vadd.f32 %v1579, %v1620
  %v1670 = vadd.f32 %v1582, %v1624
  %v1671 = vxor.u32 %v1669, 2147483648
  %v1672 = vxor.u32 %v1670, 2147483648
  %v1673 = vmul.f32 %v1671, 1.442695
  %v1674 = vpow.pop %v1673
  %v1675 = vmul.f32 %v1672, 1.442695
  %v1676 = vpow.pop %v1675
  %v1677 = vadd.f32 %v1674, 1.0
  %v1678 = vadd.f32 %v1676, 1.0
  %v1679 = vrcp.pop %v1677
  %v1680 = vmul.f32 1.0, %v1679
  %v1681 = vrcp.pop %v1678
  %v1682 = vmul.f32 1.0, %v1681
  %v1683 = vadd.f32 %v1580, %v1622
  %v1684 = vadd.f32 %v1583, %v1626
  %v1685 = vxor.u32 %v1683, 2147483648
  %v1686 = vxor.u32 %v1684, 2147483648
  %v1687 = vmul.f32 %v1685, 1.442695
  %v1688 = vpow.pop %v1687
  %v1689 = vmul.f32 %v1686, 1.442695
  %v1690 = vpow.pop %v1689
  %v1691 = vadd.f32 %v1688, 1.0
  %v1692 = vadd.f32 %v1690, 1.0
  %v1693 = vrcp.pop %v1691
  %v1694 = vmul.f32 1.0, %v1693
  %v1695 = vrcp.pop %v1692
  %v1696 = vmul.f32 1.0, %v1695
  %v1697 = vadd.f32 %v1663, %v660
  %v1698 = vadd.f32 %v1666, %v660
  %v1699 = vmul.f32 %v1680, %v1697
  %v1700 = vmul.f32 %v1682, %v1698
  %v1701 = vadd.f32 %v1581, %v1699
  %v1702 = vadd.f32 %v1584, %v1700
  %v1703 = vtanh.pop %v1701
  %v1704 = vtanh.pop %v1702
  %v1705 = vsub.f32 1.0, %v1694
  %v1706 = vsub.f32 1.0, %v1696
  %v1707 = vmul.f32 %v1705, %v1703
  %v1708 = vmul.f32 %v1706, %v1704
  %v1709 = vmul.f32 %v1694, %v1563
  %v1710 = vmul.f32 %v1696, %v1564
  %v1711 = vadd.f32 %v1707, %v1709
  %v1712 = vadd.f32 %v1708, %v1710
  %v1713 = vpack.c.bf16 %v1712, %v1711
  %v1715 = vunpack.c.l.b16 %v1713
  %v1716 = vunpack.c.h.b16 %v1713
  %v1717 = vpack.c.b16 %v1715, %v1715
  %v1718 = vpack.c.b16 %v1716, %v1716
  %s1721 = scalar_lea.vmem %s5, 56
  %1722 = vst [vmem:[%s1721] sm:$0xf] %v1717
  %1723 = vst [vmem:[%s1721 + $0x4] sm:$0xf] %v1718
  %1724 = vst [vmem:[#allocation2] sm:$0xff] %v1711
  %1725 = vst [vmem:[#allocation2 + $0x8] sm:$0xff] %v1712
  // Predicated region
  $region26: #{_lambda_.3} parent=0 // pred_check
    _
  $region27: #{_lambda_.3} parent=0 // pred_check_branch
    %1727 = sbr.rel (0) target = $region29
  $region28: #{_lambda_.3} parent=0 // pred_region
    _
  $region29: #{_lambda_.3} parent=0 // pred_fallthru
    _
  // Predicated region
  $region30: #{_lambda_.3} parent=0 // pred_check
    _
  $region31: #{_lambda_.3} parent=0 // pred_check_branch
    %1729 = sbr.rel (0) target = $region33
  $region32: #{_lambda_.3} parent=0 // pred_region
    _
  $region33: #{_lambda_.3} parent=0 // pred_fallthru
    _

</llo_original>
